<compile_context>
chip_gen: v7x
topology: tpu7x:2x2x1
jax: 0.10.0
libtpu: 0.0.40
codegen_flags: <defaults>
</compile_context>

<pallas_src>
import jax
import jax.numpy as jnp
from jax.experimental import pallas as pl
from jax.experimental.pallas import tpu as pltpu


# ---------------------------------------------------------------------------
# Kernels
# ---------------------------------------------------------------------------
def _conv1x1_bn_relu_kernel(x_ref, w_ref, sb_ref, o_ref):
    """1x1 conv: (Cout,Cin)@(Cin,L) + folded BN + ReLU.  Lane-dense output."""
    y = jnp.dot(w_ref[...], x_ref[...], preferred_element_type=jnp.float32)
    y = y * sb_ref[:, 0:1] + sb_ref[:, 1:2]
    o_ref[...] = jnp.maximum(y, 0.0).astype(o_ref.dtype)


def _pool_conv_bn_relu_kernel(x_ref, w_ref, sb_ref, o_ref):
    """AdaptiveAvgPool2d(1) -> 1x1 conv -> BN -> ReLU -> upsample to HxW.

    conv(mean(x)) == mean(conv(x)) (1x1 conv is linear), so we reuse the
    lane-dense matmul and reduce over lanes afterwards.  Bilinear upsampling
    of a 1x1 map (align_corners=False) is a constant broadcast.
    """
    L = x_ref.shape[-1]
    y = jnp.dot(w_ref[...], x_ref[...], preferred_element_type=jnp.float32)
    m = jnp.sum(y, axis=1, keepdims=True) * (1.0 / L)            # (Cout, 1)
    m = jnp.maximum(m * sb_ref[:, 0:1] + sb_ref[:, 1:2], 0.0)
    o_ref[...] = jnp.broadcast_to(m, y.shape).astype(o_ref.dtype)


def _down2_residual_kernel(res_ref, x_ref, w_ref, sb_ref, o_ref):
    """out = relu(x + relu(BN(conv1x1(res)))); down_2 Dropout = id (eval)."""
    y = jnp.dot(w_ref[...], res_ref[...], preferred_element_type=jnp.float32)
    y = jnp.maximum(y * sb_ref[:, 0:1] + sb_ref[:, 1:2], 0.0)
    o_ref[...] = jnp.maximum(x_ref[...] + y, 0.0).astype(o_ref.dtype)


def _make_branch_kernel(C, H, W, dils):
    """One fused DASPP branch: 3 cascaded dilated 3x3 convs + concats + down_1."""
    L = H * W

    def dilated_conv(feat_ref, row0, w_ref, sb_ref, pad_ref, patch_ref, d):
        """3x3 conv, dilation=padding=d, on feat_ref[row0:4C] (cin channels)."""
        cin = 4 * C - row0
        padlen = d * (W + 1)
        # Stage input into a zero-padded flat buffer: a tap that overflows in
        # the H direction then reads zeros; W-direction overflow is masked.
        pad_ref[:, 0:padlen] = jnp.zeros((cin, padlen), jnp.float32)
        pad_ref[:, padlen + L:] = jnp.zeros((cin, padlen), jnp.float32)
        pad_ref[:, padlen:padlen + L] = feat_ref[row0:4 * C, :]
        col = jax.lax.broadcasted_iota(jnp.int32, (cin, L), 1) % W
        # im2col: 9 contiguous lane-window slabs -> one (9*cin, L) patch.
        for ky in range(3):
            for kx in range(3):
                shift = (ky - 1) * d * W + (kx - 1) * d
                slab = pad_ref[:, padlen + shift:padlen + shift + L]
                if kx == 0:          # tap looks d pixels to the left
                    slab = jnp.where(col >= d, slab, 0.0)
                elif kx == 2:        # tap looks d pixels to the right
                    slab = jnp.where(col < W - d, slab, 0.0)
                tap = ky * 3 + kx
                patch_ref[tap * cin:(tap + 1) * cin, :] = slab
        # Single im2col matmul, K = 9*cin (not 9 tiny K=cin matmuls).
        acc = jnp.dot(w_ref[...], patch_ref[...],
                      preferred_element_type=jnp.float32)        # (C, L)
        return jnp.maximum(acc * sb_ref[:, 0:1] + sb_ref[:, 1:2], 0.0)

    def kernel(x_ref, w0_ref, sb0_ref, w1_ref, sb1_ref, w2_ref, sb2_ref,
               wd_ref, sbd_ref, o_ref,
               feat_ref, pad0_ref, pad1_ref, pad2_ref,
               patch0_ref, patch1_ref, patch2_ref):
        # Feature buffer rows, newest first: [a3 | a2 | a1 | x]  (torch.cat order)
        feat_ref[3 * C:4 * C, :] = x_ref[...].astype(jnp.float32)
        a1 = dilated_conv(feat_ref, 3 * C, w0_ref, sb0_ref,
                          pad0_ref, patch0_ref, dils[0])
        feat_ref[2 * C:3 * C, :] = a1
        a2 = dilated_conv(feat_ref, 2 * C, w1_ref, sb1_ref,
                          pad1_ref, patch1_ref, dils[1])
        feat_ref[1 * C:2 * C, :] = a2
        a3 = dilated_conv(feat_ref, 1 * C, w2_ref, sb2_ref,
                          pad2_ref, patch2_ref, dils[2])
        feat_ref[0:C, :] = a3
        # down_1: 1x1 conv (4C -> C) + BN + ReLU (Dropout = identity, eval).
        y = jnp.dot(wd_ref[...], feat_ref[...],
                    preferred_element_type=jnp.float32)
        y = jnp.maximum(y * sbd_ref[:, 0:1] + sbd_ref[:, 1:2], 0.0)
        o_ref[...] = y.astype(o_ref.dtype)

    return kernel


# ---------------------------------------------------------------------------
# pallas_call wrappers
# ---------------------------------------------------------------------------
_PARALLEL = pltpu.CompilerParams(dimension_semantics=("parallel",))


def _full_spec(a):
    nd = a.ndim
    return pl.BlockSpec(a.shape, lambda *_: (0,) * nd)


def _conv1x1_bn_relu(xf, w, sb):
    N, Cin, L = xf.shape
    Cout = w.shape[0]
    return pl.pallas_call(
        _conv1x1_bn_relu_kernel,
        out_shape=jax.ShapeDtypeStruct((N, Cout, L), xf.dtype),
        grid=(N,),
        in_specs=[pl.BlockSpec((None, Cin, L), lambda n: (n, 0, 0)),
                  _full_spec(w), _full_spec(sb)],
        out_specs=pl.BlockSpec((None, Cout, L), lambda n: (n, 0, 0)),
        compiler_params=_PARALLEL,
    )(xf, w, sb)


def _pool_conv_bn_relu(xf, w, sb):
    N, Cin, L = xf.shape
    Cout = w.shape[0]
    return pl.pallas_call(
        _pool_conv_bn_relu_kernel,
        out_shape=jax.ShapeDtypeStruct((N, Cout, L), xf.dtype),
        grid=(N,),
        in_specs=[pl.BlockSpec((None, Cin, L), lambda n: (n, 0, 0)),
                  _full_spec(w), _full_spec(sb)],
        out_specs=pl.BlockSpec((None, Cout, L), lambda n: (n, 0, 0)),
        compiler_params=_PARALLEL,
    )(xf, w, sb)


def _down2_residual(res, xf, w, sb):
    N, Cres, L = res.shape
    C = xf.shape[1]
    return pl.pallas_call(
        _down2_residual_kernel,
        out_shape=jax.ShapeDtypeStruct((N, C, L), xf.dtype),
        grid=(N,),
        in_specs=[pl.BlockSpec((None, Cres, L), lambda n: (n, 0, 0)),
                  pl.BlockSpec((None, C, L), lambda n: (n, 0, 0)),
                  _full_spec(w), _full_spec(sb)],
        out_specs=pl.BlockSpec((None, C, L), lambda n: (n, 0, 0)),
        compiler_params=_PARALLEL,
    )(res, xf, w, sb)


def _branch(xf, H, W, dils, w0, sb0, w1, sb1, w2, sb2, wd, sbd):
    N, C, L = xf.shape
    d0, d1, d2 = dils
    return pl.pallas_call(
        _make_branch_kernel(C, H, W, (d0, d1, d2)),
        out_shape=jax.ShapeDtypeStruct((N, C, L), xf.dtype),
        grid=(N,),
        in_specs=[pl.BlockSpec((None, C, L), lambda n: (n, 0, 0)),
                  _full_spec(w0), _full_spec(sb0),
                  _full_spec(w1), _full_spec(sb1),
                  _full_spec(w2), _full_spec(sb2),
                  _full_spec(wd), _full_spec(sbd)],
        out_specs=pl.BlockSpec((None, C, L), lambda n: (n, 0, 0)),
        scratch_shapes=[
            pltpu.VMEM((4 * C, L), jnp.float32),                      # feat
            pltpu.VMEM((1 * C, L + 2 * d0 * (W + 1)), jnp.float32),   # pad lvl0
            pltpu.VMEM((2 * C, L + 2 * d1 * (W + 1)), jnp.float32),   # pad lvl1
            pltpu.VMEM((3 * C, L + 2 * d2 * (W + 1)), jnp.float32),   # pad lvl2
            pltpu.VMEM((9 * C, L), jnp.float32),                      # patch lvl0
            pltpu.VMEM((18 * C, L), jnp.float32),                     # patch lvl1
            pltpu.VMEM((27 * C, L), jnp.float32),                     # patch lvl2
        ],
        compiler_params=_PARALLEL,
    )(xf, w0, sb0, w1, sb1, w2, sb2, wd, sbd)


# ---------------------------------------------------------------------------
# Parameter folding / relayout (plain JAX glue) and the DASPP forward
# ---------------------------------------------------------------------------
def _fold_bn(p, eps=1e-5):
    scale = p["gamma"] / jnp.sqrt(p["var"] + eps)
    bias = p["beta"] - p["mean"] * scale
    return jnp.stack([scale, bias], axis=1).astype(jnp.float32)   # (Cout, 2)


def _w3x3(w):   # (Cout, Cin, 3, 3) -> (Cout, 9*Cin), column = (ky*3+kx)*Cin + ci
    cout, cin = w.shape[0], w.shape[1]
    return jnp.transpose(w, (0, 2, 3, 1)).reshape(cout, 9 * cin).astype(jnp.float32)


def _w1x1(w):   # (Cout, Cin, 1, 1) -> (Cout, Cin)
    return w.reshape(w.shape[0], w.shape[1]).astype(jnp.float32)


def daspp_forward(x_nchw, params, atrous_rates, eps=1e-5):
    """DASPP forward (eval mode).  Input/output are NCHW, like PyTorch."""
    N, C, H, W = x_nchw.shape
    L = H * W
    xf = x_nchw.reshape(N, C, L).astype(jnp.float32)   # free reshape, no transpose

    wd1, sbd1 = _w1x1(params["down1"]["w"]), _fold_bn(params["down1"], eps)
    branch_outs = []
    for b in range(3):
        lv = params["branch"][b]
        branch_outs.append(_branch(
            xf, H, W, tuple(int(d) for d in atrous_rates[b]),
            _w3x3(lv[0]["w"]), _fold_bn(lv[0], eps),
            _w3x3(lv[1]["w"]), _fold_bn(lv[1], eps),
            _w3x3(lv[2]["w"]), _fold_bn(lv[2], eps),
            wd1, sbd1))

    a4 = _conv1x1_bn_relu(xf, _w1x1(params["conv0"]["w"]),
                          _fold_bn(params["conv0"], eps))
    a5 = _pool_conv_bn_relu(xf, _w1x1(params["pool"]["w"]),
                            _fold_bn(params["pool"], eps))
    res = jnp.concatenate(branch_outs + [a4, a5], axis=1)         # (N, 5C, L)
    out = _down2_residual(res, xf, _w1x1(params["down2"]["w"]),
                          _fold_bn(params["down2"], eps))
    return out.reshape(N, C, H, W)


# ---------------------------------------------------------------------------
# Pure-JAX reference (lax.conv) mirroring the PyTorch forward, for checking
# ---------------------------------------------------------------------------
def _reference_daspp(x, params, rates, eps=1e-5):
    prec = jax.lax.Precision.HIGHEST

    def bnr(y, p):
        s = p["gamma"] / jnp.sqrt(p["var"] + eps)
        b = p["beta"] - p["mean"] * s
        return jax.nn.relu(y * s.reshape(1, -1, 1, 1) + b.reshape(1, -1, 1, 1))

    def daspp_conv(z, p, d):
        y = jax.lax.conv_general_dilated(
            z, p["w"], window_strides=(1, 1), padding=((d, d), (d, d)),
            rhs_dilation=(d, d), dimension_numbers=("NCHW", "OIHW", "NCHW"),
            precision=prec)
        return bnr(y, p)

    def conv1x1(z, p):
        y = jax.lax.conv_general_dilated(
            z, p["w"], window_strides=(1, 1), padding=((0, 0), (0, 0)),
            dimension_numbers=("NCHW", "OIHW", "NCHW"), precision=prec)
        return bnr(y, p)

    def pooling(z, p):
        m = jnp.mean(z, axis=(2, 3), keepdims=True)
        y = conv1x1(m, p)
        return jnp.broadcast_to(y, (z.shape[0], y.shape[1],
                                    z.shape[2], z.shape[3]))

    cats = []
    for b in range(3):
        lv = params["branch"][b]
        a = daspp_conv(x, lv[0], rates[b][0])
        cat = jnp.concatenate([a, x], axis=1)
        for i in range(1, 3):
            a = daspp_conv(cat, lv[i], rates[b][i])
            cat = jnp.concatenate([a, cat], axis=1)
        cats.append(cat)
    a4 = conv1x1(x, params["conv0"])
    a5 = pooling(x, params["pool"])
    d1 = [conv1x1(c, params["down1"]) for c in cats]   # Dropout = identity (eval)
    res = jnp.concatenate(d1 + [a4, a5], axis=1)
    return jax.nn.relu(x + conv1x1(res, params["down2"]))


# ---------------------------------------------------------------------------
if __name__ == "__main__":
    key = jax.random.PRNGKey(0)
    N, C, H, W = 2, 4, 16, 16            # DASPP requires out_channels == in_channels
    atrous_rates = [[1, 2, 3], [2, 4, 6], [3, 6, 9]]

    def make_bn(k, c):
        k1, k2, k3, k4 = jax.random.split(k, 4)
        return {"gamma": 1.0 + 0.1 * jax.random.normal(k1, (c,), jnp.float32),
                "beta": 0.1 * jax.random.normal(k2, (c,), jnp.float32),
                "mean": 0.1 * jax.random.normal(k3, (c,), jnp.float32),
                "var": 0.5 + jax.random.uniform(k4, (c,), jnp.float32)}

    def make_conv(k, cout, cin, ksz):
        kw, kb = jax.random.split(k)
        std = 0.5 / (cin * ksz * ksz) ** 0.5
        p = {"w": std * jax.random.normal(kw, (cout, cin, ksz, ksz), jnp.float32)}
        p.update(make_bn(kb, cout))
        return p

    keys = jax.random.split(key, 15)
    params = {
        "conv0": make_conv(keys[0], C, C, 1),
        "pool":  make_conv(keys[1], C, C, 1),
        "down1": make_conv(keys[2], C, 4 * C, 1),
        "down2": make_conv(keys[3], C, 5 * C, 1),
        "branch": [[make_conv(keys[4 + 3 * b + i], C, (i + 1) * C, 3)
                    for i in range(3)] for b in range(3)],
    }
    x = jax.random.normal(keys[13], (N, C, H, W), jnp.float32)

    fwd = jax.jit(lambda inp: daspp_forward(inp, params, atrous_rates))
    out = jax.block_until_ready(fwd(x))

    ref = jax.block_until_ready(_reference_daspp(x, params, atrous_rates))
    assert out.shape == (N, C, H, W), out.shape
    max_err = float(jnp.max(jnp.abs(out - ref)))
    assert jnp.allclose(out, ref, atol=1e-3, rtol=1e-3), max_err

    print("KERNEL_OK")
</pallas_src>

<mosaic_0001>
module attributes {stable_mosaic.version = 11 : i64} {
  func.func @_conv1x1_bn_relu_kernel(%arg0: i32, %arg1: memref<1x4x256xf32, #tpu.memory_space<vmem>>, %arg2: memref<4x4xf32, #tpu.memory_space<vmem>>, %arg3: memref<4x2xf32, #tpu.memory_space<vmem>>, %arg4: memref<1x4x256xf32, #tpu.memory_space<vmem>>) attributes {dimension_semantics = [#tpu.dimension_semantics<parallel>], iteration_bounds = array<i64: 2>, scalar_prefetch = 0 : i64, scratch_operands = 0 : i64, tpu.core_type = #tpu.core_type<tc>, window_params = [{transform_indices = @transform_0, window_bounds = array<i64: 1, 4, 256>}, {pipeline_mode = #tpu.pipeline_mode<synchronous>, transform_indices = @transform_1, window_bounds = array<i64: 4, 4>}, {pipeline_mode = #tpu.pipeline_mode<synchronous>, transform_indices = @transform_2, window_bounds = array<i64: 4, 2>}, {transform_indices = @transform_3, window_bounds = array<i64: 1, 4, 256>}]} {
    %c0 = arith.constant 0 : index
    %c0_0 = arith.constant 0 : index
    %0 = vector.load %arg2[%c0, %c0_0] : memref<4x4xf32, #tpu.memory_space<vmem>>, vector<4x4xf32>
    %c0_1 = arith.constant 0 : index
    %c0_2 = arith.constant 0 : index
    %c0_3 = arith.constant 0 : index
    %1 = vector.load %arg1[%c0_1, %c0_2, %c0_3] : memref<1x4x256xf32, #tpu.memory_space<vmem>>, vector<1x4x256xf32>
    %2 = vector.shape_cast %1 : vector<1x4x256xf32> to vector<4x256xf32>
    %cst = arith.constant dense<0.000000e+00> : vector<4x256xf32>
    %3 = tpu.matmul %0, %2, %cst {dimension_numbers = #tpu.dot_dimension_numbers<[1], [0], [0], [1], [0, 0, 1, 1], [], []>} : vector<4x4xf32>, vector<4x256xf32>, vector<4x256xf32> -> vector<4x256xf32>
    %c0_4 = arith.constant 0 : index
    %c0_5 = arith.constant 0 : index
    %4 = vector.load %arg3[%c0_4, %c0_5] : memref<4x2xf32, #tpu.memory_space<vmem>>, vector<4x1xf32>
    %5 = vector.broadcast %4 : vector<4x1xf32> to vector<4x256xf32>
    %6 = arith.mulf %3, %5 : vector<4x256xf32>
    %c0_6 = arith.constant 0 : index
    %c1 = arith.constant 1 : index
    %7 = vector.load %arg3[%c0_6, %c1] : memref<4x2xf32, #tpu.memory_space<vmem>>, vector<4x1xf32>
    %8 = vector.broadcast %7 : vector<4x1xf32> to vector<4x256xf32>
    %9 = arith.addf %6, %8 : vector<4x256xf32>
    %cst_7 = arith.constant 0.000000e+00 : f32
    %10 = vector.broadcast %cst_7 : f32 to vector<4x256xf32>
    %11 = arith.maximumf %9, %10 : vector<4x256xf32>
    %c0_8 = arith.constant 0 : index
    %c0_9 = arith.constant 0 : index
    %c0_10 = arith.constant 0 : index
    %12 = vector.load %arg4[%c0_8, %c0_9, %c0_10] : memref<1x4x256xf32, #tpu.memory_space<vmem>>, vector<1x4x256xf32>
    %13 = vector.shape_cast %12 : vector<1x4x256xf32> to vector<4x256xf32>
    %14 = vector.shape_cast %11 : vector<4x256xf32> to vector<1x4x256xf32>
    tpu.vector_store %arg4[%c0_8, %c0_9, %c0_10], %14 {strides = array<i32>} : memref<1x4x256xf32, #tpu.memory_space<vmem>>, vector<1x4x256xf32>,
    return
  }
  func.func @transform_0(%arg0: i32) -> (i32, i32, i32) {
    %c0_i32 = arith.constant 0 : i32
    %c0_i32_0 = arith.constant 0 : i32
    %c0_i32_1 = arith.constant 0 : i32
    return %arg0, %c0_i32, %c0_i32_0 : i32, i32, i32
  }
  func.func @transform_1(%arg0: i32) -> (i32, i32) {
    %c0_i32 = arith.constant 0 : i32
    %c0_i32_0 = arith.constant 0 : i32
    %c0_i32_1 = arith.constant 0 : i32
    return %c0_i32, %c0_i32_0 : i32, i32
  }
  func.func @transform_2(%arg0: i32) -> (i32, i32) {
    %c0_i32 = arith.constant 0 : i32
    %c0_i32_0 = arith.constant 0 : i32
    %c0_i32_1 = arith.constant 0 : i32
    return %c0_i32, %c0_i32_0 : i32, i32
  }
  func.func @transform_3(%arg0: i32) -> (i32, i32, i32) {
    %c0_i32 = arith.constant 0 : i32
    %c0_i32_0 = arith.constant 0 : i32
    %c0_i32_1 = arith.constant 0 : i32
    return %arg0, %c0_i32, %c0_i32_0 : i32, i32, i32
  }
}

module attributes {stable_mosaic.version = 11 : i64} {
  func.func @_pool_conv_bn_relu_kernel(%arg0: i32, %arg1: memref<1x4x256xf32, #tpu.memory_space<vmem>>, %arg2: memref<4x4xf32, #tpu.memory_space<vmem>>, %arg3: memref<4x2xf32, #tpu.memory_space<vmem>>, %arg4: memref<1x4x256xf32, #tpu.memory_space<vmem>>) attributes {dimension_semantics = [#tpu.dimension_semantics<parallel>], iteration_bounds = array<i64: 2>, scalar_prefetch = 0 : i64, scratch_operands = 0 : i64, tpu.core_type = #tpu.core_type<tc>, window_params = [{transform_indices = @transform_0, window_bounds = array<i64: 1, 4, 256>}, {pipeline_mode = #tpu.pipeline_mode<synchronous>, transform_indices = @transform_1, window_bounds = array<i64: 4, 4>}, {pipeline_mode = #tpu.pipeline_mode<synchronous>, transform_indices = @transform_2, window_bounds = array<i64: 4, 2>}, {transform_indices = @transform_3, window_bounds = array<i64: 1, 4, 256>}]} {
    %c0 = arith.constant 0 : index
    %c0_0 = arith.constant 0 : index
    %0 = vector.load %arg2[%c0, %c0_0] : memref<4x4xf32, #tpu.memory_space<vmem>>, vector<4x4xf32>
    %c0_1 = arith.constant 0 : index
    %c0_2 = arith.constant 0 : index
    %c0_3 = arith.constant 0 : index
    %1 = vector.load %arg1[%c0_1, %c0_2, %c0_3] : memref<1x4x256xf32, #tpu.memory_space<vmem>>, vector<1x4x256xf32>
    %2 = vector.shape_cast %1 : vector<1x4x256xf32> to vector<4x256xf32>
    %cst = arith.constant dense<0.000000e+00> : vector<4x256xf32>
    %3 = tpu.matmul %0, %2, %cst {dimension_numbers = #tpu.dot_dimension_numbers<[1], [0], [0], [1], [0, 0, 1, 1], [], []>} : vector<4x4xf32>, vector<4x256xf32>, vector<4x256xf32> -> vector<4x256xf32>
    %cst_4 = arith.constant dense<0.000000e+00> : vector<4xf32>
    %4 = vector.multi_reduction <add>, %3, %cst_4 [1] : vector<4x256xf32> to vector<4xf32>
    %5 = vector.shape_cast %4 : vector<4xf32> to vector<4x1xf32>
    %cst_5 = arith.constant 3.906250e-03 : f32
    %6 = vector.broadcast %cst_5 : f32 to vector<4x1xf32>
    %7 = arith.mulf %5, %6 : vector<4x1xf32>
    %c0_6 = arith.constant 0 : index
    %c0_7 = arith.constant 0 : index
    %8 = vector.load %arg3[%c0_6, %c0_7] : memref<4x2xf32, #tpu.memory_space<vmem>>, vector<4x1xf32>
    %9 = arith.mulf %7, %8 : vector<4x1xf32>
    %c0_8 = arith.constant 0 : index
    %c1 = arith.constant 1 : index
    %10 = vector.load %arg3[%c0_8, %c1] : memref<4x2xf32, #tpu.memory_space<vmem>>, vector<4x1xf32>
    %11 = arith.addf %9, %10 : vector<4x1xf32>
    %cst_9 = arith.constant 0.000000e+00 : f32
    %12 = vector.broadcast %cst_9 : f32 to vector<4x1xf32>
    %13 = arith.maximumf %11, %12 : vector<4x1xf32>
    %14 = vector.shape_cast %13 : vector<4x1xf32> to vector<4x1xf32>
    %15 = vector.broadcast %14 : vector<4x1xf32> to vector<4x256xf32>
    %c0_10 = arith.constant 0 : index
    %c0_11 = arith.constant 0 : index
    %c0_12 = arith.constant 0 : index
    %16 = vector.load %arg4[%c0_10, %c0_11, %c0_12] : memref<1x4x256xf32, #tpu.memory_space<vmem>>, vector<1x4x256xf32>
    %17 = vector.shape_cast %16 : vector<1x4x256xf32> to vector<4x256xf32>
    %18 = vector.shape_cast %15 : vector<4x256xf32> to vector<1x4x256xf32>
    tpu.vector_store %arg4[%c0_10, %c0_11, %c0_12], %18 {strides = array<i32>} : memref<1x4x256xf32, #tpu.memory_space<vmem>>, vector<1x4x256xf32>,
    return
  }
  func.func @transform_0(%arg0: i32) -> (i32, i32, i32) {
    %c0_i32 = arith.constant 0 : i32
    %c0_i32_0 = arith.constant 0 : i32
    %c0_i32_1 = arith.constant 0 : i32
    return %arg0, %c0_i32, %c0_i32_0 : i32, i32, i32
  }
  func.func @transform_1(%arg0: i32) -> (i32, i32) {
    %c0_i32 = arith.constant 0 : i32
    %c0_i32_0 = arith.constant 0 : i32
    %c0_i32_1 = arith.constant 0 : i32
    return %c0_i32, %c0_i32_0 : i32, i32
  }
  func.func @transform_2(%arg0: i32) -> (i32, i32) {
    %c0_i32 = arith.constant 0 : i32
    %c0_i32_0 = arith.constant 0 : i32
    %c0_i32_1 = arith.constant 0 : i32
    return %c0_i32, %c0_i32_0 : i32, i32
  }
  func.func @transform_3(%arg0: i32) -> (i32, i32, i32) {
    %c0_i32 = arith.constant 0 : i32
    %c0_i32_0 = arith.constant 0 : i32
    %c0_i32_1 = arith.constant 0 : i32
    return %arg0, %c0_i32, %c0_i32_0 : i32, i32, i32
  }
}

module attributes {stable_mosaic.version = 11 : i64} {
  func.func @kernel(%arg0: i32, %arg1: memref<1x4x256xf32, #tpu.memory_space<vmem>>, %arg2: memref<4x36xf32, #tpu.memory_space<vmem>>, %arg3: memref<4x2xf32, #tpu.memory_space<vmem>>, %arg4: memref<4x72xf32, #tpu.memory_space<vmem>>, %arg5: memref<4x2xf32, #tpu.memory_space<vmem>>, %arg6: memref<4x108xf32, #tpu.memory_space<vmem>>, %arg7: memref<4x2xf32, #tpu.memory_space<vmem>>, %arg8: memref<4x16xf32, #tpu.memory_space<vmem>>, %arg9: memref<4x2xf32, #tpu.memory_space<vmem>>, %arg10: memref<1x4x256xf32, #tpu.memory_space<vmem>>, %arg11: memref<16x256xf32, #tpu.memory_space<vmem>>, %arg12: memref<4x358xf32, #tpu.memory_space<vmem>>, %arg13: memref<8x460xf32, #tpu.memory_space<vmem>>, %arg14: memref<12x562xf32, #tpu.memory_space<vmem>>, %arg15: memref<36x256xf32, #tpu.memory_space<vmem>>, %arg16: memref<72x256xf32, #tpu.memory_space<vmem>>, %arg17: memref<108x256xf32, #tpu.memory_space<vmem>>) attributes {dimension_semantics = [#tpu.dimension_semantics<parallel>], iteration_bounds = array<i64: 2>, scalar_prefetch = 0 : i64, scratch_operands = 7 : i64, tpu.core_type = #tpu.core_type<tc>, window_params = [{transform_indices = @transform_0, window_bounds = array<i64: 1, 4, 256>}, {pipeline_mode = #tpu.pipeline_mode<synchronous>, transform_indices = @transform_1, window_bounds = array<i64: 4, 36>}, {pipeline_mode = #tpu.pipeline_mode<synchronous>, transform_indices = @transform_2, window_bounds = array<i64: 4, 2>}, {pipeline_mode = #tpu.pipeline_mode<synchronous>, transform_indices = @transform_3, window_bounds = array<i64: 4, 72>}, {pipeline_mode = #tpu.pipeline_mode<synchronous>, transform_indices = @transform_4, window_bounds = array<i64: 4, 2>}, {pipeline_mode = #tpu.pipeline_mode<synchronous>, transform_indices = @transform_5, window_bounds = array<i64: 4, 108>}, {pipeline_mode = #tpu.pipeline_mode<synchronous>, transform_indices = @transform_6, window_bounds = array<i64: 4, 2>}, {pipeline_mode = #tpu.pipeline_mode<synchronous>, transform_indices = @transform_7, window_bounds = array<i64: 4, 16>}, {pipeline_mode = #tpu.pipeline_mode<synchronous>, transform_indices = @transform_8, window_bounds = array<i64: 4, 2>}, {transform_indices = @transform_9, window_bounds = array<i64: 1, 4, 256>}]} {
    %c0 = arith.constant 0 : index
    %c0_0 = arith.constant 0 : index
    %c0_1 = arith.constant 0 : index
    %0 = vector.load %arg1[%c0, %c0_0, %c0_1] : memref<1x4x256xf32, #tpu.memory_space<vmem>>, vector<1x4x256xf32>
    %1 = vector.shape_cast %0 : vector<1x4x256xf32> to vector<4x256xf32>
    %c12 = arith.constant 12 : index
    %c0_2 = arith.constant 0 : index
    %2 = vector.load %arg11[%c12, %c0_2] : memref<16x256xf32, #tpu.memory_space<vmem>>, vector<4x256xf32>
    tpu.vector_store %arg11[%c12, %c0_2], %1 {strides = array<i32>} : memref<16x256xf32, #tpu.memory_space<vmem>>, vector<4x256xf32>,
    %cst = arith.constant 0.000000e+00 : f32
    %3 = vector.broadcast %cst : f32 to vector<4x51xf32>
    %c0_3 = arith.constant 0 : index
    %c0_4 = arith.constant 0 : index
    %4 = vector.load %arg12[%c0_3, %c0_4] : memref<4x358xf32, #tpu.memory_space<vmem>>, vector<4x51xf32>
    tpu.vector_store %arg12[%c0_3, %c0_4], %3 {strides = array<i32>} : memref<4x358xf32, #tpu.memory_space<vmem>>, vector<4x51xf32>,
    %cst_5 = arith.constant 0.000000e+00 : f32
    %5 = vector.broadcast %cst_5 : f32 to vector<4x51xf32>
    %c0_6 = arith.constant 0 : index
    %c307 = arith.constant 307 : index
    %6 = vector.load %arg12[%c0_6, %c307] : memref<4x358xf32, #tpu.memory_space<vmem>>, vector<4x51xf32>
    tpu.vector_store %arg12[%c0_6, %c307], %5 {strides = array<i32>} : memref<4x358xf32, #tpu.memory_space<vmem>>, vector<4x51xf32>,
    %c12_7 = arith.constant 12 : index
    %c0_8 = arith.constant 0 : index
    %7 = vector.load %arg11[%c12_7, %c0_8] : memref<16x256xf32, #tpu.memory_space<vmem>>, vector<4x256xf32>
    %c0_9 = arith.constant 0 : index
    %c51 = arith.constant 51 : index
    %8 = vector.load %arg12[%c0_9, %c51] : memref<4x358xf32, #tpu.memory_space<vmem>>, vector<4x256xf32>
    tpu.vector_store %arg12[%c0_9, %c51], %7 {strides = array<i32>} : memref<4x358xf32, #tpu.memory_space<vmem>>, vector<4x256xf32>,
    %9 = tpu.iota {dimensions = array<i32: 1>} : vector<4x256xi32>
    %c16_i32 = arith.constant 16 : i32
    %c0_i32 = arith.constant 0 : i32
    %10 = arith.cmpi eq, %c16_i32, %c0_i32 : i32
    %c1_i32 = arith.constant 1 : i32
    %11 = arith.select %10, %c1_i32, %c16_i32 : i32
    %12 = vector.broadcast %11 : i32 to vector<4x256xi32>
    %13 = arith.remsi %9, %12 : vector<4x256xi32>
    %c0_i32_10 = arith.constant 0 : i32
    %14 = vector.broadcast %c0_i32_10 : i32 to vector<4x256xi32>
    %15 = arith.cmpi ne, %13, %14 : vector<4x256xi32>
    %c0_i32_11 = arith.constant 0 : i32
    %16 = vector.broadcast %c0_i32_11 : i32 to vector<4x256xi32>
    %17 = arith.cmpi slt, %13, %16 : vector<4x256xi32>
    %c0_i32_12 = arith.constant 0 : i32
    %18 = arith.cmpi slt, %11, %c0_i32_12 : i32
    %19 = vector.broadcast %18 : i1 to vector<4x256xi1>
    %20 = vector.broadcast %19 : vector<4x256xi1> to vector<4x256xi1>
    %21 = arith.xori %17, %20 : vector<4x256xi1>
    %22 = arith.andi %21, %15 : vector<4x256xi1>
    %23 = vector.broadcast %11 : i32 to vector<4x256xi32>
    %24 = arith.addi %13, %23 : vector<4x256xi32>
    %25 = arith.select %22, %24, %13 : vector<4x256xi1>, vector<4x256xi32>
    %c0_13 = arith.constant 0 : index
    %c0_14 = arith.constant 0 : index
    %26 = vector.load %arg12[%c0_13, %c0_14] : memref<4x358xf32, #tpu.memory_space<vmem>>, vector<4x256xf32>
    %c3_i32 = arith.constant 3 : i32
    %27 = vector.broadcast %c3_i32 : i32 to vector<4x256xi32>
    %28 = arith.cmpi sge, %25, %27 : vector<4x256xi32>
    %cst_15 = arith.constant 0.000000e+00 : f32
    %29 = vector.broadcast %cst_15 : f32 to vector<4x256xf32>
    %30 = arith.select %28, %26, %29 : vector<4x256xi1>, vector<4x256xf32>
    %c0_16 = arith.constant 0 : index
    %c0_17 = arith.constant 0 : index
    %31 = vector.load %arg15[%c0_16, %c0_17] : memref<36x256xf32, #tpu.memory_space<vmem>>, vector<4x256xf32>
    tpu.vector_store %arg15[%c0_16, %c0_17], %30 {strides = array<i32>} : memref<36x256xf32, #tpu.memory_space<vmem>>, vector<4x256xf32>,
    %c0_18 = arith.constant 0 : index
    %c3 = arith.constant 3 : index
    %32 = vector.load %arg12[%c0_18, %c3] : memref<4x358xf32, #tpu.memory_space<vmem>>, vector<4x256xf32>
    %c4 = arith.constant 4 : index
    %c0_19 = arith.constant 0 : index
    %33 = vector.load %arg15[%c4, %c0_19] : memref<36x256xf32, #tpu.memory_space<vmem>>, vector<4x256xf32>
    tpu.vector_store %arg15[%c4, %c0_19], %32 {strides = array<i32>} : memref<36x256xf32, #tpu.memory_space<vmem>>, vector<4x256xf32>,
    %c0_20 = arith.constant 0 : index
    %c6 = arith.constant 6 : index
    %34 = vector.load %arg12[%c0_20, %c6] : memref<4x358xf32, #tpu.memory_space<vmem>>, vector<4x256xf32>
    %c13_i32 = arith.constant 13 : i32
    %35 = vector.broadcast %c13_i32 : i32 to vector<4x256xi32>
    %36 = arith.cmpi slt, %25, %35 : vector<4x256xi32>
    %cst_21 = arith.constant 0.000000e+00 : f32
    %37 = vector.broadcast %cst_21 : f32 to vector<4x256xf32>
    %38 = arith.select %36, %34, %37 : vector<4x256xi1>, vector<4x256xf32>
    %c8 = arith.constant 8 : index
    %c0_22 = arith.constant 0 : index
    %39 = vector.load %arg15[%c8, %c0_22] : memref<36x256xf32, #tpu.memory_space<vmem>>, vector<4x256xf32>
    tpu.vector_store %arg15[%c8, %c0_22], %38 {strides = array<i32>} : memref<36x256xf32, #tpu.memory_space<vmem>>, vector<4x256xf32>,
    %c0_23 = arith.constant 0 : index
    %c48 = arith.constant 48 : index
    %40 = vector.load %arg12[%c0_23, %c48] : memref<4x358xf32, #tpu.memory_space<vmem>>, vector<4x256xf32>
    %c3_i32_24 = arith.constant 3 : i32
    %41 = vector.broadcast %c3_i32_24 : i32 to vector<4x256xi32>
    %42 = arith.cmpi sge, %25, %41 : vector<4x256xi32>
    %cst_25 = arith.constant 0.000000e+00 : f32
    %43 = vector.broadcast %cst_25 : f32 to vector<4x256xf32>
    %44 = arith.select %42, %40, %43 : vector<4x256xi1>, vector<4x256xf32>
    %c12_26 = arith.constant 12 : index
    %c0_27 = arith.constant 0 : index
    %45 = vector.load %arg15[%c12_26, %c0_27] : memref<36x256xf32, #tpu.memory_space<vmem>>, vector<4x256xf32>
    tpu.vector_store %arg15[%c12_26, %c0_27], %44 {strides = array<i32>} : memref<36x256xf32, #tpu.memory_space<vmem>>, vector<4x256xf32>,
    %c0_28 = arith.constant 0 : index
    %c51_29 = arith.constant 51 : index
    %46 = vector.load %arg12[%c0_28, %c51_29] : memref<4x358xf32, #tpu.memory_space<vmem>>, vector<4x256xf32>
    %c16 = arith.constant 16 : index
    %c0_30 = arith.constant 0 : index
    %47 = vector.load %arg15[%c16, %c0_30] : memref<36x256xf32, #tpu.memory_space<vmem>>, vector<4x256xf32>
    tpu.vector_store %arg15[%c16, %c0_30], %46 {strides = array<i32>} : memref<36x256xf32, #tpu.memory_space<vmem>>, vector<4x256xf32>,
    %c0_31 = arith.constant 0 : index
    %c54 = arith.constant 54 : index
    %48 = vector.load %arg12[%c0_31, %c54] : memref<4x358xf32, #tpu.memory_space<vmem>>, vector<4x256xf32>
    %c13_i32_32 = arith.constant 13 : i32
    %49 = vector.broadcast %c13_i32_32 : i32 to vector<4x256xi32>
    %50 = arith.cmpi slt, %25, %49 : vector<4x256xi32>
    %cst_33 = arith.constant 0.000000e+00 : f32
    %51 = vector.broadcast %cst_33 : f32 to vector<4x256xf32>
    %52 = arith.select %50, %48, %51 : vector<4x256xi1>, vector<4x256xf32>
    %c20 = arith.constant 20 : index
    %c0_34 = arith.constant 0 : index
    %53 = vector.load %arg15[%c20, %c0_34] : memref<36x256xf32, #tpu.memory_space<vmem>>, vector<4x256xf32>
    tpu.vector_store %arg15[%c20, %c0_34], %52 {strides = array<i32>} : memref<36x256xf32, #tpu.memory_space<vmem>>, vector<4x256xf32>,
    %c0_35 = arith.constant 0 : index
    %c96 = arith.constant 96 : index
    %54 = vector.load %arg12[%c0_35, %c96] : memref<4x358xf32, #tpu.memory_space<vmem>>, vector<4x256xf32>
    %c3_i32_36 = arith.constant 3 : i32
    %55 = vector.broadcast %c3_i32_36 : i32 to vector<4x256xi32>
    %56 = arith.cmpi sge, %25, %55 : vector<4x256xi32>
    %cst_37 = arith.constant 0.000000e+00 : f32
    %57 = vector.broadcast %cst_37 : f32 to vector<4x256xf32>
    %58 = arith.select %56, %54, %57 : vector<4x256xi1>, vector<4x256xf32>
    %c24 = arith.constant 24 : index
    %c0_38 = arith.constant 0 : index
    %59 = vector.load %arg15[%c24, %c0_38] : memref<36x256xf32, #tpu.memory_space<vmem>>, vector<4x256xf32>
    tpu.vector_store %arg15[%c24, %c0_38], %58 {strides = array<i32>} : memref<36x256xf32, #tpu.memory_space<vmem>>, vector<4x256xf32>,
    %c0_39 = arith.constant 0 : index
    %c99 = arith.constant 99 : index
    %60 = vector.load %arg12[%c0_39, %c99] : memref<4x358xf32, #tpu.memory_space<vmem>>, vector<4x256xf32>
    %c28 = arith.constant 28 : index
    %c0_40 = arith.constant 0 : index
    %61 = vector.load %arg15[%c28, %c0_40] : memref<36x256xf32, #tpu.memory_space<vmem>>, vector<4x256xf32>
    tpu.vector_store %arg15[%c28, %c0_40], %60 {strides = array<i32>} : memref<36x256xf32, #tpu.memory_space<vmem>>, vector<4x256xf32>,
    %c0_41 = arith.constant 0 : index
    %c102 = arith.constant 102 : index
    %62 = vector.load %arg12[%c0_41, %c102] : memref<4x358xf32, #tpu.memory_space<vmem>>, vector<4x256xf32>
    %c13_i32_42 = arith.constant 13 : i32
    %63 = vector.broadcast %c13_i32_42 : i32 to vector<4x256xi32>
    %64 = arith.cmpi slt, %25, %63 : vector<4x256xi32>
    %cst_43 = arith.constant 0.000000e+00 : f32
    %65 = vector.broadcast %cst_43 : f32 to vector<4x256xf32>
    %66 = arith.select %64, %62, %65 : vector<4x256xi1>, vector<4x256xf32>
    %c32 = arith.constant 32 : index
    %c0_44 = arith.constant 0 : index
    %67 = vector.load %arg15[%c32, %c0_44] : memref<36x256xf32, #tpu.memory_space<vmem>>, vector<4x256xf32>
    tpu.vector_store %arg15[%c32, %c0_44], %66 {strides = array<i32>} : memref<36x256xf32, #tpu.memory_space<vmem>>, vector<4x256xf32>,
    %c0_45 = arith.constant 0 : index
    %c0_46 = arith.constant 0 : index
    %68 = vector.load %arg2[%c0_45, %c0_46] : memref<4x36xf32, #tpu.memory_space<vmem>>, vector<4x36xf32>
    %c0_47 = arith.constant 0 : index
    %c0_48 = arith.constant 0 : index
    %69 = vector.load %arg15[%c0_47, %c0_48] : memref<36x256xf32, #tpu.memory_space<vmem>>, vector<36x256xf32>
    %cst_49 = arith.constant dense<0.000000e+00> : vector<4x256xf32>
    %70 = tpu.matmul %68, %69, %cst_49 {dimension_numbers = #tpu.dot_dimension_numbers<[1], [0], [0], [1], [0, 0, 1, 1], [], []>} : vector<4x36xf32>, vector<36x256xf32>, vector<4x256xf32> -> vector<4x256xf32>
    %c0_50 = arith.constant 0 : index
    %c0_51 = arith.constant 0 : index
    %71 = vector.load %arg3[%c0_50, %c0_51] : memref<4x2xf32, #tpu.memory_space<vmem>>, vector<4x1xf32>
    %72 = vector.broadcast %71 : vector<4x1xf32> to vector<4x256xf32>
    %73 = arith.mulf %70, %72 : vector<4x256xf32>
    %c0_52 = arith.constant 0 : index
    %c1 = arith.constant 1 : index
    %74 = vector.load %arg3[%c0_52, %c1] : memref<4x2xf32, #tpu.memory_space<vmem>>, vector<4x1xf32>
    %75 = vector.broadcast %74 : vector<4x1xf32> to vector<4x256xf32>
    %76 = arith.addf %73, %75 : vector<4x256xf32>
    %cst_53 = arith.constant 0.000000e+00 : f32
    %77 = vector.broadcast %cst_53 : f32 to vector<4x256xf32>
    %78 = arith.maximumf %76, %77 : vector<4x256xf32>
    %c8_54 = arith.constant 8 : index
    %c0_55 = arith.constant 0 : index
    %79 = vector.load %arg11[%c8_54, %c0_55] : memref<16x256xf32, #tpu.memory_space<vmem>>, vector<4x256xf32>
    tpu.vector_store %arg11[%c8_54, %c0_55], %78 {strides = array<i32>} : memref<16x256xf32, #tpu.memory_space<vmem>>, vector<4x256xf32>,
    %cst_56 = arith.constant 0.000000e+00 : f32
    %80 = vector.broadcast %cst_56 : f32 to vector<8x102xf32>
    %c0_57 = arith.constant 0 : index
    %c0_58 = arith.constant 0 : index
    %81 = vector.load %arg13[%c0_57, %c0_58] : memref<8x460xf32, #tpu.memory_space<vmem>>, vector<8x102xf32>
    tpu.vector_store %arg13[%c0_57, %c0_58], %80 {strides = array<i32>} : memref<8x460xf32, #tpu.memory_space<vmem>>, vector<8x102xf32>,
    %cst_59 = arith.constant 0.000000e+00 : f32
    %82 = vector.broadcast %cst_59 : f32 to vector<8x102xf32>
    %c0_60 = arith.constant 0 : index
    %c358 = arith.constant 358 : index
    %83 = vector.load %arg13[%c0_60, %c358] : memref<8x460xf32, #tpu.memory_space<vmem>>, vector<8x102xf32>
    tpu.vector_store %arg13[%c0_60, %c358], %82 {strides = array<i32>} : memref<8x460xf32, #tpu.memory_space<vmem>>, vector<8x102xf32>,
    %c8_61 = arith.constant 8 : index
    %c0_62 = arith.constant 0 : index
    %84 = vector.load %arg11[%c8_61, %c0_62] : memref<16x256xf32, #tpu.memory_space<vmem>>, vector<8x256xf32>
    %c0_63 = arith.constant 0 : index
    %c102_64 = arith.constant 102 : index
    %85 = vector.load %arg13[%c0_63, %c102_64] : memref<8x460xf32, #tpu.memory_space<vmem>>, vector<8x256xf32>
    tpu.vector_store %arg13[%c0_63, %c102_64], %84 {strides = array<i32>} : memref<8x460xf32, #tpu.memory_space<vmem>>, vector<8x256xf32>,
    %86 = tpu.iota {dimensions = array<i32: 1>} : vector<8x256xi32>
    %c16_i32_65 = arith.constant 16 : i32
    %c0_i32_66 = arith.constant 0 : i32
    %87 = arith.cmpi eq, %c16_i32_65, %c0_i32_66 : i32
    %c1_i32_67 = arith.constant 1 : i32
    %88 = arith.select %87, %c1_i32_67, %c16_i32_65 : i32
    %89 = vector.broadcast %88 : i32 to vector<8x256xi32>
    %90 = arith.remsi %86, %89 : vector<8x256xi32>
    %c0_i32_68 = arith.constant 0 : i32
    %91 = vector.broadcast %c0_i32_68 : i32 to vector<8x256xi32>
    %92 = arith.cmpi ne, %90, %91 : vector<8x256xi32>
    %c0_i32_69 = arith.constant 0 : i32
    %93 = vector.broadcast %c0_i32_69 : i32 to vector<8x256xi32>
    %94 = arith.cmpi slt, %90, %93 : vector<8x256xi32>
    %c0_i32_70 = arith.constant 0 : i32
    %95 = arith.cmpi slt, %88, %c0_i32_70 : i32
    %96 = vector.broadcast %95 : i1 to vector<8x256xi1>
    %97 = vector.broadcast %96 : vector<8x256xi1> to vector<8x256xi1>
    %98 = arith.xori %94, %97 : vector<8x256xi1>
    %99 = arith.andi %98, %92 : vector<8x256xi1>
    %100 = vector.broadcast %88 : i32 to vector<8x256xi32>
    %101 = arith.addi %90, %100 : vector<8x256xi32>
    %102 = arith.select %99, %101, %90 : vector<8x256xi1>, vector<8x256xi32>
    %c0_71 = arith.constant 0 : index
    %c0_72 = arith.constant 0 : index
    %103 = vector.load %arg13[%c0_71, %c0_72] : memref<8x460xf32, #tpu.memory_space<vmem>>, vector<8x256xf32>
    %c6_i32 = arith.constant 6 : i32
    %104 = vector.broadcast %c6_i32 : i32 to vector<8x256xi32>
    %105 = arith.cmpi sge, %102, %104 : vector<8x256xi32>
    %cst_73 = arith.constant 0.000000e+00 : f32
    %106 = vector.broadcast %cst_73 : f32 to vector<8x256xf32>
    %107 = arith.select %105, %103, %106 : vector<8x256xi1>, vector<8x256xf32>
    %c0_74 = arith.constant 0 : index
    %c0_75 = arith.constant 0 : index
    %108 = vector.load %arg16[%c0_74, %c0_75] : memref<72x256xf32, #tpu.memory_space<vmem>>, vector<8x256xf32>
    tpu.vector_store %arg16[%c0_74, %c0_75], %107 {strides = array<i32>} : memref<72x256xf32, #tpu.memory_space<vmem>>, vector<8x256xf32>,
    %c0_76 = arith.constant 0 : index
    %c6_77 = arith.constant 6 : index
    %109 = vector.load %arg13[%c0_76, %c6_77] : memref<8x460xf32, #tpu.memory_space<vmem>>, vector<8x256xf32>
    %c8_78 = arith.constant 8 : index
    %c0_79 = arith.constant 0 : index
    %110 = vector.load %arg16[%c8_78, %c0_79] : memref<72x256xf32, #tpu.memory_space<vmem>>, vector<8x256xf32>
    tpu.vector_store %arg16[%c8_78, %c0_79], %109 {strides = array<i32>} : memref<72x256xf32, #tpu.memory_space<vmem>>, vector<8x256xf32>,
    %c0_80 = arith.constant 0 : index
    %c12_81 = arith.constant 12 : index
    %111 = vector.load %arg13[%c0_80, %c12_81] : memref<8x460xf32, #tpu.memory_space<vmem>>, vector<8x256xf32>
    %c10_i32 = arith.constant 10 : i32
    %112 = vector.broadcast %c10_i32 : i32 to vector<8x256xi32>
    %113 = arith.cmpi slt, %102, %112 : vector<8x256xi32>
    %cst_82 = arith.constant 0.000000e+00 : f32
    %114 = vector.broadcast %cst_82 : f32 to vector<8x256xf32>
    %115 = arith.select %113, %111, %114 : vector<8x256xi1>, vector<8x256xf32>
    %c16_83 = arith.constant 16 : index
    %c0_84 = arith.constant 0 : index
    %116 = vector.load %arg16[%c16_83, %c0_84] : memref<72x256xf32, #tpu.memory_space<vmem>>, vector<8x256xf32>
    tpu.vector_store %arg16[%c16_83, %c0_84], %115 {strides = array<i32>} : memref<72x256xf32, #tpu.memory_space<vmem>>, vector<8x256xf32>,
    %c0_85 = arith.constant 0 : index
    %c96_86 = arith.constant 96 : index
    %117 = vector.load %arg13[%c0_85, %c96_86] : memref<8x460xf32, #tpu.memory_space<vmem>>, vector<8x256xf32>
    %c6_i32_87 = arith.constant 6 : i32
    %118 = vector.broadcast %c6_i32_87 : i32 to vector<8x256xi32>
    %119 = arith.cmpi sge, %102, %118 : vector<8x256xi32>
    %cst_88 = arith.constant 0.000000e+00 : f32
    %120 = vector.broadcast %cst_88 : f32 to vector<8x256xf32>
    %121 = arith.select %119, %117, %120 : vector<8x256xi1>, vector<8x256xf32>
    %c24_89 = arith.constant 24 : index
    %c0_90 = arith.constant 0 : index
    %122 = vector.load %arg16[%c24_89, %c0_90] : memref<72x256xf32, #tpu.memory_space<vmem>>, vector<8x256xf32>
    tpu.vector_store %arg16[%c24_89, %c0_90], %121 {strides = array<i32>} : memref<72x256xf32, #tpu.memory_space<vmem>>, vector<8x256xf32>,
    %c0_91 = arith.constant 0 : index
    %c102_92 = arith.constant 102 : index
    %123 = vector.load %arg13[%c0_91, %c102_92] : memref<8x460xf32, #tpu.memory_space<vmem>>, vector<8x256xf32>
    %c32_93 = arith.constant 32 : index
    %c0_94 = arith.constant 0 : index
    %124 = vector.load %arg16[%c32_93, %c0_94] : memref<72x256xf32, #tpu.memory_space<vmem>>, vector<8x256xf32>
    tpu.vector_store %arg16[%c32_93, %c0_94], %123 {strides = array<i32>} : memref<72x256xf32, #tpu.memory_space<vmem>>, vector<8x256xf32>,
    %c0_95 = arith.constant 0 : index
    %c108 = arith.constant 108 : index
    %125 = vector.load %arg13[%c0_95, %c108] : memref<8x460xf32, #tpu.memory_space<vmem>>, vector<8x256xf32>
    %c10_i32_96 = arith.constant 10 : i32
    %126 = vector.broadcast %c10_i32_96 : i32 to vector<8x256xi32>
    %127 = arith.cmpi slt, %102, %126 : vector<8x256xi32>
    %cst_97 = arith.constant 0.000000e+00 : f32
    %128 = vector.broadcast %cst_97 : f32 to vector<8x256xf32>
    %129 = arith.select %127, %125, %128 : vector<8x256xi1>, vector<8x256xf32>
    %c40 = arith.constant 40 : index
    %c0_98 = arith.constant 0 : index
    %130 = vector.load %arg16[%c40, %c0_98] : memref<72x256xf32, #tpu.memory_space<vmem>>, vector<8x256xf32>
    tpu.vector_store %arg16[%c40, %c0_98], %129 {strides = array<i32>} : memref<72x256xf32, #tpu.memory_space<vmem>>, vector<8x256xf32>,
    %c0_99 = arith.constant 0 : index
    %c192 = arith.constant 192 : index
    %131 = vector.load %arg13[%c0_99, %c192] : memref<8x460xf32, #tpu.memory_space<vmem>>, vector<8x256xf32>
    %c6_i32_100 = arith.constant 6 : i32
    %132 = vector.broadcast %c6_i32_100 : i32 to vector<8x256xi32>
    %133 = arith.cmpi sge, %102, %132 : vector<8x256xi32>
    %cst_101 = arith.constant 0.000000e+00 : f32
    %134 = vector.broadcast %cst_101 : f32 to vector<8x256xf32>
    %135 = arith.select %133, %131, %134 : vector<8x256xi1>, vector<8x256xf32>
    %c48_102 = arith.constant 48 : index
    %c0_103 = arith.constant 0 : index
    %136 = vector.load %arg16[%c48_102, %c0_103] : memref<72x256xf32, #tpu.memory_space<vmem>>, vector<8x256xf32>
    tpu.vector_store %arg16[%c48_102, %c0_103], %135 {strides = array<i32>} : memref<72x256xf32, #tpu.memory_space<vmem>>, vector<8x256xf32>,
    %c0_104 = arith.constant 0 : index
    %c198 = arith.constant 198 : index
    %137 = vector.load %arg13[%c0_104, %c198] : memref<8x460xf32, #tpu.memory_space<vmem>>, vector<8x256xf32>
    %c56 = arith.constant 56 : index
    %c0_105 = arith.constant 0 : index
    %138 = vector.load %arg16[%c56, %c0_105] : memref<72x256xf32, #tpu.memory_space<vmem>>, vector<8x256xf32>
    tpu.vector_store %arg16[%c56, %c0_105], %137 {strides = array<i32>} : memref<72x256xf32, #tpu.memory_space<vmem>>, vector<8x256xf32>,
    %c0_106 = arith.constant 0 : index
    %c204 = arith.constant 204 : index
    %139 = vector.load %arg13[%c0_106, %c204] : memref<8x460xf32, #tpu.memory_space<vmem>>, vector<8x256xf32>
    %c10_i32_107 = arith.constant 10 : i32
    %140 = vector.broadcast %c10_i32_107 : i32 to vector<8x256xi32>
    %141 = arith.cmpi slt, %102, %140 : vector<8x256xi32>
    %cst_108 = arith.constant 0.000000e+00 : f32
    %142 = vector.broadcast %cst_108 : f32 to vector<8x256xf32>
    %143 = arith.select %141, %139, %142 : vector<8x256xi1>, vector<8x256xf32>
    %c64 = arith.constant 64 : index
    %c0_109 = arith.constant 0 : index
    %144 = vector.load %arg16[%c64, %c0_109] : memref<72x256xf32, #tpu.memory_space<vmem>>, vector<8x256xf32>
    tpu.vector_store %arg16[%c64, %c0_109], %143 {strides = array<i32>} : memref<72x256xf32, #tpu.memory_space<vmem>>, vector<8x256xf32>,
    %c0_110 = arith.constant 0 : index
    %c0_111 = arith.constant 0 : index
    %145 = vector.load %arg4[%c0_110, %c0_111] : memref<4x72xf32, #tpu.memory_space<vmem>>, vector<4x72xf32>
    %c0_112 = arith.constant 0 : index
    %c0_113 = arith.constant 0 : index
    %146 = vector.load %arg16[%c0_112, %c0_113] : memref<72x256xf32, #tpu.memory_space<vmem>>, vector<72x256xf32>
    %cst_114 = arith.constant dense<0.000000e+00> : vector<4x256xf32>
    %147 = tpu.matmul %145, %146, %cst_114 {dimension_numbers = #tpu.dot_dimension_numbers<[1], [0], [0], [1], [0, 0, 1, 1], [], []>} : vector<4x72xf32>, vector<72x256xf32>, vector<4x256xf32> -> vector<4x256xf32>
    %c0_115 = arith.constant 0 : index
    %c0_116 = arith.constant 0 : index
    %148 = vector.load %arg5[%c0_115, %c0_116] : memref<4x2xf32, #tpu.memory_space<vmem>>, vector<4x1xf32>
    %149 = vector.broadcast %148 : vector<4x1xf32> to vector<4x256xf32>
    %150 = arith.mulf %147, %149 : vector<4x256xf32>
    %c0_117 = arith.constant 0 : index
    %c1_118 = arith.constant 1 : index
    %151 = vector.load %arg5[%c0_117, %c1_118] : memref<4x2xf32, #tpu.memory_space<vmem>>, vector<4x1xf32>
    %152 = vector.broadcast %151 : vector<4x1xf32> to vector<4x256xf32>
    %153 = arith.addf %150, %152 : vector<4x256xf32>
    %cst_119 = arith.constant 0.000000e+00 : f32
    %154 = vector.broadcast %cst_119 : f32 to vector<4x256xf32>
    %155 = arith.maximumf %153, %154 : vector<4x256xf32>
    %c4_120 = arith.constant 4 : index
    %c0_121 = arith.constant 0 : index
    %156 = vector.load %arg11[%c4_120, %c0_121] : memref<16x256xf32, #tpu.memory_space<vmem>>, vector<4x256xf32>
    tpu.vector_store %arg11[%c4_120, %c0_121], %155 {strides = array<i32>} : memref<16x256xf32, #tpu.memory_space<vmem>>, vector<4x256xf32>,
    %cst_122 = arith.constant 0.000000e+00 : f32
    %157 = vector.broadcast %cst_122 : f32 to vector<12x153xf32>
    %c0_123 = arith.constant 0 : index
    %c0_124 = arith.constant 0 : index
    %158 = vector.load %arg14[%c0_123, %c0_124] : memref<12x562xf32, #tpu.memory_space<vmem>>, vector<12x153xf32>
    tpu.vector_store %arg14[%c0_123, %c0_124], %157 {strides = array<i32>} : memref<12x562xf32, #tpu.memory_space<vmem>>, vector<12x153xf32>,
    %cst_125 = arith.constant 0.000000e+00 : f32
    %159 = vector.broadcast %cst_125 : f32 to vector<12x153xf32>
    %c0_126 = arith.constant 0 : index
    %c409 = arith.constant 409 : index
    %160 = vector.load %arg14[%c0_126, %c409] : memref<12x562xf32, #tpu.memory_space<vmem>>, vector<12x153xf32>
    tpu.vector_store %arg14[%c0_126, %c409], %159 {strides = array<i32>} : memref<12x562xf32, #tpu.memory_space<vmem>>, vector<12x153xf32>,
    %c4_127 = arith.constant 4 : index
    %c0_128 = arith.constant 0 : index
    %161 = vector.load %arg11[%c4_127, %c0_128] : memref<16x256xf32, #tpu.memory_space<vmem>>, vector<12x256xf32>
    %c0_129 = arith.constant 0 : index
    %c153 = arith.constant 153 : index
    %162 = vector.load %arg14[%c0_129, %c153] : memref<12x562xf32, #tpu.memory_space<vmem>>, vector<12x256xf32>
    tpu.vector_store %arg14[%c0_129, %c153], %161 {strides = array<i32>} : memref<12x562xf32, #tpu.memory_space<vmem>>, vector<12x256xf32>,
    %163 = tpu.iota {dimensions = array<i32: 1>} : vector<12x256xi32>
    %c16_i32_130 = arith.constant 16 : i32
    %c0_i32_131 = arith.constant 0 : i32
    %164 = arith.cmpi eq, %c16_i32_130, %c0_i32_131 : i32
    %c1_i32_132 = arith.constant 1 : i32
    %165 = arith.select %164, %c1_i32_132, %c16_i32_130 : i32
    %166 = vector.broadcast %165 : i32 to vector<12x256xi32>
    %167 = arith.remsi %163, %166 : vector<12x256xi32>
    %c0_i32_133 = arith.constant 0 : i32
    %168 = vector.broadcast %c0_i32_133 : i32 to vector<12x256xi32>
    %169 = arith.cmpi ne, %167, %168 : vector<12x256xi32>
    %c0_i32_134 = arith.constant 0 : i32
    %170 = vector.broadcast %c0_i32_134 : i32 to vector<12x256xi32>
    %171 = arith.cmpi slt, %167, %170 : vector<12x256xi32>
    %c0_i32_135 = arith.constant 0 : i32
    %172 = arith.cmpi slt, %165, %c0_i32_135 : i32
    %173 = vector.broadcast %172 : i1 to vector<12x256xi1>
    %174 = vector.broadcast %173 : vector<12x256xi1> to vector<12x256xi1>
    %175 = arith.xori %171, %174 : vector<12x256xi1>
    %176 = arith.andi %175, %169 : vector<12x256xi1>
    %177 = vector.broadcast %165 : i32 to vector<12x256xi32>
    %178 = arith.addi %167, %177 : vector<12x256xi32>
    %179 = arith.select %176, %178, %167 : vector<12x256xi1>, vector<12x256xi32>
    %c0_136 = arith.constant 0 : index
    %c0_137 = arith.constant 0 : index
    %180 = vector.load %arg14[%c0_136, %c0_137] : memref<12x562xf32, #tpu.memory_space<vmem>>, vector<12x256xf32>
    %c9_i32 = arith.constant 9 : i32
    %181 = vector.broadcast %c9_i32 : i32 to vector<12x256xi32>
    %182 = arith.cmpi sge, %179, %181 : vector<12x256xi32>
    %cst_138 = arith.constant 0.000000e+00 : f32
    %183 = vector.broadcast %cst_138 : f32 to vector<12x256xf32>
    %184 = arith.select %182, %180, %183 : vector<12x256xi1>, vector<12x256xf32>
    %c0_139 = arith.constant 0 : index
    %c0_140 = arith.constant 0 : index
    %185 = vector.load %arg17[%c0_139, %c0_140] : memref<108x256xf32, #tpu.memory_space<vmem>>, vector<12x256xf32>
    tpu.vector_store %arg17[%c0_139, %c0_140], %184 {strides = array<i32>} : memref<108x256xf32, #tpu.memory_space<vmem>>, vector<12x256xf32>,
    %c0_141 = arith.constant 0 : index
    %c9 = arith.constant 9 : index
    %186 = vector.load %arg14[%c0_141, %c9] : memref<12x562xf32, #tpu.memory_space<vmem>>, vector<12x256xf32>
    %c12_142 = arith.constant 12 : index
    %c0_143 = arith.constant 0 : index
    %187 = vector.load %arg17[%c12_142, %c0_143] : memref<108x256xf32, #tpu.memory_space<vmem>>, vector<12x256xf32>
    tpu.vector_store %arg17[%c12_142, %c0_143], %186 {strides = array<i32>} : memref<108x256xf32, #tpu.memory_space<vmem>>, vector<12x256xf32>,
    %c0_144 = arith.constant 0 : index
    %c18 = arith.constant 18 : index
    %188 = vector.load %arg14[%c0_144, %c18] : memref<12x562xf32, #tpu.memory_space<vmem>>, vector<12x256xf32>
    %c7_i32 = arith.constant 7 : i32
    %189 = vector.broadcast %c7_i32 : i32 to vector<12x256xi32>
    %190 = arith.cmpi slt, %179, %189 : vector<12x256xi32>
    %cst_145 = arith.constant 0.000000e+00 : f32
    %191 = vector.broadcast %cst_145 : f32 to vector<12x256xf32>
    %192 = arith.select %190, %188, %191 : vector<12x256xi1>, vector<12x256xf32>
    %c24_146 = arith.constant 24 : index
    %c0_147 = arith.constant 0 : index
    %193 = vector.load %arg17[%c24_146, %c0_147] : memref<108x256xf32, #tpu.memory_space<vmem>>, vector<12x256xf32>
    tpu.vector_store %arg17[%c24_146, %c0_147], %192 {strides = array<i32>} : memref<108x256xf32, #tpu.memory_space<vmem>>, vector<12x256xf32>,
    %c0_148 = arith.constant 0 : index
    %c144 = arith.constant 144 : index
    %194 = vector.load %arg14[%c0_148, %c144] : memref<12x562xf32, #tpu.memory_space<vmem>>, vector<12x256xf32>
    %c9_i32_149 = arith.constant 9 : i32
    %195 = vector.broadcast %c9_i32_149 : i32 to vector<12x256xi32>
    %196 = arith.cmpi sge, %179, %195 : vector<12x256xi32>
    %cst_150 = arith.constant 0.000000e+00 : f32
    %197 = vector.broadcast %cst_150 : f32 to vector<12x256xf32>
    %198 = arith.select %196, %194, %197 : vector<12x256xi1>, vector<12x256xf32>
    %c36 = arith.constant 36 : index
    %c0_151 = arith.constant 0 : index
    %199 = vector.load %arg17[%c36, %c0_151] : memref<108x256xf32, #tpu.memory_space<vmem>>, vector<12x256xf32>
    tpu.vector_store %arg17[%c36, %c0_151], %198 {strides = array<i32>} : memref<108x256xf32, #tpu.memory_space<vmem>>, vector<12x256xf32>,
    %c0_152 = arith.constant 0 : index
    %c153_153 = arith.constant 153 : index
    %200 = vector.load %arg14[%c0_152, %c153_153] : memref<12x562xf32, #tpu.memory_space<vmem>>, vector<12x256xf32>
    %c48_154 = arith.constant 48 : index
    %c0_155 = arith.constant 0 : index
    %201 = vector.load %arg17[%c48_154, %c0_155] : memref<108x256xf32, #tpu.memory_space<vmem>>, vector<12x256xf32>
    tpu.vector_store %arg17[%c48_154, %c0_155], %200 {strides = array<i32>} : memref<108x256xf32, #tpu.memory_space<vmem>>, vector<12x256xf32>,
    %c0_156 = arith.constant 0 : index
    %c162 = arith.constant 162 : index
    %202 = vector.load %arg14[%c0_156, %c162] : memref<12x562xf32, #tpu.memory_space<vmem>>, vector<12x256xf32>
    %c7_i32_157 = arith.constant 7 : i32
    %203 = vector.broadcast %c7_i32_157 : i32 to vector<12x256xi32>
    %204 = arith.cmpi slt, %179, %203 : vector<12x256xi32>
    %cst_158 = arith.constant 0.000000e+00 : f32
    %205 = vector.broadcast %cst_158 : f32 to vector<12x256xf32>
    %206 = arith.select %204, %202, %205 : vector<12x256xi1>, vector<12x256xf32>
    %c60 = arith.constant 60 : index
    %c0_159 = arith.constant 0 : index
    %207 = vector.load %arg17[%c60, %c0_159] : memref<108x256xf32, #tpu.memory_space<vmem>>, vector<12x256xf32>
    tpu.vector_store %arg17[%c60, %c0_159], %206 {strides = array<i32>} : memref<108x256xf32, #tpu.memory_space<vmem>>, vector<12x256xf32>,
    %c0_160 = arith.constant 0 : index
    %c288 = arith.constant 288 : index
    %208 = vector.load %arg14[%c0_160, %c288] : memref<12x562xf32, #tpu.memory_space<vmem>>, vector<12x256xf32>
    %c9_i32_161 = arith.constant 9 : i32
    %209 = vector.broadcast %c9_i32_161 : i32 to vector<12x256xi32>
    %210 = arith.cmpi sge, %179, %209 : vector<12x256xi32>
    %cst_162 = arith.constant 0.000000e+00 : f32
    %211 = vector.broadcast %cst_162 : f32 to vector<12x256xf32>
    %212 = arith.select %210, %208, %211 : vector<12x256xi1>, vector<12x256xf32>
    %c72 = arith.constant 72 : index
    %c0_163 = arith.constant 0 : index
    %213 = vector.load %arg17[%c72, %c0_163] : memref<108x256xf32, #tpu.memory_space<vmem>>, vector<12x256xf32>
    tpu.vector_store %arg17[%c72, %c0_163], %212 {strides = array<i32>} : memref<108x256xf32, #tpu.memory_space<vmem>>, vector<12x256xf32>,
    %c0_164 = arith.constant 0 : index
    %c297 = arith.constant 297 : index
    %214 = vector.load %arg14[%c0_164, %c297] : memref<12x562xf32, #tpu.memory_space<vmem>>, vector<12x256xf32>
    %c84 = arith.constant 84 : index
    %c0_165 = arith.constant 0 : index
    %215 = vector.load %arg17[%c84, %c0_165] : memref<108x256xf32, #tpu.memory_space<vmem>>, vector<12x256xf32>
    tpu.vector_store %arg17[%c84, %c0_165], %214 {strides = array<i32>} : memref<108x256xf32, #tpu.memory_space<vmem>>, vector<12x256xf32>,
    %c0_166 = arith.constant 0 : index
    %c306 = arith.constant 306 : index
    %216 = vector.load %arg14[%c0_166, %c306] : memref<12x562xf32, #tpu.memory_space<vmem>>, vector<12x256xf32>
    %c7_i32_167 = arith.constant 7 : i32
    %217 = vector.broadcast %c7_i32_167 : i32 to vector<12x256xi32>
    %218 = arith.cmpi slt, %179, %217 : vector<12x256xi32>
    %cst_168 = arith.constant 0.000000e+00 : f32
    %219 = vector.broadcast %cst_168 : f32 to vector<12x256xf32>
    %220 = arith.select %218, %216, %219 : vector<12x256xi1>, vector<12x256xf32>
    %c96_169 = arith.constant 96 : index
    %c0_170 = arith.constant 0 : index
    %221 = vector.load %arg17[%c96_169, %c0_170] : memref<108x256xf32, #tpu.memory_space<vmem>>, vector<12x256xf32>
    tpu.vector_store %arg17[%c96_169, %c0_170], %220 {strides = array<i32>} : memref<108x256xf32, #tpu.memory_space<vmem>>, vector<12x256xf32>,
    %c0_171 = arith.constant 0 : index
    %c0_172 = arith.constant 0 : index
    %222 = vector.load %arg6[%c0_171, %c0_172] : memref<4x108xf32, #tpu.memory_space<vmem>>, vector<4x108xf32>
    %c0_173 = arith.constant 0 : index
    %c0_174 = arith.constant 0 : index
    %223 = vector.load %arg17[%c0_173, %c0_174] : memref<108x256xf32, #tpu.memory_space<vmem>>, vector<108x256xf32>
    %cst_175 = arith.constant dense<0.000000e+00> : vector<4x256xf32>
    %224 = tpu.matmul %222, %223, %cst_175 {dimension_numbers = #tpu.dot_dimension_numbers<[1], [0], [0], [1], [0, 0, 1, 1], [], []>} : vector<4x108xf32>, vector<108x256xf32>, vector<4x256xf32> -> vector<4x256xf32>
    %c0_176 = arith.constant 0 : index
    %c0_177 = arith.constant 0 : index
    %225 = vector.load %arg7[%c0_176, %c0_177] : memref<4x2xf32, #tpu.memory_space<vmem>>, vector<4x1xf32>
    %226 = vector.broadcast %225 : vector<4x1xf32> to vector<4x256xf32>
    %227 = arith.mulf %224, %226 : vector<4x256xf32>
    %c0_178 = arith.constant 0 : index
    %c1_179 = arith.constant 1 : index
    %228 = vector.load %arg7[%c0_178, %c1_179] : memref<4x2xf32, #tpu.memory_space<vmem>>, vector<4x1xf32>
    %229 = vector.broadcast %228 : vector<4x1xf32> to vector<4x256xf32>
    %230 = arith.addf %227, %229 : vector<4x256xf32>
    %cst_180 = arith.constant 0.000000e+00 : f32
    %231 = vector.broadcast %cst_180 : f32 to vector<4x256xf32>
    %232 = arith.maximumf %230, %231 : vector<4x256xf32>
    %c0_181 = arith.constant 0 : index
    %c0_182 = arith.constant 0 : index
    %233 = vector.load %arg11[%c0_181, %c0_182] : memref<16x256xf32, #tpu.memory_space<vmem>>, vector<4x256xf32>
    tpu.vector_store %arg11[%c0_181, %c0_182], %232 {strides = array<i32>} : memref<16x256xf32, #tpu.memory_space<vmem>>, vector<4x256xf32>,
    %c0_183 = arith.constant 0 : index
    %c0_184 = arith.constant 0 : index
    %234 = vector.load %arg8[%c0_183, %c0_184] : memref<4x16xf32, #tpu.memory_space<vmem>>, vector<4x16xf32>
    %c0_185 = arith.constant 0 : index
    %c0_186 = arith.constant 0 : index
    %235 = vector.load %arg11[%c0_185, %c0_186] : memref<16x256xf32, #tpu.memory_space<vmem>>, vector<16x256xf32>
    %cst_187 = arith.constant dense<0.000000e+00> : vector<4x256xf32>
    %236 = tpu.matmul %234, %235, %cst_187 {dimension_numbers = #tpu.dot_dimension_numbers<[1], [0], [0], [1], [0, 0, 1, 1], [], []>} : vector<4x16xf32>, vector<16x256xf32>, vector<4x256xf32> -> vector<4x256xf32>
    %c0_188 = arith.constant 0 : index
    %c0_189 = arith.constant 0 : index
    %237 = vector.load %arg9[%c0_188, %c0_189] : memref<4x2xf32, #tpu.memory_space<vmem>>, vector<4x1xf32>
    %238 = vector.broadcast %237 : vector<4x1xf32> to vector<4x256xf32>
    %239 = arith.mulf %236, %238 : vector<4x256xf32>
    %c0_190 = arith.constant 0 : index
    %c1_191 = arith.constant 1 : index
    %240 = vector.load %arg9[%c0_190, %c1_191] : memref<4x2xf32, #tpu.memory_space<vmem>>, vector<4x1xf32>
    %241 = vector.broadcast %240 : vector<4x1xf32> to vector<4x256xf32>
    %242 = arith.addf %239, %241 : vector<4x256xf32>
    %cst_192 = arith.constant 0.000000e+00 : f32
    %243 = vector.broadcast %cst_192 : f32 to vector<4x256xf32>
    %244 = arith.maximumf %242, %243 : vector<4x256xf32>
    %c0_193 = arith.constant 0 : index
    %c0_194 = arith.constant 0 : index
    %c0_195 = arith.constant 0 : index
    %245 = vector.load %arg10[%c0_193, %c0_194, %c0_195] : memref<1x4x256xf32, #tpu.memory_space<vmem>>, vector<1x4x256xf32>
    %246 = vector.shape_cast %245 : vector<1x4x256xf32> to vector<4x256xf32>
    %247 = vector.shape_cast %244 : vector<4x256xf32> to vector<1x4x256xf32>
    tpu.vector_store %arg10[%c0_193, %c0_194, %c0_195], %247 {strides = array<i32>} : memref<1x4x256xf32, #tpu.memory_space<vmem>>, vector<1x4x256xf32>,
    return
  }
  func.func @transform_0(%arg0: i32) -> (i32, i32, i32) {
    %c0_i32 = arith.constant 0 : i32
    %c0_i32_0 = arith.constant 0 : i32
    %c0_i32_1 = arith.constant 0 : i32
    return %arg0, %c0_i32, %c0_i32_0 : i32, i32, i32
  }
  func.func @transform_1(%arg0: i32) -> (i32, i32) {
    %c0_i32 = arith.constant 0 : i32
    %c0_i32_0 = arith.constant 0 : i32
    %c0_i32_1 = arith.constant 0 : i32
    return %c0_i32, %c0_i32_0 : i32, i32
  }
  func.func @transform_2(%arg0: i32) -> (i32, i32) {
    %c0_i32 = arith.constant 0 : i32
    %c0_i32_0 = arith.constant 0 : i32
    %c0_i32_1 = arith.constant 0 : i32
    return %c0_i32, %c0_i32_0 : i32, i32
  }
  func.func @transform_3(%arg0: i32) -> (i32, i32) {
    %c0_i32 = arith.constant 0 : i32
    %c0_i32_0 = arith.constant 0 : i32
    %c0_i32_1 = arith.constant 0 : i32
    return %c0_i32, %c0_i32_0 : i32, i32
  }
  func.func @transform_4(%arg0: i32) -> (i32, i32) {
    %c0_i32 = arith.constant 0 : i32
    %c0_i32_0 = arith.constant 0 : i32
    %c0_i32_1 = arith.constant 0 : i32
    return %c0_i32, %c0_i32_0 : i32, i32
  }
  func.func @transform_5(%arg0: i32) -> (i32, i32) {
    %c0_i32 = arith.constant 0 : i32
    %c0_i32_0 = arith.constant 0 : i32
    %c0_i32_1 = arith.constant 0 : i32
    return %c0_i32, %c0_i32_0 : i32, i32
  }
  func.func @transform_6(%arg0: i32) -> (i32, i32) {
    %c0_i32 = arith.constant 0 : i32
    %c0_i32_0 = arith.constant 0 : i32
    %c0_i32_1 = arith.constant 0 : i32
    return %c0_i32, %c0_i32_0 : i32, i32
  }
  func.func @transform_7(%arg0: i32) -> (i32, i32) {
    %c0_i32 = arith.constant 0 : i32
    %c0_i32_0 = arith.constant 0 : i32
    %c0_i32_1 = arith.constant 0 : i32
    return %c0_i32, %c0_i32_0 : i32, i32
  }
  func.func @transform_8(%arg0: i32) -> (i32, i32) {
    %c0_i32 = arith.constant 0 : i32
    %c0_i32_0 = arith.constant 0 : i32
    %c0_i32_1 = arith.constant 0 : i32
    return %c0_i32, %c0_i32_0 : i32, i32
  }
  func.func @transform_9(%arg0: i32) -> (i32, i32, i32) {
    %c0_i32 = arith.constant 0 : i32
    %c0_i32_0 = arith.constant 0 : i32
    %c0_i32_1 = arith.constant 0 : i32
    return %arg0, %c0_i32, %c0_i32_0 : i32, i32, i32
  }
}

module attributes {stable_mosaic.version = 11 : i64} {
  func.func @kernel(%arg0: i32, %arg1: memref<1x4x256xf32, #tpu.memory_space<vmem>>, %arg2: memref<4x36xf32, #tpu.memory_space<vmem>>, %arg3: memref<4x2xf32, #tpu.memory_space<vmem>>, %arg4: memref<4x72xf32, #tpu.memory_space<vmem>>, %arg5: memref<4x2xf32, #tpu.memory_space<vmem>>, %arg6: memref<4x108xf32, #tpu.memory_space<vmem>>, %arg7: memref<4x2xf32, #tpu.memory_space<vmem>>, %arg8: memref<4x16xf32, #tpu.memory_space<vmem>>, %arg9: memref<4x2xf32, #tpu.memory_space<vmem>>, %arg10: memref<1x4x256xf32, #tpu.memory_space<vmem>>, %arg11: memref<16x256xf32, #tpu.memory_space<vmem>>, %arg12: memref<4x324xf32, #tpu.memory_space<vmem>>, %arg13: memref<8x392xf32, #tpu.memory_space<vmem>>, %arg14: memref<12x460xf32, #tpu.memory_space<vmem>>, %arg15: memref<36x256xf32, #tpu.memory_space<vmem>>, %arg16: memref<72x256xf32, #tpu.memory_space<vmem>>, %arg17: memref<108x256xf32, #tpu.memory_space<vmem>>) attributes {dimension_semantics = [#tpu.dimension_semantics<parallel>], iteration_bounds = array<i64: 2>, scalar_prefetch = 0 : i64, scratch_operands = 7 : i64, tpu.core_type = #tpu.core_type<tc>, window_params = [{transform_indices = @transform_0, window_bounds = array<i64: 1, 4, 256>}, {pipeline_mode = #tpu.pipeline_mode<synchronous>, transform_indices = @transform_1, window_bounds = array<i64: 4, 36>}, {pipeline_mode = #tpu.pipeline_mode<synchronous>, transform_indices = @transform_2, window_bounds = array<i64: 4, 2>}, {pipeline_mode = #tpu.pipeline_mode<synchronous>, transform_indices = @transform_3, window_bounds = array<i64: 4, 72>}, {pipeline_mode = #tpu.pipeline_mode<synchronous>, transform_indices = @transform_4, window_bounds = array<i64: 4, 2>}, {pipeline_mode = #tpu.pipeline_mode<synchronous>, transform_indices = @transform_5, window_bounds = array<i64: 4, 108>}, {pipeline_mode = #tpu.pipeline_mode<synchronous>, transform_indices = @transform_6, window_bounds = array<i64: 4, 2>}, {pipeline_mode = #tpu.pipeline_mode<synchronous>, transform_indices = @transform_7, window_bounds = array<i64: 4, 16>}, {pipeline_mode = #tpu.pipeline_mode<synchronous>, transform_indices = @transform_8, window_bounds = array<i64: 4, 2>}, {transform_indices = @transform_9, window_bounds = array<i64: 1, 4, 256>}]} {
    %c0 = arith.constant 0 : index
    %c0_0 = arith.constant 0 : index
    %c0_1 = arith.constant 0 : index
    %0 = vector.load %arg1[%c0, %c0_0, %c0_1] : memref<1x4x256xf32, #tpu.memory_space<vmem>>, vector<1x4x256xf32>
    %1 = vector.shape_cast %0 : vector<1x4x256xf32> to vector<4x256xf32>
    %c12 = arith.constant 12 : index
    %c0_2 = arith.constant 0 : index
    %2 = vector.load %arg11[%c12, %c0_2] : memref<16x256xf32, #tpu.memory_space<vmem>>, vector<4x256xf32>
    tpu.vector_store %arg11[%c12, %c0_2], %1 {strides = array<i32>} : memref<16x256xf32, #tpu.memory_space<vmem>>, vector<4x256xf32>,
    %cst = arith.constant 0.000000e+00 : f32
    %3 = vector.broadcast %cst : f32 to vector<4x34xf32>
    %c0_3 = arith.constant 0 : index
    %c0_4 = arith.constant 0 : index
    %4 = vector.load %arg12[%c0_3, %c0_4] : memref<4x324xf32, #tpu.memory_space<vmem>>, vector<4x34xf32>
    tpu.vector_store %arg12[%c0_3, %c0_4], %3 {strides = array<i32>} : memref<4x324xf32, #tpu.memory_space<vmem>>, vector<4x34xf32>,
    %cst_5 = arith.constant 0.000000e+00 : f32
    %5 = vector.broadcast %cst_5 : f32 to vector<4x34xf32>
    %c0_6 = arith.constant 0 : index
    %c290 = arith.constant 290 : index
    %6 = vector.load %arg12[%c0_6, %c290] : memref<4x324xf32, #tpu.memory_space<vmem>>, vector<4x34xf32>
    tpu.vector_store %arg12[%c0_6, %c290], %5 {strides = array<i32>} : memref<4x324xf32, #tpu.memory_space<vmem>>, vector<4x34xf32>,
    %c12_7 = arith.constant 12 : index
    %c0_8 = arith.constant 0 : index
    %7 = vector.load %arg11[%c12_7, %c0_8] : memref<16x256xf32, #tpu.memory_space<vmem>>, vector<4x256xf32>
    %c0_9 = arith.constant 0 : index
    %c34 = arith.constant 34 : index
    %8 = vector.load %arg12[%c0_9, %c34] : memref<4x324xf32, #tpu.memory_space<vmem>>, vector<4x256xf32>
    tpu.vector_store %arg12[%c0_9, %c34], %7 {strides = array<i32>} : memref<4x324xf32, #tpu.memory_space<vmem>>, vector<4x256xf32>,
    %9 = tpu.iota {dimensions = array<i32: 1>} : vector<4x256xi32>
    %c16_i32 = arith.constant 16 : i32
    %c0_i32 = arith.constant 0 : i32
    %10 = arith.cmpi eq, %c16_i32, %c0_i32 : i32
    %c1_i32 = arith.constant 1 : i32
    %11 = arith.select %10, %c1_i32, %c16_i32 : i32
    %12 = vector.broadcast %11 : i32 to vector<4x256xi32>
    %13 = arith.remsi %9, %12 : vector<4x256xi32>
    %c0_i32_10 = arith.constant 0 : i32
    %14 = vector.broadcast %c0_i32_10 : i32 to vector<4x256xi32>
    %15 = arith.cmpi ne, %13, %14 : vector<4x256xi32>
    %c0_i32_11 = arith.constant 0 : i32
    %16 = vector.broadcast %c0_i32_11 : i32 to vector<4x256xi32>
    %17 = arith.cmpi slt, %13, %16 : vector<4x256xi32>
    %c0_i32_12 = arith.constant 0 : i32
    %18 = arith.cmpi slt, %11, %c0_i32_12 : i32
    %19 = vector.broadcast %18 : i1 to vector<4x256xi1>
    %20 = vector.broadcast %19 : vector<4x256xi1> to vector<4x256xi1>
    %21 = arith.xori %17, %20 : vector<4x256xi1>
    %22 = arith.andi %21, %15 : vector<4x256xi1>
    %23 = vector.broadcast %11 : i32 to vector<4x256xi32>
    %24 = arith.addi %13, %23 : vector<4x256xi32>
    %25 = arith.select %22, %24, %13 : vector<4x256xi1>, vector<4x256xi32>
    %c0_13 = arith.constant 0 : index
    %c0_14 = arith.constant 0 : index
    %26 = vector.load %arg12[%c0_13, %c0_14] : memref<4x324xf32, #tpu.memory_space<vmem>>, vector<4x256xf32>
    %c2_i32 = arith.constant 2 : i32
    %27 = vector.broadcast %c2_i32 : i32 to vector<4x256xi32>
    %28 = arith.cmpi sge, %25, %27 : vector<4x256xi32>
    %cst_15 = arith.constant 0.000000e+00 : f32
    %29 = vector.broadcast %cst_15 : f32 to vector<4x256xf32>
    %30 = arith.select %28, %26, %29 : vector<4x256xi1>, vector<4x256xf32>
    %c0_16 = arith.constant 0 : index
    %c0_17 = arith.constant 0 : index
    %31 = vector.load %arg15[%c0_16, %c0_17] : memref<36x256xf32, #tpu.memory_space<vmem>>, vector<4x256xf32>
    tpu.vector_store %arg15[%c0_16, %c0_17], %30 {strides = array<i32>} : memref<36x256xf32, #tpu.memory_space<vmem>>, vector<4x256xf32>,
    %c0_18 = arith.constant 0 : index
    %c2 = arith.constant 2 : index
    %32 = vector.load %arg12[%c0_18, %c2] : memref<4x324xf32, #tpu.memory_space<vmem>>, vector<4x256xf32>
    %c4 = arith.constant 4 : index
    %c0_19 = arith.constant 0 : index
    %33 = vector.load %arg15[%c4, %c0_19] : memref<36x256xf32, #tpu.memory_space<vmem>>, vector<4x256xf32>
    tpu.vector_store %arg15[%c4, %c0_19], %32 {strides = array<i32>} : memref<36x256xf32, #tpu.memory_space<vmem>>, vector<4x256xf32>,
    %c0_20 = arith.constant 0 : index
    %c4_21 = arith.constant 4 : index
    %34 = vector.load %arg12[%c0_20, %c4_21] : memref<4x324xf32, #tpu.memory_space<vmem>>, vector<4x256xf32>
    %c14_i32 = arith.constant 14 : i32
    %35 = vector.broadcast %c14_i32 : i32 to vector<4x256xi32>
    %36 = arith.cmpi slt, %25, %35 : vector<4x256xi32>
    %cst_22 = arith.constant 0.000000e+00 : f32
    %37 = vector.broadcast %cst_22 : f32 to vector<4x256xf32>
    %38 = arith.select %36, %34, %37 : vector<4x256xi1>, vector<4x256xf32>
    %c8 = arith.constant 8 : index
    %c0_23 = arith.constant 0 : index
    %39 = vector.load %arg15[%c8, %c0_23] : memref<36x256xf32, #tpu.memory_space<vmem>>, vector<4x256xf32>
    tpu.vector_store %arg15[%c8, %c0_23], %38 {strides = array<i32>} : memref<36x256xf32, #tpu.memory_space<vmem>>, vector<4x256xf32>,
    %c0_24 = arith.constant 0 : index
    %c32 = arith.constant 32 : index
    %40 = vector.load %arg12[%c0_24, %c32] : memref<4x324xf32, #tpu.memory_space<vmem>>, vector<4x256xf32>
    %c2_i32_25 = arith.constant 2 : i32
    %41 = vector.broadcast %c2_i32_25 : i32 to vector<4x256xi32>
    %42 = arith.cmpi sge, %25, %41 : vector<4x256xi32>
    %cst_26 = arith.constant 0.000000e+00 : f32
    %43 = vector.broadcast %cst_26 : f32 to vector<4x256xf32>
    %44 = arith.select %42, %40, %43 : vector<4x256xi1>, vector<4x256xf32>
    %c12_27 = arith.constant 12 : index
    %c0_28 = arith.constant 0 : index
    %45 = vector.load %arg15[%c12_27, %c0_28] : memref<36x256xf32, #tpu.memory_space<vmem>>, vector<4x256xf32>
    tpu.vector_store %arg15[%c12_27, %c0_28], %44 {strides = array<i32>} : memref<36x256xf32, #tpu.memory_space<vmem>>, vector<4x256xf32>,
    %c0_29 = arith.constant 0 : index
    %c34_30 = arith.constant 34 : index
    %46 = vector.load %arg12[%c0_29, %c34_30] : memref<4x324xf32, #tpu.memory_space<vmem>>, vector<4x256xf32>
    %c16 = arith.constant 16 : index
    %c0_31 = arith.constant 0 : index
    %47 = vector.load %arg15[%c16, %c0_31] : memref<36x256xf32, #tpu.memory_space<vmem>>, vector<4x256xf32>
    tpu.vector_store %arg15[%c16, %c0_31], %46 {strides = array<i32>} : memref<36x256xf32, #tpu.memory_space<vmem>>, vector<4x256xf32>,
    %c0_32 = arith.constant 0 : index
    %c36 = arith.constant 36 : index
    %48 = vector.load %arg12[%c0_32, %c36] : memref<4x324xf32, #tpu.memory_space<vmem>>, vector<4x256xf32>
    %c14_i32_33 = arith.constant 14 : i32
    %49 = vector.broadcast %c14_i32_33 : i32 to vector<4x256xi32>
    %50 = arith.cmpi slt, %25, %49 : vector<4x256xi32>
    %cst_34 = arith.constant 0.000000e+00 : f32
    %51 = vector.broadcast %cst_34 : f32 to vector<4x256xf32>
    %52 = arith.select %50, %48, %51 : vector<4x256xi1>, vector<4x256xf32>
    %c20 = arith.constant 20 : index
    %c0_35 = arith.constant 0 : index
    %53 = vector.load %arg15[%c20, %c0_35] : memref<36x256xf32, #tpu.memory_space<vmem>>, vector<4x256xf32>
    tpu.vector_store %arg15[%c20, %c0_35], %52 {strides = array<i32>} : memref<36x256xf32, #tpu.memory_space<vmem>>, vector<4x256xf32>,
    %c0_36 = arith.constant 0 : index
    %c64 = arith.constant 64 : index
    %54 = vector.load %arg12[%c0_36, %c64] : memref<4x324xf32, #tpu.memory_space<vmem>>, vector<4x256xf32>
    %c2_i32_37 = arith.constant 2 : i32
    %55 = vector.broadcast %c2_i32_37 : i32 to vector<4x256xi32>
    %56 = arith.cmpi sge, %25, %55 : vector<4x256xi32>
    %cst_38 = arith.constant 0.000000e+00 : f32
    %57 = vector.broadcast %cst_38 : f32 to vector<4x256xf32>
    %58 = arith.select %56, %54, %57 : vector<4x256xi1>, vector<4x256xf32>
    %c24 = arith.constant 24 : index
    %c0_39 = arith.constant 0 : index
    %59 = vector.load %arg15[%c24, %c0_39] : memref<36x256xf32, #tpu.memory_space<vmem>>, vector<4x256xf32>
    tpu.vector_store %arg15[%c24, %c0_39], %58 {strides = array<i32>} : memref<36x256xf32, #tpu.memory_space<vmem>>, vector<4x256xf32>,
    %c0_40 = arith.constant 0 : index
    %c66 = arith.constant 66 : index
    %60 = vector.load %arg12[%c0_40, %c66] : memref<4x324xf32, #tpu.memory_space<vmem>>, vector<4x256xf32>
    %c28 = arith.constant 28 : index
    %c0_41 = arith.constant 0 : index
    %61 = vector.load %arg15[%c28, %c0_41] : memref<36x256xf32, #tpu.memory_space<vmem>>, vector<4x256xf32>
    tpu.vector_store %arg15[%c28, %c0_41], %60 {strides = array<i32>} : memref<36x256xf32, #tpu.memory_space<vmem>>, vector<4x256xf32>,
    %c0_42 = arith.constant 0 : index
    %c68 = arith.constant 68 : index
    %62 = vector.load %arg12[%c0_42, %c68] : memref<4x324xf32, #tpu.memory_space<vmem>>, vector<4x256xf32>
    %c14_i32_43 = arith.constant 14 : i32
    %63 = vector.broadcast %c14_i32_43 : i32 to vector<4x256xi32>
    %64 = arith.cmpi slt, %25, %63 : vector<4x256xi32>
    %cst_44 = arith.constant 0.000000e+00 : f32
    %65 = vector.broadcast %cst_44 : f32 to vector<4x256xf32>
    %66 = arith.select %64, %62, %65 : vector<4x256xi1>, vector<4x256xf32>
    %c32_45 = arith.constant 32 : index
    %c0_46 = arith.constant 0 : index
    %67 = vector.load %arg15[%c32_45, %c0_46] : memref<36x256xf32, #tpu.memory_space<vmem>>, vector<4x256xf32>
    tpu.vector_store %arg15[%c32_45, %c0_46], %66 {strides = array<i32>} : memref<36x256xf32, #tpu.memory_space<vmem>>, vector<4x256xf32>,
    %c0_47 = arith.constant 0 : index
    %c0_48 = arith.constant 0 : index
    %68 = vector.load %arg2[%c0_47, %c0_48] : memref<4x36xf32, #tpu.memory_space<vmem>>, vector<4x36xf32>
    %c0_49 = arith.constant 0 : index
    %c0_50 = arith.constant 0 : index
    %69 = vector.load %arg15[%c0_49, %c0_50] : memref<36x256xf32, #tpu.memory_space<vmem>>, vector<36x256xf32>
    %cst_51 = arith.constant dense<0.000000e+00> : vector<4x256xf32>
    %70 = tpu.matmul %68, %69, %cst_51 {dimension_numbers = #tpu.dot_dimension_numbers<[1], [0], [0], [1], [0, 0, 1, 1], [], []>} : vector<4x36xf32>, vector<36x256xf32>, vector<4x256xf32> -> vector<4x256xf32>
    %c0_52 = arith.constant 0 : index
    %c0_53 = arith.constant 0 : index
    %71 = vector.load %arg3[%c0_52, %c0_53] : memref<4x2xf32, #tpu.memory_space<vmem>>, vector<4x1xf32>
    %72 = vector.broadcast %71 : vector<4x1xf32> to vector<4x256xf32>
    %73 = arith.mulf %70, %72 : vector<4x256xf32>
    %c0_54 = arith.constant 0 : index
    %c1 = arith.constant 1 : index
    %74 = vector.load %arg3[%c0_54, %c1] : memref<4x2xf32, #tpu.memory_space<vmem>>, vector<4x1xf32>
    %75 = vector.broadcast %74 : vector<4x1xf32> to vector<4x256xf32>
    %76 = arith.addf %73, %75 : vector<4x256xf32>
    %cst_55 = arith.constant 0.000000e+00 : f32
    %77 = vector.broadcast %cst_55 : f32 to vector<4x256xf32>
    %78 = arith.maximumf %76, %77 : vector<4x256xf32>
    %c8_56 = arith.constant 8 : index
    %c0_57 = arith.constant 0 : index
    %79 = vector.load %arg11[%c8_56, %c0_57] : memref<16x256xf32, #tpu.memory_space<vmem>>, vector<4x256xf32>
    tpu.vector_store %arg11[%c8_56, %c0_57], %78 {strides = array<i32>} : memref<16x256xf32, #tpu.memory_space<vmem>>, vector<4x256xf32>,
    %cst_58 = arith.constant 0.000000e+00 : f32
    %80 = vector.broadcast %cst_58 : f32 to vector<8x68xf32>
    %c0_59 = arith.constant 0 : index
    %c0_60 = arith.constant 0 : index
    %81 = vector.load %arg13[%c0_59, %c0_60] : memref<8x392xf32, #tpu.memory_space<vmem>>, vector<8x68xf32>
    tpu.vector_store %arg13[%c0_59, %c0_60], %80 {strides = array<i32>} : memref<8x392xf32, #tpu.memory_space<vmem>>, vector<8x68xf32>,
    %cst_61 = arith.constant 0.000000e+00 : f32
    %82 = vector.broadcast %cst_61 : f32 to vector<8x68xf32>
    %c0_62 = arith.constant 0 : index
    %c324 = arith.constant 324 : index
    %83 = vector.load %arg13[%c0_62, %c324] : memref<8x392xf32, #tpu.memory_space<vmem>>, vector<8x68xf32>
    tpu.vector_store %arg13[%c0_62, %c324], %82 {strides = array<i32>} : memref<8x392xf32, #tpu.memory_space<vmem>>, vector<8x68xf32>,
    %c8_63 = arith.constant 8 : index
    %c0_64 = arith.constant 0 : index
    %84 = vector.load %arg11[%c8_63, %c0_64] : memref<16x256xf32, #tpu.memory_space<vmem>>, vector<8x256xf32>
    %c0_65 = arith.constant 0 : index
    %c68_66 = arith.constant 68 : index
    %85 = vector.load %arg13[%c0_65, %c68_66] : memref<8x392xf32, #tpu.memory_space<vmem>>, vector<8x256xf32>
    tpu.vector_store %arg13[%c0_65, %c68_66], %84 {strides = array<i32>} : memref<8x392xf32, #tpu.memory_space<vmem>>, vector<8x256xf32>,
    %86 = tpu.iota {dimensions = array<i32: 1>} : vector<8x256xi32>
    %c16_i32_67 = arith.constant 16 : i32
    %c0_i32_68 = arith.constant 0 : i32
    %87 = arith.cmpi eq, %c16_i32_67, %c0_i32_68 : i32
    %c1_i32_69 = arith.constant 1 : i32
    %88 = arith.select %87, %c1_i32_69, %c16_i32_67 : i32
    %89 = vector.broadcast %88 : i32 to vector<8x256xi32>
    %90 = arith.remsi %86, %89 : vector<8x256xi32>
    %c0_i32_70 = arith.constant 0 : i32
    %91 = vector.broadcast %c0_i32_70 : i32 to vector<8x256xi32>
    %92 = arith.cmpi ne, %90, %91 : vector<8x256xi32>
    %c0_i32_71 = arith.constant 0 : i32
    %93 = vector.broadcast %c0_i32_71 : i32 to vector<8x256xi32>
    %94 = arith.cmpi slt, %90, %93 : vector<8x256xi32>
    %c0_i32_72 = arith.constant 0 : i32
    %95 = arith.cmpi slt, %88, %c0_i32_72 : i32
    %96 = vector.broadcast %95 : i1 to vector<8x256xi1>
    %97 = vector.broadcast %96 : vector<8x256xi1> to vector<8x256xi1>
    %98 = arith.xori %94, %97 : vector<8x256xi1>
    %99 = arith.andi %98, %92 : vector<8x256xi1>
    %100 = vector.broadcast %88 : i32 to vector<8x256xi32>
    %101 = arith.addi %90, %100 : vector<8x256xi32>
    %102 = arith.select %99, %101, %90 : vector<8x256xi1>, vector<8x256xi32>
    %c0_73 = arith.constant 0 : index
    %c0_74 = arith.constant 0 : index
    %103 = vector.load %arg13[%c0_73, %c0_74] : memref<8x392xf32, #tpu.memory_space<vmem>>, vector<8x256xf32>
    %c4_i32 = arith.constant 4 : i32
    %104 = vector.broadcast %c4_i32 : i32 to vector<8x256xi32>
    %105 = arith.cmpi sge, %102, %104 : vector<8x256xi32>
    %cst_75 = arith.constant 0.000000e+00 : f32
    %106 = vector.broadcast %cst_75 : f32 to vector<8x256xf32>
    %107 = arith.select %105, %103, %106 : vector<8x256xi1>, vector<8x256xf32>
    %c0_76 = arith.constant 0 : index
    %c0_77 = arith.constant 0 : index
    %108 = vector.load %arg16[%c0_76, %c0_77] : memref<72x256xf32, #tpu.memory_space<vmem>>, vector<8x256xf32>
    tpu.vector_store %arg16[%c0_76, %c0_77], %107 {strides = array<i32>} : memref<72x256xf32, #tpu.memory_space<vmem>>, vector<8x256xf32>,
    %c0_78 = arith.constant 0 : index
    %c4_79 = arith.constant 4 : index
    %109 = vector.load %arg13[%c0_78, %c4_79] : memref<8x392xf32, #tpu.memory_space<vmem>>, vector<8x256xf32>
    %c8_80 = arith.constant 8 : index
    %c0_81 = arith.constant 0 : index
    %110 = vector.load %arg16[%c8_80, %c0_81] : memref<72x256xf32, #tpu.memory_space<vmem>>, vector<8x256xf32>
    tpu.vector_store %arg16[%c8_80, %c0_81], %109 {strides = array<i32>} : memref<72x256xf32, #tpu.memory_space<vmem>>, vector<8x256xf32>,
    %c0_82 = arith.constant 0 : index
    %c8_83 = arith.constant 8 : index
    %111 = vector.load %arg13[%c0_82, %c8_83] : memref<8x392xf32, #tpu.memory_space<vmem>>, vector<8x256xf32>
    %c12_i32 = arith.constant 12 : i32
    %112 = vector.broadcast %c12_i32 : i32 to vector<8x256xi32>
    %113 = arith.cmpi slt, %102, %112 : vector<8x256xi32>
    %cst_84 = arith.constant 0.000000e+00 : f32
    %114 = vector.broadcast %cst_84 : f32 to vector<8x256xf32>
    %115 = arith.select %113, %111, %114 : vector<8x256xi1>, vector<8x256xf32>
    %c16_85 = arith.constant 16 : index
    %c0_86 = arith.constant 0 : index
    %116 = vector.load %arg16[%c16_85, %c0_86] : memref<72x256xf32, #tpu.memory_space<vmem>>, vector<8x256xf32>
    tpu.vector_store %arg16[%c16_85, %c0_86], %115 {strides = array<i32>} : memref<72x256xf32, #tpu.memory_space<vmem>>, vector<8x256xf32>,
    %c0_87 = arith.constant 0 : index
    %c64_88 = arith.constant 64 : index
    %117 = vector.load %arg13[%c0_87, %c64_88] : memref<8x392xf32, #tpu.memory_space<vmem>>, vector<8x256xf32>
    %c4_i32_89 = arith.constant 4 : i32
    %118 = vector.broadcast %c4_i32_89 : i32 to vector<8x256xi32>
    %119 = arith.cmpi sge, %102, %118 : vector<8x256xi32>
    %cst_90 = arith.constant 0.000000e+00 : f32
    %120 = vector.broadcast %cst_90 : f32 to vector<8x256xf32>
    %121 = arith.select %119, %117, %120 : vector<8x256xi1>, vector<8x256xf32>
    %c24_91 = arith.constant 24 : index
    %c0_92 = arith.constant 0 : index
    %122 = vector.load %arg16[%c24_91, %c0_92] : memref<72x256xf32, #tpu.memory_space<vmem>>, vector<8x256xf32>
    tpu.vector_store %arg16[%c24_91, %c0_92], %121 {strides = array<i32>} : memref<72x256xf32, #tpu.memory_space<vmem>>, vector<8x256xf32>,
    %c0_93 = arith.constant 0 : index
    %c68_94 = arith.constant 68 : index
    %123 = vector.load %arg13[%c0_93, %c68_94] : memref<8x392xf32, #tpu.memory_space<vmem>>, vector<8x256xf32>
    %c32_95 = arith.constant 32 : index
    %c0_96 = arith.constant 0 : index
    %124 = vector.load %arg16[%c32_95, %c0_96] : memref<72x256xf32, #tpu.memory_space<vmem>>, vector<8x256xf32>
    tpu.vector_store %arg16[%c32_95, %c0_96], %123 {strides = array<i32>} : memref<72x256xf32, #tpu.memory_space<vmem>>, vector<8x256xf32>,
    %c0_97 = arith.constant 0 : index
    %c72 = arith.constant 72 : index
    %125 = vector.load %arg13[%c0_97, %c72] : memref<8x392xf32, #tpu.memory_space<vmem>>, vector<8x256xf32>
    %c12_i32_98 = arith.constant 12 : i32
    %126 = vector.broadcast %c12_i32_98 : i32 to vector<8x256xi32>
    %127 = arith.cmpi slt, %102, %126 : vector<8x256xi32>
    %cst_99 = arith.constant 0.000000e+00 : f32
    %128 = vector.broadcast %cst_99 : f32 to vector<8x256xf32>
    %129 = arith.select %127, %125, %128 : vector<8x256xi1>, vector<8x256xf32>
    %c40 = arith.constant 40 : index
    %c0_100 = arith.constant 0 : index
    %130 = vector.load %arg16[%c40, %c0_100] : memref<72x256xf32, #tpu.memory_space<vmem>>, vector<8x256xf32>
    tpu.vector_store %arg16[%c40, %c0_100], %129 {strides = array<i32>} : memref<72x256xf32, #tpu.memory_space<vmem>>, vector<8x256xf32>,
    %c0_101 = arith.constant 0 : index
    %c128 = arith.constant 128 : index
    %131 = vector.load %arg13[%c0_101, %c128] : memref<8x392xf32, #tpu.memory_space<vmem>>, vector<8x256xf32>
    %c4_i32_102 = arith.constant 4 : i32
    %132 = vector.broadcast %c4_i32_102 : i32 to vector<8x256xi32>
    %133 = arith.cmpi sge, %102, %132 : vector<8x256xi32>
    %cst_103 = arith.constant 0.000000e+00 : f32
    %134 = vector.broadcast %cst_103 : f32 to vector<8x256xf32>
    %135 = arith.select %133, %131, %134 : vector<8x256xi1>, vector<8x256xf32>
    %c48 = arith.constant 48 : index
    %c0_104 = arith.constant 0 : index
    %136 = vector.load %arg16[%c48, %c0_104] : memref<72x256xf32, #tpu.memory_space<vmem>>, vector<8x256xf32>
    tpu.vector_store %arg16[%c48, %c0_104], %135 {strides = array<i32>} : memref<72x256xf32, #tpu.memory_space<vmem>>, vector<8x256xf32>,
    %c0_105 = arith.constant 0 : index
    %c132 = arith.constant 132 : index
    %137 = vector.load %arg13[%c0_105, %c132] : memref<8x392xf32, #tpu.memory_space<vmem>>, vector<8x256xf32>
    %c56 = arith.constant 56 : index
    %c0_106 = arith.constant 0 : index
    %138 = vector.load %arg16[%c56, %c0_106] : memref<72x256xf32, #tpu.memory_space<vmem>>, vector<8x256xf32>
    tpu.vector_store %arg16[%c56, %c0_106], %137 {strides = array<i32>} : memref<72x256xf32, #tpu.memory_space<vmem>>, vector<8x256xf32>,
    %c0_107 = arith.constant 0 : index
    %c136 = arith.constant 136 : index
    %139 = vector.load %arg13[%c0_107, %c136] : memref<8x392xf32, #tpu.memory_space<vmem>>, vector<8x256xf32>
    %c12_i32_108 = arith.constant 12 : i32
    %140 = vector.broadcast %c12_i32_108 : i32 to vector<8x256xi32>
    %141 = arith.cmpi slt, %102, %140 : vector<8x256xi32>
    %cst_109 = arith.constant 0.000000e+00 : f32
    %142 = vector.broadcast %cst_109 : f32 to vector<8x256xf32>
    %143 = arith.select %141, %139, %142 : vector<8x256xi1>, vector<8x256xf32>
    %c64_110 = arith.constant 64 : index
    %c0_111 = arith.constant 0 : index
    %144 = vector.load %arg16[%c64_110, %c0_111] : memref<72x256xf32, #tpu.memory_space<vmem>>, vector<8x256xf32>
    tpu.vector_store %arg16[%c64_110, %c0_111], %143 {strides = array<i32>} : memref<72x256xf32, #tpu.memory_space<vmem>>, vector<8x256xf32>,
    %c0_112 = arith.constant 0 : index
    %c0_113 = arith.constant 0 : index
    %145 = vector.load %arg4[%c0_112, %c0_113] : memref<4x72xf32, #tpu.memory_space<vmem>>, vector<4x72xf32>
    %c0_114 = arith.constant 0 : index
    %c0_115 = arith.constant 0 : index
    %146 = vector.load %arg16[%c0_114, %c0_115] : memref<72x256xf32, #tpu.memory_space<vmem>>, vector<72x256xf32>
    %cst_116 = arith.constant dense<0.000000e+00> : vector<4x256xf32>
    %147 = tpu.matmul %145, %146, %cst_116 {dimension_numbers = #tpu.dot_dimension_numbers<[1], [0], [0], [1], [0, 0, 1, 1], [], []>} : vector<4x72xf32>, vector<72x256xf32>, vector<4x256xf32> -> vector<4x256xf32>
    %c0_117 = arith.constant 0 : index
    %c0_118 = arith.constant 0 : index
    %148 = vector.load %arg5[%c0_117, %c0_118] : memref<4x2xf32, #tpu.memory_space<vmem>>, vector<4x1xf32>
    %149 = vector.broadcast %148 : vector<4x1xf32> to vector<4x256xf32>
    %150 = arith.mulf %147, %149 : vector<4x256xf32>
    %c0_119 = arith.constant 0 : index
    %c1_120 = arith.constant 1 : index
    %151 = vector.load %arg5[%c0_119, %c1_120] : memref<4x2xf32, #tpu.memory_space<vmem>>, vector<4x1xf32>
    %152 = vector.broadcast %151 : vector<4x1xf32> to vector<4x256xf32>
    %153 = arith.addf %150, %152 : vector<4x256xf32>
    %cst_121 = arith.constant 0.000000e+00 : f32
    %154 = vector.broadcast %cst_121 : f32 to vector<4x256xf32>
    %155 = arith.maximumf %153, %154 : vector<4x256xf32>
    %c4_122 = arith.constant 4 : index
    %c0_123 = arith.constant 0 : index
    %156 = vector.load %arg11[%c4_122, %c0_123] : memref<16x256xf32, #tpu.memory_space<vmem>>, vector<4x256xf32>
    tpu.vector_store %arg11[%c4_122, %c0_123], %155 {strides = array<i32>} : memref<16x256xf32, #tpu.memory_space<vmem>>, vector<4x256xf32>,
    %cst_124 = arith.constant 0.000000e+00 : f32
    %157 = vector.broadcast %cst_124 : f32 to vector<12x102xf32>
    %c0_125 = arith.constant 0 : index
    %c0_126 = arith.constant 0 : index
    %158 = vector.load %arg14[%c0_125, %c0_126] : memref<12x460xf32, #tpu.memory_space<vmem>>, vector<12x102xf32>
    tpu.vector_store %arg14[%c0_125, %c0_126], %157 {strides = array<i32>} : memref<12x460xf32, #tpu.memory_space<vmem>>, vector<12x102xf32>,
    %cst_127 = arith.constant 0.000000e+00 : f32
    %159 = vector.broadcast %cst_127 : f32 to vector<12x102xf32>
    %c0_128 = arith.constant 0 : index
    %c358 = arith.constant 358 : index
    %160 = vector.load %arg14[%c0_128, %c358] : memref<12x460xf32, #tpu.memory_space<vmem>>, vector<12x102xf32>
    tpu.vector_store %arg14[%c0_128, %c358], %159 {strides = array<i32>} : memref<12x460xf32, #tpu.memory_space<vmem>>, vector<12x102xf32>,
    %c4_129 = arith.constant 4 : index
    %c0_130 = arith.constant 0 : index
    %161 = vector.load %arg11[%c4_129, %c0_130] : memref<16x256xf32, #tpu.memory_space<vmem>>, vector<12x256xf32>
    %c0_131 = arith.constant 0 : index
    %c102 = arith.constant 102 : index
    %162 = vector.load %arg14[%c0_131, %c102] : memref<12x460xf32, #tpu.memory_space<vmem>>, vector<12x256xf32>
    tpu.vector_store %arg14[%c0_131, %c102], %161 {strides = array<i32>} : memref<12x460xf32, #tpu.memory_space<vmem>>, vector<12x256xf32>,
    %163 = tpu.iota {dimensions = array<i32: 1>} : vector<12x256xi32>
    %c16_i32_132 = arith.constant 16 : i32
    %c0_i32_133 = arith.constant 0 : i32
    %164 = arith.cmpi eq, %c16_i32_132, %c0_i32_133 : i32
    %c1_i32_134 = arith.constant 1 : i32
    %165 = arith.select %164, %c1_i32_134, %c16_i32_132 : i32
    %166 = vector.broadcast %165 : i32 to vector<12x256xi32>
    %167 = arith.remsi %163, %166 : vector<12x256xi32>
    %c0_i32_135 = arith.constant 0 : i32
    %168 = vector.broadcast %c0_i32_135 : i32 to vector<12x256xi32>
    %169 = arith.cmpi ne, %167, %168 : vector<12x256xi32>
    %c0_i32_136 = arith.constant 0 : i32
    %170 = vector.broadcast %c0_i32_136 : i32 to vector<12x256xi32>
    %171 = arith.cmpi slt, %167, %170 : vector<12x256xi32>
    %c0_i32_137 = arith.constant 0 : i32
    %172 = arith.cmpi slt, %165, %c0_i32_137 : i32
    %173 = vector.broadcast %172 : i1 to vector<12x256xi1>
    %174 = vector.broadcast %173 : vector<12x256xi1> to vector<12x256xi1>
    %175 = arith.xori %171, %174 : vector<12x256xi1>
    %176 = arith.andi %175, %169 : vector<12x256xi1>
    %177 = vector.broadcast %165 : i32 to vector<12x256xi32>
    %178 = arith.addi %167, %177 : vector<12x256xi32>
    %179 = arith.select %176, %178, %167 : vector<12x256xi1>, vector<12x256xi32>
    %c0_138 = arith.constant 0 : index
    %c0_139 = arith.constant 0 : index
    %180 = vector.load %arg14[%c0_138, %c0_139] : memref<12x460xf32, #tpu.memory_space<vmem>>, vector<12x256xf32>
    %c6_i32 = arith.constant 6 : i32
    %181 = vector.broadcast %c6_i32 : i32 to vector<12x256xi32>
    %182 = arith.cmpi sge, %179, %181 : vector<12x256xi32>
    %cst_140 = arith.constant 0.000000e+00 : f32
    %183 = vector.broadcast %cst_140 : f32 to vector<12x256xf32>
    %184 = arith.select %182, %180, %183 : vector<12x256xi1>, vector<12x256xf32>
    %c0_141 = arith.constant 0 : index
    %c0_142 = arith.constant 0 : index
    %185 = vector.load %arg17[%c0_141, %c0_142] : memref<108x256xf32, #tpu.memory_space<vmem>>, vector<12x256xf32>
    tpu.vector_store %arg17[%c0_141, %c0_142], %184 {strides = array<i32>} : memref<108x256xf32, #tpu.memory_space<vmem>>, vector<12x256xf32>,
    %c0_143 = arith.constant 0 : index
    %c6 = arith.constant 6 : index
    %186 = vector.load %arg14[%c0_143, %c6] : memref<12x460xf32, #tpu.memory_space<vmem>>, vector<12x256xf32>
    %c12_144 = arith.constant 12 : index
    %c0_145 = arith.constant 0 : index
    %187 = vector.load %arg17[%c12_144, %c0_145] : memref<108x256xf32, #tpu.memory_space<vmem>>, vector<12x256xf32>
    tpu.vector_store %arg17[%c12_144, %c0_145], %186 {strides = array<i32>} : memref<108x256xf32, #tpu.memory_space<vmem>>, vector<12x256xf32>,
    %c0_146 = arith.constant 0 : index
    %c12_147 = arith.constant 12 : index
    %188 = vector.load %arg14[%c0_146, %c12_147] : memref<12x460xf32, #tpu.memory_space<vmem>>, vector<12x256xf32>
    %c10_i32 = arith.constant 10 : i32
    %189 = vector.broadcast %c10_i32 : i32 to vector<12x256xi32>
    %190 = arith.cmpi slt, %179, %189 : vector<12x256xi32>
    %cst_148 = arith.constant 0.000000e+00 : f32
    %191 = vector.broadcast %cst_148 : f32 to vector<12x256xf32>
    %192 = arith.select %190, %188, %191 : vector<12x256xi1>, vector<12x256xf32>
    %c24_149 = arith.constant 24 : index
    %c0_150 = arith.constant 0 : index
    %193 = vector.load %arg17[%c24_149, %c0_150] : memref<108x256xf32, #tpu.memory_space<vmem>>, vector<12x256xf32>
    tpu.vector_store %arg17[%c24_149, %c0_150], %192 {strides = array<i32>} : memref<108x256xf32, #tpu.memory_space<vmem>>, vector<12x256xf32>,
    %c0_151 = arith.constant 0 : index
    %c96 = arith.constant 96 : index
    %194 = vector.load %arg14[%c0_151, %c96] : memref<12x460xf32, #tpu.memory_space<vmem>>, vector<12x256xf32>
    %c6_i32_152 = arith.constant 6 : i32
    %195 = vector.broadcast %c6_i32_152 : i32 to vector<12x256xi32>
    %196 = arith.cmpi sge, %179, %195 : vector<12x256xi32>
    %cst_153 = arith.constant 0.000000e+00 : f32
    %197 = vector.broadcast %cst_153 : f32 to vector<12x256xf32>
    %198 = arith.select %196, %194, %197 : vector<12x256xi1>, vector<12x256xf32>
    %c36_154 = arith.constant 36 : index
    %c0_155 = arith.constant 0 : index
    %199 = vector.load %arg17[%c36_154, %c0_155] : memref<108x256xf32, #tpu.memory_space<vmem>>, vector<12x256xf32>
    tpu.vector_store %arg17[%c36_154, %c0_155], %198 {strides = array<i32>} : memref<108x256xf32, #tpu.memory_space<vmem>>, vector<12x256xf32>,
    %c0_156 = arith.constant 0 : index
    %c102_157 = arith.constant 102 : index
    %200 = vector.load %arg14[%c0_156, %c102_157] : memref<12x460xf32, #tpu.memory_space<vmem>>, vector<12x256xf32>
    %c48_158 = arith.constant 48 : index
    %c0_159 = arith.constant 0 : index
    %201 = vector.load %arg17[%c48_158, %c0_159] : memref<108x256xf32, #tpu.memory_space<vmem>>, vector<12x256xf32>
    tpu.vector_store %arg17[%c48_158, %c0_159], %200 {strides = array<i32>} : memref<108x256xf32, #tpu.memory_space<vmem>>, vector<12x256xf32>,
    %c0_160 = arith.constant 0 : index
    %c108 = arith.constant 108 : index
    %202 = vector.load %arg14[%c0_160, %c108] : memref<12x460xf32, #tpu.memory_space<vmem>>, vector<12x256xf32>
    %c10_i32_161 = arith.constant 10 : i32
    %203 = vector.broadcast %c10_i32_161 : i32 to vector<12x256xi32>
    %204 = arith.cmpi slt, %179, %203 : vector<12x256xi32>
    %cst_162 = arith.constant 0.000000e+00 : f32
    %205 = vector.broadcast %cst_162 : f32 to vector<12x256xf32>
    %206 = arith.select %204, %202, %205 : vector<12x256xi1>, vector<12x256xf32>
    %c60 = arith.constant 60 : index
    %c0_163 = arith.constant 0 : index
    %207 = vector.load %arg17[%c60, %c0_163] : memref<108x256xf32, #tpu.memory_space<vmem>>, vector<12x256xf32>
    tpu.vector_store %arg17[%c60, %c0_163], %206 {strides = array<i32>} : memref<108x256xf32, #tpu.memory_space<vmem>>, vector<12x256xf32>,
    %c0_164 = arith.constant 0 : index
    %c192 = arith.constant 192 : index
    %208 = vector.load %arg14[%c0_164, %c192] : memref<12x460xf32, #tpu.memory_space<vmem>>, vector<12x256xf32>
    %c6_i32_165 = arith.constant 6 : i32
    %209 = vector.broadcast %c6_i32_165 : i32 to vector<12x256xi32>
    %210 = arith.cmpi sge, %179, %209 : vector<12x256xi32>
    %cst_166 = arith.constant 0.000000e+00 : f32
    %211 = vector.broadcast %cst_166 : f32 to vector<12x256xf32>
    %212 = arith.select %210, %208, %211 : vector<12x256xi1>, vector<12x256xf32>
    %c72_167 = arith.constant 72 : index
    %c0_168 = arith.constant 0 : index
    %213 = vector.load %arg17[%c72_167, %c0_168] : memref<108x256xf32, #tpu.memory_space<vmem>>, vector<12x256xf32>
    tpu.vector_store %arg17[%c72_167, %c0_168], %212 {strides = array<i32>} : memref<108x256xf32, #tpu.memory_space<vmem>>, vector<12x256xf32>,
    %c0_169 = arith.constant 0 : index
    %c198 = arith.constant 198 : index
    %214 = vector.load %arg14[%c0_169, %c198] : memref<12x460xf32, #tpu.memory_space<vmem>>, vector<12x256xf32>
    %c84 = arith.constant 84 : index
    %c0_170 = arith.constant 0 : index
    %215 = vector.load %arg17[%c84, %c0_170] : memref<108x256xf32, #tpu.memory_space<vmem>>, vector<12x256xf32>
    tpu.vector_store %arg17[%c84, %c0_170], %214 {strides = array<i32>} : memref<108x256xf32, #tpu.memory_space<vmem>>, vector<12x256xf32>,
    %c0_171 = arith.constant 0 : index
    %c204 = arith.constant 204 : index
    %216 = vector.load %arg14[%c0_171, %c204] : memref<12x460xf32, #tpu.memory_space<vmem>>, vector<12x256xf32>
    %c10_i32_172 = arith.constant 10 : i32
    %217 = vector.broadcast %c10_i32_172 : i32 to vector<12x256xi32>
    %218 = arith.cmpi slt, %179, %217 : vector<12x256xi32>
    %cst_173 = arith.constant 0.000000e+00 : f32
    %219 = vector.broadcast %cst_173 : f32 to vector<12x256xf32>
    %220 = arith.select %218, %216, %219 : vector<12x256xi1>, vector<12x256xf32>
    %c96_174 = arith.constant 96 : index
    %c0_175 = arith.constant 0 : index
    %221 = vector.load %arg17[%c96_174, %c0_175] : memref<108x256xf32, #tpu.memory_space<vmem>>, vector<12x256xf32>
    tpu.vector_store %arg17[%c96_174, %c0_175], %220 {strides = array<i32>} : memref<108x256xf32, #tpu.memory_space<vmem>>, vector<12x256xf32>,
    %c0_176 = arith.constant 0 : index
    %c0_177 = arith.constant 0 : index
    %222 = vector.load %arg6[%c0_176, %c0_177] : memref<4x108xf32, #tpu.memory_space<vmem>>, vector<4x108xf32>
    %c0_178 = arith.constant 0 : index
    %c0_179 = arith.constant 0 : index
    %223 = vector.load %arg17[%c0_178, %c0_179] : memref<108x256xf32, #tpu.memory_space<vmem>>, vector<108x256xf32>
    %cst_180 = arith.constant dense<0.000000e+00> : vector<4x256xf32>
    %224 = tpu.matmul %222, %223, %cst_180 {dimension_numbers = #tpu.dot_dimension_numbers<[1], [0], [0], [1], [0, 0, 1, 1], [], []>} : vector<4x108xf32>, vector<108x256xf32>, vector<4x256xf32> -> vector<4x256xf32>
    %c0_181 = arith.constant 0 : index
    %c0_182 = arith.constant 0 : index
    %225 = vector.load %arg7[%c0_181, %c0_182] : memref<4x2xf32, #tpu.memory_space<vmem>>, vector<4x1xf32>
    %226 = vector.broadcast %225 : vector<4x1xf32> to vector<4x256xf32>
    %227 = arith.mulf %224, %226 : vector<4x256xf32>
    %c0_183 = arith.constant 0 : index
    %c1_184 = arith.constant 1 : index
    %228 = vector.load %arg7[%c0_183, %c1_184] : memref<4x2xf32, #tpu.memory_space<vmem>>, vector<4x1xf32>
    %229 = vector.broadcast %228 : vector<4x1xf32> to vector<4x256xf32>
    %230 = arith.addf %227, %229 : vector<4x256xf32>
    %cst_185 = arith.constant 0.000000e+00 : f32
    %231 = vector.broadcast %cst_185 : f32 to vector<4x256xf32>
    %232 = arith.maximumf %230, %231 : vector<4x256xf32>
    %c0_186 = arith.constant 0 : index
    %c0_187 = arith.constant 0 : index
    %233 = vector.load %arg11[%c0_186, %c0_187] : memref<16x256xf32, #tpu.memory_space<vmem>>, vector<4x256xf32>
    tpu.vector_store %arg11[%c0_186, %c0_187], %232 {strides = array<i32>} : memref<16x256xf32, #tpu.memory_space<vmem>>, vector<4x256xf32>,
    %c0_188 = arith.constant 0 : index
    %c0_189 = arith.constant 0 : index
    %234 = vector.load %arg8[%c0_188, %c0_189] : memref<4x16xf32, #tpu.memory_space<vmem>>, vector<4x16xf32>
    %c0_190 = arith.constant 0 : index
    %c0_191 = arith.constant 0 : index
    %235 = vector.load %arg11[%c0_190, %c0_191] : memref<16x256xf32, #tpu.memory_space<vmem>>, vector<16x256xf32>
    %cst_192 = arith.constant dense<0.000000e+00> : vector<4x256xf32>
    %236 = tpu.matmul %234, %235, %cst_192 {dimension_numbers = #tpu.dot_dimension_numbers<[1], [0], [0], [1], [0, 0, 1, 1], [], []>} : vector<4x16xf32>, vector<16x256xf32>, vector<4x256xf32> -> vector<4x256xf32>
    %c0_193 = arith.constant 0 : index
    %c0_194 = arith.constant 0 : index
    %237 = vector.load %arg9[%c0_193, %c0_194] : memref<4x2xf32, #tpu.memory_space<vmem>>, vector<4x1xf32>
    %238 = vector.broadcast %237 : vector<4x1xf32> to vector<4x256xf32>
    %239 = arith.mulf %236, %238 : vector<4x256xf32>
    %c0_195 = arith.constant 0 : index
    %c1_196 = arith.constant 1 : index
    %240 = vector.load %arg9[%c0_195, %c1_196] : memref<4x2xf32, #tpu.memory_space<vmem>>, vector<4x1xf32>
    %241 = vector.broadcast %240 : vector<4x1xf32> to vector<4x256xf32>
    %242 = arith.addf %239, %241 : vector<4x256xf32>
    %cst_197 = arith.constant 0.000000e+00 : f32
    %243 = vector.broadcast %cst_197 : f32 to vector<4x256xf32>
    %244 = arith.maximumf %242, %243 : vector<4x256xf32>
    %c0_198 = arith.constant 0 : index
    %c0_199 = arith.constant 0 : index
    %c0_200 = arith.constant 0 : index
    %245 = vector.load %arg10[%c0_198, %c0_199, %c0_200] : memref<1x4x256xf32, #tpu.memory_space<vmem>>, vector<1x4x256xf32>
    %246 = vector.shape_cast %245 : vector<1x4x256xf32> to vector<4x256xf32>
    %247 = vector.shape_cast %244 : vector<4x256xf32> to vector<1x4x256xf32>
    tpu.vector_store %arg10[%c0_198, %c0_199, %c0_200], %247 {strides = array<i32>} : memref<1x4x256xf32, #tpu.memory_space<vmem>>, vector<1x4x256xf32>,
    return
  }
  func.func @transform_0(%arg0: i32) -> (i32, i32, i32) {
    %c0_i32 = arith.constant 0 : i32
    %c0_i32_0 = arith.constant 0 : i32
    %c0_i32_1 = arith.constant 0 : i32
    return %arg0, %c0_i32, %c0_i32_0 : i32, i32, i32
  }
  func.func @transform_1(%arg0: i32) -> (i32, i32) {
    %c0_i32 = arith.constant 0 : i32
    %c0_i32_0 = arith.constant 0 : i32
    %c0_i32_1 = arith.constant 0 : i32
    return %c0_i32, %c0_i32_0 : i32, i32
  }
  func.func @transform_2(%arg0: i32) -> (i32, i32) {
    %c0_i32 = arith.constant 0 : i32
    %c0_i32_0 = arith.constant 0 : i32
    %c0_i32_1 = arith.constant 0 : i32
    return %c0_i32, %c0_i32_0 : i32, i32
  }
  func.func @transform_3(%arg0: i32) -> (i32, i32) {
    %c0_i32 = arith.constant 0 : i32
    %c0_i32_0 = arith.constant 0 : i32
    %c0_i32_1 = arith.constant 0 : i32
    return %c0_i32, %c0_i32_0 : i32, i32
  }
  func.func @transform_4(%arg0: i32) -> (i32, i32) {
    %c0_i32 = arith.constant 0 : i32
    %c0_i32_0 = arith.constant 0 : i32
    %c0_i32_1 = arith.constant 0 : i32
    return %c0_i32, %c0_i32_0 : i32, i32
  }
  func.func @transform_5(%arg0: i32) -> (i32, i32) {
    %c0_i32 = arith.constant 0 : i32
    %c0_i32_0 = arith.constant 0 : i32
    %c0_i32_1 = arith.constant 0 : i32
    return %c0_i32, %c0_i32_0 : i32, i32
  }
  func.func @transform_6(%arg0: i32) -> (i32, i32) {
    %c0_i32 = arith.constant 0 : i32
    %c0_i32_0 = arith.constant 0 : i32
    %c0_i32_1 = arith.constant 0 : i32
    return %c0_i32, %c0_i32_0 : i32, i32
  }
  func.func @transform_7(%arg0: i32) -> (i32, i32) {
    %c0_i32 = arith.constant 0 : i32
    %c0_i32_0 = arith.constant 0 : i32
    %c0_i32_1 = arith.constant 0 : i32
    return %c0_i32, %c0_i32_0 : i32, i32
  }
  func.func @transform_8(%arg0: i32) -> (i32, i32) {
    %c0_i32 = arith.constant 0 : i32
    %c0_i32_0 = arith.constant 0 : i32
    %c0_i32_1 = arith.constant 0 : i32
    return %c0_i32, %c0_i32_0 : i32, i32
  }
  func.func @transform_9(%arg0: i32) -> (i32, i32, i32) {
    %c0_i32 = arith.constant 0 : i32
    %c0_i32_0 = arith.constant 0 : i32
    %c0_i32_1 = arith.constant 0 : i32
    return %arg0, %c0_i32, %c0_i32_0 : i32, i32, i32
  }
}

module attributes {stable_mosaic.version = 11 : i64} {
  func.func @_down2_residual_kernel(%arg0: i32, %arg1: memref<1x20x256xf32, #tpu.memory_space<vmem>>, %arg2: memref<1x4x256xf32, #tpu.memory_space<vmem>>, %arg3: memref<4x20xf32, #tpu.memory_space<vmem>>, %arg4: memref<4x2xf32, #tpu.memory_space<vmem>>, %arg5: memref<1x4x256xf32, #tpu.memory_space<vmem>>) attributes {dimension_semantics = [#tpu.dimension_semantics<parallel>], iteration_bounds = array<i64: 2>, scalar_prefetch = 0 : i64, scratch_operands = 0 : i64, tpu.core_type = #tpu.core_type<tc>, window_params = [{transform_indices = @transform_0, window_bounds = array<i64: 1, 20, 256>}, {transform_indices = @transform_1, window_bounds = array<i64: 1, 4, 256>}, {pipeline_mode = #tpu.pipeline_mode<synchronous>, transform_indices = @transform_2, window_bounds = array<i64: 4, 20>}, {pipeline_mode = #tpu.pipeline_mode<synchronous>, transform_indices = @transform_3, window_bounds = array<i64: 4, 2>}, {transform_indices = @transform_4, window_bounds = array<i64: 1, 4, 256>}]} {
    %c0 = arith.constant 0 : index
    %c0_0 = arith.constant 0 : index
    %0 = vector.load %arg3[%c0, %c0_0] : memref<4x20xf32, #tpu.memory_space<vmem>>, vector<4x20xf32>
    %c0_1 = arith.constant 0 : index
    %c0_2 = arith.constant 0 : index
    %c0_3 = arith.constant 0 : index
    %1 = vector.load %arg1[%c0_1, %c0_2, %c0_3] : memref<1x20x256xf32, #tpu.memory_space<vmem>>, vector<1x20x256xf32>
    %2 = vector.shape_cast %1 : vector<1x20x256xf32> to vector<20x256xf32>
    %cst = arith.constant dense<0.000000e+00> : vector<4x256xf32>
    %3 = tpu.matmul %0, %2, %cst {dimension_numbers = #tpu.dot_dimension_numbers<[1], [0], [0], [1], [0, 0, 1, 1], [], []>} : vector<4x20xf32>, vector<20x256xf32>, vector<4x256xf32> -> vector<4x256xf32>
    %c0_4 = arith.constant 0 : index
    %c0_5 = arith.constant 0 : index
    %4 = vector.load %arg4[%c0_4, %c0_5] : memref<4x2xf32, #tpu.memory_space<vmem>>, vector<4x1xf32>
    %5 = vector.broadcast %4 : vector<4x1xf32> to vector<4x256xf32>
    %6 = arith.mulf %3, %5 : vector<4x256xf32>
    %c0_6 = arith.constant 0 : index
    %c1 = arith.constant 1 : index
    %7 = vector.load %arg4[%c0_6, %c1] : memref<4x2xf32, #tpu.memory_space<vmem>>, vector<4x1xf32>
    %8 = vector.broadcast %7 : vector<4x1xf32> to vector<4x256xf32>
    %9 = arith.addf %6, %8 : vector<4x256xf32>
    %cst_7 = arith.constant 0.000000e+00 : f32
    %10 = vector.broadcast %cst_7 : f32 to vector<4x256xf32>
    %11 = arith.maximumf %9, %10 : vector<4x256xf32>
    %c0_8 = arith.constant 0 : index
    %c0_9 = arith.constant 0 : index
    %c0_10 = arith.constant 0 : index
    %12 = vector.load %arg2[%c0_8, %c0_9, %c0_10] : memref<1x4x256xf32, #tpu.memory_space<vmem>>, vector<1x4x256xf32>
    %13 = vector.shape_cast %12 : vector<1x4x256xf32> to vector<4x256xf32>
    %14 = arith.addf %13, %11 : vector<4x256xf32>
    %cst_11 = arith.constant 0.000000e+00 : f32
    %15 = vector.broadcast %cst_11 : f32 to vector<4x256xf32>
    %16 = arith.maximumf %14, %15 : vector<4x256xf32>
    %c0_12 = arith.constant 0 : index
    %c0_13 = arith.constant 0 : index
    %c0_14 = arith.constant 0 : index
    %17 = vector.load %arg5[%c0_12, %c0_13, %c0_14] : memref<1x4x256xf32, #tpu.memory_space<vmem>>, vector<1x4x256xf32>
    %18 = vector.shape_cast %17 : vector<1x4x256xf32> to vector<4x256xf32>
    %19 = vector.shape_cast %16 : vector<4x256xf32> to vector<1x4x256xf32>
    tpu.vector_store %arg5[%c0_12, %c0_13, %c0_14], %19 {strides = array<i32>} : memref<1x4x256xf32, #tpu.memory_space<vmem>>, vector<1x4x256xf32>,
    return
  }
  func.func @transform_0(%arg0: i32) -> (i32, i32, i32) {
    %c0_i32 = arith.constant 0 : i32
    %c0_i32_0 = arith.constant 0 : i32
    %c0_i32_1 = arith.constant 0 : i32
    return %arg0, %c0_i32, %c0_i32_0 : i32, i32, i32
  }
  func.func @transform_1(%arg0: i32) -> (i32, i32, i32) {
    %c0_i32 = arith.constant 0 : i32
    %c0_i32_0 = arith.constant 0 : i32
    %c0_i32_1 = arith.constant 0 : i32
    return %arg0, %c0_i32, %c0_i32_0 : i32, i32, i32
  }
  func.func @transform_2(%arg0: i32) -> (i32, i32) {
    %c0_i32 = arith.constant 0 : i32
    %c0_i32_0 = arith.constant 0 : i32
    %c0_i32_1 = arith.constant 0 : i32
    return %c0_i32, %c0_i32_0 : i32, i32
  }
  func.func @transform_3(%arg0: i32) -> (i32, i32) {
    %c0_i32 = arith.constant 0 : i32
    %c0_i32_0 = arith.constant 0 : i32
    %c0_i32_1 = arith.constant 0 : i32
    return %c0_i32, %c0_i32_0 : i32, i32
  }
  func.func @transform_4(%arg0: i32) -> (i32, i32, i32) {
    %c0_i32 = arith.constant 0 : i32
    %c0_i32_0 = arith.constant 0 : i32
    %c0_i32_1 = arith.constant 0 : i32
    return %arg0, %c0_i32, %c0_i32_0 : i32, i32, i32
  }
}

module attributes {stable_mosaic.version = 11 : i64} {
  func.func @kernel(%arg0: i32, %arg1: memref<1x4x256xf32, #tpu.memory_space<vmem>>, %arg2: memref<4x36xf32, #tpu.memory_space<vmem>>, %arg3: memref<4x2xf32, #tpu.memory_space<vmem>>, %arg4: memref<4x72xf32, #tpu.memory_space<vmem>>, %arg5: memref<4x2xf32, #tpu.memory_space<vmem>>, %arg6: memref<4x108xf32, #tpu.memory_space<vmem>>, %arg7: memref<4x2xf32, #tpu.memory_space<vmem>>, %arg8: memref<4x16xf32, #tpu.memory_space<vmem>>, %arg9: memref<4x2xf32, #tpu.memory_space<vmem>>, %arg10: memref<1x4x256xf32, #tpu.memory_space<vmem>>, %arg11: memref<16x256xf32, #tpu.memory_space<vmem>>, %arg12: memref<4x290xf32, #tpu.memory_space<vmem>>, %arg13: memref<8x324xf32, #tpu.memory_space<vmem>>, %arg14: memref<12x358xf32, #tpu.memory_space<vmem>>, %arg15: memref<36x256xf32, #tpu.memory_space<vmem>>, %arg16: memref<72x256xf32, #tpu.memory_space<vmem>>, %arg17: memref<108x256xf32, #tpu.memory_space<vmem>>) attributes {dimension_semantics = [#tpu.dimension_semantics<parallel>], iteration_bounds = array<i64: 2>, scalar_prefetch = 0 : i64, scratch_operands = 7 : i64, tpu.core_type = #tpu.core_type<tc>, window_params = [{transform_indices = @transform_0, window_bounds = array<i64: 1, 4, 256>}, {pipeline_mode = #tpu.pipeline_mode<synchronous>, transform_indices = @transform_1, window_bounds = array<i64: 4, 36>}, {pipeline_mode = #tpu.pipeline_mode<synchronous>, transform_indices = @transform_2, window_bounds = array<i64: 4, 2>}, {pipeline_mode = #tpu.pipeline_mode<synchronous>, transform_indices = @transform_3, window_bounds = array<i64: 4, 72>}, {pipeline_mode = #tpu.pipeline_mode<synchronous>, transform_indices = @transform_4, window_bounds = array<i64: 4, 2>}, {pipeline_mode = #tpu.pipeline_mode<synchronous>, transform_indices = @transform_5, window_bounds = array<i64: 4, 108>}, {pipeline_mode = #tpu.pipeline_mode<synchronous>, transform_indices = @transform_6, window_bounds = array<i64: 4, 2>}, {pipeline_mode = #tpu.pipeline_mode<synchronous>, transform_indices = @transform_7, window_bounds = array<i64: 4, 16>}, {pipeline_mode = #tpu.pipeline_mode<synchronous>, transform_indices = @transform_8, window_bounds = array<i64: 4, 2>}, {transform_indices = @transform_9, window_bounds = array<i64: 1, 4, 256>}]} {
    %c0 = arith.constant 0 : index
    %c0_0 = arith.constant 0 : index
    %c0_1 = arith.constant 0 : index
    %0 = vector.load %arg1[%c0, %c0_0, %c0_1] : memref<1x4x256xf32, #tpu.memory_space<vmem>>, vector<1x4x256xf32>
    %1 = vector.shape_cast %0 : vector<1x4x256xf32> to vector<4x256xf32>
    %c12 = arith.constant 12 : index
    %c0_2 = arith.constant 0 : index
    %2 = vector.load %arg11[%c12, %c0_2] : memref<16x256xf32, #tpu.memory_space<vmem>>, vector<4x256xf32>
    tpu.vector_store %arg11[%c12, %c0_2], %1 {strides = array<i32>} : memref<16x256xf32, #tpu.memory_space<vmem>>, vector<4x256xf32>,
    %cst = arith.constant 0.000000e+00 : f32
    %3 = vector.broadcast %cst : f32 to vector<4x17xf32>
    %c0_3 = arith.constant 0 : index
    %c0_4 = arith.constant 0 : index
    %4 = vector.load %arg12[%c0_3, %c0_4] : memref<4x290xf32, #tpu.memory_space<vmem>>, vector<4x17xf32>
    tpu.vector_store %arg12[%c0_3, %c0_4], %3 {strides = array<i32>} : memref<4x290xf32, #tpu.memory_space<vmem>>, vector<4x17xf32>,
    %cst_5 = arith.constant 0.000000e+00 : f32
    %5 = vector.broadcast %cst_5 : f32 to vector<4x17xf32>
    %c0_6 = arith.constant 0 : index
    %c273 = arith.constant 273 : index
    %6 = vector.load %arg12[%c0_6, %c273] : memref<4x290xf32, #tpu.memory_space<vmem>>, vector<4x17xf32>
    tpu.vector_store %arg12[%c0_6, %c273], %5 {strides = array<i32>} : memref<4x290xf32, #tpu.memory_space<vmem>>, vector<4x17xf32>,
    %c12_7 = arith.constant 12 : index
    %c0_8 = arith.constant 0 : index
    %7 = vector.load %arg11[%c12_7, %c0_8] : memref<16x256xf32, #tpu.memory_space<vmem>>, vector<4x256xf32>
    %c0_9 = arith.constant 0 : index
    %c17 = arith.constant 17 : index
    %8 = vector.load %arg12[%c0_9, %c17] : memref<4x290xf32, #tpu.memory_space<vmem>>, vector<4x256xf32>
    tpu.vector_store %arg12[%c0_9, %c17], %7 {strides = array<i32>} : memref<4x290xf32, #tpu.memory_space<vmem>>, vector<4x256xf32>,
    %9 = tpu.iota {dimensions = array<i32: 1>} : vector<4x256xi32>
    %c16_i32 = arith.constant 16 : i32
    %c0_i32 = arith.constant 0 : i32
    %10 = arith.cmpi eq, %c16_i32, %c0_i32 : i32
    %c1_i32 = arith.constant 1 : i32
    %11 = arith.select %10, %c1_i32, %c16_i32 : i32
    %12 = vector.broadcast %11 : i32 to vector<4x256xi32>
    %13 = arith.remsi %9, %12 : vector<4x256xi32>
    %c0_i32_10 = arith.constant 0 : i32
    %14 = vector.broadcast %c0_i32_10 : i32 to vector<4x256xi32>
    %15 = arith.cmpi ne, %13, %14 : vector<4x256xi32>
    %c0_i32_11 = arith.constant 0 : i32
    %16 = vector.broadcast %c0_i32_11 : i32 to vector<4x256xi32>
    %17 = arith.cmpi slt, %13, %16 : vector<4x256xi32>
    %c0_i32_12 = arith.constant 0 : i32
    %18 = arith.cmpi slt, %11, %c0_i32_12 : i32
    %19 = vector.broadcast %18 : i1 to vector<4x256xi1>
    %20 = vector.broadcast %19 : vector<4x256xi1> to vector<4x256xi1>
    %21 = arith.xori %17, %20 : vector<4x256xi1>
    %22 = arith.andi %21, %15 : vector<4x256xi1>
    %23 = vector.broadcast %11 : i32 to vector<4x256xi32>
    %24 = arith.addi %13, %23 : vector<4x256xi32>
    %25 = arith.select %22, %24, %13 : vector<4x256xi1>, vector<4x256xi32>
    %c0_13 = arith.constant 0 : index
    %c0_14 = arith.constant 0 : index
    %26 = vector.load %arg12[%c0_13, %c0_14] : memref<4x290xf32, #tpu.memory_space<vmem>>, vector<4x256xf32>
    %c1_i32_15 = arith.constant 1 : i32
    %27 = vector.broadcast %c1_i32_15 : i32 to vector<4x256xi32>
    %28 = arith.cmpi sge, %25, %27 : vector<4x256xi32>
    %cst_16 = arith.constant 0.000000e+00 : f32
    %29 = vector.broadcast %cst_16 : f32 to vector<4x256xf32>
    %30 = arith.select %28, %26, %29 : vector<4x256xi1>, vector<4x256xf32>
    %c0_17 = arith.constant 0 : index
    %c0_18 = arith.constant 0 : index
    %31 = vector.load %arg15[%c0_17, %c0_18] : memref<36x256xf32, #tpu.memory_space<vmem>>, vector<4x256xf32>
    tpu.vector_store %arg15[%c0_17, %c0_18], %30 {strides = array<i32>} : memref<36x256xf32, #tpu.memory_space<vmem>>, vector<4x256xf32>,
    %c0_19 = arith.constant 0 : index
    %c1 = arith.constant 1 : index
    %32 = vector.load %arg12[%c0_19, %c1] : memref<4x290xf32, #tpu.memory_space<vmem>>, vector<4x256xf32>
    %c4 = arith.constant 4 : index
    %c0_20 = arith.constant 0 : index
    %33 = vector.load %arg15[%c4, %c0_20] : memref<36x256xf32, #tpu.memory_space<vmem>>, vector<4x256xf32>
    tpu.vector_store %arg15[%c4, %c0_20], %32 {strides = array<i32>} : memref<36x256xf32, #tpu.memory_space<vmem>>, vector<4x256xf32>,
    %c0_21 = arith.constant 0 : index
    %c2 = arith.constant 2 : index
    %34 = vector.load %arg12[%c0_21, %c2] : memref<4x290xf32, #tpu.memory_space<vmem>>, vector<4x256xf32>
    %c15_i32 = arith.constant 15 : i32
    %35 = vector.broadcast %c15_i32 : i32 to vector<4x256xi32>
    %36 = arith.cmpi slt, %25, %35 : vector<4x256xi32>
    %cst_22 = arith.constant 0.000000e+00 : f32
    %37 = vector.broadcast %cst_22 : f32 to vector<4x256xf32>
    %38 = arith.select %36, %34, %37 : vector<4x256xi1>, vector<4x256xf32>
    %c8 = arith.constant 8 : index
    %c0_23 = arith.constant 0 : index
    %39 = vector.load %arg15[%c8, %c0_23] : memref<36x256xf32, #tpu.memory_space<vmem>>, vector<4x256xf32>
    tpu.vector_store %arg15[%c8, %c0_23], %38 {strides = array<i32>} : memref<36x256xf32, #tpu.memory_space<vmem>>, vector<4x256xf32>,
    %c0_24 = arith.constant 0 : index
    %c16 = arith.constant 16 : index
    %40 = vector.load %arg12[%c0_24, %c16] : memref<4x290xf32, #tpu.memory_space<vmem>>, vector<4x256xf32>
    %c1_i32_25 = arith.constant 1 : i32
    %41 = vector.broadcast %c1_i32_25 : i32 to vector<4x256xi32>
    %42 = arith.cmpi sge, %25, %41 : vector<4x256xi32>
    %cst_26 = arith.constant 0.000000e+00 : f32
    %43 = vector.broadcast %cst_26 : f32 to vector<4x256xf32>
    %44 = arith.select %42, %40, %43 : vector<4x256xi1>, vector<4x256xf32>
    %c12_27 = arith.constant 12 : index
    %c0_28 = arith.constant 0 : index
    %45 = vector.load %arg15[%c12_27, %c0_28] : memref<36x256xf32, #tpu.memory_space<vmem>>, vector<4x256xf32>
    tpu.vector_store %arg15[%c12_27, %c0_28], %44 {strides = array<i32>} : memref<36x256xf32, #tpu.memory_space<vmem>>, vector<4x256xf32>,
    %c0_29 = arith.constant 0 : index
    %c17_30 = arith.constant 17 : index
    %46 = vector.load %arg12[%c0_29, %c17_30] : memref<4x290xf32, #tpu.memory_space<vmem>>, vector<4x256xf32>
    %c16_31 = arith.constant 16 : index
    %c0_32 = arith.constant 0 : index
    %47 = vector.load %arg15[%c16_31, %c0_32] : memref<36x256xf32, #tpu.memory_space<vmem>>, vector<4x256xf32>
    tpu.vector_store %arg15[%c16_31, %c0_32], %46 {strides = array<i32>} : memref<36x256xf32, #tpu.memory_space<vmem>>, vector<4x256xf32>,
    %c0_33 = arith.constant 0 : index
    %c18 = arith.constant 18 : index
    %48 = vector.load %arg12[%c0_33, %c18] : memref<4x290xf32, #tpu.memory_space<vmem>>, vector<4x256xf32>
    %c15_i32_34 = arith.constant 15 : i32
    %49 = vector.broadcast %c15_i32_34 : i32 to vector<4x256xi32>
    %50 = arith.cmpi slt, %25, %49 : vector<4x256xi32>
    %cst_35 = arith.constant 0.000000e+00 : f32
    %51 = vector.broadcast %cst_35 : f32 to vector<4x256xf32>
    %52 = arith.select %50, %48, %51 : vector<4x256xi1>, vector<4x256xf32>
    %c20 = arith.constant 20 : index
    %c0_36 = arith.constant 0 : index
    %53 = vector.load %arg15[%c20, %c0_36] : memref<36x256xf32, #tpu.memory_space<vmem>>, vector<4x256xf32>
    tpu.vector_store %arg15[%c20, %c0_36], %52 {strides = array<i32>} : memref<36x256xf32, #tpu.memory_space<vmem>>, vector<4x256xf32>,
    %c0_37 = arith.constant 0 : index
    %c32 = arith.constant 32 : index
    %54 = vector.load %arg12[%c0_37, %c32] : memref<4x290xf32, #tpu.memory_space<vmem>>, vector<4x256xf32>
    %c1_i32_38 = arith.constant 1 : i32
    %55 = vector.broadcast %c1_i32_38 : i32 to vector<4x256xi32>
    %56 = arith.cmpi sge, %25, %55 : vector<4x256xi32>
    %cst_39 = arith.constant 0.000000e+00 : f32
    %57 = vector.broadcast %cst_39 : f32 to vector<4x256xf32>
    %58 = arith.select %56, %54, %57 : vector<4x256xi1>, vector<4x256xf32>
    %c24 = arith.constant 24 : index
    %c0_40 = arith.constant 0 : index
    %59 = vector.load %arg15[%c24, %c0_40] : memref<36x256xf32, #tpu.memory_space<vmem>>, vector<4x256xf32>
    tpu.vector_store %arg15[%c24, %c0_40], %58 {strides = array<i32>} : memref<36x256xf32, #tpu.memory_space<vmem>>, vector<4x256xf32>,
    %c0_41 = arith.constant 0 : index
    %c33 = arith.constant 33 : index
    %60 = vector.load %arg12[%c0_41, %c33] : memref<4x290xf32, #tpu.memory_space<vmem>>, vector<4x256xf32>
    %c28 = arith.constant 28 : index
    %c0_42 = arith.constant 0 : index
    %61 = vector.load %arg15[%c28, %c0_42] : memref<36x256xf32, #tpu.memory_space<vmem>>, vector<4x256xf32>
    tpu.vector_store %arg15[%c28, %c0_42], %60 {strides = array<i32>} : memref<36x256xf32, #tpu.memory_space<vmem>>, vector<4x256xf32>,
    %c0_43 = arith.constant 0 : index
    %c34 = arith.constant 34 : index
    %62 = vector.load %arg12[%c0_43, %c34] : memref<4x290xf32, #tpu.memory_space<vmem>>, vector<4x256xf32>
    %c15_i32_44 = arith.constant 15 : i32
    %63 = vector.broadcast %c15_i32_44 : i32 to vector<4x256xi32>
    %64 = arith.cmpi slt, %25, %63 : vector<4x256xi32>
    %cst_45 = arith.constant 0.000000e+00 : f32
    %65 = vector.broadcast %cst_45 : f32 to vector<4x256xf32>
    %66 = arith.select %64, %62, %65 : vector<4x256xi1>, vector<4x256xf32>
    %c32_46 = arith.constant 32 : index
    %c0_47 = arith.constant 0 : index
    %67 = vector.load %arg15[%c32_46, %c0_47] : memref<36x256xf32, #tpu.memory_space<vmem>>, vector<4x256xf32>
    tpu.vector_store %arg15[%c32_46, %c0_47], %66 {strides = array<i32>} : memref<36x256xf32, #tpu.memory_space<vmem>>, vector<4x256xf32>,
    %c0_48 = arith.constant 0 : index
    %c0_49 = arith.constant 0 : index
    %68 = vector.load %arg2[%c0_48, %c0_49] : memref<4x36xf32, #tpu.memory_space<vmem>>, vector<4x36xf32>
    %c0_50 = arith.constant 0 : index
    %c0_51 = arith.constant 0 : index
    %69 = vector.load %arg15[%c0_50, %c0_51] : memref<36x256xf32, #tpu.memory_space<vmem>>, vector<36x256xf32>
    %cst_52 = arith.constant dense<0.000000e+00> : vector<4x256xf32>
    %70 = tpu.matmul %68, %69, %cst_52 {dimension_numbers = #tpu.dot_dimension_numbers<[1], [0], [0], [1], [0, 0, 1, 1], [], []>} : vector<4x36xf32>, vector<36x256xf32>, vector<4x256xf32> -> vector<4x256xf32>
    %c0_53 = arith.constant 0 : index
    %c0_54 = arith.constant 0 : index
    %71 = vector.load %arg3[%c0_53, %c0_54] : memref<4x2xf32, #tpu.memory_space<vmem>>, vector<4x1xf32>
    %72 = vector.broadcast %71 : vector<4x1xf32> to vector<4x256xf32>
    %73 = arith.mulf %70, %72 : vector<4x256xf32>
    %c0_55 = arith.constant 0 : index
    %c1_56 = arith.constant 1 : index
    %74 = vector.load %arg3[%c0_55, %c1_56] : memref<4x2xf32, #tpu.memory_space<vmem>>, vector<4x1xf32>
    %75 = vector.broadcast %74 : vector<4x1xf32> to vector<4x256xf32>
    %76 = arith.addf %73, %75 : vector<4x256xf32>
    %cst_57 = arith.constant 0.000000e+00 : f32
    %77 = vector.broadcast %cst_57 : f32 to vector<4x256xf32>
    %78 = arith.maximumf %76, %77 : vector<4x256xf32>
    %c8_58 = arith.constant 8 : index
    %c0_59 = arith.constant 0 : index
    %79 = vector.load %arg11[%c8_58, %c0_59] : memref<16x256xf32, #tpu.memory_space<vmem>>, vector<4x256xf32>
    tpu.vector_store %arg11[%c8_58, %c0_59], %78 {strides = array<i32>} : memref<16x256xf32, #tpu.memory_space<vmem>>, vector<4x256xf32>,
    %cst_60 = arith.constant 0.000000e+00 : f32
    %80 = vector.broadcast %cst_60 : f32 to vector<8x34xf32>
    %c0_61 = arith.constant 0 : index
    %c0_62 = arith.constant 0 : index
    %81 = vector.load %arg13[%c0_61, %c0_62] : memref<8x324xf32, #tpu.memory_space<vmem>>, vector<8x34xf32>
    tpu.vector_store %arg13[%c0_61, %c0_62], %80 {strides = array<i32>} : memref<8x324xf32, #tpu.memory_space<vmem>>, vector<8x34xf32>,
    %cst_63 = arith.constant 0.000000e+00 : f32
    %82 = vector.broadcast %cst_63 : f32 to vector<8x34xf32>
    %c0_64 = arith.constant 0 : index
    %c290 = arith.constant 290 : index
    %83 = vector.load %arg13[%c0_64, %c290] : memref<8x324xf32, #tpu.memory_space<vmem>>, vector<8x34xf32>
    tpu.vector_store %arg13[%c0_64, %c290], %82 {strides = array<i32>} : memref<8x324xf32, #tpu.memory_space<vmem>>, vector<8x34xf32>,
    %c8_65 = arith.constant 8 : index
    %c0_66 = arith.constant 0 : index
    %84 = vector.load %arg11[%c8_65, %c0_66] : memref<16x256xf32, #tpu.memory_space<vmem>>, vector<8x256xf32>
    %c0_67 = arith.constant 0 : index
    %c34_68 = arith.constant 34 : index
    %85 = vector.load %arg13[%c0_67, %c34_68] : memref<8x324xf32, #tpu.memory_space<vmem>>, vector<8x256xf32>
    tpu.vector_store %arg13[%c0_67, %c34_68], %84 {strides = array<i32>} : memref<8x324xf32, #tpu.memory_space<vmem>>, vector<8x256xf32>,
    %86 = tpu.iota {dimensions = array<i32: 1>} : vector<8x256xi32>
    %c16_i32_69 = arith.constant 16 : i32
    %c0_i32_70 = arith.constant 0 : i32
    %87 = arith.cmpi eq, %c16_i32_69, %c0_i32_70 : i32
    %c1_i32_71 = arith.constant 1 : i32
    %88 = arith.select %87, %c1_i32_71, %c16_i32_69 : i32
    %89 = vector.broadcast %88 : i32 to vector<8x256xi32>
    %90 = arith.remsi %86, %89 : vector<8x256xi32>
    %c0_i32_72 = arith.constant 0 : i32
    %91 = vector.broadcast %c0_i32_72 : i32 to vector<8x256xi32>
    %92 = arith.cmpi ne, %90, %91 : vector<8x256xi32>
    %c0_i32_73 = arith.constant 0 : i32
    %93 = vector.broadcast %c0_i32_73 : i32 to vector<8x256xi32>
    %94 = arith.cmpi slt, %90, %93 : vector<8x256xi32>
    %c0_i32_74 = arith.constant 0 : i32
    %95 = arith.cmpi slt, %88, %c0_i32_74 : i32
    %96 = vector.broadcast %95 : i1 to vector<8x256xi1>
    %97 = vector.broadcast %96 : vector<8x256xi1> to vector<8x256xi1>
    %98 = arith.xori %94, %97 : vector<8x256xi1>
    %99 = arith.andi %98, %92 : vector<8x256xi1>
    %100 = vector.broadcast %88 : i32 to vector<8x256xi32>
    %101 = arith.addi %90, %100 : vector<8x256xi32>
    %102 = arith.select %99, %101, %90 : vector<8x256xi1>, vector<8x256xi32>
    %c0_75 = arith.constant 0 : index
    %c0_76 = arith.constant 0 : index
    %103 = vector.load %arg13[%c0_75, %c0_76] : memref<8x324xf32, #tpu.memory_space<vmem>>, vector<8x256xf32>
    %c2_i32 = arith.constant 2 : i32
    %104 = vector.broadcast %c2_i32 : i32 to vector<8x256xi32>
    %105 = arith.cmpi sge, %102, %104 : vector<8x256xi32>
    %cst_77 = arith.constant 0.000000e+00 : f32
    %106 = vector.broadcast %cst_77 : f32 to vector<8x256xf32>
    %107 = arith.select %105, %103, %106 : vector<8x256xi1>, vector<8x256xf32>
    %c0_78 = arith.constant 0 : index
    %c0_79 = arith.constant 0 : index
    %108 = vector.load %arg16[%c0_78, %c0_79] : memref<72x256xf32, #tpu.memory_space<vmem>>, vector<8x256xf32>
    tpu.vector_store %arg16[%c0_78, %c0_79], %107 {strides = array<i32>} : memref<72x256xf32, #tpu.memory_space<vmem>>, vector<8x256xf32>,
    %c0_80 = arith.constant 0 : index
    %c2_81 = arith.constant 2 : index
    %109 = vector.load %arg13[%c0_80, %c2_81] : memref<8x324xf32, #tpu.memory_space<vmem>>, vector<8x256xf32>
    %c8_82 = arith.constant 8 : index
    %c0_83 = arith.constant 0 : index
    %110 = vector.load %arg16[%c8_82, %c0_83] : memref<72x256xf32, #tpu.memory_space<vmem>>, vector<8x256xf32>
    tpu.vector_store %arg16[%c8_82, %c0_83], %109 {strides = array<i32>} : memref<72x256xf32, #tpu.memory_space<vmem>>, vector<8x256xf32>,
    %c0_84 = arith.constant 0 : index
    %c4_85 = arith.constant 4 : index
    %111 = vector.load %arg13[%c0_84, %c4_85] : memref<8x324xf32, #tpu.memory_space<vmem>>, vector<8x256xf32>
    %c14_i32 = arith.constant 14 : i32
    %112 = vector.broadcast %c14_i32 : i32 to vector<8x256xi32>
    %113 = arith.cmpi slt, %102, %112 : vector<8x256xi32>
    %cst_86 = arith.constant 0.000000e+00 : f32
    %114 = vector.broadcast %cst_86 : f32 to vector<8x256xf32>
    %115 = arith.select %113, %111, %114 : vector<8x256xi1>, vector<8x256xf32>
    %c16_87 = arith.constant 16 : index
    %c0_88 = arith.constant 0 : index
    %116 = vector.load %arg16[%c16_87, %c0_88] : memref<72x256xf32, #tpu.memory_space<vmem>>, vector<8x256xf32>
    tpu.vector_store %arg16[%c16_87, %c0_88], %115 {strides = array<i32>} : memref<72x256xf32, #tpu.memory_space<vmem>>, vector<8x256xf32>,
    %c0_89 = arith.constant 0 : index
    %c32_90 = arith.constant 32 : index
    %117 = vector.load %arg13[%c0_89, %c32_90] : memref<8x324xf32, #tpu.memory_space<vmem>>, vector<8x256xf32>
    %c2_i32_91 = arith.constant 2 : i32
    %118 = vector.broadcast %c2_i32_91 : i32 to vector<8x256xi32>
    %119 = arith.cmpi sge, %102, %118 : vector<8x256xi32>
    %cst_92 = arith.constant 0.000000e+00 : f32
    %120 = vector.broadcast %cst_92 : f32 to vector<8x256xf32>
    %121 = arith.select %119, %117, %120 : vector<8x256xi1>, vector<8x256xf32>
    %c24_93 = arith.constant 24 : index
    %c0_94 = arith.constant 0 : index
    %122 = vector.load %arg16[%c24_93, %c0_94] : memref<72x256xf32, #tpu.memory_space<vmem>>, vector<8x256xf32>
    tpu.vector_store %arg16[%c24_93, %c0_94], %121 {strides = array<i32>} : memref<72x256xf32, #tpu.memory_space<vmem>>, vector<8x256xf32>,
    %c0_95 = arith.constant 0 : index
    %c34_96 = arith.constant 34 : index
    %123 = vector.load %arg13[%c0_95, %c34_96] : memref<8x324xf32, #tpu.memory_space<vmem>>, vector<8x256xf32>
    %c32_97 = arith.constant 32 : index
    %c0_98 = arith.constant 0 : index
    %124 = vector.load %arg16[%c32_97, %c0_98] : memref<72x256xf32, #tpu.memory_space<vmem>>, vector<8x256xf32>
    tpu.vector_store %arg16[%c32_97, %c0_98], %123 {strides = array<i32>} : memref<72x256xf32, #tpu.memory_space<vmem>>, vector<8x256xf32>,
    %c0_99 = arith.constant 0 : index
    %c36 = arith.constant 36 : index
    %125 = vector.load %arg13[%c0_99, %c36] : memref<8x324xf32, #tpu.memory_space<vmem>>, vector<8x256xf32>
    %c14_i32_100 = arith.constant 14 : i32
    %126 = vector.broadcast %c14_i32_100 : i32 to vector<8x256xi32>
    %127 = arith.cmpi slt, %102, %126 : vector<8x256xi32>
    %cst_101 = arith.constant 0.000000e+00 : f32
    %128 = vector.broadcast %cst_101 : f32 to vector<8x256xf32>
    %129 = arith.select %127, %125, %128 : vector<8x256xi1>, vector<8x256xf32>
    %c40 = arith.constant 40 : index
    %c0_102 = arith.constant 0 : index
    %130 = vector.load %arg16[%c40, %c0_102] : memref<72x256xf32, #tpu.memory_space<vmem>>, vector<8x256xf32>
    tpu.vector_store %arg16[%c40, %c0_102], %129 {strides = array<i32>} : memref<72x256xf32, #tpu.memory_space<vmem>>, vector<8x256xf32>,
    %c0_103 = arith.constant 0 : index
    %c64 = arith.constant 64 : index
    %131 = vector.load %arg13[%c0_103, %c64] : memref<8x324xf32, #tpu.memory_space<vmem>>, vector<8x256xf32>
    %c2_i32_104 = arith.constant 2 : i32
    %132 = vector.broadcast %c2_i32_104 : i32 to vector<8x256xi32>
    %133 = arith.cmpi sge, %102, %132 : vector<8x256xi32>
    %cst_105 = arith.constant 0.000000e+00 : f32
    %134 = vector.broadcast %cst_105 : f32 to vector<8x256xf32>
    %135 = arith.select %133, %131, %134 : vector<8x256xi1>, vector<8x256xf32>
    %c48 = arith.constant 48 : index
    %c0_106 = arith.constant 0 : index
    %136 = vector.load %arg16[%c48, %c0_106] : memref<72x256xf32, #tpu.memory_space<vmem>>, vector<8x256xf32>
    tpu.vector_store %arg16[%c48, %c0_106], %135 {strides = array<i32>} : memref<72x256xf32, #tpu.memory_space<vmem>>, vector<8x256xf32>,
    %c0_107 = arith.constant 0 : index
    %c66 = arith.constant 66 : index
    %137 = vector.load %arg13[%c0_107, %c66] : memref<8x324xf32, #tpu.memory_space<vmem>>, vector<8x256xf32>
    %c56 = arith.constant 56 : index
    %c0_108 = arith.constant 0 : index
    %138 = vector.load %arg16[%c56, %c0_108] : memref<72x256xf32, #tpu.memory_space<vmem>>, vector<8x256xf32>
    tpu.vector_store %arg16[%c56, %c0_108], %137 {strides = array<i32>} : memref<72x256xf32, #tpu.memory_space<vmem>>, vector<8x256xf32>,
    %c0_109 = arith.constant 0 : index
    %c68 = arith.constant 68 : index
    %139 = vector.load %arg13[%c0_109, %c68] : memref<8x324xf32, #tpu.memory_space<vmem>>, vector<8x256xf32>
    %c14_i32_110 = arith.constant 14 : i32
    %140 = vector.broadcast %c14_i32_110 : i32 to vector<8x256xi32>
    %141 = arith.cmpi slt, %102, %140 : vector<8x256xi32>
    %cst_111 = arith.constant 0.000000e+00 : f32
    %142 = vector.broadcast %cst_111 : f32 to vector<8x256xf32>
    %143 = arith.select %141, %139, %142 : vector<8x256xi1>, vector<8x256xf32>
    %c64_112 = arith.constant 64 : index
    %c0_113 = arith.constant 0 : index
    %144 = vector.load %arg16[%c64_112, %c0_113] : memref<72x256xf32, #tpu.memory_space<vmem>>, vector<8x256xf32>
    tpu.vector_store %arg16[%c64_112, %c0_113], %143 {strides = array<i32>} : memref<72x256xf32, #tpu.memory_space<vmem>>, vector<8x256xf32>,
    %c0_114 = arith.constant 0 : index
    %c0_115 = arith.constant 0 : index
    %145 = vector.load %arg4[%c0_114, %c0_115] : memref<4x72xf32, #tpu.memory_space<vmem>>, vector<4x72xf32>
    %c0_116 = arith.constant 0 : index
    %c0_117 = arith.constant 0 : index
    %146 = vector.load %arg16[%c0_116, %c0_117] : memref<72x256xf32, #tpu.memory_space<vmem>>, vector<72x256xf32>
    %cst_118 = arith.constant dense<0.000000e+00> : vector<4x256xf32>
    %147 = tpu.matmul %145, %146, %cst_118 {dimension_numbers = #tpu.dot_dimension_numbers<[1], [0], [0], [1], [0, 0, 1, 1], [], []>} : vector<4x72xf32>, vector<72x256xf32>, vector<4x256xf32> -> vector<4x256xf32>
    %c0_119 = arith.constant 0 : index
    %c0_120 = arith.constant 0 : index
    %148 = vector.load %arg5[%c0_119, %c0_120] : memref<4x2xf32, #tpu.memory_space<vmem>>, vector<4x1xf32>
    %149 = vector.broadcast %148 : vector<4x1xf32> to vector<4x256xf32>
    %150 = arith.mulf %147, %149 : vector<4x256xf32>
    %c0_121 = arith.constant 0 : index
    %c1_122 = arith.constant 1 : index
    %151 = vector.load %arg5[%c0_121, %c1_122] : memref<4x2xf32, #tpu.memory_space<vmem>>, vector<4x1xf32>
    %152 = vector.broadcast %151 : vector<4x1xf32> to vector<4x256xf32>
    %153 = arith.addf %150, %152 : vector<4x256xf32>
    %cst_123 = arith.constant 0.000000e+00 : f32
    %154 = vector.broadcast %cst_123 : f32 to vector<4x256xf32>
    %155 = arith.maximumf %153, %154 : vector<4x256xf32>
    %c4_124 = arith.constant 4 : index
    %c0_125 = arith.constant 0 : index
    %156 = vector.load %arg11[%c4_124, %c0_125] : memref<16x256xf32, #tpu.memory_space<vmem>>, vector<4x256xf32>
    tpu.vector_store %arg11[%c4_124, %c0_125], %155 {strides = array<i32>} : memref<16x256xf32, #tpu.memory_space<vmem>>, vector<4x256xf32>,
    %cst_126 = arith.constant 0.000000e+00 : f32
    %157 = vector.broadcast %cst_126 : f32 to vector<12x51xf32>
    %c0_127 = arith.constant 0 : index
    %c0_128 = arith.constant 0 : index
    %158 = vector.load %arg14[%c0_127, %c0_128] : memref<12x358xf32, #tpu.memory_space<vmem>>, vector<12x51xf32>
    tpu.vector_store %arg14[%c0_127, %c0_128], %157 {strides = array<i32>} : memref<12x358xf32, #tpu.memory_space<vmem>>, vector<12x51xf32>,
    %cst_129 = arith.constant 0.000000e+00 : f32
    %159 = vector.broadcast %cst_129 : f32 to vector<12x51xf32>
    %c0_130 = arith.constant 0 : index
    %c307 = arith.constant 307 : index
    %160 = vector.load %arg14[%c0_130, %c307] : memref<12x358xf32, #tpu.memory_space<vmem>>, vector<12x51xf32>
    tpu.vector_store %arg14[%c0_130, %c307], %159 {strides = array<i32>} : memref<12x358xf32, #tpu.memory_space<vmem>>, vector<12x51xf32>,
    %c4_131 = arith.constant 4 : index
    %c0_132 = arith.constant 0 : index
    %161 = vector.load %arg11[%c4_131, %c0_132] : memref<16x256xf32, #tpu.memory_space<vmem>>, vector<12x256xf32>
    %c0_133 = arith.constant 0 : index
    %c51 = arith.constant 51 : index
    %162 = vector.load %arg14[%c0_133, %c51] : memref<12x358xf32, #tpu.memory_space<vmem>>, vector<12x256xf32>
    tpu.vector_store %arg14[%c0_133, %c51], %161 {strides = array<i32>} : memref<12x358xf32, #tpu.memory_space<vmem>>, vector<12x256xf32>,
    %163 = tpu.iota {dimensions = array<i32: 1>} : vector<12x256xi32>
    %c16_i32_134 = arith.constant 16 : i32
    %c0_i32_135 = arith.constant 0 : i32
    %164 = arith.cmpi eq, %c16_i32_134, %c0_i32_135 : i32
    %c1_i32_136 = arith.constant 1 : i32
    %165 = arith.select %164, %c1_i32_136, %c16_i32_134 : i32
    %166 = vector.broadcast %165 : i32 to vector<12x256xi32>
    %167 = arith.remsi %163, %166 : vector<12x256xi32>
    %c0_i32_137 = arith.constant 0 : i32
    %168 = vector.broadcast %c0_i32_137 : i32 to vector<12x256xi32>
    %169 = arith.cmpi ne, %167, %168 : vector<12x256xi32>
    %c0_i32_138 = arith.constant 0 : i32
    %170 = vector.broadcast %c0_i32_138 : i32 to vector<12x256xi32>
    %171 = arith.cmpi slt, %167, %170 : vector<12x256xi32>
    %c0_i32_139 = arith.constant 0 : i32
    %172 = arith.cmpi slt, %165, %c0_i32_139 : i32
    %173 = vector.broadcast %172 : i1 to vector<12x256xi1>
    %174 = vector.broadcast %173 : vector<12x256xi1> to vector<12x256xi1>
    %175 = arith.xori %171, %174 : vector<12x256xi1>
    %176 = arith.andi %175, %169 : vector<12x256xi1>
    %177 = vector.broadcast %165 : i32 to vector<12x256xi32>
    %178 = arith.addi %167, %177 : vector<12x256xi32>
    %179 = arith.select %176, %178, %167 : vector<12x256xi1>, vector<12x256xi32>
    %c0_140 = arith.constant 0 : index
    %c0_141 = arith.constant 0 : index
    %180 = vector.load %arg14[%c0_140, %c0_141] : memref<12x358xf32, #tpu.memory_space<vmem>>, vector<12x256xf32>
    %c3_i32 = arith.constant 3 : i32
    %181 = vector.broadcast %c3_i32 : i32 to vector<12x256xi32>
    %182 = arith.cmpi sge, %179, %181 : vector<12x256xi32>
    %cst_142 = arith.constant 0.000000e+00 : f32
    %183 = vector.broadcast %cst_142 : f32 to vector<12x256xf32>
    %184 = arith.select %182, %180, %183 : vector<12x256xi1>, vector<12x256xf32>
    %c0_143 = arith.constant 0 : index
    %c0_144 = arith.constant 0 : index
    %185 = vector.load %arg17[%c0_143, %c0_144] : memref<108x256xf32, #tpu.memory_space<vmem>>, vector<12x256xf32>
    tpu.vector_store %arg17[%c0_143, %c0_144], %184 {strides = array<i32>} : memref<108x256xf32, #tpu.memory_space<vmem>>, vector<12x256xf32>,
    %c0_145 = arith.constant 0 : index
    %c3 = arith.constant 3 : index
    %186 = vector.load %arg14[%c0_145, %c3] : memref<12x358xf32, #tpu.memory_space<vmem>>, vector<12x256xf32>
    %c12_146 = arith.constant 12 : index
    %c0_147 = arith.constant 0 : index
    %187 = vector.load %arg17[%c12_146, %c0_147] : memref<108x256xf32, #tpu.memory_space<vmem>>, vector<12x256xf32>
    tpu.vector_store %arg17[%c12_146, %c0_147], %186 {strides = array<i32>} : memref<108x256xf32, #tpu.memory_space<vmem>>, vector<12x256xf32>,
    %c0_148 = arith.constant 0 : index
    %c6 = arith.constant 6 : index
    %188 = vector.load %arg14[%c0_148, %c6] : memref<12x358xf32, #tpu.memory_space<vmem>>, vector<12x256xf32>
    %c13_i32 = arith.constant 13 : i32
    %189 = vector.broadcast %c13_i32 : i32 to vector<12x256xi32>
    %190 = arith.cmpi slt, %179, %189 : vector<12x256xi32>
    %cst_149 = arith.constant 0.000000e+00 : f32
    %191 = vector.broadcast %cst_149 : f32 to vector<12x256xf32>
    %192 = arith.select %190, %188, %191 : vector<12x256xi1>, vector<12x256xf32>
    %c24_150 = arith.constant 24 : index
    %c0_151 = arith.constant 0 : index
    %193 = vector.load %arg17[%c24_150, %c0_151] : memref<108x256xf32, #tpu.memory_space<vmem>>, vector<12x256xf32>
    tpu.vector_store %arg17[%c24_150, %c0_151], %192 {strides = array<i32>} : memref<108x256xf32, #tpu.memory_space<vmem>>, vector<12x256xf32>,
    %c0_152 = arith.constant 0 : index
    %c48_153 = arith.constant 48 : index
    %194 = vector.load %arg14[%c0_152, %c48_153] : memref<12x358xf32, #tpu.memory_space<vmem>>, vector<12x256xf32>
    %c3_i32_154 = arith.constant 3 : i32
    %195 = vector.broadcast %c3_i32_154 : i32 to vector<12x256xi32>
    %196 = arith.cmpi sge, %179, %195 : vector<12x256xi32>
    %cst_155 = arith.constant 0.000000e+00 : f32
    %197 = vector.broadcast %cst_155 : f32 to vector<12x256xf32>
    %198 = arith.select %196, %194, %197 : vector<12x256xi1>, vector<12x256xf32>
    %c36_156 = arith.constant 36 : index
    %c0_157 = arith.constant 0 : index
    %199 = vector.load %arg17[%c36_156, %c0_157] : memref<108x256xf32, #tpu.memory_space<vmem>>, vector<12x256xf32>
    tpu.vector_store %arg17[%c36_156, %c0_157], %198 {strides = array<i32>} : memref<108x256xf32, #tpu.memory_space<vmem>>, vector<12x256xf32>,
    %c0_158 = arith.constant 0 : index
    %c51_159 = arith.constant 51 : index
    %200 = vector.load %arg14[%c0_158, %c51_159] : memref<12x358xf32, #tpu.memory_space<vmem>>, vector<12x256xf32>
    %c48_160 = arith.constant 48 : index
    %c0_161 = arith.constant 0 : index
    %201 = vector.load %arg17[%c48_160, %c0_161] : memref<108x256xf32, #tpu.memory_space<vmem>>, vector<12x256xf32>
    tpu.vector_store %arg17[%c48_160, %c0_161], %200 {strides = array<i32>} : memref<108x256xf32, #tpu.memory_space<vmem>>, vector<12x256xf32>,
    %c0_162 = arith.constant 0 : index
    %c54 = arith.constant 54 : index
    %202 = vector.load %arg14[%c0_162, %c54] : memref<12x358xf32, #tpu.memory_space<vmem>>, vector<12x256xf32>
    %c13_i32_163 = arith.constant 13 : i32
    %203 = vector.broadcast %c13_i32_163 : i32 to vector<12x256xi32>
    %204 = arith.cmpi slt, %179, %203 : vector<12x256xi32>
    %cst_164 = arith.constant 0.000000e+00 : f32
    %205 = vector.broadcast %cst_164 : f32 to vector<12x256xf32>
    %206 = arith.select %204, %202, %205 : vector<12x256xi1>, vector<12x256xf32>
    %c60 = arith.constant 60 : index
    %c0_165 = arith.constant 0 : index
    %207 = vector.load %arg17[%c60, %c0_165] : memref<108x256xf32, #tpu.memory_space<vmem>>, vector<12x256xf32>
    tpu.vector_store %arg17[%c60, %c0_165], %206 {strides = array<i32>} : memref<108x256xf32, #tpu.memory_space<vmem>>, vector<12x256xf32>,
    %c0_166 = arith.constant 0 : index
    %c96 = arith.constant 96 : index
    %208 = vector.load %arg14[%c0_166, %c96] : memref<12x358xf32, #tpu.memory_space<vmem>>, vector<12x256xf32>
    %c3_i32_167 = arith.constant 3 : i32
    %209 = vector.broadcast %c3_i32_167 : i32 to vector<12x256xi32>
    %210 = arith.cmpi sge, %179, %209 : vector<12x256xi32>
    %cst_168 = arith.constant 0.000000e+00 : f32
    %211 = vector.broadcast %cst_168 : f32 to vector<12x256xf32>
    %212 = arith.select %210, %208, %211 : vector<12x256xi1>, vector<12x256xf32>
    %c72 = arith.constant 72 : index
    %c0_169 = arith.constant 0 : index
    %213 = vector.load %arg17[%c72, %c0_169] : memref<108x256xf32, #tpu.memory_space<vmem>>, vector<12x256xf32>
    tpu.vector_store %arg17[%c72, %c0_169], %212 {strides = array<i32>} : memref<108x256xf32, #tpu.memory_space<vmem>>, vector<12x256xf32>,
    %c0_170 = arith.constant 0 : index
    %c99 = arith.constant 99 : index
    %214 = vector.load %arg14[%c0_170, %c99] : memref<12x358xf32, #tpu.memory_space<vmem>>, vector<12x256xf32>
    %c84 = arith.constant 84 : index
    %c0_171 = arith.constant 0 : index
    %215 = vector.load %arg17[%c84, %c0_171] : memref<108x256xf32, #tpu.memory_space<vmem>>, vector<12x256xf32>
    tpu.vector_store %arg17[%c84, %c0_171], %214 {strides = array<i32>} : memref<108x256xf32, #tpu.memory_space<vmem>>, vector<12x256xf32>,
    %c0_172 = arith.constant 0 : index
    %c102 = arith.constant 102 : index
    %216 = vector.load %arg14[%c0_172, %c102] : memref<12x358xf32, #tpu.memory_space<vmem>>, vector<12x256xf32>
    %c13_i32_173 = arith.constant 13 : i32
    %217 = vector.broadcast %c13_i32_173 : i32 to vector<12x256xi32>
    %218 = arith.cmpi slt, %179, %217 : vector<12x256xi32>
    %cst_174 = arith.constant 0.000000e+00 : f32
    %219 = vector.broadcast %cst_174 : f32 to vector<12x256xf32>
    %220 = arith.select %218, %216, %219 : vector<12x256xi1>, vector<12x256xf32>
    %c96_175 = arith.constant 96 : index
    %c0_176 = arith.constant 0 : index
    %221 = vector.load %arg17[%c96_175, %c0_176] : memref<108x256xf32, #tpu.memory_space<vmem>>, vector<12x256xf32>
    tpu.vector_store %arg17[%c96_175, %c0_176], %220 {strides = array<i32>} : memref<108x256xf32, #tpu.memory_space<vmem>>, vector<12x256xf32>,
    %c0_177 = arith.constant 0 : index
    %c0_178 = arith.constant 0 : index
    %222 = vector.load %arg6[%c0_177, %c0_178] : memref<4x108xf32, #tpu.memory_space<vmem>>, vector<4x108xf32>
    %c0_179 = arith.constant 0 : index
    %c0_180 = arith.constant 0 : index
    %223 = vector.load %arg17[%c0_179, %c0_180] : memref<108x256xf32, #tpu.memory_space<vmem>>, vector<108x256xf32>
    %cst_181 = arith.constant dense<0.000000e+00> : vector<4x256xf32>
    %224 = tpu.matmul %222, %223, %cst_181 {dimension_numbers = #tpu.dot_dimension_numbers<[1], [0], [0], [1], [0, 0, 1, 1], [], []>} : vector<4x108xf32>, vector<108x256xf32>, vector<4x256xf32> -> vector<4x256xf32>
    %c0_182 = arith.constant 0 : index
    %c0_183 = arith.constant 0 : index
    %225 = vector.load %arg7[%c0_182, %c0_183] : memref<4x2xf32, #tpu.memory_space<vmem>>, vector<4x1xf32>
    %226 = vector.broadcast %225 : vector<4x1xf32> to vector<4x256xf32>
    %227 = arith.mulf %224, %226 : vector<4x256xf32>
    %c0_184 = arith.constant 0 : index
    %c1_185 = arith.constant 1 : index
    %228 = vector.load %arg7[%c0_184, %c1_185] : memref<4x2xf32, #tpu.memory_space<vmem>>, vector<4x1xf32>
    %229 = vector.broadcast %228 : vector<4x1xf32> to vector<4x256xf32>
    %230 = arith.addf %227, %229 : vector<4x256xf32>
    %cst_186 = arith.constant 0.000000e+00 : f32
    %231 = vector.broadcast %cst_186 : f32 to vector<4x256xf32>
    %232 = arith.maximumf %230, %231 : vector<4x256xf32>
    %c0_187 = arith.constant 0 : index
    %c0_188 = arith.constant 0 : index
    %233 = vector.load %arg11[%c0_187, %c0_188] : memref<16x256xf32, #tpu.memory_space<vmem>>, vector<4x256xf32>
    tpu.vector_store %arg11[%c0_187, %c0_188], %232 {strides = array<i32>} : memref<16x256xf32, #tpu.memory_space<vmem>>, vector<4x256xf32>,
    %c0_189 = arith.constant 0 : index
    %c0_190 = arith.constant 0 : index
    %234 = vector.load %arg8[%c0_189, %c0_190] : memref<4x16xf32, #tpu.memory_space<vmem>>, vector<4x16xf32>
    %c0_191 = arith.constant 0 : index
    %c0_192 = arith.constant 0 : index
    %235 = vector.load %arg11[%c0_191, %c0_192] : memref<16x256xf32, #tpu.memory_space<vmem>>, vector<16x256xf32>
    %cst_193 = arith.constant dense<0.000000e+00> : vector<4x256xf32>
    %236 = tpu.matmul %234, %235, %cst_193 {dimension_numbers = #tpu.dot_dimension_numbers<[1], [0], [0], [1], [0, 0, 1, 1], [], []>} : vector<4x16xf32>, vector<16x256xf32>, vector<4x256xf32> -> vector<4x256xf32>
    %c0_194 = arith.constant 0 : index
    %c0_195 = arith.constant 0 : index
    %237 = vector.load %arg9[%c0_194, %c0_195] : memref<4x2xf32, #tpu.memory_space<vmem>>, vector<4x1xf32>
    %238 = vector.broadcast %237 : vector<4x1xf32> to vector<4x256xf32>
    %239 = arith.mulf %236, %238 : vector<4x256xf32>
    %c0_196 = arith.constant 0 : index
    %c1_197 = arith.constant 1 : index
    %240 = vector.load %arg9[%c0_196, %c1_197] : memref<4x2xf32, #tpu.memory_space<vmem>>, vector<4x1xf32>
    %241 = vector.broadcast %240 : vector<4x1xf32> to vector<4x256xf32>
    %242 = arith.addf %239, %241 : vector<4x256xf32>
    %cst_198 = arith.constant 0.000000e+00 : f32
    %243 = vector.broadcast %cst_198 : f32 to vector<4x256xf32>
    %244 = arith.maximumf %242, %243 : vector<4x256xf32>
    %c0_199 = arith.constant 0 : index
    %c0_200 = arith.constant 0 : index
    %c0_201 = arith.constant 0 : index
    %245 = vector.load %arg10[%c0_199, %c0_200, %c0_201] : memref<1x4x256xf32, #tpu.memory_space<vmem>>, vector<1x4x256xf32>
    %246 = vector.shape_cast %245 : vector<1x4x256xf32> to vector<4x256xf32>
    %247 = vector.shape_cast %244 : vector<4x256xf32> to vector<1x4x256xf32>
    tpu.vector_store %arg10[%c0_199, %c0_200, %c0_201], %247 {strides = array<i32>} : memref<1x4x256xf32, #tpu.memory_space<vmem>>, vector<1x4x256xf32>,
    return
  }
  func.func @transform_0(%arg0: i32) -> (i32, i32, i32) {
    %c0_i32 = arith.constant 0 : i32
    %c0_i32_0 = arith.constant 0 : i32
    %c0_i32_1 = arith.constant 0 : i32
    return %arg0, %c0_i32, %c0_i32_0 : i32, i32, i32
  }
  func.func @transform_1(%arg0: i32) -> (i32, i32) {
    %c0_i32 = arith.constant 0 : i32
    %c0_i32_0 = arith.constant 0 : i32
    %c0_i32_1 = arith.constant 0 : i32
    return %c0_i32, %c0_i32_0 : i32, i32
  }
  func.func @transform_2(%arg0: i32) -> (i32, i32) {
    %c0_i32 = arith.constant 0 : i32
    %c0_i32_0 = arith.constant 0 : i32
    %c0_i32_1 = arith.constant 0 : i32
    return %c0_i32, %c0_i32_0 : i32, i32
  }
  func.func @transform_3(%arg0: i32) -> (i32, i32) {
    %c0_i32 = arith.constant 0 : i32
    %c0_i32_0 = arith.constant 0 : i32
    %c0_i32_1 = arith.constant 0 : i32
    return %c0_i32, %c0_i32_0 : i32, i32
  }
  func.func @transform_4(%arg0: i32) -> (i32, i32) {
    %c0_i32 = arith.constant 0 : i32
    %c0_i32_0 = arith.constant 0 : i32
    %c0_i32_1 = arith.constant 0 : i32
    return %c0_i32, %c0_i32_0 : i32, i32
  }
  func.func @transform_5(%arg0: i32) -> (i32, i32) {
    %c0_i32 = arith.constant 0 : i32
    %c0_i32_0 = arith.constant 0 : i32
    %c0_i32_1 = arith.constant 0 : i32
    return %c0_i32, %c0_i32_0 : i32, i32
  }
  func.func @transform_6(%arg0: i32) -> (i32, i32) {
    %c0_i32 = arith.constant 0 : i32
    %c0_i32_0 = arith.constant 0 : i32
    %c0_i32_1 = arith.constant 0 : i32
    return %c0_i32, %c0_i32_0 : i32, i32
  }
  func.func @transform_7(%arg0: i32) -> (i32, i32) {
    %c0_i32 = arith.constant 0 : i32
    %c0_i32_0 = arith.constant 0 : i32
    %c0_i32_1 = arith.constant 0 : i32
    return %c0_i32, %c0_i32_0 : i32, i32
  }
  func.func @transform_8(%arg0: i32) -> (i32, i32) {
    %c0_i32 = arith.constant 0 : i32
    %c0_i32_0 = arith.constant 0 : i32
    %c0_i32_1 = arith.constant 0 : i32
    return %c0_i32, %c0_i32_0 : i32, i32
  }
  func.func @transform_9(%arg0: i32) -> (i32, i32, i32) {
    %c0_i32 = arith.constant 0 : i32
    %c0_i32_0 = arith.constant 0 : i32
    %c0_i32_1 = arith.constant 0 : i32
    return %arg0, %c0_i32, %c0_i32_0 : i32, i32, i32
  }
}

</mosaic_0001>

<llo_original>
// kernel: _lambda_.9
$region0: #{_lambda_.9}
  #allocation0 [shape = 'u32[]', space=smem, size = 0x4, offset = 0x4, fixed_abs, tag = 'smem constant byte address 0x4 - core index']
  #allocation1 [shape = 'u32[144,128]{1,0:T(1,128)}', space=vmem, size = 0x12000, scoped, tag = 'internal scratch']
  %s0 = inlined_call_operand.vmem [shape: f32[2,4,256], index: 0, kind: input, shape index: {}]
  %s1 = inlined_call_operand.vmem [shape: f32[4,4], index: 1, kind: input, shape index: {}]
  %s2 = inlined_call_operand.vmem [shape: f32[4,2], index: 2, kind: input, shape index: {}]
  %s3 = inlined_call_operand.vmem [shape: f32[2,4,256], index: 3, kind: output, shape index: {}]
  %s4 = sld [smem:[#allocation0]]
  $region45: #{_lambda_.9} parent=0
    _
  %s6 = ssub.s32 1, %s4
  %s7 = scalar_select 0, %s6, %s4
  loop: start=0, step=1, limit=4
  $region2: #{_lambda_.9} parent=0 // loop_pre_header
    _
  $region3: #{_lambda_.9} parent=0 // loop_header
    %s9 = sphi 0, %s13
    %p10 = scmp.ge.s32.totalorder %s9, 4
    %s19 = sphi 0, %s21
    %s22 = sphi 0, %s19
    %s23 = sphi 0, %s22
    %s39 = sphi 0, %s23
    %s43 = sphi 0, %s43
    %s45 = sphi 0, %s43
    %s46 = sphi 0, %s45
    %s60 = sphi 0, %s46
    %s64 = sphi 0, %s64
    %s66 = sphi 0, %s64
    %s67 = sphi 0, %s66
    %s81 = sphi 0, %s67
    %s87 = sphi 0, %s89
    %s90 = sphi 0, %s87
    %s91 = sphi 0, %s90
    %s107 = sphi 0, %s91
  $region4: #{_lambda_.9} parent=0 // loop_header_branch
    %12 = sbr.rel (%p10) target = $region8
  $region5: #{_lambda_.9} parent=0 // loop_body
    %s14 = ssub.s32 %s9, 1
    %s15 = ssub.s32 %s9, 2
    %s16 = sadd.s32 %s9, 1
    %s17 = ssub.s32 %s9, %s16
    %p18 = scmp.eq.s32.totalorder %s17, 0
    %s20 = sadd.s32 %s19, 1
    %s21 = scalar_select %p18, %s19, %s20
    %p24 = pneg %p18
    %p25 = scmp.eq.s32.totalorder %s9, 1
    %p26 = por %p24, %p25
    %p27 = scmp.ne.s32.totalorder %s19, %s22
    %p28 = scmp.eq.s32.totalorder %s9, 0
    %p29 = por %p27, %p28
    %p30 = scmp.ne.s32.totalorder %s19, %s22
    %p31 = scmp.eq.s32.totalorder %s14, 1
    %p32 = por %p30, %p31
    %p33 = scmp.ne.s32.totalorder %s22, %s23
    %p34 = scmp.eq.s32.totalorder %s14, 0
    %p35 = por %p33, %p34
    %p36 = scmp.ne.s32.totalorder %s22, %s23
    %p37 = scmp.eq.s32.totalorder %s15, 1
    %p38 = por %p36, %p37
    %p40 = scmp.ne.s32.totalorder %s23, %s39
    %p41 = scmp.eq.s32.totalorder %s15, 0
    %p42 = por %p40, %p41
    %s44 = sadd.s32 %s43, 1
    %p47 = scmp.eq.s32.totalorder %s9, 1
    %p48 = scmp.ne.s32.totalorder %s43, %s45
    %p49 = scmp.eq.s32.totalorder %s9, 0
    %p50 = por %p48, %p49
    %p51 = scmp.ne.s32.totalorder %s43, %s45
    %p52 = scmp.eq.s32.totalorder %s14, 1
    %p53 = por %p51, %p52
    %p54 = scmp.ne.s32.totalorder %s45, %s46
    %p55 = scmp.eq.s32.totalorder %s14, 0
    %p56 = por %p54, %p55
    %p57 = scmp.ne.s32.totalorder %s45, %s46
    %p58 = scmp.eq.s32.totalorder %s15, 1
    %p59 = por %p57, %p58
    %p61 = scmp.ne.s32.totalorder %s46, %s60
    %p62 = scmp.eq.s32.totalorder %s15, 0
    %p63 = por %p61, %p62
    %s65 = sadd.s32 %s64, 1
    %p68 = scmp.eq.s32.totalorder %s9, 1
    %p69 = scmp.ne.s32.totalorder %s64, %s66
    %p70 = scmp.eq.s32.totalorder %s9, 0
    %p71 = por %p69, %p70
    %p72 = scmp.ne.s32.totalorder %s64, %s66
    %p73 = scmp.eq.s32.totalorder %s14, 1
    %p74 = por %p72, %p73
    %p75 = scmp.ne.s32.totalorder %s66, %s67
    %p76 = scmp.eq.s32.totalorder %s14, 0
    %p77 = por %p75, %p76
    %p78 = scmp.ne.s32.totalorder %s66, %s67
    %p79 = scmp.eq.s32.totalorder %s15, 1
    %p80 = por %p78, %p79
    %p82 = scmp.ne.s32.totalorder %s67, %s81
    %p83 = scmp.eq.s32.totalorder %s15, 0
    %p84 = por %p82, %p83
    %s85 = ssub.s32 %s9, %s16
    %p86 = scmp.eq.s32.totalorder %s85, 0
    %s88 = sadd.s32 %s87, 1
    %s89 = scalar_select %p86, %s87, %s88
    %p92 = pneg %p86
    %p93 = scmp.eq.s32.totalorder %s9, 1
    %p94 = por %p92, %p93
    %p95 = scmp.ne.s32.totalorder %s87, %s90
    %p96 = scmp.eq.s32.totalorder %s9, 0
    %p97 = por %p95, %p96
    %p98 = scmp.ne.s32.totalorder %s87, %s90
    %p99 = scmp.eq.s32.totalorder %s14, 1
    %p100 = por %p98, %p99
    %p101 = scmp.ne.s32.totalorder %s90, %s91
    %p102 = scmp.eq.s32.totalorder %s14, 0
    %p103 = por %p101, %p102
    %p104 = scmp.ne.s32.totalorder %s90, %s91
    %p105 = scmp.eq.s32.totalorder %s15, 1
    %p106 = por %p104, %p105
    %p108 = scmp.ne.s32.totalorder %s91, %s107
    %p109 = scmp.eq.s32.totalorder %s15, 0
    %p110 = por %p108, %p109
    %p111 = scmp.le.s32.totalorder 1, %s9
    %p112 = scmp.lt.s32.totalorder %s9, 3
    %p113 = pnand %p111, %p112
    %p114 = pneg %p113
    // Predicated region
    $region9: #{_lambda_.9} parent=5 // pred_check
      _
    $region10: #{_lambda_.9} parent=5 // pred_check_branch
      %116 = sbr.rel (%p113) target = $region12
    $region11: #{_lambda_.9} parent=5 // pred_region
      %s117 = ssub.s32 %s9, 1
      // Predicated region
      $region13: #{_lambda_.9} parent=11 // pred_check
        %p118 = pneg %p56
      $region14: #{_lambda_.9} parent=11 // pred_check_branch
        %120 = sbr.rel (%p118) target = $region16
      $region15: #{_lambda_.9} parent=11 // pred_region
        _
      $region16: #{_lambda_.9} parent=11 // pred_fallthru
        _
      // Predicated region
      $region17: #{_lambda_.9} parent=11 // pred_check
        %p121 = pneg %p77
      $region18: #{_lambda_.9} parent=11 // pred_check_branch
        %123 = sbr.rel (%p121) target = $region20
      $region19: #{_lambda_.9} parent=11 // pred_region
        _
      $region20: #{_lambda_.9} parent=11 // pred_fallthru
        _
    $region12: #{_lambda_.9} parent=5 // pred_fallthru
      _
    %p124 = scmp.lt.s32.totalorder %s9, 2
    // Predicated region
    $region21: #{_lambda_.9} parent=5 // pred_check
      %p125 = pneg %p124
    $region22: #{_lambda_.9} parent=5 // pred_check_branch
      %127 = sbr.rel (%p125) target = $region24
    $region23: #{_lambda_.9} parent=5 // pred_region
      // Predicated region
      $region25: #{_lambda_.9} parent=23 // pred_check
        %p128 = pneg %p29
      $region26: #{_lambda_.9} parent=23 // pred_check_branch
        %130 = sbr.rel (%p128) target = $region28
      $region27: #{_lambda_.9} parent=23 // pred_region
        %p131 = scmp.lt.s32.totalorder %s9, 1
        %s132 = scalar_select %p131, %s9, 1
        %s133 = smul.addr %s132, 2
        %s134 = smul.addr %s133, 4
        %s135 = scalar_lea.vmem %s0, %s134
      $region28: #{_lambda_.9} parent=23 // pred_fallthru
        _
    $region24: #{_lambda_.9} parent=5 // pred_fallthru
      _
    %p136 = scmp.le.s32.totalorder 1, %s9
    %p137 = scmp.lt.s32.totalorder %s9, 3
    %p138 = pnand %p136, %p137
    %p139 = pneg %p138
    // Predicated region
    $region29: #{_lambda_.9} parent=5 // pred_check
      _
    $region30: #{_lambda_.9} parent=5 // pred_check_branch
      %141 = sbr.rel (%p138) target = $region32
    $region31: #{_lambda_.9} parent=5 // pred_region
      %s142 = ssub.s32 %s9, 1
      %p143 = scmp.lt.s32.totalorder %s14, 1
      %s144 = scalar_select %p143, %s14, 1
      %s145 = smul.addr %s144, 2
      %s146 = smul.addr %s145, 4
      %s147 = scalar_lea.vmem %s0, %s146
      %p148 = pneg %p35
      %p149 = pneg %p32
      %p150 = pneg %p56
      %p151 = pneg %p53
      %p152 = pneg %p77
      %p153 = pneg %p74
      %p154 = pneg %p103
      %p155 = pneg %p100
      %p156 = scmp.lt.s32.totalorder %s14, 1
      %s157 = scalar_select %p156, %s14, 1
      %s158 = smul.addr %s157, 2
      %s159 = smul.addr %s158, 4
      %s160 = scalar_lea.vmem %s3, %s159
      %p161 = scmp.lt.s32.totalorder %s14, 1
      %s162 = scalar_select %p161, %s14, 1
      %s163 = smul.addr %s162, 2
      %s164 = smul.addr %s163, 4
      %s165 = scalar_lea.vmem %s0, %s164
      %p166 = scmp.lt.s32.totalorder %s14, 1
      %s167 = scalar_select %p166, %s14, 1
      %s168 = smul.addr %s167, 2
      %s169 = smul.addr %s168, 4
      %s170 = scalar_lea.vmem %s3, %s169
      %v171 = vld [vmem:[%s1] sm:$0xf]
      %v172 = vld [vmem:[%s165] sm:$0xff]
      %v174 = vcombine.high %v172, %v172
      %vm175 = vcmask 31744
      %v177 = vsel %vm175, %v171, 0
      %vm179 = vcmask 1043456
      %v180 = vsel %vm179, %v172, 0
      %v182 = vsel %vm179, %v174, 0
      %184 = vmatprep.subr.mxu0 %v182
      %185 = vmatpush1.msra.mxu0 %v180
      %186 = vmatprep.subr.mxu0 0.0
      %187 = vmatpush1.msra.mxu0 0.0
      %188 = vmatprep.subr.mxu0 0.0
      %189 = vmatpush1.msra.mxu0 0.0
      %190 = vmatprep.subr.mxu0 0.0
      %191 = vmatpush1.msra.mxu0 0.0
      %192 = vmatprep.subr.mxu0 0.0
      %193 = vmatpush1.msra.mxu0 0.0
      %194 = vmatprep.subr.mxu0 0.0
      %195 = vmatpush1.msra.mxu0 0.0
      %196 = vmatprep.subr.mxu0 0.0
      %197 = vmatpush1.msra.mxu0 0.0
      %198 = vmatprep.subr.mxu0 0.0
      %199 = vmatpush1.msra.mxu0 0.0
      %200 = vmatprep.subr.mxu0 0.0
      %201 = vmatpush1.msra.mxu0 0.0
      %202 = vmatprep.subr.mxu0 0.0
      %203 = vmatpush1.msra.mxu0 0.0
      %204 = vmatprep.subr.mxu0 0.0
      %205 = vmatpush1.msra.mxu0 0.0
      %206 = vmatprep.subr.mxu0 0.0
      %207 = vmatpush1.msra.mxu0 0.0
      %208 = vmatprep.subr.mxu0 0.0
      %209 = vmatpush1.msra.mxu0 0.0
      %210 = vmatprep.subr.mxu0 0.0
      %211 = vmatpush1.msra.mxu0 0.0
      %212 = vmatprep.subr.mxu0 0.0
      %213 = vmatpush1.msra.mxu0 0.0
      %214 = vmatprep.subr.mxu0 0.0
      %215 = vmatpush1.msra.mxu0 0.0
      %216 = vmatprep.subr.mxu0 0.0
      %217 = vmatpush1.msra.mxu0 0.0
      %218 = vmatprep.subr.mxu0 0.0
      %219 = vmatpush1.msra.mxu0 0.0
      %220 = vmatprep.subr.mxu0 0.0
      %221 = vmatpush1.msra.mxu0 0.0
      %222 = vmatprep.subr.mxu0 0.0
      %223 = vmatpush1.msra.mxu0 0.0
      %224 = vmatprep.subr.mxu0 0.0
      %225 = vmatpush1.msra.mxu0 0.0
      %226 = vmatprep.subr.mxu0 0.0
      %227 = vmatpush1.msra.mxu0 0.0
      %228 = vmatprep.subr.mxu0 0.0
      %229 = vmatpush1.msra.mxu0 0.0
      %230 = vmatprep.subr.mxu0 0.0
      %231 = vmatpush1.msra.mxu0 0.0
      %232 = vmatprep.subr.mxu0 0.0
      %233 = vmatpush1.msra.mxu0 0.0
      %234 = vmatprep.subr.mxu0 0.0
      %235 = vmatpush1.msra.mxu0 0.0
      %236 = vmatprep.subr.mxu0 0.0
      %237 = vmatpush1.msra.mxu0 0.0
      %238 = vmatprep.subr.mxu0 0.0
      %239 = vmatpush1.msra.mxu0 0.0
      %240 = vmatprep.subr.mxu0 0.0
      %241 = vmatpush1.msra.mxu0 0.0
      %242 = vmatprep.subr.mxu0 0.0
      %243 = vmatpush1.msra.mxu0 0.0
      %244 = vmatprep.subr.mxu0 0.0
      %245 = vmatpush1.msra.mxu0 0.0
      %246 = vmatprep.subr.mxu0 0.0
      %247 = vmatpush1.msra.mxu0 0.0
      %248 = vmatprep.mubr.f32.mxu0 0.0
      %249 = vmatmul.mubr.f32.gmra.mrb[0].mxu0 %v177
      %v250 = vpop.f32.mrb[0].mxu0
      %v251 = vadd.f32 0.0, %v250
      %v252 = vpop.f32.mrb[0].mxu0
      %v253 = vadd.f32 0.0, %v252
      %254 = vdwg.mxu0
      %v255 = vld [vmem:[%s2] sm:$0xf]
      %257 = vset.pattern.permute.xlu0 0
      %258 = vperm.xlu0 %257, %v255
      %v259 = vpop.permute.xlu0 %258
      %v261 = vmul.f32 %v251, %v259
      %v262 = vmul.f32 %v253, %v259
      %263 = vset.pattern.permute.xlu0 1
      %264 = vperm.xlu0 %263, %v255
      %v265 = vpop.permute.xlu0 %264
      %v267 = vadd.f32 %v261, %v265
      %v268 = vadd.f32 %v262, %v265
      %v269 = vmax.f32 %v267, 0.0
      %v270 = vmax.f32 %v268, 0.0
      %v273 = vcombine.low %v269, %v270
      %275 = vst [vmem:[%s170] sm:$0xff] %v273
      %p276 = scmp.lt.s32.totalorder %s14, 1
      %s277 = scalar_select %p276, %s14, 1
      %s278 = smul.addr %s277, 2
      %s279 = smul.addr %s278, 4
      %s280 = scalar_lea.vmem %s3, %s279
      // Predicated region
      $region33: #{_lambda_.9} parent=31 // pred_check
        %p281 = pneg %p100
      $region34: #{_lambda_.9} parent=31 // pred_check_branch
        %283 = sbr.rel (%p281) target = $region36
      $region35: #{_lambda_.9} parent=31 // pred_region
        _
      $region36: #{_lambda_.9} parent=31 // pred_fallthru
        _
    $region32: #{_lambda_.9} parent=5 // pred_fallthru
      _
    %p284 = scmp.le.s32.totalorder 2, %s9
    // Predicated region
    $region37: #{_lambda_.9} parent=5 // pred_check
      %p285 = pneg %p284
    $region38: #{_lambda_.9} parent=5 // pred_check_branch
      %287 = sbr.rel (%p285) target = $region40
    $region39: #{_lambda_.9} parent=5 // pred_region
      %s288 = ssub.s32 %s9, 2
      // Predicated region
      $region41: #{_lambda_.9} parent=39 // pred_check
        %p289 = pneg %p106
      $region42: #{_lambda_.9} parent=39 // pred_check_branch
        %291 = sbr.rel (%p289) target = $region44
      $region43: #{_lambda_.9} parent=39 // pred_region
        %p292 = scmp.lt.s32.totalorder %s15, 1
        %s293 = scalar_select %p292, %s15, 1
        %s294 = smul.addr %s293, 2
        %s295 = smul.addr %s294, 4
        %s296 = scalar_lea.vmem %s3, %s295
      $region44: #{_lambda_.9} parent=39 // pred_fallthru
        _
    $region40: #{_lambda_.9} parent=5 // pred_fallthru
      _
  $region6: #{_lambda_.9} parent=0 // loop_footer
    %s13 = sadd.s32 1, %s9
  $region7: #{_lambda_.9} parent=0 // loop_footer_branch
    %8 = sbr.rel target = $region3
  $region8: #{_lambda_.9} parent=0 // loop_exit
    _

// kernel: _lambda_.10
$region0: #{_lambda_.10}
  #allocation0 [shape = 'u32[]', space=smem, size = 0x4, offset = 0x4, fixed_abs, tag = 'smem constant byte address 0x4 - core index']
  #allocation1 [shape = 'u32[144,128]{1,0:T(1,128)}', space=vmem, size = 0x12000, scoped, tag = 'internal scratch']
  %s0 = inlined_call_operand.vmem [shape: f32[2,4,256], index: 0, kind: input, shape index: {}]
  %s1 = inlined_call_operand.vmem [shape: f32[4,4], index: 1, kind: input, shape index: {}]
  %s2 = inlined_call_operand.vmem [shape: f32[4,2], index: 2, kind: input, shape index: {}]
  %s3 = inlined_call_operand.vmem [shape: f32[2,4,256], index: 3, kind: output, shape index: {}]
  %s4 = sld [smem:[#allocation0]]
  $region45: #{_lambda_.10} parent=0
    _
  %s6 = ssub.s32 1, %s4
  %s7 = scalar_select 0, %s6, %s4
  loop: start=0, step=1, limit=4
  $region2: #{_lambda_.10} parent=0 // loop_pre_header
    _
  $region3: #{_lambda_.10} parent=0 // loop_header
    %s9 = sphi 0, %s13
    %p10 = scmp.ge.s32.totalorder %s9, 4
    %s19 = sphi 0, %s21
    %s22 = sphi 0, %s19
    %s23 = sphi 0, %s22
    %s39 = sphi 0, %s23
    %s43 = sphi 0, %s43
    %s45 = sphi 0, %s43
    %s46 = sphi 0, %s45
    %s60 = sphi 0, %s46
    %s64 = sphi 0, %s64
    %s66 = sphi 0, %s64
    %s67 = sphi 0, %s66
    %s81 = sphi 0, %s67
    %s87 = sphi 0, %s89
    %s90 = sphi 0, %s87
    %s91 = sphi 0, %s90
    %s107 = sphi 0, %s91
  $region4: #{_lambda_.10} parent=0 // loop_header_branch
    %12 = sbr.rel (%p10) target = $region8
  $region5: #{_lambda_.10} parent=0 // loop_body
    %s14 = ssub.s32 %s9, 1
    %s15 = ssub.s32 %s9, 2
    %s16 = sadd.s32 %s9, 1
    %s17 = ssub.s32 %s9, %s16
    %p18 = scmp.eq.s32.totalorder %s17, 0
    %s20 = sadd.s32 %s19, 1
    %s21 = scalar_select %p18, %s19, %s20
    %p24 = pneg %p18
    %p25 = scmp.eq.s32.totalorder %s9, 1
    %p26 = por %p24, %p25
    %p27 = scmp.ne.s32.totalorder %s19, %s22
    %p28 = scmp.eq.s32.totalorder %s9, 0
    %p29 = por %p27, %p28
    %p30 = scmp.ne.s32.totalorder %s19, %s22
    %p31 = scmp.eq.s32.totalorder %s14, 1
    %p32 = por %p30, %p31
    %p33 = scmp.ne.s32.totalorder %s22, %s23
    %p34 = scmp.eq.s32.totalorder %s14, 0
    %p35 = por %p33, %p34
    %p36 = scmp.ne.s32.totalorder %s22, %s23
    %p37 = scmp.eq.s32.totalorder %s15, 1
    %p38 = por %p36, %p37
    %p40 = scmp.ne.s32.totalorder %s23, %s39
    %p41 = scmp.eq.s32.totalorder %s15, 0
    %p42 = por %p40, %p41
    %s44 = sadd.s32 %s43, 1
    %p47 = scmp.eq.s32.totalorder %s9, 1
    %p48 = scmp.ne.s32.totalorder %s43, %s45
    %p49 = scmp.eq.s32.totalorder %s9, 0
    %p50 = por %p48, %p49
    %p51 = scmp.ne.s32.totalorder %s43, %s45
    %p52 = scmp.eq.s32.totalorder %s14, 1
    %p53 = por %p51, %p52
    %p54 = scmp.ne.s32.totalorder %s45, %s46
    %p55 = scmp.eq.s32.totalorder %s14, 0
    %p56 = por %p54, %p55
    %p57 = scmp.ne.s32.totalorder %s45, %s46
    %p58 = scmp.eq.s32.totalorder %s15, 1
    %p59 = por %p57, %p58
    %p61 = scmp.ne.s32.totalorder %s46, %s60
    %p62 = scmp.eq.s32.totalorder %s15, 0
    %p63 = por %p61, %p62
    %s65 = sadd.s32 %s64, 1
    %p68 = scmp.eq.s32.totalorder %s9, 1
    %p69 = scmp.ne.s32.totalorder %s64, %s66
    %p70 = scmp.eq.s32.totalorder %s9, 0
    %p71 = por %p69, %p70
    %p72 = scmp.ne.s32.totalorder %s64, %s66
    %p73 = scmp.eq.s32.totalorder %s14, 1
    %p74 = por %p72, %p73
    %p75 = scmp.ne.s32.totalorder %s66, %s67
    %p76 = scmp.eq.s32.totalorder %s14, 0
    %p77 = por %p75, %p76
    %p78 = scmp.ne.s32.totalorder %s66, %s67
    %p79 = scmp.eq.s32.totalorder %s15, 1
    %p80 = por %p78, %p79
    %p82 = scmp.ne.s32.totalorder %s67, %s81
    %p83 = scmp.eq.s32.totalorder %s15, 0
    %p84 = por %p82, %p83
    %s85 = ssub.s32 %s9, %s16
    %p86 = scmp.eq.s32.totalorder %s85, 0
    %s88 = sadd.s32 %s87, 1
    %s89 = scalar_select %p86, %s87, %s88
    %p92 = pneg %p86
    %p93 = scmp.eq.s32.totalorder %s9, 1
    %p94 = por %p92, %p93
    %p95 = scmp.ne.s32.totalorder %s87, %s90
    %p96 = scmp.eq.s32.totalorder %s9, 0
    %p97 = por %p95, %p96
    %p98 = scmp.ne.s32.totalorder %s87, %s90
    %p99 = scmp.eq.s32.totalorder %s14, 1
    %p100 = por %p98, %p99
    %p101 = scmp.ne.s32.totalorder %s90, %s91
    %p102 = scmp.eq.s32.totalorder %s14, 0
    %p103 = por %p101, %p102
    %p104 = scmp.ne.s32.totalorder %s90, %s91
    %p105 = scmp.eq.s32.totalorder %s15, 1
    %p106 = por %p104, %p105
    %p108 = scmp.ne.s32.totalorder %s91, %s107
    %p109 = scmp.eq.s32.totalorder %s15, 0
    %p110 = por %p108, %p109
    %p111 = scmp.le.s32.totalorder 1, %s9
    %p112 = scmp.lt.s32.totalorder %s9, 3
    %p113 = pnand %p111, %p112
    %p114 = pneg %p113
    // Predicated region
    $region9: #{_lambda_.10} parent=5 // pred_check
      _
    $region10: #{_lambda_.10} parent=5 // pred_check_branch
      %116 = sbr.rel (%p113) target = $region12
    $region11: #{_lambda_.10} parent=5 // pred_region
      %s117 = ssub.s32 %s9, 1
      // Predicated region
      $region13: #{_lambda_.10} parent=11 // pred_check
        %p118 = pneg %p56
      $region14: #{_lambda_.10} parent=11 // pred_check_branch
        %120 = sbr.rel (%p118) target = $region16
      $region15: #{_lambda_.10} parent=11 // pred_region
        _
      $region16: #{_lambda_.10} parent=11 // pred_fallthru
        _
      // Predicated region
      $region17: #{_lambda_.10} parent=11 // pred_check
        %p121 = pneg %p77
      $region18: #{_lambda_.10} parent=11 // pred_check_branch
        %123 = sbr.rel (%p121) target = $region20
      $region19: #{_lambda_.10} parent=11 // pred_region
        _
      $region20: #{_lambda_.10} parent=11 // pred_fallthru
        _
    $region12: #{_lambda_.10} parent=5 // pred_fallthru
      _
    %p124 = scmp.lt.s32.totalorder %s9, 2
    // Predicated region
    $region21: #{_lambda_.10} parent=5 // pred_check
      %p125 = pneg %p124
    $region22: #{_lambda_.10} parent=5 // pred_check_branch
      %127 = sbr.rel (%p125) target = $region24
    $region23: #{_lambda_.10} parent=5 // pred_region
      // Predicated region
      $region25: #{_lambda_.10} parent=23 // pred_check
        %p128 = pneg %p29
      $region26: #{_lambda_.10} parent=23 // pred_check_branch
        %130 = sbr.rel (%p128) target = $region28
      $region27: #{_lambda_.10} parent=23 // pred_region
        %p131 = scmp.lt.s32.totalorder %s9, 1
        %s132 = scalar_select %p131, %s9, 1
        %s133 = smul.addr %s132, 2
        %s134 = smul.addr %s133, 4
        %s135 = scalar_lea.vmem %s0, %s134
      $region28: #{_lambda_.10} parent=23 // pred_fallthru
        _
    $region24: #{_lambda_.10} parent=5 // pred_fallthru
      _
    %p136 = scmp.le.s32.totalorder 1, %s9
    %p137 = scmp.lt.s32.totalorder %s9, 3
    %p138 = pnand %p136, %p137
    %p139 = pneg %p138
    // Predicated region
    $region29: #{_lambda_.10} parent=5 // pred_check
      _
    $region30: #{_lambda_.10} parent=5 // pred_check_branch
      %141 = sbr.rel (%p138) target = $region32
    $region31: #{_lambda_.10} parent=5 // pred_region
      %s142 = ssub.s32 %s9, 1
      %p143 = scmp.lt.s32.totalorder %s14, 1
      %s144 = scalar_select %p143, %s14, 1
      %s145 = smul.addr %s144, 2
      %s146 = smul.addr %s145, 4
      %s147 = scalar_lea.vmem %s0, %s146
      %p148 = pneg %p35
      %p149 = pneg %p32
      %p150 = pneg %p56
      %p151 = pneg %p53
      %p152 = pneg %p77
      %p153 = pneg %p74
      %p154 = pneg %p103
      %p155 = pneg %p100
      %p156 = scmp.lt.s32.totalorder %s14, 1
      %s157 = scalar_select %p156, %s14, 1
      %s158 = smul.addr %s157, 2
      %s159 = smul.addr %s158, 4
      %s160 = scalar_lea.vmem %s3, %s159
      %p161 = scmp.lt.s32.totalorder %s14, 1
      %s162 = scalar_select %p161, %s14, 1
      %s163 = smul.addr %s162, 2
      %s164 = smul.addr %s163, 4
      %s165 = scalar_lea.vmem %s0, %s164
      %p166 = scmp.lt.s32.totalorder %s14, 1
      %s167 = scalar_select %p166, %s14, 1
      %s168 = smul.addr %s167, 2
      %s169 = smul.addr %s168, 4
      %s170 = scalar_lea.vmem %s3, %s169
      %v171 = vld [vmem:[%s1] sm:$0xf]
      %v172 = vld [vmem:[%s165] sm:$0xff]
      %v174 = vcombine.high %v172, %v172
      %vm175 = vcmask 31744
      %v177 = vsel %vm175, %v171, 0
      %vm179 = vcmask 1043456
      %v180 = vsel %vm179, %v172, 0
      %v182 = vsel %vm179, %v174, 0
      %184 = vmatprep.subr.mxu0 %v182
      %185 = vmatpush1.msra.mxu0 %v180
      %186 = vmatprep.subr.mxu0 0.0
      %187 = vmatpush1.msra.mxu0 0.0
      %188 = vmatprep.subr.mxu0 0.0
      %189 = vmatpush1.msra.mxu0 0.0
      %190 = vmatprep.subr.mxu0 0.0
      %191 = vmatpush1.msra.mxu0 0.0
      %192 = vmatprep.subr.mxu0 0.0
      %193 = vmatpush1.msra.mxu0 0.0
      %194 = vmatprep.subr.mxu0 0.0
      %195 = vmatpush1.msra.mxu0 0.0
      %196 = vmatprep.subr.mxu0 0.0
      %197 = vmatpush1.msra.mxu0 0.0
      %198 = vmatprep.subr.mxu0 0.0
      %199 = vmatpush1.msra.mxu0 0.0
      %200 = vmatprep.subr.mxu0 0.0
      %201 = vmatpush1.msra.mxu0 0.0
      %202 = vmatprep.subr.mxu0 0.0
      %203 = vmatpush1.msra.mxu0 0.0
      %204 = vmatprep.subr.mxu0 0.0
      %205 = vmatpush1.msra.mxu0 0.0
      %206 = vmatprep.subr.mxu0 0.0
      %207 = vmatpush1.msra.mxu0 0.0
      %208 = vmatprep.subr.mxu0 0.0
      %209 = vmatpush1.msra.mxu0 0.0
      %210 = vmatprep.subr.mxu0 0.0
      %211 = vmatpush1.msra.mxu0 0.0
      %212 = vmatprep.subr.mxu0 0.0
      %213 = vmatpush1.msra.mxu0 0.0
      %214 = vmatprep.subr.mxu0 0.0
      %215 = vmatpush1.msra.mxu0 0.0
      %216 = vmatprep.subr.mxu0 0.0
      %217 = vmatpush1.msra.mxu0 0.0
      %218 = vmatprep.subr.mxu0 0.0
      %219 = vmatpush1.msra.mxu0 0.0
      %220 = vmatprep.subr.mxu0 0.0
      %221 = vmatpush1.msra.mxu0 0.0
      %222 = vmatprep.subr.mxu0 0.0
      %223 = vmatpush1.msra.mxu0 0.0
      %224 = vmatprep.subr.mxu0 0.0
      %225 = vmatpush1.msra.mxu0 0.0
      %226 = vmatprep.subr.mxu0 0.0
      %227 = vmatpush1.msra.mxu0 0.0
      %228 = vmatprep.subr.mxu0 0.0
      %229 = vmatpush1.msra.mxu0 0.0
      %230 = vmatprep.subr.mxu0 0.0
      %231 = vmatpush1.msra.mxu0 0.0
      %232 = vmatprep.subr.mxu0 0.0
      %233 = vmatpush1.msra.mxu0 0.0
      %234 = vmatprep.subr.mxu0 0.0
      %235 = vmatpush1.msra.mxu0 0.0
      %236 = vmatprep.subr.mxu0 0.0
      %237 = vmatpush1.msra.mxu0 0.0
      %238 = vmatprep.subr.mxu0 0.0
      %239 = vmatpush1.msra.mxu0 0.0
      %240 = vmatprep.subr.mxu0 0.0
      %241 = vmatpush1.msra.mxu0 0.0
      %242 = vmatprep.subr.mxu0 0.0
      %243 = vmatpush1.msra.mxu0 0.0
      %244 = vmatprep.subr.mxu0 0.0
      %245 = vmatpush1.msra.mxu0 0.0
      %246 = vmatprep.subr.mxu0 0.0
      %247 = vmatpush1.msra.mxu0 0.0
      %248 = vmatprep.mubr.f32.mxu0 0.0
      %249 = vmatmul.mubr.f32.gmra.mrb[0].mxu0 %v177
      %v250 = vpop.f32.mrb[0].mxu0
      %v251 = vadd.f32 0.0, %v250
      %v252 = vpop.f32.mrb[0].mxu0
      %v253 = vadd.f32 0.0, %v252
      %254 = vdwg.mxu0
      %v255 = vsel %vm179, %v251, 0.0
      %v256 = vsel %vm179, %v253, 0.0
      %v257 = vadd.f32 %v255, %v256
      %258 = vadd.xlane.f32.xlu0 %v257
      %v259 = vpop.xlane.xlu0 %258
      %v260 = vmul.f32 %v259, 0.00390625
      %v261 = vld [vmem:[%s2] sm:$0xf]
      %v262 = vmul.f32 %v260, %v261
      %264 = vrot.lane.b32.xlu0 %v261, 127
      %v265 = vpop.permute.xlu0 %264
      %v267 = vadd.f32 %v262, %v265
      %v268 = vmax.f32 %v267, 0.0
      %270 = vset.pattern.permute.xlu0 0
      %271 = vperm.xlu0 %270, %v268
      %v272 = vpop.permute.xlu0 %271
      %v274 = vunpack.c.l.s4 839922192
      %v275 = vunpack.c.0.s8 %v274
      %v276 = vlaneseq
      %v277 = vshrl.u32 %v276, 7
      %v278 = vsub.s32 %v275, %v277
      %v279 = vrot.slane %v272, %v278
      %281 = vst [vmem:[%s170] sm:$0xff] %v279
      %p282 = scmp.lt.s32.totalorder %s14, 1
      %s283 = scalar_select %p282, %s14, 1
      %s284 = smul.addr %s283, 2
      %s285 = smul.addr %s284, 4
      %s286 = scalar_lea.vmem %s3, %s285
      // Predicated region
      $region33: #{_lambda_.10} parent=31 // pred_check
        %p287 = pneg %p100
      $region34: #{_lambda_.10} parent=31 // pred_check_branch
        %289 = sbr.rel (%p287) target = $region36
      $region35: #{_lambda_.10} parent=31 // pred_region
        _
      $region36: #{_lambda_.10} parent=31 // pred_fallthru
        _
    $region32: #{_lambda_.10} parent=5 // pred_fallthru
      _
    %p290 = scmp.le.s32.totalorder 2, %s9
    // Predicated region
    $region37: #{_lambda_.10} parent=5 // pred_check
      %p291 = pneg %p290
    $region38: #{_lambda_.10} parent=5 // pred_check_branch
      %293 = sbr.rel (%p291) target = $region40
    $region39: #{_lambda_.10} parent=5 // pred_region
      %s294 = ssub.s32 %s9, 2
      // Predicated region
      $region41: #{_lambda_.10} parent=39 // pred_check
        %p295 = pneg %p106
      $region42: #{_lambda_.10} parent=39 // pred_check_branch
        %297 = sbr.rel (%p295) target = $region44
      $region43: #{_lambda_.10} parent=39 // pred_region
        %p298 = scmp.lt.s32.totalorder %s15, 1
        %s299 = scalar_select %p298, %s15, 1
        %s300 = smul.addr %s299, 2
        %s301 = smul.addr %s300, 4
        %s302 = scalar_lea.vmem %s3, %s301
      $region44: #{_lambda_.10} parent=39 // pred_fallthru
        _
    $region40: #{_lambda_.10} parent=5 // pred_fallthru
      _
  $region6: #{_lambda_.10} parent=0 // loop_footer
    %s13 = sadd.s32 1, %s9
  $region7: #{_lambda_.10} parent=0 // loop_footer_branch
    %8 = sbr.rel target = $region3
  $region8: #{_lambda_.10} parent=0 // loop_exit
    _

// kernel: _lambda_.11
$region0: #{_lambda_.11}
  #allocation0 [shape = 'u32[]', space=smem, size = 0x4, offset = 0x4, fixed_abs, tag = 'smem constant byte address 0x4 - core index']
  #allocation1 [shape = 'u32[144,128]{1,0:T(1,128)}', space=vmem, size = 0x12000, scoped, tag = 'internal scratch']
  %s0 = inlined_call_operand.vmem [shape: f32[2,20,256], index: 0, kind: input, shape index: {}]
  %s1 = inlined_call_operand.vmem [shape: f32[2,4,256], index: 1, kind: input, shape index: {}]
  %s2 = inlined_call_operand.vmem [shape: f32[4,20], index: 2, kind: input, shape index: {}]
  %s3 = inlined_call_operand.vmem [shape: f32[4,2], index: 3, kind: input, shape index: {}]
  %s4 = inlined_call_operand.vmem [shape: f32[2,4,256], index: 4, kind: output, shape index: {}]
  %s5 = sld [smem:[#allocation0]]
  $region49: #{_lambda_.11} parent=0
    _
  %s7 = ssub.s32 1, %s5
  %s8 = scalar_select 0, %s7, %s5
  loop: start=0, step=1, limit=4
  $region2: #{_lambda_.11} parent=0 // loop_pre_header
    _
  $region3: #{_lambda_.11} parent=0 // loop_header
    %s10 = sphi 0, %s14
    %p11 = scmp.ge.s32.totalorder %s10, 4
    %s20 = sphi 0, %s22
    %s23 = sphi 0, %s20
    %s24 = sphi 0, %s23
    %s40 = sphi 0, %s24
    %s46 = sphi 0, %s48
    %s49 = sphi 0, %s46
    %s50 = sphi 0, %s49
    %s66 = sphi 0, %s50
    %s70 = sphi 0, %s70
    %s72 = sphi 0, %s70
    %s73 = sphi 0, %s72
    %s87 = sphi 0, %s73
    %s91 = sphi 0, %s91
    %s93 = sphi 0, %s91
    %s94 = sphi 0, %s93
    %s108 = sphi 0, %s94
    %s114 = sphi 0, %s116
    %s117 = sphi 0, %s114
    %s118 = sphi 0, %s117
    %s134 = sphi 0, %s118
  $region4: #{_lambda_.11} parent=0 // loop_header_branch
    %13 = sbr.rel (%p11) target = $region8
  $region5: #{_lambda_.11} parent=0 // loop_body
    %s15 = ssub.s32 %s10, 1
    %s16 = ssub.s32 %s10, 2
    %s17 = sadd.s32 %s10, 1
    %s18 = ssub.s32 %s10, %s17
    %p19 = scmp.eq.s32.totalorder %s18, 0
    %s21 = sadd.s32 %s20, 1
    %s22 = scalar_select %p19, %s20, %s21
    %p25 = pneg %p19
    %p26 = scmp.eq.s32.totalorder %s10, 1
    %p27 = por %p25, %p26
    %p28 = scmp.ne.s32.totalorder %s20, %s23
    %p29 = scmp.eq.s32.totalorder %s10, 0
    %p30 = por %p28, %p29
    %p31 = scmp.ne.s32.totalorder %s20, %s23
    %p32 = scmp.eq.s32.totalorder %s15, 1
    %p33 = por %p31, %p32
    %p34 = scmp.ne.s32.totalorder %s23, %s24
    %p35 = scmp.eq.s32.totalorder %s15, 0
    %p36 = por %p34, %p35
    %p37 = scmp.ne.s32.totalorder %s23, %s24
    %p38 = scmp.eq.s32.totalorder %s16, 1
    %p39 = por %p37, %p38
    %p41 = scmp.ne.s32.totalorder %s24, %s40
    %p42 = scmp.eq.s32.totalorder %s16, 0
    %p43 = por %p41, %p42
    %s44 = ssub.s32 %s10, %s17
    %p45 = scmp.eq.s32.totalorder %s44, 0
    %s47 = sadd.s32 %s46, 1
    %s48 = scalar_select %p45, %s46, %s47
    %p51 = pneg %p45
    %p52 = scmp.eq.s32.totalorder %s10, 1
    %p53 = por %p51, %p52
    %p54 = scmp.ne.s32.totalorder %s46, %s49
    %p55 = scmp.eq.s32.totalorder %s10, 0
    %p56 = por %p54, %p55
    %p57 = scmp.ne.s32.totalorder %s46, %s49
    %p58 = scmp.eq.s32.totalorder %s15, 1
    %p59 = por %p57, %p58
    %p60 = scmp.ne.s32.totalorder %s49, %s50
    %p61 = scmp.eq.s32.totalorder %s15, 0
    %p62 = por %p60, %p61
    %p63 = scmp.ne.s32.totalorder %s49, %s50
    %p64 = scmp.eq.s32.totalorder %s16, 1
    %p65 = por %p63, %p64
    %p67 = scmp.ne.s32.totalorder %s50, %s66
    %p68 = scmp.eq.s32.totalorder %s16, 0
    %p69 = por %p67, %p68
    %s71 = sadd.s32 %s70, 1
    %p74 = scmp.eq.s32.totalorder %s10, 1
    %p75 = scmp.ne.s32.totalorder %s70, %s72
    %p76 = scmp.eq.s32.totalorder %s10, 0
    %p77 = por %p75, %p76
    %p78 = scmp.ne.s32.totalorder %s70, %s72
    %p79 = scmp.eq.s32.totalorder %s15, 1
    %p80 = por %p78, %p79
    %p81 = scmp.ne.s32.totalorder %s72, %s73
    %p82 = scmp.eq.s32.totalorder %s15, 0
    %p83 = por %p81, %p82
    %p84 = scmp.ne.s32.totalorder %s72, %s73
    %p85 = scmp.eq.s32.totalorder %s16, 1
    %p86 = por %p84, %p85
    %p88 = scmp.ne.s32.totalorder %s73, %s87
    %p89 = scmp.eq.s32.totalorder %s16, 0
    %p90 = por %p88, %p89
    %s92 = sadd.s32 %s91, 1
    %p95 = scmp.eq.s32.totalorder %s10, 1
    %p96 = scmp.ne.s32.totalorder %s91, %s93
    %p97 = scmp.eq.s32.totalorder %s10, 0
    %p98 = por %p96, %p97
    %p99 = scmp.ne.s32.totalorder %s91, %s93
    %p100 = scmp.eq.s32.totalorder %s15, 1
    %p101 = por %p99, %p100
    %p102 = scmp.ne.s32.totalorder %s93, %s94
    %p103 = scmp.eq.s32.totalorder %s15, 0
    %p104 = por %p102, %p103
    %p105 = scmp.ne.s32.totalorder %s93, %s94
    %p106 = scmp.eq.s32.totalorder %s16, 1
    %p107 = por %p105, %p106
    %p109 = scmp.ne.s32.totalorder %s94, %s108
    %p110 = scmp.eq.s32.totalorder %s16, 0
    %p111 = por %p109, %p110
    %s112 = ssub.s32 %s10, %s17
    %p113 = scmp.eq.s32.totalorder %s112, 0
    %s115 = sadd.s32 %s114, 1
    %s116 = scalar_select %p113, %s114, %s115
    %p119 = pneg %p113
    %p120 = scmp.eq.s32.totalorder %s10, 1
    %p121 = por %p119, %p120
    %p122 = scmp.ne.s32.totalorder %s114, %s117
    %p123 = scmp.eq.s32.totalorder %s10, 0
    %p124 = por %p122, %p123
    %p125 = scmp.ne.s32.totalorder %s114, %s117
    %p126 = scmp.eq.s32.totalorder %s15, 1
    %p127 = por %p125, %p126
    %p128 = scmp.ne.s32.totalorder %s117, %s118
    %p129 = scmp.eq.s32.totalorder %s15, 0
    %p130 = por %p128, %p129
    %p131 = scmp.ne.s32.totalorder %s117, %s118
    %p132 = scmp.eq.s32.totalorder %s16, 1
    %p133 = por %p131, %p132
    %p135 = scmp.ne.s32.totalorder %s118, %s134
    %p136 = scmp.eq.s32.totalorder %s16, 0
    %p137 = por %p135, %p136
    %p138 = scmp.le.s32.totalorder 1, %s10
    %p139 = scmp.lt.s32.totalorder %s10, 3
    %p140 = pnand %p138, %p139
    %p141 = pneg %p140
    // Predicated region
    $region9: #{_lambda_.11} parent=5 // pred_check
      _
    $region10: #{_lambda_.11} parent=5 // pred_check_branch
      %143 = sbr.rel (%p140) target = $region12
    $region11: #{_lambda_.11} parent=5 // pred_region
      %s144 = ssub.s32 %s10, 1
      // Predicated region
      $region13: #{_lambda_.11} parent=11 // pred_check
        %p145 = pneg %p83
      $region14: #{_lambda_.11} parent=11 // pred_check_branch
        %147 = sbr.rel (%p145) target = $region16
      $region15: #{_lambda_.11} parent=11 // pred_region
        _
      $region16: #{_lambda_.11} parent=11 // pred_fallthru
        _
      // Predicated region
      $region17: #{_lambda_.11} parent=11 // pred_check
        %p148 = pneg %p104
      $region18: #{_lambda_.11} parent=11 // pred_check_branch
        %150 = sbr.rel (%p148) target = $region20
      $region19: #{_lambda_.11} parent=11 // pred_region
        _
      $region20: #{_lambda_.11} parent=11 // pred_fallthru
        _
    $region12: #{_lambda_.11} parent=5 // pred_fallthru
      _
    %p151 = scmp.lt.s32.totalorder %s10, 2
    // Predicated region
    $region21: #{_lambda_.11} parent=5 // pred_check
      %p152 = pneg %p151
    $region22: #{_lambda_.11} parent=5 // pred_check_branch
      %154 = sbr.rel (%p152) target = $region24
    $region23: #{_lambda_.11} parent=5 // pred_region
      // Predicated region
      $region25: #{_lambda_.11} parent=23 // pred_check
        %p155 = pneg %p30
      $region26: #{_lambda_.11} parent=23 // pred_check_branch
        %157 = sbr.rel (%p155) target = $region28
      $region27: #{_lambda_.11} parent=23 // pred_region
        %p158 = scmp.lt.s32.totalorder %s10, 1
        %s159 = scalar_select %p158, %s10, 1
        %s160 = smul.addr %s159, 6
        %s161 = smul.addr %s160, 8
        %s162 = scalar_lea.vmem %s0, %s161
      $region28: #{_lambda_.11} parent=23 // pred_fallthru
        _
      // Predicated region
      $region29: #{_lambda_.11} parent=23 // pred_check
        %p163 = pneg %p56
      $region30: #{_lambda_.11} parent=23 // pred_check_branch
        %165 = sbr.rel (%p163) target = $region32
      $region31: #{_lambda_.11} parent=23 // pred_region
        %p166 = scmp.lt.s32.totalorder %s10, 1
        %s167 = scalar_select %p166, %s10, 1
        %s168 = smul.addr %s167, 2
        %s169 = smul.addr %s168, 4
        %s170 = scalar_lea.vmem %s1, %s169
      $region32: #{_lambda_.11} parent=23 // pred_fallthru
        _
    $region24: #{_lambda_.11} parent=5 // pred_fallthru
      _
    %p171 = scmp.le.s32.totalorder 1, %s10
    %p172 = scmp.lt.s32.totalorder %s10, 3
    %p173 = pnand %p171, %p172
    %p174 = pneg %p173
    // Predicated region
    $region33: #{_lambda_.11} parent=5 // pred_check
      _
    $region34: #{_lambda_.11} parent=5 // pred_check_branch
      %176 = sbr.rel (%p173) target = $region36
    $region35: #{_lambda_.11} parent=5 // pred_region
      %s177 = ssub.s32 %s10, 1
      %p178 = scmp.lt.s32.totalorder %s15, 1
      %s179 = scalar_select %p178, %s15, 1
      %s180 = smul.addr %s179, 6
      %s181 = smul.addr %s180, 8
      %s182 = scalar_lea.vmem %s0, %s181
      %p183 = pneg %p36
      %p184 = pneg %p33
      %p185 = scmp.lt.s32.totalorder %s15, 1
      %s186 = scalar_select %p185, %s15, 1
      %s187 = smul.addr %s186, 2
      %s188 = smul.addr %s187, 4
      %s189 = scalar_lea.vmem %s1, %s188
      %p190 = pneg %p62
      %p191 = pneg %p59
      %p192 = pneg %p83
      %p193 = pneg %p80
      %p194 = pneg %p104
      %p195 = pneg %p101
      %p196 = pneg %p130
      %p197 = pneg %p127
      %p198 = scmp.lt.s32.totalorder %s15, 1
      %s199 = scalar_select %p198, %s15, 1
      %s200 = smul.addr %s199, 2
      %s201 = smul.addr %s200, 4
      %s202 = scalar_lea.vmem %s4, %s201
      %p203 = scmp.lt.s32.totalorder %s15, 1
      %s204 = scalar_select %p203, %s15, 1
      %s205 = smul.addr %s204, 6
      %s206 = smul.addr %s205, 8
      %s207 = scalar_lea.vmem %s0, %s206
      %p208 = scmp.lt.s32.totalorder %s15, 1
      %s209 = scalar_select %p208, %s15, 1
      %s210 = smul.addr %s209, 2
      %s211 = smul.addr %s210, 4
      %s212 = scalar_lea.vmem %s1, %s211
      %p213 = scmp.lt.s32.totalorder %s15, 1
      %s214 = scalar_select %p213, %s15, 1
      %s215 = smul.addr %s214, 2
      %s216 = smul.addr %s215, 4
      %s217 = scalar_lea.vmem %s4, %s216
      %v218 = vld [vmem:[%s2] sm:$0xf]
      %v219 = vld [vmem:[%s207] sm:$0xff]
      %v220 = vld [vmem:[%s207 + $0x8] sm:$0xff]
      %v221 = vld [vmem:[%s207 + $0x10] sm:$0xff]
      %v222 = vld [vmem:[%s207 + $0x18] sm:$0xff]
      %v223 = vld [vmem:[%s207 + $0x20] sm:$0xf]
      %v224 = vld [vmem:[%s207 + $0x28] sm:$0xf]
      %vm225 = vcmask 162816
      %v227 = vsel %vm225, %v218, 0
      %vm229 = vcmask 1043456
      %v231 = vsel %vm229, %v223, 0
      %v234 = vsel %vm229, %v224, 0
      %236 = vmatprep.subr.mxu0 %v220
      %237 = vmatpush1.msra.mxu0 %v219
      %238 = vmatprep.subr.mxu0 %v222
      %239 = vmatpush1.msra.mxu0 %v221
      %240 = vmatprep.subr.mxu0 %v234
      %241 = vmatpush1.msra.mxu0 %v231
      %242 = vmatprep.subr.mxu0 0.0
      %243 = vmatpush1.msra.mxu0 0.0
      %244 = vmatprep.subr.mxu0 0.0
      %245 = vmatpush1.msra.mxu0 0.0
      %246 = vmatprep.subr.mxu0 0.0
      %247 = vmatpush1.msra.mxu0 0.0
      %248 = vmatprep.subr.mxu0 0.0
      %249 = vmatpush1.msra.mxu0 0.0
      %250 = vmatprep.subr.mxu0 0.0
      %251 = vmatpush1.msra.mxu0 0.0
      %252 = vmatprep.subr.mxu0 0.0
      %253 = vmatpush1.msra.mxu0 0.0
      %254 = vmatprep.subr.mxu0 0.0
      %255 = vmatpush1.msra.mxu0 0.0
      %256 = vmatprep.subr.mxu0 0.0
      %257 = vmatpush1.msra.mxu0 0.0
      %258 = vmatprep.subr.mxu0 0.0
      %259 = vmatpush1.msra.mxu0 0.0
      %260 = vmatprep.subr.mxu0 0.0
      %261 = vmatpush1.msra.mxu0 0.0
      %262 = vmatprep.subr.mxu0 0.0
      %263 = vmatpush1.msra.mxu0 0.0
      %264 = vmatprep.subr.mxu0 0.0
      %265 = vmatpush1.msra.mxu0 0.0
      %266 = vmatprep.subr.mxu0 0.0
      %267 = vmatpush1.msra.mxu0 0.0
      %268 = vmatprep.subr.mxu0 0.0
      %269 = vmatpush1.msra.mxu0 0.0
      %270 = vmatprep.subr.mxu0 0.0
      %271 = vmatpush1.msra.mxu0 0.0
      %272 = vmatprep.subr.mxu0 0.0
      %273 = vmatpush1.msra.mxu0 0.0
      %274 = vmatprep.subr.mxu0 0.0
      %275 = vmatpush1.msra.mxu0 0.0
      %276 = vmatprep.subr.mxu0 0.0
      %277 = vmatpush1.msra.mxu0 0.0
      %278 = vmatprep.subr.mxu0 0.0
      %279 = vmatpush1.msra.mxu0 0.0
      %280 = vmatprep.subr.mxu0 0.0
      %281 = vmatpush1.msra.mxu0 0.0
      %282 = vmatprep.subr.mxu0 0.0
      %283 = vmatpush1.msra.mxu0 0.0
      %284 = vmatprep.subr.mxu0 0.0
      %285 = vmatpush1.msra.mxu0 0.0
      %286 = vmatprep.subr.mxu0 0.0
      %287 = vmatpush1.msra.mxu0 0.0
      %288 = vmatprep.subr.mxu0 0.0
      %289 = vmatpush1.msra.mxu0 0.0
      %290 = vmatprep.subr.mxu0 0.0
      %291 = vmatpush1.msra.mxu0 0.0
      %292 = vmatprep.subr.mxu0 0.0
      %293 = vmatpush1.msra.mxu0 0.0
      %294 = vmatprep.subr.mxu0 0.0
      %295 = vmatpush1.msra.mxu0 0.0
      %296 = vmatprep.subr.mxu0 0.0
      %297 = vmatpush1.msra.mxu0 0.0
      %298 = vmatprep.subr.mxu0 0.0
      %299 = vmatpush1.msra.mxu0 0.0
      %300 = vmatprep.mubr.f32.mxu0 0.0
      %301 = vmatmul.mubr.f32.gmra.mrb[0].mxu0 %v227
      %v302 = vpop.f32.mrb[0].mxu0
      %v303 = vadd.f32 0.0, %v302
      %v304 = vpop.f32.mrb[0].mxu0
      %v305 = vadd.f32 0.0, %v304
      %306 = vdwg.mxu0
      %v307 = vld [vmem:[%s3] sm:$0xf]
      %309 = vset.pattern.permute.xlu0 0
      %310 = vperm.xlu0 %309, %v307
      %v311 = vpop.permute.xlu0 %310
      %v313 = vmul.f32 %v303, %v311
      %v314 = vmul.f32 %v305, %v311
      %315 = vset.pattern.permute.xlu0 1
      %316 = vperm.xlu0 %315, %v307
      %v317 = vpop.permute.xlu0 %316
      %v319 = vadd.f32 %v313, %v317
      %v320 = vadd.f32 %v314, %v317
      %v321 = vmax.f32 %v319, 0.0
      %v322 = vmax.f32 %v320, 0.0
      %v323 = vld [vmem:[%s212] sm:$0xff]
      %v326 = vcombine.low %v321, %v322
      %v328 = vadd.f32 %v323, %v326
      %v329 = vmax.f32 %v328, 0.0
      %330 = vst [vmem:[%s217] sm:$0xff] %v329
      %p331 = scmp.lt.s32.totalorder %s15, 1
      %s332 = scalar_select %p331, %s15, 1
      %s333 = smul.addr %s332, 2
      %s334 = smul.addr %s333, 4
      %s335 = scalar_lea.vmem %s4, %s334
      // Predicated region
      $region37: #{_lambda_.11} parent=35 // pred_check
        %p336 = pneg %p127
      $region38: #{_lambda_.11} parent=35 // pred_check_branch
        %338 = sbr.rel (%p336) target = $region40
      $region39: #{_lambda_.11} parent=35 // pred_region
        _
      $region40: #{_lambda_.11} parent=35 // pred_fallthru
        _
    $region36: #{_lambda_.11} parent=5 // pred_fallthru
      _
    %p339 = scmp.le.s32.totalorder 2, %s10
    // Predicated region
    $region41: #{_lambda_.11} parent=5 // pred_check
      %p340 = pneg %p339
    $region42: #{_lambda_.11} parent=5 // pred_check_branch
      %342 = sbr.rel (%p340) target = $region44
    $region43: #{_lambda_.11} parent=5 // pred_region
      %s343 = ssub.s32 %s10, 2
      // Predicated region
      $region45: #{_lambda_.11} parent=43 // pred_check
        %p344 = pneg %p133
      $region46: #{_lambda_.11} parent=43 // pred_check_branch
        %346 = sbr.rel (%p344) target = $region48
      $region47: #{_lambda_.11} parent=43 // pred_region
        %p347 = scmp.lt.s32.totalorder %s16, 1
        %s348 = scalar_select %p347, %s16, 1
        %s349 = smul.addr %s348, 2
        %s350 = smul.addr %s349, 4
        %s351 = scalar_lea.vmem %s4, %s350
      $region48: #{_lambda_.11} parent=43 // pred_fallthru
        _
    $region44: #{_lambda_.11} parent=5 // pred_fallthru
      _
  $region6: #{_lambda_.11} parent=0 // loop_footer
    %s14 = sadd.s32 1, %s10
  $region7: #{_lambda_.11} parent=0 // loop_footer_branch
    %9 = sbr.rel target = $region3
  $region8: #{_lambda_.11} parent=0 // loop_exit
    _

// kernel: _lambda_.8
$region0: #{_lambda_.8}
  #allocation0 [shape = 'u32[]', space=smem, size = 0x4, offset = 0x4, fixed_abs, tag = 'smem constant byte address 0x4 - core index']
  #allocation1 [shape = 'u32[144,128]{1,0:T(1,128)}', space=vmem, size = 0x12000, scoped, tag = 'internal scratch']
  #allocation2 [shape = 'f32[16,256]{1,0:T(8,128)}', space=vmem, size = 0x4000, scoped, tag = 'scratch operand']
  #allocation3 [shape = 'f32[4,358]{1,0:T(4,128)}', space=vmem, size = 0x1800, scoped, tag = 'scratch operand']
  #allocation4 [shape = 'f32[8,460]{1,0:T(8,128)}', space=vmem, size = 0x4000, scoped, tag = 'scratch operand']
  #allocation5 [shape = 'f32[12,562]{1,0:T(8,128)}', space=vmem, size = 0xa000, scoped, tag = 'scratch operand']
  #allocation6 [shape = 'f32[36,256]{1,0:T(8,128)}', space=vmem, size = 0xa000, scoped, tag = 'scratch operand']
  #allocation7 [shape = 'f32[72,256]{1,0:T(8,128)}', space=vmem, size = 0x12000, scoped, tag = 'scratch operand']
  #allocation8 [shape = 'f32[108,256]{1,0:T(8,128)}', space=vmem, size = 0x1c000, scoped, tag = 'scratch operand']
  %s0 = inlined_call_operand.vmem [shape: f32[2,4,256], index: 0, kind: input, shape index: {}]
  %s1 = inlined_call_operand.vmem [shape: f32[4,36], index: 1, kind: input, shape index: {}]
  %s2 = inlined_call_operand.vmem [shape: f32[4,2], index: 2, kind: input, shape index: {}]
  %s3 = inlined_call_operand.vmem [shape: f32[4,72], index: 3, kind: input, shape index: {}]
  %s4 = inlined_call_operand.vmem [shape: f32[4,2], index: 4, kind: input, shape index: {}]
  %s5 = inlined_call_operand.vmem [shape: f32[4,108], index: 5, kind: input, shape index: {}]
  %s6 = inlined_call_operand.vmem [shape: f32[4,2], index: 6, kind: input, shape index: {}]
  %s7 = inlined_call_operand.vmem [shape: f32[4,16], index: 7, kind: input, shape index: {}]
  %s8 = inlined_call_operand.vmem [shape: f32[4,2], index: 8, kind: input, shape index: {}]
  %s9 = inlined_call_operand.vmem [shape: f32[2,4,256], index: 9, kind: output, shape index: {}]
  %s10 = sld [smem:[#allocation0]]
  $region69: #{_lambda_.8} parent=0
    _
  %s12 = ssub.s32 1, %s10
  %s13 = scalar_select 0, %s12, %s10
  loop: start=0, step=1, limit=4
  $region2: #{_lambda_.8} parent=0 // loop_pre_header
    _
  $region3: #{_lambda_.8} parent=0 // loop_header
    %s15 = sphi 0, %s19
    %p16 = scmp.ge.s32.totalorder %s15, 4
    %s25 = sphi 0, %s27
    %s28 = sphi 0, %s25
    %s29 = sphi 0, %s28
    %s45 = sphi 0, %s29
    %s49 = sphi 0, %s49
    %s51 = sphi 0, %s49
    %s52 = sphi 0, %s51
    %s66 = sphi 0, %s52
    %s70 = sphi 0, %s70
    %s72 = sphi 0, %s70
    %s73 = sphi 0, %s72
    %s87 = sphi 0, %s73
    %s91 = sphi 0, %s91
    %s93 = sphi 0, %s91
    %s94 = sphi 0, %s93
    %s108 = sphi 0, %s94
    %s112 = sphi 0, %s112
    %s114 = sphi 0, %s112
    %s115 = sphi 0, %s114
    %s129 = sphi 0, %s115
    %s133 = sphi 0, %s133
    %s135 = sphi 0, %s133
    %s136 = sphi 0, %s135
    %s150 = sphi 0, %s136
    %s154 = sphi 0, %s154
    %s156 = sphi 0, %s154
    %s157 = sphi 0, %s156
    %s171 = sphi 0, %s157
    %s175 = sphi 0, %s175
    %s177 = sphi 0, %s175
    %s178 = sphi 0, %s177
    %s192 = sphi 0, %s178
    %s196 = sphi 0, %s196
    %s198 = sphi 0, %s196
    %s199 = sphi 0, %s198
    %s213 = sphi 0, %s199
    %s219 = sphi 0, %s221
    %s222 = sphi 0, %s219
    %s223 = sphi 0, %s222
    %s239 = sphi 0, %s223
  $region4: #{_lambda_.8} parent=0 // loop_header_branch
    %18 = sbr.rel (%p16) target = $region8
  $region5: #{_lambda_.8} parent=0 // loop_body
    %s20 = ssub.s32 %s15, 1
    %s21 = ssub.s32 %s15, 2
    %s22 = sadd.s32 %s15, 1
    %s23 = ssub.s32 %s15, %s22
    %p24 = scmp.eq.s32.totalorder %s23, 0
    %s26 = sadd.s32 %s25, 1
    %s27 = scalar_select %p24, %s25, %s26
    %p30 = pneg %p24
    %p31 = scmp.eq.s32.totalorder %s15, 1
    %p32 = por %p30, %p31
    %p33 = scmp.ne.s32.totalorder %s25, %s28
    %p34 = scmp.eq.s32.totalorder %s15, 0
    %p35 = por %p33, %p34
    %p36 = scmp.ne.s32.totalorder %s25, %s28
    %p37 = scmp.eq.s32.totalorder %s20, 1
    %p38 = por %p36, %p37
    %p39 = scmp.ne.s32.totalorder %s28, %s29
    %p40 = scmp.eq.s32.totalorder %s20, 0
    %p41 = por %p39, %p40
    %p42 = scmp.ne.s32.totalorder %s28, %s29
    %p43 = scmp.eq.s32.totalorder %s21, 1
    %p44 = por %p42, %p43
    %p46 = scmp.ne.s32.totalorder %s29, %s45
    %p47 = scmp.eq.s32.totalorder %s21, 0
    %p48 = por %p46, %p47
    %s50 = sadd.s32 %s49, 1
    %p53 = scmp.eq.s32.totalorder %s15, 1
    %p54 = scmp.ne.s32.totalorder %s49, %s51
    %p55 = scmp.eq.s32.totalorder %s15, 0
    %p56 = por %p54, %p55
    %p57 = scmp.ne.s32.totalorder %s49, %s51
    %p58 = scmp.eq.s32.totalorder %s20, 1
    %p59 = por %p57, %p58
    %p60 = scmp.ne.s32.totalorder %s51, %s52
    %p61 = scmp.eq.s32.totalorder %s20, 0
    %p62 = por %p60, %p61
    %p63 = scmp.ne.s32.totalorder %s51, %s52
    %p64 = scmp.eq.s32.totalorder %s21, 1
    %p65 = por %p63, %p64
    %p67 = scmp.ne.s32.totalorder %s52, %s66
    %p68 = scmp.eq.s32.totalorder %s21, 0
    %p69 = por %p67, %p68
    %s71 = sadd.s32 %s70, 1
    %p74 = scmp.eq.s32.totalorder %s15, 1
    %p75 = scmp.ne.s32.totalorder %s70, %s72
    %p76 = scmp.eq.s32.totalorder %s15, 0
    %p77 = por %p75, %p76
    %p78 = scmp.ne.s32.totalorder %s70, %s72
    %p79 = scmp.eq.s32.totalorder %s20, 1
    %p80 = por %p78, %p79
    %p81 = scmp.ne.s32.totalorder %s72, %s73
    %p82 = scmp.eq.s32.totalorder %s20, 0
    %p83 = por %p81, %p82
    %p84 = scmp.ne.s32.totalorder %s72, %s73
    %p85 = scmp.eq.s32.totalorder %s21, 1
    %p86 = por %p84, %p85
    %p88 = scmp.ne.s32.totalorder %s73, %s87
    %p89 = scmp.eq.s32.totalorder %s21, 0
    %p90 = por %p88, %p89
    %s92 = sadd.s32 %s91, 1
    %p95 = scmp.eq.s32.totalorder %s15, 1
    %p96 = scmp.ne.s32.totalorder %s91, %s93
    %p97 = scmp.eq.s32.totalorder %s15, 0
    %p98 = por %p96, %p97
    %p99 = scmp.ne.s32.totalorder %s91, %s93
    %p100 = scmp.eq.s32.totalorder %s20, 1
    %p101 = por %p99, %p100
    %p102 = scmp.ne.s32.totalorder %s93, %s94
    %p103 = scmp.eq.s32.totalorder %s20, 0
    %p104 = por %p102, %p103
    %p105 = scmp.ne.s32.totalorder %s93, %s94
    %p106 = scmp.eq.s32.totalorder %s21, 1
    %p107 = por %p105, %p106
    %p109 = scmp.ne.s32.totalorder %s94, %s108
    %p110 = scmp.eq.s32.totalorder %s21, 0
    %p111 = por %p109, %p110
    %s113 = sadd.s32 %s112, 1
    %p116 = scmp.eq.s32.totalorder %s15, 1
    %p117 = scmp.ne.s32.totalorder %s112, %s114
    %p118 = scmp.eq.s32.totalorder %s15, 0
    %p119 = por %p117, %p118
    %p120 = scmp.ne.s32.totalorder %s112, %s114
    %p121 = scmp.eq.s32.totalorder %s20, 1
    %p122 = por %p120, %p121
    %p123 = scmp.ne.s32.totalorder %s114, %s115
    %p124 = scmp.eq.s32.totalorder %s20, 0
    %p125 = por %p123, %p124
    %p126 = scmp.ne.s32.totalorder %s114, %s115
    %p127 = scmp.eq.s32.totalorder %s21, 1
    %p128 = por %p126, %p127
    %p130 = scmp.ne.s32.totalorder %s115, %s129
    %p131 = scmp.eq.s32.totalorder %s21, 0
    %p132 = por %p130, %p131
    %s134 = sadd.s32 %s133, 1
    %p137 = scmp.eq.s32.totalorder %s15, 1
    %p138 = scmp.ne.s32.totalorder %s133, %s135
    %p139 = scmp.eq.s32.totalorder %s15, 0
    %p140 = por %p138, %p139
    %p141 = scmp.ne.s32.totalorder %s133, %s135
    %p142 = scmp.eq.s32.totalorder %s20, 1
    %p143 = por %p141, %p142
    %p144 = scmp.ne.s32.totalorder %s135, %s136
    %p145 = scmp.eq.s32.totalorder %s20, 0
    %p146 = por %p144, %p145
    %p147 = scmp.ne.s32.totalorder %s135, %s136
    %p148 = scmp.eq.s32.totalorder %s21, 1
    %p149 = por %p147, %p148
    %p151 = scmp.ne.s32.totalorder %s136, %s150
    %p152 = scmp.eq.s32.totalorder %s21, 0
    %p153 = por %p151, %p152
    %s155 = sadd.s32 %s154, 1
    %p158 = scmp.eq.s32.totalorder %s15, 1
    %p159 = scmp.ne.s32.totalorder %s154, %s156
    %p160 = scmp.eq.s32.totalorder %s15, 0
    %p161 = por %p159, %p160
    %p162 = scmp.ne.s32.totalorder %s154, %s156
    %p163 = scmp.eq.s32.totalorder %s20, 1
    %p164 = por %p162, %p163
    %p165 = scmp.ne.s32.totalorder %s156, %s157
    %p166 = scmp.eq.s32.totalorder %s20, 0
    %p167 = por %p165, %p166
    %p168 = scmp.ne.s32.totalorder %s156, %s157
    %p169 = scmp.eq.s32.totalorder %s21, 1
    %p170 = por %p168, %p169
    %p172 = scmp.ne.s32.totalorder %s157, %s171
    %p173 = scmp.eq.s32.totalorder %s21, 0
    %p174 = por %p172, %p173
    %s176 = sadd.s32 %s175, 1
    %p179 = scmp.eq.s32.totalorder %s15, 1
    %p180 = scmp.ne.s32.totalorder %s175, %s177
    %p181 = scmp.eq.s32.totalorder %s15, 0
    %p182 = por %p180, %p181
    %p183 = scmp.ne.s32.totalorder %s175, %s177
    %p184 = scmp.eq.s32.totalorder %s20, 1
    %p185 = por %p183, %p184
    %p186 = scmp.ne.s32.totalorder %s177, %s178
    %p187 = scmp.eq.s32.totalorder %s20, 0
    %p188 = por %p186, %p187
    %p189 = scmp.ne.s32.totalorder %s177, %s178
    %p190 = scmp.eq.s32.totalorder %s21, 1
    %p191 = por %p189, %p190
    %p193 = scmp.ne.s32.totalorder %s178, %s192
    %p194 = scmp.eq.s32.totalorder %s21, 0
    %p195 = por %p193, %p194
    %s197 = sadd.s32 %s196, 1
    %p200 = scmp.eq.s32.totalorder %s15, 1
    %p201 = scmp.ne.s32.totalorder %s196, %s198
    %p202 = scmp.eq.s32.totalorder %s15, 0
    %p203 = por %p201, %p202
    %p204 = scmp.ne.s32.totalorder %s196, %s198
    %p205 = scmp.eq.s32.totalorder %s20, 1
    %p206 = por %p204, %p205
    %p207 = scmp.ne.s32.totalorder %s198, %s199
    %p208 = scmp.eq.s32.totalorder %s20, 0
    %p209 = por %p207, %p208
    %p210 = scmp.ne.s32.totalorder %s198, %s199
    %p211 = scmp.eq.s32.totalorder %s21, 1
    %p212 = por %p210, %p211
    %p214 = scmp.ne.s32.totalorder %s199, %s213
    %p215 = scmp.eq.s32.totalorder %s21, 0
    %p216 = por %p214, %p215
    %s217 = ssub.s32 %s15, %s22
    %p218 = scmp.eq.s32.totalorder %s217, 0
    %s220 = sadd.s32 %s219, 1
    %s221 = scalar_select %p218, %s219, %s220
    %p224 = pneg %p218
    %p225 = scmp.eq.s32.totalorder %s15, 1
    %p226 = por %p224, %p225
    %p227 = scmp.ne.s32.totalorder %s219, %s222
    %p228 = scmp.eq.s32.totalorder %s15, 0
    %p229 = por %p227, %p228
    %p230 = scmp.ne.s32.totalorder %s219, %s222
    %p231 = scmp.eq.s32.totalorder %s20, 1
    %p232 = por %p230, %p231
    %p233 = scmp.ne.s32.totalorder %s222, %s223
    %p234 = scmp.eq.s32.totalorder %s20, 0
    %p235 = por %p233, %p234
    %p236 = scmp.ne.s32.totalorder %s222, %s223
    %p237 = scmp.eq.s32.totalorder %s21, 1
    %p238 = por %p236, %p237
    %p240 = scmp.ne.s32.totalorder %s223, %s239
    %p241 = scmp.eq.s32.totalorder %s21, 0
    %p242 = por %p240, %p241
    %p243 = scmp.le.s32.totalorder 1, %s15
    %p244 = scmp.lt.s32.totalorder %s15, 3
    %p245 = pnand %p243, %p244
    %p246 = pneg %p245
    // Predicated region
    $region9: #{_lambda_.8} parent=5 // pred_check
      _
    $region10: #{_lambda_.8} parent=5 // pred_check_branch
      %248 = sbr.rel (%p245) target = $region12
    $region11: #{_lambda_.8} parent=5 // pred_region
      %s249 = ssub.s32 %s15, 1
      // Predicated region
      $region13: #{_lambda_.8} parent=11 // pred_check
        %p250 = pneg %p62
      $region14: #{_lambda_.8} parent=11 // pred_check_branch
        %252 = sbr.rel (%p250) target = $region16
      $region15: #{_lambda_.8} parent=11 // pred_region
        _
      $region16: #{_lambda_.8} parent=11 // pred_fallthru
        _
      // Predicated region
      $region17: #{_lambda_.8} parent=11 // pred_check
        %p253 = pneg %p83
      $region18: #{_lambda_.8} parent=11 // pred_check_branch
        %255 = sbr.rel (%p253) target = $region20
      $region19: #{_lambda_.8} parent=11 // pred_region
        _
      $region20: #{_lambda_.8} parent=11 // pred_fallthru
        _
      // Predicated region
      $region21: #{_lambda_.8} parent=11 // pred_check
        %p256 = pneg %p104
      $region22: #{_lambda_.8} parent=11 // pred_check_branch
        %258 = sbr.rel (%p256) target = $region24
      $region23: #{_lambda_.8} parent=11 // pred_region
        _
      $region24: #{_lambda_.8} parent=11 // pred_fallthru
        _
      // Predicated region
      $region25: #{_lambda_.8} parent=11 // pred_check
        %p259 = pneg %p125
      $region26: #{_lambda_.8} parent=11 // pred_check_branch
        %261 = sbr.rel (%p259) target = $region28
      $region27: #{_lambda_.8} parent=11 // pred_region
        _
      $region28: #{_lambda_.8} parent=11 // pred_fallthru
        _
      // Predicated region
      $region29: #{_lambda_.8} parent=11 // pred_check
        %p262 = pneg %p146
      $region30: #{_lambda_.8} parent=11 // pred_check_branch
        %264 = sbr.rel (%p262) target = $region32
      $region31: #{_lambda_.8} parent=11 // pred_region
        _
      $region32: #{_lambda_.8} parent=11 // pred_fallthru
        _
      // Predicated region
      $region33: #{_lambda_.8} parent=11 // pred_check
        %p265 = pneg %p167
      $region34: #{_lambda_.8} parent=11 // pred_check_branch
        %267 = sbr.rel (%p265) target = $region36
      $region35: #{_lambda_.8} parent=11 // pred_region
        _
      $region36: #{_lambda_.8} parent=11 // pred_fallthru
        _
      // Predicated region
      $region37: #{_lambda_.8} parent=11 // pred_check
        %p268 = pneg %p188
      $region38: #{_lambda_.8} parent=11 // pred_check_branch
        %270 = sbr.rel (%p268) target = $region40
      $region39: #{_lambda_.8} parent=11 // pred_region
        _
      $region40: #{_lambda_.8} parent=11 // pred_fallthru
        _
      // Predicated region
      $region41: #{_lambda_.8} parent=11 // pred_check
        %p271 = pneg %p209
      $region42: #{_lambda_.8} parent=11 // pred_check_branch
        %273 = sbr.rel (%p271) target = $region44
      $region43: #{_lambda_.8} parent=11 // pred_region
        _
      $region44: #{_lambda_.8} parent=11 // pred_fallthru
        _
    $region12: #{_lambda_.8} parent=5 // pred_fallthru
      _
    %p274 = scmp.lt.s32.totalorder %s15, 2
    // Predicated region
    $region45: #{_lambda_.8} parent=5 // pred_check
      %p275 = pneg %p274
    $region46: #{_lambda_.8} parent=5 // pred_check_branch
      %277 = sbr.rel (%p275) target = $region48
    $region47: #{_lambda_.8} parent=5 // pred_region
      // Predicated region
      $region49: #{_lambda_.8} parent=47 // pred_check
        %p278 = pneg %p35
      $region50: #{_lambda_.8} parent=47 // pred_check_branch
        %280 = sbr.rel (%p278) target = $region52
      $region51: #{_lambda_.8} parent=47 // pred_region
        %p281 = scmp.lt.s32.totalorder %s15, 1
        %s282 = scalar_select %p281, %s15, 1
        %s283 = smul.addr %s282, 2
        %s284 = smul.addr %s283, 4
        %s285 = scalar_lea.vmem %s0, %s284
      $region52: #{_lambda_.8} parent=47 // pred_fallthru
        _
    $region48: #{_lambda_.8} parent=5 // pred_fallthru
      _
    %p286 = scmp.le.s32.totalorder 1, %s15
    %p287 = scmp.lt.s32.totalorder %s15, 3
    %p288 = pnand %p286, %p287
    %p289 = pneg %p288
    // Predicated region
    $region53: #{_lambda_.8} parent=5 // pred_check
      _
    $region54: #{_lambda_.8} parent=5 // pred_check_branch
      %291 = sbr.rel (%p288) target = $region56
    $region55: #{_lambda_.8} parent=5 // pred_region
      %s292 = ssub.s32 %s15, 1
      %p293 = scmp.lt.s32.totalorder %s20, 1
      %s294 = scalar_select %p293, %s20, 1
      %s295 = smul.addr %s294, 2
      %s296 = smul.addr %s295, 4
      %s297 = scalar_lea.vmem %s0, %s296
      %p298 = pneg %p41
      %p299 = pneg %p38
      %p300 = pneg %p62
      %p301 = pneg %p59
      %p302 = pneg %p83
      %p303 = pneg %p80
      %p304 = pneg %p104
      %p305 = pneg %p101
      %p306 = pneg %p125
      %p307 = pneg %p122
      %p308 = pneg %p146
      %p309 = pneg %p143
      %p310 = pneg %p167
      %p311 = pneg %p164
      %p312 = pneg %p188
      %p313 = pneg %p185
      %p314 = pneg %p209
      %p315 = pneg %p206
      %p316 = pneg %p235
      %p317 = pneg %p232
      %p318 = scmp.lt.s32.totalorder %s20, 1
      %s319 = scalar_select %p318, %s20, 1
      %s320 = smul.addr %s319, 2
      %s321 = smul.addr %s320, 4
      %s322 = scalar_lea.vmem %s9, %s321
      %p323 = scmp.lt.s32.totalorder %s20, 1
      %s324 = scalar_select %p323, %s20, 1
      %s325 = smul.addr %s324, 2
      %s326 = smul.addr %s325, 4
      %s327 = scalar_lea.vmem %s0, %s326
      %p328 = scmp.lt.s32.totalorder %s20, 1
      %s329 = scalar_select %p328, %s20, 1
      %s330 = smul.addr %s329, 2
      %s331 = smul.addr %s330, 4
      %s332 = scalar_lea.vmem %s9, %s331
      %v333 = vld [vmem:[%s327] sm:$0xff]
      %v335 = vcombine.low %v333, %v333
      %337 = vst [vmem:[#allocation2 + $0x10] sm:$0xf0] %v335
      %338 = vst [vmem:[#allocation2 + $0x18] sm:$0xf0] %v333
      %vm339 = vcmask 412672
      %340 = vst.msk [vmem:[#allocation3] sm:$0xf] %vm339, 0.0
      %vm341 = vcmask 830872
      %342 = vst.msk [vmem:[#allocation3 + $0x8] sm:$0xf] %vm341, 0.0
      %v343 = vld [vmem:[#allocation2 + $0x10] sm:$0xf0]
      %v344 = vld [vmem:[#allocation2 + $0x18] sm:$0xf0]
      %v347 = vcombine.high %v343, %v344
      %348 = vrot.lane.b32.xlu0 %v347, 51
      %v349 = vpop.permute.xlu0 %348
      %v350 = vrot.slane %v349, 4
      %vm351 = vcmask 416768
      %v352 = vsel %vm351, %v350, %v349
      %vm355 = vcmask 1043864
      %vm356 = vcmask 1047556
      %vm357 = vmor %vm356, %vm355
      %358 = vst.msk [vmem:[#allocation3] sm:$0xff] %vm357, %v352
      %359 = vst.msk [vmem:[#allocation3 + $0x8] sm:$0xf] %vm339, %v350
      %v360 = vlaneseq
      %v361 = vand.u32 %v360, 127
      %v362 = vadd.s32 %v361, 128
      %vm363 = vcmp.lt.s32.totalorder %v361, 0
      %v364 = vsub.s32 0, %v361
      %v365 = vsel %vm363, %v364, %v361
      %v366 = vshrl.u32 %v365, 4
      %v367 = vand.u32 %v365, 15
      %v368 = vsub.s32 0, %v367
      %v369 = vsel %vm363, %v368, %v367
      %vm370 = vcmp.lt.s32.totalorder %v362, 0
      %v371 = vsub.s32 0, %v362
      %v372 = vsel %vm370, %v371, %v362
      %v373 = vshrl.u32 %v372, 4
      %v374 = vand.u32 %v372, 15
      %v375 = vsub.s32 0, %v374
      %v376 = vsel %vm370, %v375, %v374
      %vm377 = vcmp.ne.s32.totalorder %v369, 0
      %vm378 = vcmp.ne.s32.totalorder %v376, 0
      %vm379 = vcmp.lt.s32.totalorder %v369, 0
      %vm380 = vcmp.lt.s32.totalorder %v376, 0
      %vm381 = vmand %vm379, %vm377
      %vm382 = vmand %vm380, %vm378
      %v383 = vadd.s32 %v369, 16
      %v384 = vadd.s32 %v376, 16
      %v385 = vsel %vm381, %v383, %v369
      %v386 = vsel %vm382, %v384, %v376
      %v387 = vld [vmem:[#allocation3] sm:$0xff]
      %vm388 = vcmp.ge.s32.totalorder %v385, 3
      %vm389 = vcmp.ge.s32.totalorder %v386, 3
      %v391 = vcombine.high %v387, %v387
      %v393 = vsel %vm388, %v387, 0.0
      %v394 = vsel %vm389, %v391, 0.0
      %395 = vst [vmem:[#allocation6] sm:$0xf] %v393
      %396 = vst [vmem:[#allocation6 + $0x8] sm:$0xf] %v394
      %v397 = vld [vmem:[#allocation3] sm:$0xff]
      %v398 = vld [vmem:[#allocation3 + $0x8] sm:$0xf]
      %v401 = vcombine.low %v397, %v397
      %v402 = vcombine.low %v398, %v398
      %403 = vrot.lane.b32.xlu0 %v401, 125
      %v404 = vpop.permute.xlu0 %403
      %405 = vrot.lane.b32.xlu0 %v397, 125
      %v406 = vpop.permute.xlu0 %405
      %407 = vrot.lane.b32.xlu0 %v402, 125
      %v408 = vpop.permute.xlu0 %407
      %vm409 = vcmask 1022976
      %v410 = vsel %vm409, %v404, %v406
      %v411 = vsel %vm409, %v406, %v408
      %414 = vst [vmem:[#allocation6] sm:$0xf0] %v410
      %415 = vst [vmem:[#allocation6 + $0x8] sm:$0xf0] %v411
      %v416 = vld [vmem:[#allocation3] sm:$0xff]
      %v417 = vld [vmem:[#allocation3 + $0x8] sm:$0xf]
      %vm418 = vcmp.lt.s32.totalorder %v385, 13
      %vm419 = vcmp.lt.s32.totalorder %v386, 13
      %v422 = vcombine.high %v416, %v416
      %423 = vrot.lane.b32.xlu0 %v416, 122
      %v424 = vpop.permute.xlu0 %423
      %425 = vrot.lane.b32.xlu0 %v422, 122
      %v426 = vpop.permute.xlu0 %425
      %427 = vrot.lane.b32.xlu0 %v417, 122
      %v428 = vpop.permute.xlu0 %427
      %vm429 = vcmask 998400
      %v430 = vsel %vm429, %v424, %v426
      %v431 = vsel %vm429, %v426, %v428
      %v434 = vsel %vm418, %v430, 0.0
      %v435 = vsel %vm419, %v431, 0.0
      %436 = vst [vmem:[#allocation6 + $0x10] sm:$0xf] %v434
      %437 = vst [vmem:[#allocation6 + $0x18] sm:$0xf] %v435
      %v438 = vld [vmem:[#allocation3] sm:$0xff]
      %v439 = vld [vmem:[#allocation3 + $0x8] sm:$0xf]
      %v442 = vcombine.high %v438, %v438
      %443 = vrot.lane.b32.xlu0 %v438, 80
      %v444 = vpop.permute.xlu0 %443
      %445 = vrot.lane.b32.xlu0 %v442, 80
      %v446 = vpop.permute.xlu0 %445
      %447 = vrot.lane.b32.xlu0 %v439, 80
      %v448 = vpop.permute.xlu0 %447
      %vm449 = vcmask 654336
      %v450 = vsel %vm449, %v444, %v446
      %v451 = vsel %vm449, %v446, %v448
      %v454 = vsel %vm388, %v450, 0.0
      %v455 = vsel %vm389, %v451, 0.0
      %v458 = vrot.slane %v454, 4
      %v459 = vrot.slane %v455, 4
      %462 = vst [vmem:[#allocation6 + $0x10] sm:$0xf0] %v458
      %463 = vst [vmem:[#allocation6 + $0x18] sm:$0xf0] %v459
      %v464 = vld [vmem:[#allocation3] sm:$0xff]
      %v465 = vld [vmem:[#allocation3 + $0x8] sm:$0xf]
      %v468 = vcombine.high %v464, %v464
      %469 = vrot.lane.b32.xlu0 %v464, 77
      %v470 = vpop.permute.xlu0 %469
      %471 = vrot.lane.b32.xlu0 %v468, 77
      %v472 = vpop.permute.xlu0 %471
      %473 = vrot.lane.b32.xlu0 %v465, 77
      %v474 = vpop.permute.xlu0 %473
      %vm475 = vcmask 629760
      %v476 = vsel %vm475, %v470, %v472
      %v477 = vsel %vm475, %v472, %v474
      %480 = vst [vmem:[#allocation6 + $0x20] sm:$0xf] %v476
      %481 = vst [vmem:[#allocation6 + $0x28] sm:$0xf] %v477
      %v482 = vld [vmem:[#allocation3] sm:$0xff]
      %v483 = vld [vmem:[#allocation3 + $0x8] sm:$0xf]
      %v486 = vcombine.high %v482, %v482
      %487 = vrot.lane.b32.xlu0 %v482, 74
      %v488 = vpop.permute.xlu0 %487
      %489 = vrot.lane.b32.xlu0 %v486, 74
      %v490 = vpop.permute.xlu0 %489
      %491 = vrot.lane.b32.xlu0 %v483, 74
      %v492 = vpop.permute.xlu0 %491
      %vm493 = vcmask 605184
      %v494 = vsel %vm493, %v488, %v490
      %v495 = vsel %vm493, %v490, %v492
      %v498 = vsel %vm418, %v494, 0.0
      %v499 = vsel %vm419, %v495, 0.0
      %v502 = vrot.slane %v498, 4
      %v503 = vrot.slane %v499, 4
      %506 = vst [vmem:[#allocation6 + $0x20] sm:$0xf0] %v502
      %507 = vst [vmem:[#allocation6 + $0x28] sm:$0xf0] %v503
      %v508 = vld [vmem:[#allocation3] sm:$0xff]
      %v509 = vld [vmem:[#allocation3 + $0x8] sm:$0xf]
      %v512 = vcombine.high %v508, %v508
      %513 = vrot.lane.b32.xlu0 %v508, 32
      %v514 = vpop.permute.xlu0 %513
      %515 = vrot.lane.b32.xlu0 %v512, 32
      %v516 = vpop.permute.xlu0 %515
      %517 = vrot.lane.b32.xlu0 %v509, 32
      %v518 = vpop.permute.xlu0 %517
      %vm519 = vcmask 261120
      %v520 = vsel %vm519, %v514, %v516
      %v521 = vsel %vm519, %v516, %v518
      %v524 = vsel %vm388, %v520, 0.0
      %v525 = vsel %vm389, %v521, 0.0
      %526 = vst [vmem:[#allocation6 + $0x30] sm:$0xf] %v524
      %527 = vst [vmem:[#allocation6 + $0x38] sm:$0xf] %v525
      %v528 = vld [vmem:[#allocation3] sm:$0xff]
      %v529 = vld [vmem:[#allocation3 + $0x8] sm:$0xf]
      %v532 = vcombine.low %v528, %v528
      %v533 = vcombine.low %v529, %v529
      %534 = vrot.lane.b32.xlu0 %v532, 29
      %v535 = vpop.permute.xlu0 %534
      %536 = vrot.lane.b32.xlu0 %v528, 29
      %v537 = vpop.permute.xlu0 %536
      %538 = vrot.lane.b32.xlu0 %v533, 29
      %v539 = vpop.permute.xlu0 %538
      %vm540 = vcmask 236544
      %v541 = vsel %vm540, %v535, %v537
      %v542 = vsel %vm540, %v537, %v539
      %545 = vst [vmem:[#allocation6 + $0x30] sm:$0xf0] %v541
      %546 = vst [vmem:[#allocation6 + $0x38] sm:$0xf0] %v542
      %v547 = vld [vmem:[#allocation3] sm:$0xff]
      %v548 = vld [vmem:[#allocation3 + $0x8] sm:$0xf]
      %v551 = vcombine.high %v547, %v547
      %552 = vrot.lane.b32.xlu0 %v547, 26
      %v553 = vpop.permute.xlu0 %552
      %554 = vrot.lane.b32.xlu0 %v551, 26
      %v555 = vpop.permute.xlu0 %554
      %556 = vrot.lane.b32.xlu0 %v548, 26
      %v557 = vpop.permute.xlu0 %556
      %vm558 = vcmask 211968
      %v559 = vsel %vm558, %v553, %v555
      %v560 = vsel %vm558, %v555, %v557
      %v563 = vsel %vm418, %v559, 0.0
      %v564 = vsel %vm419, %v560, 0.0
      %565 = vst [vmem:[#allocation6 + $0x40] sm:$0xf] %v563
      %566 = vst [vmem:[#allocation6 + $0x48] sm:$0xf] %v564
      %v567 = vld [vmem:[%s1] sm:$0xf]
      %v568 = vld [vmem:[#allocation6] sm:$0xff]
      %v569 = vld [vmem:[#allocation6 + $0x8] sm:$0xff]
      %v570 = vld [vmem:[#allocation6 + $0x10] sm:$0xff]
      %v571 = vld [vmem:[#allocation6 + $0x18] sm:$0xff]
      %v572 = vld [vmem:[#allocation6 + $0x20] sm:$0xff]
      %v573 = vld [vmem:[#allocation6 + $0x28] sm:$0xff]
      %v574 = vld [vmem:[#allocation6 + $0x30] sm:$0xff]
      %v575 = vld [vmem:[#allocation6 + $0x38] sm:$0xff]
      %v576 = vld [vmem:[#allocation6 + $0x40] sm:$0xf]
      %v577 = vld [vmem:[#allocation6 + $0x48] sm:$0xf]
      %vm578 = vcmask 293888
      %v580 = vsel %vm578, %v567, 0
      %vm582 = vcmask 1043456
      %v584 = vsel %vm582, %v576, 0
      %v587 = vsel %vm582, %v577, 0
      %589 = vmatprep.subr.mxu0 %v569
      %590 = vmatpush1.msra.mxu0 %v568
      %591 = vmatprep.subr.mxu0 %v571
      %592 = vmatpush1.msra.mxu0 %v570
      %593 = vmatprep.subr.mxu0 %v573
      %594 = vmatpush1.msra.mxu0 %v572
      %595 = vmatprep.subr.mxu0 %v575
      %596 = vmatpush1.msra.mxu0 %v574
      %597 = vmatprep.subr.mxu0 %v587
      %598 = vmatpush1.msra.mxu0 %v584
      %599 = vmatprep.subr.mxu0 0.0
      %600 = vmatpush1.msra.mxu0 0.0
      %601 = vmatprep.subr.mxu0 0.0
      %602 = vmatpush1.msra.mxu0 0.0
      %603 = vmatprep.subr.mxu0 0.0
      %604 = vmatpush1.msra.mxu0 0.0
      %605 = vmatprep.subr.mxu0 0.0
      %606 = vmatpush1.msra.mxu0 0.0
      %607 = vmatprep.subr.mxu0 0.0
      %608 = vmatpush1.msra.mxu0 0.0
      %609 = vmatprep.subr.mxu0 0.0
      %610 = vmatpush1.msra.mxu0 0.0
      %611 = vmatprep.subr.mxu0 0.0
      %612 = vmatpush1.msra.mxu0 0.0
      %613 = vmatprep.subr.mxu0 0.0
      %614 = vmatpush1.msra.mxu0 0.0
      %615 = vmatprep.subr.mxu0 0.0
      %616 = vmatpush1.msra.mxu0 0.0
      %617 = vmatprep.subr.mxu0 0.0
      %618 = vmatpush1.msra.mxu0 0.0
      %619 = vmatprep.subr.mxu0 0.0
      %620 = vmatpush1.msra.mxu0 0.0
      %621 = vmatprep.subr.mxu0 0.0
      %622 = vmatpush1.msra.mxu0 0.0
      %623 = vmatprep.subr.mxu0 0.0
      %624 = vmatpush1.msra.mxu0 0.0
      %625 = vmatprep.subr.mxu0 0.0
      %626 = vmatpush1.msra.mxu0 0.0
      %627 = vmatprep.subr.mxu0 0.0
      %628 = vmatpush1.msra.mxu0 0.0
      %629 = vmatprep.subr.mxu0 0.0
      %630 = vmatpush1.msra.mxu0 0.0
      %631 = vmatprep.subr.mxu0 0.0
      %632 = vmatpush1.msra.mxu0 0.0
      %633 = vmatprep.subr.mxu0 0.0
      %634 = vmatpush1.msra.mxu0 0.0
      %635 = vmatprep.subr.mxu0 0.0
      %636 = vmatpush1.msra.mxu0 0.0
      %637 = vmatprep.subr.mxu0 0.0
      %638 = vmatpush1.msra.mxu0 0.0
      %639 = vmatprep.subr.mxu0 0.0
      %640 = vmatpush1.msra.mxu0 0.0
      %641 = vmatprep.subr.mxu0 0.0
      %642 = vmatpush1.msra.mxu0 0.0
      %643 = vmatprep.subr.mxu0 0.0
      %644 = vmatpush1.msra.mxu0 0.0
      %645 = vmatprep.subr.mxu0 0.0
      %646 = vmatpush1.msra.mxu0 0.0
      %647 = vmatprep.subr.mxu0 0.0
      %648 = vmatpush1.msra.mxu0 0.0
      %649 = vmatprep.subr.mxu0 0.0
      %650 = vmatpush1.msra.mxu0 0.0
      %651 = vmatprep.subr.mxu0 0.0
      %652 = vmatpush1.msra.mxu0 0.0
      %653 = vmatprep.mubr.f32.mxu0 0.0
      %654 = vmatmul.mubr.f32.gmra.mrb[0].mxu0 %v580
      %v655 = vpop.f32.mrb[0].mxu0
      %v656 = vadd.f32 0.0, %v655
      %v657 = vpop.f32.mrb[0].mxu0
      %v658 = vadd.f32 0.0, %v657
      %659 = vdwg.mxu0
      %v660 = vld [vmem:[%s2] sm:$0xf]
      %662 = vset.pattern.permute.xlu0 0
      %663 = vperm.xlu0 %662, %v660
      %v664 = vpop.permute.xlu0 %663
      %v666 = vmul.f32 %v656, %v664
      %v667 = vmul.f32 %v658, %v664
      %668 = vset.pattern.permute.xlu0 1
      %669 = vperm.xlu0 %668, %v660
      %v670 = vpop.permute.xlu0 %669
      %v672 = vadd.f32 %v666, %v670
      %v673 = vadd.f32 %v667, %v670
      %v674 = vmax.f32 %v672, 0.0
      %v675 = vmax.f32 %v673, 0.0
      %676 = vst [vmem:[#allocation2 + $0x10] sm:$0xf] %v674
      %677 = vst [vmem:[#allocation2 + $0x18] sm:$0xf] %v675
      %vm678 = vcmask 834560
      %679 = vst.msk [vmem:[#allocation4] sm:$0xff] %vm678, 0.0
      %vm680 = vcmask 1048368
      %681 = vst.msk [vmem:[#allocation4 + $0x10] sm:$0xff] %vm680, 0.0
      %vm682 = vcmask 621568
      %683 = vst.msk [vmem:[#allocation4 + $0x18] sm:$0xff] %vm682, 0.0
      %v684 = vld [vmem:[#allocation2 + $0x10] sm:$0xff]
      %v685 = vld [vmem:[#allocation2 + $0x18] sm:$0xff]
      %688 = vrot.lane.b32.xlu0 %v684, 102
      %v689 = vpop.permute.xlu0 %688
      %690 = vrot.lane.b32.xlu0 %v685, 102
      %v691 = vpop.permute.xlu0 %690
      %v692 = vsel %vm678, %v689, %v691
      %696 = vst.msk [vmem:[#allocation4] sm:$0xff] %vm680, %v689
      %697 = vst [vmem:[#allocation4 + $0x8] sm:$0xff] %v692
      %698 = vst.msk [vmem:[#allocation4 + $0x10] sm:$0xff] %vm678, %v691
      %v699 = vld [vmem:[#allocation4] sm:$0xff]
      %v700 = vld [vmem:[#allocation4 + $0x8] sm:$0xff]
      %vm701 = vcmp.ge.s32.totalorder %v385, 6
      %vm702 = vcmp.ge.s32.totalorder %v386, 6
      %v703 = vsel %vm701, %v699, 0.0
      %v704 = vsel %vm702, %v700, 0.0
      %705 = vst [vmem:[#allocation7] sm:$0xff] %v703
      %706 = vst [vmem:[#allocation7 + $0x8] sm:$0xff] %v704
      %v707 = vld [vmem:[#allocation4] sm:$0xff]
      %v708 = vld [vmem:[#allocation4 + $0x8] sm:$0xff]
      %v709 = vld [vmem:[#allocation4 + $0x10] sm:$0xff]
      %713 = vrot.lane.b32.xlu0 %v707, 122
      %v714 = vpop.permute.xlu0 %713
      %715 = vrot.lane.b32.xlu0 %v708, 122
      %v716 = vpop.permute.xlu0 %715
      %717 = vrot.lane.b32.xlu0 %v709, 122
      %v718 = vpop.permute.xlu0 %717
      %v719 = vsel %vm429, %v714, %v716
      %v720 = vsel %vm429, %v716, %v718
      %723 = vst [vmem:[#allocation7 + $0x10] sm:$0xff] %v719
      %724 = vst [vmem:[#allocation7 + $0x18] sm:$0xff] %v720
      %v725 = vld [vmem:[#allocation4] sm:$0xff]
      %v726 = vld [vmem:[#allocation4 + $0x8] sm:$0xff]
      %v727 = vld [vmem:[#allocation4 + $0x10] sm:$0xff]
      %vm728 = vcmp.lt.s32.totalorder %v385, 10
      %vm729 = vcmp.lt.s32.totalorder %v386, 10
      %733 = vrot.lane.b32.xlu0 %v725, 116
      %v734 = vpop.permute.xlu0 %733
      %735 = vrot.lane.b32.xlu0 %v726, 116
      %v736 = vpop.permute.xlu0 %735
      %737 = vrot.lane.b32.xlu0 %v727, 116
      %v738 = vpop.permute.xlu0 %737
      %vm739 = vcmask 949248
      %v740 = vsel %vm739, %v734, %v736
      %v741 = vsel %vm739, %v736, %v738
      %v744 = vsel %vm728, %v740, 0.0
      %v745 = vsel %vm729, %v741, 0.0
      %746 = vst [vmem:[#allocation7 + $0x20] sm:$0xff] %v744
      %747 = vst [vmem:[#allocation7 + $0x28] sm:$0xff] %v745
      %v748 = vld [vmem:[#allocation4] sm:$0xff]
      %v749 = vld [vmem:[#allocation4 + $0x8] sm:$0xff]
      %v750 = vld [vmem:[#allocation4 + $0x10] sm:$0xff]
      %754 = vrot.lane.b32.xlu0 %v748, 32
      %v755 = vpop.permute.xlu0 %754
      %756 = vrot.lane.b32.xlu0 %v749, 32
      %v757 = vpop.permute.xlu0 %756
      %758 = vrot.lane.b32.xlu0 %v750, 32
      %v759 = vpop.permute.xlu0 %758
      %v760 = vsel %vm519, %v755, %v757
      %v761 = vsel %vm519, %v757, %v759
      %v764 = vsel %vm701, %v760, 0.0
      %v765 = vsel %vm702, %v761, 0.0
      %766 = vst [vmem:[#allocation7 + $0x30] sm:$0xff] %v764
      %767 = vst [vmem:[#allocation7 + $0x38] sm:$0xff] %v765
      %v768 = vld [vmem:[#allocation4] sm:$0xff]
      %v769 = vld [vmem:[#allocation4 + $0x8] sm:$0xff]
      %v770 = vld [vmem:[#allocation4 + $0x10] sm:$0xff]
      %774 = vrot.lane.b32.xlu0 %v768, 26
      %v775 = vpop.permute.xlu0 %774
      %776 = vrot.lane.b32.xlu0 %v769, 26
      %v777 = vpop.permute.xlu0 %776
      %778 = vrot.lane.b32.xlu0 %v770, 26
      %v779 = vpop.permute.xlu0 %778
      %v780 = vsel %vm558, %v775, %v777
      %v781 = vsel %vm558, %v777, %v779
      %784 = vst [vmem:[#allocation7 + $0x40] sm:$0xff] %v780
      %785 = vst [vmem:[#allocation7 + $0x48] sm:$0xff] %v781
      %v786 = vld [vmem:[#allocation4] sm:$0xff]
      %v787 = vld [vmem:[#allocation4 + $0x8] sm:$0xff]
      %v788 = vld [vmem:[#allocation4 + $0x10] sm:$0xff]
      %792 = vrot.lane.b32.xlu0 %v786, 20
      %v793 = vpop.permute.xlu0 %792
      %794 = vrot.lane.b32.xlu0 %v787, 20
      %v795 = vpop.permute.xlu0 %794
      %796 = vrot.lane.b32.xlu0 %v788, 20
      %v797 = vpop.permute.xlu0 %796
      %vm798 = vcmask 162816
      %v799 = vsel %vm798, %v793, %v795
      %v800 = vsel %vm798, %v795, %v797
      %v803 = vsel %vm728, %v799, 0.0
      %v804 = vsel %vm729, %v800, 0.0
      %805 = vst [vmem:[#allocation7 + $0x50] sm:$0xff] %v803
      %806 = vst [vmem:[#allocation7 + $0x58] sm:$0xff] %v804
      %v807 = vld [vmem:[#allocation4 + $0x8] sm:$0xff]
      %v808 = vld [vmem:[#allocation4 + $0x10] sm:$0xff]
      %v809 = vld [vmem:[#allocation4 + $0x18] sm:$0xff]
      %813 = vrot.lane.b32.xlu0 %v807, 64
      %v814 = vpop.permute.xlu0 %813
      %815 = vrot.lane.b32.xlu0 %v808, 64
      %v816 = vpop.permute.xlu0 %815
      %817 = vrot.lane.b32.xlu0 %v809, 64
      %v818 = vpop.permute.xlu0 %817
      %vm819 = vcmask 523264
      %v820 = vsel %vm819, %v814, %v816
      %v821 = vsel %vm819, %v816, %v818
      %v824 = vsel %vm701, %v820, 0.0
      %v825 = vsel %vm702, %v821, 0.0
      %826 = vst [vmem:[#allocation7 + $0x60] sm:$0xff] %v824
      %827 = vst [vmem:[#allocation7 + $0x68] sm:$0xff] %v825
      %v828 = vld [vmem:[#allocation4 + $0x8] sm:$0xff]
      %v829 = vld [vmem:[#allocation4 + $0x10] sm:$0xff]
      %v830 = vld [vmem:[#allocation4 + $0x18] sm:$0xff]
      %834 = vrot.lane.b32.xlu0 %v828, 58
      %v835 = vpop.permute.xlu0 %834
      %836 = vrot.lane.b32.xlu0 %v829, 58
      %v837 = vpop.permute.xlu0 %836
      %838 = vrot.lane.b32.xlu0 %v830, 58
      %v839 = vpop.permute.xlu0 %838
      %vm840 = vcmask 474112
      %v841 = vsel %vm840, %v835, %v837
      %v842 = vsel %vm840, %v837, %v839
      %845 = vst [vmem:[#allocation7 + $0x70] sm:$0xff] %v841
      %846 = vst [vmem:[#allocation7 + $0x78] sm:$0xff] %v842
      %v847 = vld [vmem:[#allocation4 + $0x8] sm:$0xff]
      %v848 = vld [vmem:[#allocation4 + $0x10] sm:$0xff]
      %v849 = vld [vmem:[#allocation4 + $0x18] sm:$0xff]
      %853 = vrot.lane.b32.xlu0 %v847, 52
      %v854 = vpop.permute.xlu0 %853
      %855 = vrot.lane.b32.xlu0 %v848, 52
      %v856 = vpop.permute.xlu0 %855
      %857 = vrot.lane.b32.xlu0 %v849, 52
      %v858 = vpop.permute.xlu0 %857
      %vm859 = vcmask 424960
      %v860 = vsel %vm859, %v854, %v856
      %v861 = vsel %vm859, %v856, %v858
      %v864 = vsel %vm728, %v860, 0.0
      %v865 = vsel %vm729, %v861, 0.0
      %866 = vst [vmem:[#allocation7 + $0x80] sm:$0xff] %v864
      %867 = vst [vmem:[#allocation7 + $0x88] sm:$0xff] %v865
      %v868 = vld [vmem:[%s3] sm:$0xf]
      %v869 = vld [vmem:[#allocation7] sm:$0xff]
      %v870 = vld [vmem:[#allocation7 + $0x8] sm:$0xff]
      %v871 = vld [vmem:[#allocation7 + $0x10] sm:$0xff]
      %v872 = vld [vmem:[#allocation7 + $0x18] sm:$0xff]
      %v873 = vld [vmem:[#allocation7 + $0x20] sm:$0xff]
      %v874 = vld [vmem:[#allocation7 + $0x28] sm:$0xff]
      %v875 = vld [vmem:[#allocation7 + $0x30] sm:$0xff]
      %v876 = vld [vmem:[#allocation7 + $0x38] sm:$0xff]
      %v877 = vld [vmem:[#allocation7 + $0x40] sm:$0xff]
      %v878 = vld [vmem:[#allocation7 + $0x48] sm:$0xff]
      %v879 = vld [vmem:[#allocation7 + $0x50] sm:$0xff]
      %v880 = vld [vmem:[#allocation7 + $0x58] sm:$0xff]
      %v881 = vld [vmem:[#allocation7 + $0x60] sm:$0xff]
      %v882 = vld [vmem:[#allocation7 + $0x68] sm:$0xff]
      %v883 = vld [vmem:[#allocation7 + $0x70] sm:$0xff]
      %v884 = vld [vmem:[#allocation7 + $0x78] sm:$0xff]
      %v885 = vld [vmem:[#allocation7 + $0x80] sm:$0xff]
      %v886 = vld [vmem:[#allocation7 + $0x88] sm:$0xff]
      %vm887 = vcmask 588800
      %v889 = vsel %vm887, %v868, 0
      %891 = vmatprep.subr.mxu0 %v870
      %892 = vmatpush1.msra.mxu0 %v869
      %893 = vmatprep.subr.mxu0 %v872
      %894 = vmatpush1.msra.mxu0 %v871
      %895 = vmatprep.subr.mxu0 %v874
      %896 = vmatpush1.msra.mxu0 %v873
      %897 = vmatprep.subr.mxu0 %v876
      %898 = vmatpush1.msra.mxu0 %v875
      %899 = vmatprep.subr.mxu0 %v878
      %900 = vmatpush1.msra.mxu0 %v877
      %901 = vmatprep.subr.mxu0 %v880
      %902 = vmatpush1.msra.mxu0 %v879
      %903 = vmatprep.subr.mxu0 %v882
      %904 = vmatpush1.msra.mxu0 %v881
      %905 = vmatprep.subr.mxu0 %v884
      %906 = vmatpush1.msra.mxu0 %v883
      %907 = vmatprep.subr.mxu0 %v886
      %908 = vmatpush1.msra.mxu0 %v885
      %909 = vmatprep.subr.mxu0 0.0
      %910 = vmatpush1.msra.mxu0 0.0
      %911 = vmatprep.subr.mxu0 0.0
      %912 = vmatpush1.msra.mxu0 0.0
      %913 = vmatprep.subr.mxu0 0.0
      %914 = vmatpush1.msra.mxu0 0.0
      %915 = vmatprep.subr.mxu0 0.0
      %916 = vmatpush1.msra.mxu0 0.0
      %917 = vmatprep.subr.mxu0 0.0
      %918 = vmatpush1.msra.mxu0 0.0
      %919 = vmatprep.subr.mxu0 0.0
      %920 = vmatpush1.msra.mxu0 0.0
      %921 = vmatprep.subr.mxu0 0.0
      %922 = vmatpush1.msra.mxu0 0.0
      %923 = vmatprep.subr.mxu0 0.0
      %924 = vmatpush1.msra.mxu0 0.0
      %925 = vmatprep.subr.mxu0 0.0
      %926 = vmatpush1.msra.mxu0 0.0
      %927 = vmatprep.subr.mxu0 0.0
      %928 = vmatpush1.msra.mxu0 0.0
      %929 = vmatprep.subr.mxu0 0.0
      %930 = vmatpush1.msra.mxu0 0.0
      %931 = vmatprep.subr.mxu0 0.0
      %932 = vmatpush1.msra.mxu0 0.0
      %933 = vmatprep.subr.mxu0 0.0
      %934 = vmatpush1.msra.mxu0 0.0
      %935 = vmatprep.subr.mxu0 0.0
      %936 = vmatpush1.msra.mxu0 0.0
      %937 = vmatprep.subr.mxu0 0.0
      %938 = vmatpush1.msra.mxu0 0.0
      %939 = vmatprep.subr.mxu0 0.0
      %940 = vmatpush1.msra.mxu0 0.0
      %941 = vmatprep.subr.mxu0 0.0
      %942 = vmatpush1.msra.mxu0 0.0
      %943 = vmatprep.subr.mxu0 0.0
      %944 = vmatpush1.msra.mxu0 0.0
      %945 = vmatprep.subr.mxu0 0.0
      %946 = vmatpush1.msra.mxu0 0.0
      %947 = vmatprep.subr.mxu0 0.0
      %948 = vmatpush1.msra.mxu0 0.0
      %949 = vmatprep.subr.mxu0 0.0
      %950 = vmatpush1.msra.mxu0 0.0
      %951 = vmatprep.subr.mxu0 0.0
      %952 = vmatpush1.msra.mxu0 0.0
      %953 = vmatprep.subr.mxu0 0.0
      %954 = vmatpush1.msra.mxu0 0.0
      %955 = vmatprep.mubr.f32.mxu0 0.0
      %956 = vmatmul.mubr.f32.gmra.mrb[0].mxu0 %v889
      %v957 = vpop.f32.mrb[0].mxu0
      %v958 = vadd.f32 0.0, %v957
      %v959 = vpop.f32.mrb[0].mxu0
      %v960 = vadd.f32 0.0, %v959
      %961 = vdwg.mxu0
      %v962 = vld [vmem:[%s4] sm:$0xf]
      %964 = vset.pattern.permute.xlu0 0
      %965 = vperm.xlu0 %964, %v962
      %v966 = vpop.permute.xlu0 %965
      %v968 = vmul.f32 %v958, %v966
      %v969 = vmul.f32 %v960, %v966
      %970 = vset.pattern.permute.xlu0 1
      %971 = vperm.xlu0 %970, %v962
      %v972 = vpop.permute.xlu0 %971
      %v974 = vadd.f32 %v968, %v972
      %v975 = vadd.f32 %v969, %v972
      %v976 = vmax.f32 %v974, 0.0
      %v977 = vmax.f32 %v975, 0.0
      %v980 = vrot.slane %v976, 4
      %v981 = vrot.slane %v977, 4
      %984 = vst [vmem:[#allocation2] sm:$0xf0] %v980
      %985 = vst [vmem:[#allocation2 + $0x8] sm:$0xf0] %v981
      %986 = vst [vmem:[#allocation5] sm:$0xff] 0.0
      %vm987 = vcmask 203776
      %988 = vst.msk [vmem:[#allocation5 + $0x8] sm:$0xff] %vm987, 0.0
      %989 = vst [vmem:[#allocation5 + $0x28] sm:$0xf] 0.0
      %vm990 = vcmask 199680
      %991 = vst.msk [vmem:[#allocation5 + $0x30] sm:$0xf] %vm990, 0.0
      %vm992 = vcmask 1047752
      %993 = vst.msk [vmem:[#allocation5 + $0x18] sm:$0xff] %vm992, 0.0
      %vm994 = vcmask 408576
      %995 = vst.msk [vmem:[#allocation5 + $0x20] sm:$0xff] %vm994, 0.0
      %vm996 = vcmask 1043656
      %997 = vst.msk [vmem:[#allocation5 + $0x40] sm:$0xf] %vm996, 0.0
      %vm998 = vcmask 404480
      %999 = vst.msk [vmem:[#allocation5 + $0x48] sm:$0xf] %vm998, 0.0
      %v1000 = vld [vmem:[#allocation2] sm:$0xf0]
      %v1001 = vld [vmem:[#allocation2 + $0x8] sm:$0xf0]
      %v1002 = vld [vmem:[#allocation2 + $0x10] sm:$0xff]
      %v1003 = vld [vmem:[#allocation2 + $0x18] sm:$0xff]
      %v1008 = vrot.slane %v1000, 4
      %v1009 = vrot.slane %v1002, 4
      %v1010 = vsel %vm582, %v1008, %v1009
      %v1011 = vrot.slane %v1001, 4
      %v1012 = vrot.slane %v1003, 4
      %v1013 = vsel %vm582, %v1011, %v1012
      %1014 = vrot.lane.b32.xlu0 %v1010, 25
      %v1015 = vpop.permute.xlu0 %1014
      %1016 = vrot.lane.b32.xlu0 %v1013, 25
      %v1017 = vpop.permute.xlu0 %1016
      %1018 = vrot.lane.b32.xlu0 %v1009, 25
      %v1019 = vpop.permute.xlu0 %1018
      %1020 = vrot.lane.b32.xlu0 %v1012, 25
      %v1021 = vpop.permute.xlu0 %1020
      %v1022 = vsel %vm987, %v1015, %v1017
      %v1023 = vsel %vm987, %v1019, %v1021
      %1030 = vst.msk [vmem:[#allocation5 + $0x8] sm:$0xff] %vm992, %v1015
      %1031 = vst [vmem:[#allocation5 + $0x10] sm:$0xff] %v1022
      %1032 = vst.msk [vmem:[#allocation5 + $0x18] sm:$0xff] %vm987, %v1017
      %1033 = vst.msk [vmem:[#allocation5 + $0x30] sm:$0xf] %vm996, %v1019
      %1034 = vst [vmem:[#allocation5 + $0x38] sm:$0xf] %v1023
      %1035 = vst.msk [vmem:[#allocation5 + $0x40] sm:$0xf] %vm990, %v1021
      %v1036 = vld [vmem:[#allocation5] sm:$0xff]
      %v1037 = vld [vmem:[#allocation5 + $0x8] sm:$0xff]
      %v1038 = vld [vmem:[#allocation5 + $0x28] sm:$0xf]
      %v1039 = vld [vmem:[#allocation5 + $0x30] sm:$0xf]
      %vm1040 = vcmp.ge.s32.totalorder %v385, 9
      %vm1041 = vcmp.ge.s32.totalorder %v386, 9
      %v1042 = vsel %vm1040, %v1036, 0.0
      %v1043 = vsel %vm1041, %v1037, 0.0
      %v1044 = vsel %vm1040, %v1038, 0.0
      %v1045 = vsel %vm1041, %v1039, 0.0
      %1046 = vst [vmem:[#allocation8] sm:$0xff] %v1042
      %1047 = vst [vmem:[#allocation8 + $0x8] sm:$0xff] %v1043
      %1048 = vst [vmem:[#allocation8 + $0x10] sm:$0xf] %v1044
      %1049 = vst [vmem:[#allocation8 + $0x18] sm:$0xf] %v1045
      %v1050 = vld [vmem:[#allocation5] sm:$0xff]
      %v1051 = vld [vmem:[#allocation5 + $0x8] sm:$0xff]
      %v1052 = vld [vmem:[#allocation5 + $0x10] sm:$0xff]
      %v1053 = vld [vmem:[#allocation5 + $0x28] sm:$0xf]
      %v1054 = vld [vmem:[#allocation5 + $0x30] sm:$0xf]
      %v1055 = vld [vmem:[#allocation5 + $0x38] sm:$0xf]
      %v1062 = vrot.slane %v1050, 4
      %v1063 = vrot.slane %v1051, 4
      %v1064 = vrot.slane %v1052, 4
      %v1065 = vrot.slane %v1053, 4
      %v1066 = vsel %vm582, %v1062, %v1065
      %v1067 = vrot.slane %v1054, 4
      %v1068 = vsel %vm582, %v1063, %v1067
      %v1069 = vrot.slane %v1055, 4
      %v1070 = vsel %vm582, %v1064, %v1069
      %1071 = vrot.lane.b32.xlu0 %v1062, 119
      %v1072 = vpop.permute.xlu0 %1071
      %1073 = vrot.lane.b32.xlu0 %v1063, 119
      %v1074 = vpop.permute.xlu0 %1073
      %1075 = vrot.lane.b32.xlu0 %v1064, 119
      %v1076 = vpop.permute.xlu0 %1075
      %1077 = vrot.lane.b32.xlu0 %v1066, 119
      %v1078 = vpop.permute.xlu0 %1077
      %1079 = vrot.lane.b32.xlu0 %v1068, 119
      %v1080 = vpop.permute.xlu0 %1079
      %1081 = vrot.lane.b32.xlu0 %v1070, 119
      %v1082 = vpop.permute.xlu0 %1081
      %vm1083 = vcmask 973824
      %v1084 = vsel %vm1083, %v1072, %v1074
      %v1085 = vsel %vm1083, %v1074, %v1076
      %v1086 = vsel %vm1083, %v1078, %v1080
      %v1087 = vsel %vm1083, %v1080, %v1082
      %1092 = vst [vmem:[#allocation8 + $0x10] sm:$0xf0] %v1084
      %1093 = vst [vmem:[#allocation8 + $0x18] sm:$0xf0] %v1085
      %1094 = vst [vmem:[#allocation8 + $0x20] sm:$0xff] %v1086
      %1095 = vst [vmem:[#allocation8 + $0x28] sm:$0xff] %v1087
      %v1096 = vld [vmem:[#allocation5] sm:$0xff]
      %v1097 = vld [vmem:[#allocation5 + $0x8] sm:$0xff]
      %v1098 = vld [vmem:[#allocation5 + $0x10] sm:$0xff]
      %v1099 = vld [vmem:[#allocation5 + $0x28] sm:$0xf]
      %v1100 = vld [vmem:[#allocation5 + $0x30] sm:$0xf]
      %v1101 = vld [vmem:[#allocation5 + $0x38] sm:$0xf]
      %vm1102 = vcmp.lt.s32.totalorder %v385, 7
      %vm1103 = vcmp.lt.s32.totalorder %v386, 7
      %1110 = vrot.lane.b32.xlu0 %v1096, 110
      %v1111 = vpop.permute.xlu0 %1110
      %1112 = vrot.lane.b32.xlu0 %v1097, 110
      %v1113 = vpop.permute.xlu0 %1112
      %1114 = vrot.lane.b32.xlu0 %v1098, 110
      %v1115 = vpop.permute.xlu0 %1114
      %1116 = vrot.lane.b32.xlu0 %v1099, 110
      %v1117 = vpop.permute.xlu0 %1116
      %1118 = vrot.lane.b32.xlu0 %v1100, 110
      %v1119 = vpop.permute.xlu0 %1118
      %1120 = vrot.lane.b32.xlu0 %v1101, 110
      %v1121 = vpop.permute.xlu0 %1120
      %vm1122 = vcmask 900096
      %v1123 = vsel %vm1122, %v1111, %v1113
      %v1124 = vsel %vm1122, %v1113, %v1115
      %v1125 = vsel %vm1122, %v1117, %v1119
      %v1126 = vsel %vm1122, %v1119, %v1121
      %v1131 = vsel %vm1102, %v1123, 0.0
      %v1132 = vsel %vm1103, %v1124, 0.0
      %v1133 = vsel %vm1102, %v1125, 0.0
      %v1134 = vsel %vm1103, %v1126, 0.0
      %1135 = vst [vmem:[#allocation8 + $0x30] sm:$0xff] %v1131
      %1136 = vst [vmem:[#allocation8 + $0x38] sm:$0xff] %v1132
      %1137 = vst [vmem:[#allocation8 + $0x40] sm:$0xf] %v1133
      %1138 = vst [vmem:[#allocation8 + $0x48] sm:$0xf] %v1134
      %v1139 = vld [vmem:[#allocation5 + $0x8] sm:$0xff]
      %v1140 = vld [vmem:[#allocation5 + $0x10] sm:$0xff]
      %v1141 = vld [vmem:[#allocation5 + $0x18] sm:$0xff]
      %v1142 = vld [vmem:[#allocation5 + $0x30] sm:$0xf]
      %v1143 = vld [vmem:[#allocation5 + $0x38] sm:$0xf]
      %v1144 = vld [vmem:[#allocation5 + $0x40] sm:$0xf]
      %1151 = vrot.lane.b32.xlu0 %v1139, 112
      %v1152 = vpop.permute.xlu0 %1151
      %1153 = vrot.lane.b32.xlu0 %v1140, 112
      %v1154 = vpop.permute.xlu0 %1153
      %1155 = vrot.lane.b32.xlu0 %v1141, 112
      %v1156 = vpop.permute.xlu0 %1155
      %1157 = vrot.lane.b32.xlu0 %v1142, 112
      %v1158 = vpop.permute.xlu0 %1157
      %1159 = vrot.lane.b32.xlu0 %v1143, 112
      %v1160 = vpop.permute.xlu0 %1159
      %1161 = vrot.lane.b32.xlu0 %v1144, 112
      %v1162 = vpop.permute.xlu0 %1161
      %vm1163 = vcmask 916480
      %v1164 = vsel %vm1163, %v1152, %v1154
      %v1165 = vsel %vm1163, %v1154, %v1156
      %v1166 = vsel %vm1163, %v1158, %v1160
      %v1167 = vsel %vm1163, %v1160, %v1162
      %v1172 = vsel %vm1040, %v1164, 0.0
      %v1173 = vsel %vm1041, %v1165, 0.0
      %v1174 = vsel %vm1040, %v1166, 0.0
      %v1175 = vsel %vm1041, %v1167, 0.0
      %v1180 = vrot.slane %v1172, 4
      %v1181 = vrot.slane %v1173, 4
      %v1182 = vrot.slane %v1174, 4
      %v1183 = vsel %vm582, %v1180, %v1182
      %v1184 = vrot.slane %v1175, 4
      %v1185 = vsel %vm582, %v1181, %v1184
      %1190 = vst [vmem:[#allocation8 + $0x40] sm:$0xf0] %v1180
      %1191 = vst [vmem:[#allocation8 + $0x48] sm:$0xf0] %v1181
      %1192 = vst [vmem:[#allocation8 + $0x50] sm:$0xff] %v1183
      %1193 = vst [vmem:[#allocation8 + $0x58] sm:$0xff] %v1185
      %v1194 = vld [vmem:[#allocation5 + $0x8] sm:$0xff]
      %v1195 = vld [vmem:[#allocation5 + $0x10] sm:$0xff]
      %v1196 = vld [vmem:[#allocation5 + $0x18] sm:$0xff]
      %v1197 = vld [vmem:[#allocation5 + $0x30] sm:$0xf]
      %v1198 = vld [vmem:[#allocation5 + $0x38] sm:$0xf]
      %v1199 = vld [vmem:[#allocation5 + $0x40] sm:$0xf]
      %1206 = vrot.lane.b32.xlu0 %v1194, 103
      %v1207 = vpop.permute.xlu0 %1206
      %1208 = vrot.lane.b32.xlu0 %v1195, 103
      %v1209 = vpop.permute.xlu0 %1208
      %1210 = vrot.lane.b32.xlu0 %v1196, 103
      %v1211 = vpop.permute.xlu0 %1210
      %1212 = vrot.lane.b32.xlu0 %v1197, 103
      %v1213 = vpop.permute.xlu0 %1212
      %1214 = vrot.lane.b32.xlu0 %v1198, 103
      %v1215 = vpop.permute.xlu0 %1214
      %1216 = vrot.lane.b32.xlu0 %v1199, 103
      %v1217 = vpop.permute.xlu0 %1216
      %vm1218 = vcmask 842752
      %v1219 = vsel %vm1218, %v1207, %v1209
      %v1220 = vsel %vm1218, %v1209, %v1211
      %v1221 = vsel %vm1218, %v1213, %v1215
      %v1222 = vsel %vm1218, %v1215, %v1217
      %1227 = vst [vmem:[#allocation8 + $0x60] sm:$0xff] %v1219
      %1228 = vst [vmem:[#allocation8 + $0x68] sm:$0xff] %v1220
      %1229 = vst [vmem:[#allocation8 + $0x70] sm:$0xf] %v1221
      %1230 = vst [vmem:[#allocation8 + $0x78] sm:$0xf] %v1222
      %v1231 = vld [vmem:[#allocation5 + $0x8] sm:$0xff]
      %v1232 = vld [vmem:[#allocation5 + $0x10] sm:$0xff]
      %v1233 = vld [vmem:[#allocation5 + $0x18] sm:$0xff]
      %v1234 = vld [vmem:[#allocation5 + $0x30] sm:$0xf]
      %v1235 = vld [vmem:[#allocation5 + $0x38] sm:$0xf]
      %v1236 = vld [vmem:[#allocation5 + $0x40] sm:$0xf]
      %1243 = vrot.lane.b32.xlu0 %v1231, 94
      %v1244 = vpop.permute.xlu0 %1243
      %1245 = vrot.lane.b32.xlu0 %v1232, 94
      %v1246 = vpop.permute.xlu0 %1245
      %1247 = vrot.lane.b32.xlu0 %v1233, 94
      %v1248 = vpop.permute.xlu0 %1247
      %1249 = vrot.lane.b32.xlu0 %v1234, 94
      %v1250 = vpop.permute.xlu0 %1249
      %1251 = vrot.lane.b32.xlu0 %v1235, 94
      %v1252 = vpop.permute.xlu0 %1251
      %1253 = vrot.lane.b32.xlu0 %v1236, 94
      %v1254 = vpop.permute.xlu0 %1253
      %vm1255 = vcmask 769024
      %v1256 = vsel %vm1255, %v1244, %v1246
      %v1257 = vsel %vm1255, %v1246, %v1248
      %v1258 = vsel %vm1255, %v1250, %v1252
      %v1259 = vsel %vm1255, %v1252, %v1254
      %v1264 = vsel %vm1102, %v1256, 0.0
      %v1265 = vsel %vm1103, %v1257, 0.0
      %v1266 = vsel %vm1102, %v1258, 0.0
      %v1267 = vsel %vm1103, %v1259, 0.0
      %v1272 = vrot.slane %v1264, 4
      %v1273 = vrot.slane %v1265, 4
      %v1274 = vrot.slane %v1266, 4
      %v1275 = vsel %vm582, %v1272, %v1274
      %v1276 = vrot.slane %v1267, 4
      %v1277 = vsel %vm582, %v1273, %v1276
      %1282 = vst [vmem:[#allocation8 + $0x70] sm:$0xf0] %v1272
      %1283 = vst [vmem:[#allocation8 + $0x78] sm:$0xf0] %v1273
      %1284 = vst [vmem:[#allocation8 + $0x80] sm:$0xff] %v1275
      %1285 = vst [vmem:[#allocation8 + $0x88] sm:$0xff] %v1277
      %v1286 = vld [vmem:[#allocation5 + $0x10] sm:$0xff]
      %v1287 = vld [vmem:[#allocation5 + $0x18] sm:$0xff]
      %v1288 = vld [vmem:[#allocation5 + $0x20] sm:$0xff]
      %v1289 = vld [vmem:[#allocation5 + $0x38] sm:$0xf]
      %v1290 = vld [vmem:[#allocation5 + $0x40] sm:$0xf]
      %v1291 = vld [vmem:[#allocation5 + $0x48] sm:$0xf]
      %1298 = vrot.lane.b32.xlu0 %v1286, 96
      %v1299 = vpop.permute.xlu0 %1298
      %1300 = vrot.lane.b32.xlu0 %v1287, 96
      %v1301 = vpop.permute.xlu0 %1300
      %1302 = vrot.lane.b32.xlu0 %v1288, 96
      %v1303 = vpop.permute.xlu0 %1302
      %1304 = vrot.lane.b32.xlu0 %v1289, 96
      %v1305 = vpop.permute.xlu0 %1304
      %1306 = vrot.lane.b32.xlu0 %v1290, 96
      %v1307 = vpop.permute.xlu0 %1306
      %1308 = vrot.lane.b32.xlu0 %v1291, 96
      %v1309 = vpop.permute.xlu0 %1308
      %vm1310 = vcmask 785408
      %v1311 = vsel %vm1310, %v1299, %v1301
      %v1312 = vsel %vm1310, %v1301, %v1303
      %v1313 = vsel %vm1310, %v1305, %v1307
      %v1314 = vsel %vm1310, %v1307, %v1309
      %v1319 = vsel %vm1040, %v1311, 0.0
      %v1320 = vsel %vm1041, %v1312, 0.0
      %v1321 = vsel %vm1040, %v1313, 0.0
      %v1322 = vsel %vm1041, %v1314, 0.0
      %1323 = vst [vmem:[#allocation8 + $0x90] sm:$0xff] %v1319
      %1324 = vst [vmem:[#allocation8 + $0x98] sm:$0xff] %v1320
      %1325 = vst [vmem:[#allocation8 + $0xa0] sm:$0xf] %v1321
      %1326 = vst [vmem:[#allocation8 + $0xa8] sm:$0xf] %v1322
      %v1327 = vld [vmem:[#allocation5 + $0x10] sm:$0xff]
      %v1328 = vld [vmem:[#allocation5 + $0x18] sm:$0xff]
      %v1329 = vld [vmem:[#allocation5 + $0x20] sm:$0xff]
      %v1330 = vld [vmem:[#allocation5 + $0x38] sm:$0xf]
      %v1331 = vld [vmem:[#allocation5 + $0x40] sm:$0xf]
      %v1332 = vld [vmem:[#allocation5 + $0x48] sm:$0xf]
      %v1339 = vrot.slane %v1327, 4
      %v1340 = vrot.slane %v1328, 4
      %v1341 = vrot.slane %v1329, 4
      %v1342 = vrot.slane %v1330, 4
      %v1343 = vsel %vm582, %v1339, %v1342
      %v1344 = vrot.slane %v1331, 4
      %v1345 = vsel %vm582, %v1340, %v1344
      %v1346 = vrot.slane %v1332, 4
      %v1347 = vsel %vm582, %v1341, %v1346
      %1348 = vrot.lane.b32.xlu0 %v1339, 87
      %v1349 = vpop.permute.xlu0 %1348
      %1350 = vrot.lane.b32.xlu0 %v1340, 87
      %v1351 = vpop.permute.xlu0 %1350
      %1352 = vrot.lane.b32.xlu0 %v1341, 87
      %v1353 = vpop.permute.xlu0 %1352
      %1354 = vrot.lane.b32.xlu0 %v1343, 87
      %v1355 = vpop.permute.xlu0 %1354
      %1356 = vrot.lane.b32.xlu0 %v1345, 87
      %v1357 = vpop.permute.xlu0 %1356
      %1358 = vrot.lane.b32.xlu0 %v1347, 87
      %v1359 = vpop.permute.xlu0 %1358
      %vm1360 = vcmask 711680
      %v1361 = vsel %vm1360, %v1349, %v1351
      %v1362 = vsel %vm1360, %v1351, %v1353
      %v1363 = vsel %vm1360, %v1355, %v1357
      %v1364 = vsel %vm1360, %v1357, %v1359
      %1369 = vst [vmem:[#allocation8 + $0xa0] sm:$0xf0] %v1361
      %1370 = vst [vmem:[#allocation8 + $0xa8] sm:$0xf0] %v1362
      %1371 = vst [vmem:[#allocation8 + $0xb0] sm:$0xff] %v1363
      %1372 = vst [vmem:[#allocation8 + $0xb8] sm:$0xff] %v1364
      %v1373 = vld [vmem:[#allocation5 + $0x10] sm:$0xff]
      %v1374 = vld [vmem:[#allocation5 + $0x18] sm:$0xff]
      %v1375 = vld [vmem:[#allocation5 + $0x20] sm:$0xff]
      %v1376 = vld [vmem:[#allocation5 + $0x38] sm:$0xf]
      %v1377 = vld [vmem:[#allocation5 + $0x40] sm:$0xf]
      %v1378 = vld [vmem:[#allocation5 + $0x48] sm:$0xf]
      %1385 = vrot.lane.b32.xlu0 %v1373, 78
      %v1386 = vpop.permute.xlu0 %1385
      %1387 = vrot.lane.b32.xlu0 %v1374, 78
      %v1388 = vpop.permute.xlu0 %1387
      %1389 = vrot.lane.b32.xlu0 %v1375, 78
      %v1390 = vpop.permute.xlu0 %1389
      %1391 = vrot.lane.b32.xlu0 %v1376, 78
      %v1392 = vpop.permute.xlu0 %1391
      %1393 = vrot.lane.b32.xlu0 %v1377, 78
      %v1394 = vpop.permute.xlu0 %1393
      %1395 = vrot.lane.b32.xlu0 %v1378, 78
      %v1396 = vpop.permute.xlu0 %1395
      %vm1397 = vcmask 637952
      %v1398 = vsel %vm1397, %v1386, %v1388
      %v1399 = vsel %vm1397, %v1388, %v1390
      %v1400 = vsel %vm1397, %v1392, %v1394
      %v1401 = vsel %vm1397, %v1394, %v1396
      %v1406 = vsel %vm1102, %v1398, 0.0
      %v1407 = vsel %vm1103, %v1399, 0.0
      %v1408 = vsel %vm1102, %v1400, 0.0
      %v1409 = vsel %vm1103, %v1401, 0.0
      %1410 = vst [vmem:[#allocation8 + $0xc0] sm:$0xff] %v1406
      %1411 = vst [vmem:[#allocation8 + $0xc8] sm:$0xff] %v1407
      %1412 = vst [vmem:[#allocation8 + $0xd0] sm:$0xf] %v1408
      %1413 = vst [vmem:[#allocation8 + $0xd8] sm:$0xf] %v1409
      %v1414 = vld [vmem:[%s5] sm:$0xf]
      %v1415 = vld [vmem:[#allocation8] sm:$0xff]
      %v1416 = vld [vmem:[#allocation8 + $0x8] sm:$0xff]
      %v1417 = vld [vmem:[#allocation8 + $0x10] sm:$0xff]
      %v1418 = vld [vmem:[#allocation8 + $0x18] sm:$0xff]
      %v1419 = vld [vmem:[#allocation8 + $0x20] sm:$0xff]
      %v1420 = vld [vmem:[#allocation8 + $0x28] sm:$0xff]
      %v1421 = vld [vmem:[#allocation8 + $0x30] sm:$0xff]
      %v1422 = vld [vmem:[#allocation8 + $0x38] sm:$0xff]
      %v1423 = vld [vmem:[#allocation8 + $0x40] sm:$0xff]
      %v1424 = vld [vmem:[#allocation8 + $0x48] sm:$0xff]
      %v1425 = vld [vmem:[#allocation8 + $0x50] sm:$0xff]
      %v1426 = vld [vmem:[#allocation8 + $0x58] sm:$0xff]
      %v1427 = vld [vmem:[#allocation8 + $0x60] sm:$0xff]
      %v1428 = vld [vmem:[#allocation8 + $0x68] sm:$0xff]
      %v1429 = vld [vmem:[#allocation8 + $0x70] sm:$0xff]
      %v1430 = vld [vmem:[#allocation8 + $0x78] sm:$0xff]
      %v1431 = vld [vmem:[#allocation8 + $0x80] sm:$0xff]
      %v1432 = vld [vmem:[#allocation8 + $0x88] sm:$0xff]
      %v1433 = vld [vmem:[#allocation8 + $0x90] sm:$0xff]
      %v1434 = vld [vmem:[#allocation8 + $0x98] sm:$0xff]
      %v1435 = vld [vmem:[#allocation8 + $0xa0] sm:$0xff]
      %v1436 = vld [vmem:[#allocation8 + $0xa8] sm:$0xff]
      %v1437 = vld [vmem:[#allocation8 + $0xb0] sm:$0xff]
      %v1438 = vld [vmem:[#allocation8 + $0xb8] sm:$0xff]
      %v1439 = vld [vmem:[#allocation8 + $0xc0] sm:$0xff]
      %v1440 = vld [vmem:[#allocation8 + $0xc8] sm:$0xff]
      %v1441 = vld [vmem:[#allocation8 + $0xd0] sm:$0xf]
      %v1442 = vld [vmem:[#allocation8 + $0xd8] sm:$0xf]
      %vm1443 = vcmask 883712
      %v1445 = vsel %vm1443, %v1414, 0
      %v1448 = vsel %vm582, %v1441, 0
      %v1451 = vsel %vm582, %v1442, 0
      %1453 = vmatprep.subr.mxu0 %v1416
      %1454 = vmatpush1.msra.mxu0 %v1415
      %1455 = vmatprep.subr.mxu0 %v1418
      %1456 = vmatpush1.msra.mxu0 %v1417
      %1457 = vmatprep.subr.mxu0 %v1420
      %1458 = vmatpush1.msra.mxu0 %v1419
      %1459 = vmatprep.subr.mxu0 %v1422
      %1460 = vmatpush1.msra.mxu0 %v1421
      %1461 = vmatprep.subr.mxu0 %v1424
      %1462 = vmatpush1.msra.mxu0 %v1423
      %1463 = vmatprep.subr.mxu0 %v1426
      %1464 = vmatpush1.msra.mxu0 %v1425
      %1465 = vmatprep.subr.mxu0 %v1428
      %1466 = vmatpush1.msra.mxu0 %v1427
      %1467 = vmatprep.subr.mxu0 %v1430
      %1468 = vmatpush1.msra.mxu0 %v1429
      %1469 = vmatprep.subr.mxu0 %v1432
      %1470 = vmatpush1.msra.mxu0 %v1431
      %1471 = vmatprep.subr.mxu0 %v1434
      %1472 = vmatpush1.msra.mxu0 %v1433
      %1473 = vmatprep.subr.mxu0 %v1436
      %1474 = vmatpush1.msra.mxu0 %v1435
      %1475 = vmatprep.subr.mxu0 %v1438
      %1476 = vmatpush1.msra.mxu0 %v1437
      %1477 = vmatprep.subr.mxu0 %v1440
      %1478 = vmatpush1.msra.mxu0 %v1439
      %1479 = vmatprep.subr.mxu0 %v1451
      %1480 = vmatpush1.msra.mxu0 %v1448
      %1481 = vmatprep.subr.mxu0 0.0
      %1482 = vmatpush1.msra.mxu0 0.0
      %1483 = vmatprep.subr.mxu0 0.0
      %1484 = vmatpush1.msra.mxu0 0.0
      %1485 = vmatprep.subr.mxu0 0.0
      %1486 = vmatpush1.msra.mxu0 0.0
      %1487 = vmatprep.subr.mxu0 0.0
      %1488 = vmatpush1.msra.mxu0 0.0
      %1489 = vmatprep.subr.mxu0 0.0
      %1490 = vmatpush1.msra.mxu0 0.0
      %1491 = vmatprep.subr.mxu0 0.0
      %1492 = vmatpush1.msra.mxu0 0.0
      %1493 = vmatprep.subr.mxu0 0.0
      %1494 = vmatpush1.msra.mxu0 0.0
      %1495 = vmatprep.subr.mxu0 0.0
      %1496 = vmatpush1.msra.mxu0 0.0
      %1497 = vmatprep.subr.mxu0 0.0
      %1498 = vmatpush1.msra.mxu0 0.0
      %1499 = vmatprep.subr.mxu0 0.0
      %1500 = vmatpush1.msra.mxu0 0.0
      %1501 = vmatprep.subr.mxu0 0.0
      %1502 = vmatpush1.msra.mxu0 0.0
      %1503 = vmatprep.subr.mxu0 0.0
      %1504 = vmatpush1.msra.mxu0 0.0
      %1505 = vmatprep.subr.mxu0 0.0
      %1506 = vmatpush1.msra.mxu0 0.0
      %1507 = vmatprep.subr.mxu0 0.0
      %1508 = vmatpush1.msra.mxu0 0.0
      %1509 = vmatprep.subr.mxu0 0.0
      %1510 = vmatpush1.msra.mxu0 0.0
      %1511 = vmatprep.subr.mxu0 0.0
      %1512 = vmatpush1.msra.mxu0 0.0
      %1513 = vmatprep.subr.mxu0 0.0
      %1514 = vmatpush1.msra.mxu0 0.0
      %1515 = vmatprep.subr.mxu0 0.0
      %1516 = vmatpush1.msra.mxu0 0.0
      %1517 = vmatprep.mubr.f32.mxu0 0.0
      %1518 = vmatmul.mubr.f32.gmra.mrb[0].mxu0 %v1445
      %v1519 = vpop.f32.mrb[0].mxu0
      %v1520 = vadd.f32 0.0, %v1519
      %v1521 = vpop.f32.mrb[0].mxu0
      %v1522 = vadd.f32 0.0, %v1521
      %1523 = vdwg.mxu0
      %v1524 = vld [vmem:[%s6] sm:$0xf]
      %1526 = vset.pattern.permute.xlu0 0
      %1527 = vperm.xlu0 %1526, %v1524
      %v1528 = vpop.permute.xlu0 %1527
      %v1530 = vmul.f32 %v1520, %v1528
      %v1531 = vmul.f32 %v1522, %v1528
      %1532 = vset.pattern.permute.xlu0 1
      %1533 = vperm.xlu0 %1532, %v1524
      %v1534 = vpop.permute.xlu0 %1533
      %v1536 = vadd.f32 %v1530, %v1534
      %v1537 = vadd.f32 %v1531, %v1534
      %v1538 = vmax.f32 %v1536, 0.0
      %v1539 = vmax.f32 %v1537, 0.0
      %1540 = vst [vmem:[#allocation2] sm:$0xf] %v1538
      %1541 = vst [vmem:[#allocation2 + $0x8] sm:$0xf] %v1539
      %v1542 = vld [vmem:[%s7] sm:$0xf]
      %v1543 = vld [vmem:[#allocation2] sm:$0xff]
      %v1544 = vld [vmem:[#allocation2 + $0x8] sm:$0xff]
      %v1545 = vld [vmem:[#allocation2 + $0x10] sm:$0xff]
      %v1546 = vld [vmem:[#allocation2 + $0x18] sm:$0xff]
      %vm1547 = vcmask 130048
      %v1549 = vsel %vm1547, %v1542, 0
      %1551 = vmatprep.subr.mxu0 %v1544
      %1552 = vmatpush1.msra.mxu0 %v1543
      %1553 = vmatprep.subr.mxu0 %v1546
      %1554 = vmatpush1.msra.mxu0 %v1545
      %1555 = vmatprep.subr.mxu0 0.0
      %1556 = vmatpush1.msra.mxu0 0.0
      %1557 = vmatprep.subr.mxu0 0.0
      %1558 = vmatpush1.msra.mxu0 0.0
      %1559 = vmatprep.subr.mxu0 0.0
      %1560 = vmatpush1.msra.mxu0 0.0
      %1561 = vmatprep.subr.mxu0 0.0
      %1562 = vmatpush1.msra.mxu0 0.0
      %1563 = vmatprep.subr.mxu0 0.0
      %1564 = vmatpush1.msra.mxu0 0.0
      %1565 = vmatprep.subr.mxu0 0.0
      %1566 = vmatpush1.msra.mxu0 0.0
      %1567 = vmatprep.subr.mxu0 0.0
      %1568 = vmatpush1.msra.mxu0 0.0
      %1569 = vmatprep.subr.mxu0 0.0
      %1570 = vmatpush1.msra.mxu0 0.0
      %1571 = vmatprep.subr.mxu0 0.0
      %1572 = vmatpush1.msra.mxu0 0.0
      %1573 = vmatprep.subr.mxu0 0.0
      %1574 = vmatpush1.msra.mxu0 0.0
      %1575 = vmatprep.subr.mxu0 0.0
      %1576 = vmatpush1.msra.mxu0 0.0
      %1577 = vmatprep.subr.mxu0 0.0
      %1578 = vmatpush1.msra.mxu0 0.0
      %1579 = vmatprep.subr.mxu0 0.0
      %1580 = vmatpush1.msra.mxu0 0.0
      %1581 = vmatprep.subr.mxu0 0.0
      %1582 = vmatpush1.msra.mxu0 0.0
      %1583 = vmatprep.subr.mxu0 0.0
      %1584 = vmatpush1.msra.mxu0 0.0
      %1585 = vmatprep.subr.mxu0 0.0
      %1586 = vmatpush1.msra.mxu0 0.0
      %1587 = vmatprep.subr.mxu0 0.0
      %1588 = vmatpush1.msra.mxu0 0.0
      %1589 = vmatprep.subr.mxu0 0.0
      %1590 = vmatpush1.msra.mxu0 0.0
      %1591 = vmatprep.subr.mxu0 0.0
      %1592 = vmatpush1.msra.mxu0 0.0
      %1593 = vmatprep.subr.mxu0 0.0
      %1594 = vmatpush1.msra.mxu0 0.0
      %1595 = vmatprep.subr.mxu0 0.0
      %1596 = vmatpush1.msra.mxu0 0.0
      %1597 = vmatprep.subr.mxu0 0.0
      %1598 = vmatpush1.msra.mxu0 0.0
      %1599 = vmatprep.subr.mxu0 0.0
      %1600 = vmatpush1.msra.mxu0 0.0
      %1601 = vmatprep.subr.mxu0 0.0
      %1602 = vmatpush1.msra.mxu0 0.0
      %1603 = vmatprep.subr.mxu0 0.0
      %1604 = vmatpush1.msra.mxu0 0.0
      %1605 = vmatprep.subr.mxu0 0.0
      %1606 = vmatpush1.msra.mxu0 0.0
      %1607 = vmatprep.subr.mxu0 0.0
      %1608 = vmatpush1.msra.mxu0 0.0
      %1609 = vmatprep.subr.mxu0 0.0
      %1610 = vmatpush1.msra.mxu0 0.0
      %1611 = vmatprep.subr.mxu0 0.0
      %1612 = vmatpush1.msra.mxu0 0.0
      %1613 = vmatprep.subr.mxu0 0.0
      %1614 = vmatpush1.msra.mxu0 0.0
      %1615 = vmatprep.mubr.f32.mxu0 0.0
      %1616 = vmatmul.mubr.f32.gmra.mrb[0].mxu0 %v1549
      %v1617 = vpop.f32.mrb[0].mxu0
      %v1618 = vadd.f32 0.0, %v1617
      %v1619 = vpop.f32.mrb[0].mxu0
      %v1620 = vadd.f32 0.0, %v1619
      %1621 = vdwg.mxu0
      %v1622 = vld [vmem:[%s8] sm:$0xf]
      %1624 = vset.pattern.permute.xlu0 0
      %1625 = vperm.xlu0 %1624, %v1622
      %v1626 = vpop.permute.xlu0 %1625
      %v1628 = vmul.f32 %v1618, %v1626
      %v1629 = vmul.f32 %v1620, %v1626
      %1630 = vset.pattern.permute.xlu0 1
      %1631 = vperm.xlu0 %1630, %v1622
      %v1632 = vpop.permute.xlu0 %1631
      %v1634 = vadd.f32 %v1628, %v1632
      %v1635 = vadd.f32 %v1629, %v1632
      %v1636 = vmax.f32 %v1634, 0.0
      %v1637 = vmax.f32 %v1635, 0.0
      %v1640 = vcombine.low %v1636, %v1637
      %1642 = vst [vmem:[%s332] sm:$0xff] %v1640
      %p1643 = scmp.lt.s32.totalorder %s20, 1
      %s1644 = scalar_select %p1643, %s20, 1
      %s1645 = smul.addr %s1644, 2
      %s1646 = smul.addr %s1645, 4
      %s1647 = scalar_lea.vmem %s9, %s1646
      // Predicated region
      $region57: #{_lambda_.8} parent=55 // pred_check
        %p1648 = pneg %p232
      $region58: #{_lambda_.8} parent=55 // pred_check_branch
        %1650 = sbr.rel (%p1648) target = $region60
      $region59: #{_lambda_.8} parent=55 // pred_region
        _
      $region60: #{_lambda_.8} parent=55 // pred_fallthru
        _
    $region56: #{_lambda_.8} parent=5 // pred_fallthru
      _
    %p1651 = scmp.le.s32.totalorder 2, %s15
    // Predicated region
    $region61: #{_lambda_.8} parent=5 // pred_check
      %p1652 = pneg %p1651
    $region62: #{_lambda_.8} parent=5 // pred_check_branch
      %1654 = sbr.rel (%p1652) target = $region64
    $region63: #{_lambda_.8} parent=5 // pred_region
      %s1655 = ssub.s32 %s15, 2
      // Predicated region
      $region65: #{_lambda_.8} parent=63 // pred_check
        %p1656 = pneg %p238
      $region66: #{_lambda_.8} parent=63 // pred_check_branch
        %1658 = sbr.rel (%p1656) target = $region68
      $region67: #{_lambda_.8} parent=63 // pred_region
        %p1659 = scmp.lt.s32.totalorder %s21, 1
        %s1660 = scalar_select %p1659, %s21, 1
        %s1661 = smul.addr %s1660, 2
        %s1662 = smul.addr %s1661, 4
        %s1663 = scalar_lea.vmem %s9, %s1662
      $region68: #{_lambda_.8} parent=63 // pred_fallthru
        _
    $region64: #{_lambda_.8} parent=5 // pred_fallthru
      _
  $region6: #{_lambda_.8} parent=0 // loop_footer
    %s19 = sadd.s32 1, %s15
  $region7: #{_lambda_.8} parent=0 // loop_footer_branch
    %14 = sbr.rel target = $region3
  $region8: #{_lambda_.8} parent=0 // loop_exit
    _

// kernel: _lambda_.7
$region0: #{_lambda_.7}
  #allocation0 [shape = 'u32[]', space=smem, size = 0x4, offset = 0x4, fixed_abs, tag = 'smem constant byte address 0x4 - core index']
  #allocation1 [shape = 'u32[144,128]{1,0:T(1,128)}', space=vmem, size = 0x12000, scoped, tag = 'internal scratch']
  #allocation2 [shape = 'f32[16,256]{1,0:T(8,128)}', space=vmem, size = 0x4000, scoped, tag = 'scratch operand']
  #allocation3 [shape = 'f32[4,324]{1,0:T(4,128)}', space=vmem, size = 0x1800, scoped, tag = 'scratch operand']
  #allocation4 [shape = 'f32[8,392]{1,0:T(8,128)}', space=vmem, size = 0x4000, scoped, tag = 'scratch operand']
  #allocation5 [shape = 'f32[12,460]{1,0:T(8,128)}', space=vmem, size = 0x8000, scoped, tag = 'scratch operand']
  #allocation6 [shape = 'f32[36,256]{1,0:T(8,128)}', space=vmem, size = 0xa000, scoped, tag = 'scratch operand']
  #allocation7 [shape = 'f32[72,256]{1,0:T(8,128)}', space=vmem, size = 0x12000, scoped, tag = 'scratch operand']
  #allocation8 [shape = 'f32[108,256]{1,0:T(8,128)}', space=vmem, size = 0x1c000, scoped, tag = 'scratch operand']
  %s0 = inlined_call_operand.vmem [shape: f32[2,4,256], index: 0, kind: input, shape index: {}]
  %s1 = inlined_call_operand.vmem [shape: f32[4,36], index: 1, kind: input, shape index: {}]
  %s2 = inlined_call_operand.vmem [shape: f32[4,2], index: 2, kind: input, shape index: {}]
  %s3 = inlined_call_operand.vmem [shape: f32[4,72], index: 3, kind: input, shape index: {}]
  %s4 = inlined_call_operand.vmem [shape: f32[4,2], index: 4, kind: input, shape index: {}]
  %s5 = inlined_call_operand.vmem [shape: f32[4,108], index: 5, kind: input, shape index: {}]
  %s6 = inlined_call_operand.vmem [shape: f32[4,2], index: 6, kind: input, shape index: {}]
  %s7 = inlined_call_operand.vmem [shape: f32[4,16], index: 7, kind: input, shape index: {}]
  %s8 = inlined_call_operand.vmem [shape: f32[4,2], index: 8, kind: input, shape index: {}]
  %s9 = inlined_call_operand.vmem [shape: f32[2,4,256], index: 9, kind: output, shape index: {}]
  %s10 = sld [smem:[#allocation0]]
  $region69: #{_lambda_.7} parent=0
    _
  %s12 = ssub.s32 1, %s10
  %s13 = scalar_select 0, %s12, %s10
  loop: start=0, step=1, limit=4
  $region2: #{_lambda_.7} parent=0 // loop_pre_header
    _
  $region3: #{_lambda_.7} parent=0 // loop_header
    %s15 = sphi 0, %s19
    %p16 = scmp.ge.s32.totalorder %s15, 4
    %s25 = sphi 0, %s27
    %s28 = sphi 0, %s25
    %s29 = sphi 0, %s28
    %s45 = sphi 0, %s29
    %s49 = sphi 0, %s49
    %s51 = sphi 0, %s49
    %s52 = sphi 0, %s51
    %s66 = sphi 0, %s52
    %s70 = sphi 0, %s70
    %s72 = sphi 0, %s70
    %s73 = sphi 0, %s72
    %s87 = sphi 0, %s73
    %s91 = sphi 0, %s91
    %s93 = sphi 0, %s91
    %s94 = sphi 0, %s93
    %s108 = sphi 0, %s94
    %s112 = sphi 0, %s112
    %s114 = sphi 0, %s112
    %s115 = sphi 0, %s114
    %s129 = sphi 0, %s115
    %s133 = sphi 0, %s133
    %s135 = sphi 0, %s133
    %s136 = sphi 0, %s135
    %s150 = sphi 0, %s136
    %s154 = sphi 0, %s154
    %s156 = sphi 0, %s154
    %s157 = sphi 0, %s156
    %s171 = sphi 0, %s157
    %s175 = sphi 0, %s175
    %s177 = sphi 0, %s175
    %s178 = sphi 0, %s177
    %s192 = sphi 0, %s178
    %s196 = sphi 0, %s196
    %s198 = sphi 0, %s196
    %s199 = sphi 0, %s198
    %s213 = sphi 0, %s199
    %s219 = sphi 0, %s221
    %s222 = sphi 0, %s219
    %s223 = sphi 0, %s222
    %s239 = sphi 0, %s223
  $region4: #{_lambda_.7} parent=0 // loop_header_branch
    %18 = sbr.rel (%p16) target = $region8
  $region5: #{_lambda_.7} parent=0 // loop_body
    %s20 = ssub.s32 %s15, 1
    %s21 = ssub.s32 %s15, 2
    %s22 = sadd.s32 %s15, 1
    %s23 = ssub.s32 %s15, %s22
    %p24 = scmp.eq.s32.totalorder %s23, 0
    %s26 = sadd.s32 %s25, 1
    %s27 = scalar_select %p24, %s25, %s26
    %p30 = pneg %p24
    %p31 = scmp.eq.s32.totalorder %s15, 1
    %p32 = por %p30, %p31
    %p33 = scmp.ne.s32.totalorder %s25, %s28
    %p34 = scmp.eq.s32.totalorder %s15, 0
    %p35 = por %p33, %p34
    %p36 = scmp.ne.s32.totalorder %s25, %s28
    %p37 = scmp.eq.s32.totalorder %s20, 1
    %p38 = por %p36, %p37
    %p39 = scmp.ne.s32.totalorder %s28, %s29
    %p40 = scmp.eq.s32.totalorder %s20, 0
    %p41 = por %p39, %p40
    %p42 = scmp.ne.s32.totalorder %s28, %s29
    %p43 = scmp.eq.s32.totalorder %s21, 1
    %p44 = por %p42, %p43
    %p46 = scmp.ne.s32.totalorder %s29, %s45
    %p47 = scmp.eq.s32.totalorder %s21, 0
    %p48 = por %p46, %p47
    %s50 = sadd.s32 %s49, 1
    %p53 = scmp.eq.s32.totalorder %s15, 1
    %p54 = scmp.ne.s32.totalorder %s49, %s51
    %p55 = scmp.eq.s32.totalorder %s15, 0
    %p56 = por %p54, %p55
    %p57 = scmp.ne.s32.totalorder %s49, %s51
    %p58 = scmp.eq.s32.totalorder %s20, 1
    %p59 = por %p57, %p58
    %p60 = scmp.ne.s32.totalorder %s51, %s52
    %p61 = scmp.eq.s32.totalorder %s20, 0
    %p62 = por %p60, %p61
    %p63 = scmp.ne.s32.totalorder %s51, %s52
    %p64 = scmp.eq.s32.totalorder %s21, 1
    %p65 = por %p63, %p64
    %p67 = scmp.ne.s32.totalorder %s52, %s66
    %p68 = scmp.eq.s32.totalorder %s21, 0
    %p69 = por %p67, %p68
    %s71 = sadd.s32 %s70, 1
    %p74 = scmp.eq.s32.totalorder %s15, 1
    %p75 = scmp.ne.s32.totalorder %s70, %s72
    %p76 = scmp.eq.s32.totalorder %s15, 0
    %p77 = por %p75, %p76
    %p78 = scmp.ne.s32.totalorder %s70, %s72
    %p79 = scmp.eq.s32.totalorder %s20, 1
    %p80 = por %p78, %p79
    %p81 = scmp.ne.s32.totalorder %s72, %s73
    %p82 = scmp.eq.s32.totalorder %s20, 0
    %p83 = por %p81, %p82
    %p84 = scmp.ne.s32.totalorder %s72, %s73
    %p85 = scmp.eq.s32.totalorder %s21, 1
    %p86 = por %p84, %p85
    %p88 = scmp.ne.s32.totalorder %s73, %s87
    %p89 = scmp.eq.s32.totalorder %s21, 0
    %p90 = por %p88, %p89
    %s92 = sadd.s32 %s91, 1
    %p95 = scmp.eq.s32.totalorder %s15, 1
    %p96 = scmp.ne.s32.totalorder %s91, %s93
    %p97 = scmp.eq.s32.totalorder %s15, 0
    %p98 = por %p96, %p97
    %p99 = scmp.ne.s32.totalorder %s91, %s93
    %p100 = scmp.eq.s32.totalorder %s20, 1
    %p101 = por %p99, %p100
    %p102 = scmp.ne.s32.totalorder %s93, %s94
    %p103 = scmp.eq.s32.totalorder %s20, 0
    %p104 = por %p102, %p103
    %p105 = scmp.ne.s32.totalorder %s93, %s94
    %p106 = scmp.eq.s32.totalorder %s21, 1
    %p107 = por %p105, %p106
    %p109 = scmp.ne.s32.totalorder %s94, %s108
    %p110 = scmp.eq.s32.totalorder %s21, 0
    %p111 = por %p109, %p110
    %s113 = sadd.s32 %s112, 1
    %p116 = scmp.eq.s32.totalorder %s15, 1
    %p117 = scmp.ne.s32.totalorder %s112, %s114
    %p118 = scmp.eq.s32.totalorder %s15, 0
    %p119 = por %p117, %p118
    %p120 = scmp.ne.s32.totalorder %s112, %s114
    %p121 = scmp.eq.s32.totalorder %s20, 1
    %p122 = por %p120, %p121
    %p123 = scmp.ne.s32.totalorder %s114, %s115
    %p124 = scmp.eq.s32.totalorder %s20, 0
    %p125 = por %p123, %p124
    %p126 = scmp.ne.s32.totalorder %s114, %s115
    %p127 = scmp.eq.s32.totalorder %s21, 1
    %p128 = por %p126, %p127
    %p130 = scmp.ne.s32.totalorder %s115, %s129
    %p131 = scmp.eq.s32.totalorder %s21, 0
    %p132 = por %p130, %p131
    %s134 = sadd.s32 %s133, 1
    %p137 = scmp.eq.s32.totalorder %s15, 1
    %p138 = scmp.ne.s32.totalorder %s133, %s135
    %p139 = scmp.eq.s32.totalorder %s15, 0
    %p140 = por %p138, %p139
    %p141 = scmp.ne.s32.totalorder %s133, %s135
    %p142 = scmp.eq.s32.totalorder %s20, 1
    %p143 = por %p141, %p142
    %p144 = scmp.ne.s32.totalorder %s135, %s136
    %p145 = scmp.eq.s32.totalorder %s20, 0
    %p146 = por %p144, %p145
    %p147 = scmp.ne.s32.totalorder %s135, %s136
    %p148 = scmp.eq.s32.totalorder %s21, 1
    %p149 = por %p147, %p148
    %p151 = scmp.ne.s32.totalorder %s136, %s150
    %p152 = scmp.eq.s32.totalorder %s21, 0
    %p153 = por %p151, %p152
    %s155 = sadd.s32 %s154, 1
    %p158 = scmp.eq.s32.totalorder %s15, 1
    %p159 = scmp.ne.s32.totalorder %s154, %s156
    %p160 = scmp.eq.s32.totalorder %s15, 0
    %p161 = por %p159, %p160
    %p162 = scmp.ne.s32.totalorder %s154, %s156
    %p163 = scmp.eq.s32.totalorder %s20, 1
    %p164 = por %p162, %p163
    %p165 = scmp.ne.s32.totalorder %s156, %s157
    %p166 = scmp.eq.s32.totalorder %s20, 0
    %p167 = por %p165, %p166
    %p168 = scmp.ne.s32.totalorder %s156, %s157
    %p169 = scmp.eq.s32.totalorder %s21, 1
    %p170 = por %p168, %p169
    %p172 = scmp.ne.s32.totalorder %s157, %s171
    %p173 = scmp.eq.s32.totalorder %s21, 0
    %p174 = por %p172, %p173
    %s176 = sadd.s32 %s175, 1
    %p179 = scmp.eq.s32.totalorder %s15, 1
    %p180 = scmp.ne.s32.totalorder %s175, %s177
    %p181 = scmp.eq.s32.totalorder %s15, 0
    %p182 = por %p180, %p181
    %p183 = scmp.ne.s32.totalorder %s175, %s177
    %p184 = scmp.eq.s32.totalorder %s20, 1
    %p185 = por %p183, %p184
    %p186 = scmp.ne.s32.totalorder %s177, %s178
    %p187 = scmp.eq.s32.totalorder %s20, 0
    %p188 = por %p186, %p187
    %p189 = scmp.ne.s32.totalorder %s177, %s178
    %p190 = scmp.eq.s32.totalorder %s21, 1
    %p191 = por %p189, %p190
    %p193 = scmp.ne.s32.totalorder %s178, %s192
    %p194 = scmp.eq.s32.totalorder %s21, 0
    %p195 = por %p193, %p194
    %s197 = sadd.s32 %s196, 1
    %p200 = scmp.eq.s32.totalorder %s15, 1
    %p201 = scmp.ne.s32.totalorder %s196, %s198
    %p202 = scmp.eq.s32.totalorder %s15, 0
    %p203 = por %p201, %p202
    %p204 = scmp.ne.s32.totalorder %s196, %s198
    %p205 = scmp.eq.s32.totalorder %s20, 1
    %p206 = por %p204, %p205
    %p207 = scmp.ne.s32.totalorder %s198, %s199
    %p208 = scmp.eq.s32.totalorder %s20, 0
    %p209 = por %p207, %p208
    %p210 = scmp.ne.s32.totalorder %s198, %s199
    %p211 = scmp.eq.s32.totalorder %s21, 1
    %p212 = por %p210, %p211
    %p214 = scmp.ne.s32.totalorder %s199, %s213
    %p215 = scmp.eq.s32.totalorder %s21, 0
    %p216 = por %p214, %p215
    %s217 = ssub.s32 %s15, %s22
    %p218 = scmp.eq.s32.totalorder %s217, 0
    %s220 = sadd.s32 %s219, 1
    %s221 = scalar_select %p218, %s219, %s220
    %p224 = pneg %p218
    %p225 = scmp.eq.s32.totalorder %s15, 1
    %p226 = por %p224, %p225
    %p227 = scmp.ne.s32.totalorder %s219, %s222
    %p228 = scmp.eq.s32.totalorder %s15, 0
    %p229 = por %p227, %p228
    %p230 = scmp.ne.s32.totalorder %s219, %s222
    %p231 = scmp.eq.s32.totalorder %s20, 1
    %p232 = por %p230, %p231
    %p233 = scmp.ne.s32.totalorder %s222, %s223
    %p234 = scmp.eq.s32.totalorder %s20, 0
    %p235 = por %p233, %p234
    %p236 = scmp.ne.s32.totalorder %s222, %s223
    %p237 = scmp.eq.s32.totalorder %s21, 1
    %p238 = por %p236, %p237
    %p240 = scmp.ne.s32.totalorder %s223, %s239
    %p241 = scmp.eq.s32.totalorder %s21, 0
    %p242 = por %p240, %p241
    %p243 = scmp.le.s32.totalorder 1, %s15
    %p244 = scmp.lt.s32.totalorder %s15, 3
    %p245 = pnand %p243, %p244
    %p246 = pneg %p245
    // Predicated region
    $region9: #{_lambda_.7} parent=5 // pred_check
      _
    $region10: #{_lambda_.7} parent=5 // pred_check_branch
      %248 = sbr.rel (%p245) target = $region12
    $region11: #{_lambda_.7} parent=5 // pred_region
      %s249 = ssub.s32 %s15, 1
      // Predicated region
      $region13: #{_lambda_.7} parent=11 // pred_check
        %p250 = pneg %p62
      $region14: #{_lambda_.7} parent=11 // pred_check_branch
        %252 = sbr.rel (%p250) target = $region16
      $region15: #{_lambda_.7} parent=11 // pred_region
        _
      $region16: #{_lambda_.7} parent=11 // pred_fallthru
        _
      // Predicated region
      $region17: #{_lambda_.7} parent=11 // pred_check
        %p253 = pneg %p83
      $region18: #{_lambda_.7} parent=11 // pred_check_branch
        %255 = sbr.rel (%p253) target = $region20
      $region19: #{_lambda_.7} parent=11 // pred_region
        _
      $region20: #{_lambda_.7} parent=11 // pred_fallthru
        _
      // Predicated region
      $region21: #{_lambda_.7} parent=11 // pred_check
        %p256 = pneg %p104
      $region22: #{_lambda_.7} parent=11 // pred_check_branch
        %258 = sbr.rel (%p256) target = $region24
      $region23: #{_lambda_.7} parent=11 // pred_region
        _
      $region24: #{_lambda_.7} parent=11 // pred_fallthru
        _
      // Predicated region
      $region25: #{_lambda_.7} parent=11 // pred_check
        %p259 = pneg %p125
      $region26: #{_lambda_.7} parent=11 // pred_check_branch
        %261 = sbr.rel (%p259) target = $region28
      $region27: #{_lambda_.7} parent=11 // pred_region
        _
      $region28: #{_lambda_.7} parent=11 // pred_fallthru
        _
      // Predicated region
      $region29: #{_lambda_.7} parent=11 // pred_check
        %p262 = pneg %p146
      $region30: #{_lambda_.7} parent=11 // pred_check_branch
        %264 = sbr.rel (%p262) target = $region32
      $region31: #{_lambda_.7} parent=11 // pred_region
        _
      $region32: #{_lambda_.7} parent=11 // pred_fallthru
        _
      // Predicated region
      $region33: #{_lambda_.7} parent=11 // pred_check
        %p265 = pneg %p167
      $region34: #{_lambda_.7} parent=11 // pred_check_branch
        %267 = sbr.rel (%p265) target = $region36
      $region35: #{_lambda_.7} parent=11 // pred_region
        _
      $region36: #{_lambda_.7} parent=11 // pred_fallthru
        _
      // Predicated region
      $region37: #{_lambda_.7} parent=11 // pred_check
        %p268 = pneg %p188
      $region38: #{_lambda_.7} parent=11 // pred_check_branch
        %270 = sbr.rel (%p268) target = $region40
      $region39: #{_lambda_.7} parent=11 // pred_region
        _
      $region40: #{_lambda_.7} parent=11 // pred_fallthru
        _
      // Predicated region
      $region41: #{_lambda_.7} parent=11 // pred_check
        %p271 = pneg %p209
      $region42: #{_lambda_.7} parent=11 // pred_check_branch
        %273 = sbr.rel (%p271) target = $region44
      $region43: #{_lambda_.7} parent=11 // pred_region
        _
      $region44: #{_lambda_.7} parent=11 // pred_fallthru
        _
    $region12: #{_lambda_.7} parent=5 // pred_fallthru
      _
    %p274 = scmp.lt.s32.totalorder %s15, 2
    // Predicated region
    $region45: #{_lambda_.7} parent=5 // pred_check
      %p275 = pneg %p274
    $region46: #{_lambda_.7} parent=5 // pred_check_branch
      %277 = sbr.rel (%p275) target = $region48
    $region47: #{_lambda_.7} parent=5 // pred_region
      // Predicated region
      $region49: #{_lambda_.7} parent=47 // pred_check
        %p278 = pneg %p35
      $region50: #{_lambda_.7} parent=47 // pred_check_branch
        %280 = sbr.rel (%p278) target = $region52
      $region51: #{_lambda_.7} parent=47 // pred_region
        %p281 = scmp.lt.s32.totalorder %s15, 1
        %s282 = scalar_select %p281, %s15, 1
        %s283 = smul.addr %s282, 2
        %s284 = smul.addr %s283, 4
        %s285 = scalar_lea.vmem %s0, %s284
      $region52: #{_lambda_.7} parent=47 // pred_fallthru
        _
    $region48: #{_lambda_.7} parent=5 // pred_fallthru
      _
    %p286 = scmp.le.s32.totalorder 1, %s15
    %p287 = scmp.lt.s32.totalorder %s15, 3
    %p288 = pnand %p286, %p287
    %p289 = pneg %p288
    // Predicated region
    $region53: #{_lambda_.7} parent=5 // pred_check
      _
    $region54: #{_lambda_.7} parent=5 // pred_check_branch
      %291 = sbr.rel (%p288) target = $region56
    $region55: #{_lambda_.7} parent=5 // pred_region
      %s292 = ssub.s32 %s15, 1
      %p293 = scmp.lt.s32.totalorder %s20, 1
      %s294 = scalar_select %p293, %s20, 1
      %s295 = smul.addr %s294, 2
      %s296 = smul.addr %s295, 4
      %s297 = scalar_lea.vmem %s0, %s296
      %p298 = pneg %p41
      %p299 = pneg %p38
      %p300 = pneg %p62
      %p301 = pneg %p59
      %p302 = pneg %p83
      %p303 = pneg %p80
      %p304 = pneg %p104
      %p305 = pneg %p101
      %p306 = pneg %p125
      %p307 = pneg %p122
      %p308 = pneg %p146
      %p309 = pneg %p143
      %p310 = pneg %p167
      %p311 = pneg %p164
      %p312 = pneg %p188
      %p313 = pneg %p185
      %p314 = pneg %p209
      %p315 = pneg %p206
      %p316 = pneg %p235
      %p317 = pneg %p232
      %p318 = scmp.lt.s32.totalorder %s20, 1
      %s319 = scalar_select %p318, %s20, 1
      %s320 = smul.addr %s319, 2
      %s321 = smul.addr %s320, 4
      %s322 = scalar_lea.vmem %s9, %s321
      %p323 = scmp.lt.s32.totalorder %s20, 1
      %s324 = scalar_select %p323, %s20, 1
      %s325 = smul.addr %s324, 2
      %s326 = smul.addr %s325, 4
      %s327 = scalar_lea.vmem %s0, %s326
      %p328 = scmp.lt.s32.totalorder %s20, 1
      %s329 = scalar_select %p328, %s20, 1
      %s330 = smul.addr %s329, 2
      %s331 = smul.addr %s330, 4
      %s332 = scalar_lea.vmem %s9, %s331
      %v333 = vld [vmem:[%s327] sm:$0xff]
      %v335 = vcombine.low %v333, %v333
      %337 = vst [vmem:[#allocation2 + $0x10] sm:$0xf0] %v335
      %338 = vst [vmem:[#allocation2 + $0x18] sm:$0xf0] %v333
      %vm339 = vcmask 273408
      %340 = vst.msk [vmem:[#allocation3] sm:$0xf] %vm339, 0.0
      %vm341 = vcmask 552208
      %342 = vst.msk [vmem:[#allocation3 + $0x8] sm:$0xf] %vm341, 0.0
      %v343 = vld [vmem:[#allocation2 + $0x10] sm:$0xf0]
      %v344 = vld [vmem:[#allocation2 + $0x18] sm:$0xf0]
      %v347 = vcombine.high %v343, %v344
      %348 = vrot.lane.b32.xlu0 %v347, 34
      %v349 = vpop.permute.xlu0 %348
      %v350 = vrot.slane %v349, 4
      %vm351 = vcmask 277504
      %v352 = vsel %vm351, %v350, %v349
      %vm355 = vcmask 1043728
      %vm356 = vcmask 1047556
      %vm357 = vmor %vm356, %vm355
      %358 = vst.msk [vmem:[#allocation3] sm:$0xff] %vm357, %v352
      %359 = vst.msk [vmem:[#allocation3 + $0x8] sm:$0xf] %vm339, %v350
      %v360 = vlaneseq
      %v361 = vand.u32 %v360, 127
      %v362 = vadd.s32 %v361, 128
      %vm363 = vcmp.lt.s32.totalorder %v361, 0
      %v364 = vsub.s32 0, %v361
      %v365 = vsel %vm363, %v364, %v361
      %v366 = vshrl.u32 %v365, 4
      %v367 = vand.u32 %v365, 15
      %v368 = vsub.s32 0, %v367
      %v369 = vsel %vm363, %v368, %v367
      %vm370 = vcmp.lt.s32.totalorder %v362, 0
      %v371 = vsub.s32 0, %v362
      %v372 = vsel %vm370, %v371, %v362
      %v373 = vshrl.u32 %v372, 4
      %v374 = vand.u32 %v372, 15
      %v375 = vsub.s32 0, %v374
      %v376 = vsel %vm370, %v375, %v374
      %vm377 = vcmp.ne.s32.totalorder %v369, 0
      %vm378 = vcmp.ne.s32.totalorder %v376, 0
      %vm379 = vcmp.lt.s32.totalorder %v369, 0
      %vm380 = vcmp.lt.s32.totalorder %v376, 0
      %vm381 = vmand %vm379, %vm377
      %vm382 = vmand %vm380, %vm378
      %v383 = vadd.s32 %v369, 16
      %v384 = vadd.s32 %v376, 16
      %v385 = vsel %vm381, %v383, %v369
      %v386 = vsel %vm382, %v384, %v376
      %v387 = vld [vmem:[#allocation3] sm:$0xff]
      %vm388 = vcmp.ge.s32.totalorder %v385, 2
      %vm389 = vcmp.ge.s32.totalorder %v386, 2
      %v391 = vcombine.high %v387, %v387
      %v393 = vsel %vm388, %v387, 0.0
      %v394 = vsel %vm389, %v391, 0.0
      %395 = vst [vmem:[#allocation6] sm:$0xf] %v393
      %396 = vst [vmem:[#allocation6 + $0x8] sm:$0xf] %v394
      %v397 = vld [vmem:[#allocation3] sm:$0xff]
      %v398 = vld [vmem:[#allocation3 + $0x8] sm:$0xf]
      %v401 = vcombine.low %v397, %v397
      %v402 = vcombine.low %v398, %v398
      %403 = vrot.lane.b32.xlu0 %v401, 126
      %v404 = vpop.permute.xlu0 %403
      %405 = vrot.lane.b32.xlu0 %v397, 126
      %v406 = vpop.permute.xlu0 %405
      %407 = vrot.lane.b32.xlu0 %v402, 126
      %v408 = vpop.permute.xlu0 %407
      %vm409 = vcmask 1031168
      %v410 = vsel %vm409, %v404, %v406
      %v411 = vsel %vm409, %v406, %v408
      %414 = vst [vmem:[#allocation6] sm:$0xf0] %v410
      %415 = vst [vmem:[#allocation6 + $0x8] sm:$0xf0] %v411
      %v416 = vld [vmem:[#allocation3] sm:$0xff]
      %v417 = vld [vmem:[#allocation3 + $0x8] sm:$0xf]
      %vm418 = vcmp.lt.s32.totalorder %v385, 14
      %vm419 = vcmp.lt.s32.totalorder %v386, 14
      %v422 = vcombine.high %v416, %v416
      %423 = vrot.lane.b32.xlu0 %v416, 124
      %v424 = vpop.permute.xlu0 %423
      %425 = vrot.lane.b32.xlu0 %v422, 124
      %v426 = vpop.permute.xlu0 %425
      %427 = vrot.lane.b32.xlu0 %v417, 124
      %v428 = vpop.permute.xlu0 %427
      %vm429 = vcmask 1014784
      %v430 = vsel %vm429, %v424, %v426
      %v431 = vsel %vm429, %v426, %v428
      %v434 = vsel %vm418, %v430, 0.0
      %v435 = vsel %vm419, %v431, 0.0
      %436 = vst [vmem:[#allocation6 + $0x10] sm:$0xf] %v434
      %437 = vst [vmem:[#allocation6 + $0x18] sm:$0xf] %v435
      %v438 = vld [vmem:[#allocation3] sm:$0xff]
      %v439 = vld [vmem:[#allocation3 + $0x8] sm:$0xf]
      %v442 = vcombine.high %v438, %v438
      %443 = vrot.lane.b32.xlu0 %v438, 96
      %v444 = vpop.permute.xlu0 %443
      %445 = vrot.lane.b32.xlu0 %v442, 96
      %v446 = vpop.permute.xlu0 %445
      %447 = vrot.lane.b32.xlu0 %v439, 96
      %v448 = vpop.permute.xlu0 %447
      %vm449 = vcmask 785408
      %v450 = vsel %vm449, %v444, %v446
      %v451 = vsel %vm449, %v446, %v448
      %v454 = vsel %vm388, %v450, 0.0
      %v455 = vsel %vm389, %v451, 0.0
      %v458 = vrot.slane %v454, 4
      %v459 = vrot.slane %v455, 4
      %462 = vst [vmem:[#allocation6 + $0x10] sm:$0xf0] %v458
      %463 = vst [vmem:[#allocation6 + $0x18] sm:$0xf0] %v459
      %v464 = vld [vmem:[#allocation3] sm:$0xff]
      %v465 = vld [vmem:[#allocation3 + $0x8] sm:$0xf]
      %v468 = vcombine.high %v464, %v464
      %469 = vrot.lane.b32.xlu0 %v464, 94
      %v470 = vpop.permute.xlu0 %469
      %471 = vrot.lane.b32.xlu0 %v468, 94
      %v472 = vpop.permute.xlu0 %471
      %473 = vrot.lane.b32.xlu0 %v465, 94
      %v474 = vpop.permute.xlu0 %473
      %vm475 = vcmask 769024
      %v476 = vsel %vm475, %v470, %v472
      %v477 = vsel %vm475, %v472, %v474
      %480 = vst [vmem:[#allocation6 + $0x20] sm:$0xf] %v476
      %481 = vst [vmem:[#allocation6 + $0x28] sm:$0xf] %v477
      %v482 = vld [vmem:[#allocation3] sm:$0xff]
      %v483 = vld [vmem:[#allocation3 + $0x8] sm:$0xf]
      %v486 = vcombine.high %v482, %v482
      %487 = vrot.lane.b32.xlu0 %v482, 92
      %v488 = vpop.permute.xlu0 %487
      %489 = vrot.lane.b32.xlu0 %v486, 92
      %v490 = vpop.permute.xlu0 %489
      %491 = vrot.lane.b32.xlu0 %v483, 92
      %v492 = vpop.permute.xlu0 %491
      %vm493 = vcmask 752640
      %v494 = vsel %vm493, %v488, %v490
      %v495 = vsel %vm493, %v490, %v492
      %v498 = vsel %vm418, %v494, 0.0
      %v499 = vsel %vm419, %v495, 0.0
      %v502 = vrot.slane %v498, 4
      %v503 = vrot.slane %v499, 4
      %506 = vst [vmem:[#allocation6 + $0x20] sm:$0xf0] %v502
      %507 = vst [vmem:[#allocation6 + $0x28] sm:$0xf0] %v503
      %v508 = vld [vmem:[#allocation3] sm:$0xff]
      %v509 = vld [vmem:[#allocation3 + $0x8] sm:$0xf]
      %v512 = vcombine.high %v508, %v508
      %513 = vrot.lane.b32.xlu0 %v508, 64
      %v514 = vpop.permute.xlu0 %513
      %515 = vrot.lane.b32.xlu0 %v512, 64
      %v516 = vpop.permute.xlu0 %515
      %517 = vrot.lane.b32.xlu0 %v509, 64
      %v518 = vpop.permute.xlu0 %517
      %vm519 = vcmask 523264
      %v520 = vsel %vm519, %v514, %v516
      %v521 = vsel %vm519, %v516, %v518
      %v524 = vsel %vm388, %v520, 0.0
      %v525 = vsel %vm389, %v521, 0.0
      %526 = vst [vmem:[#allocation6 + $0x30] sm:$0xf] %v524
      %527 = vst [vmem:[#allocation6 + $0x38] sm:$0xf] %v525
      %v528 = vld [vmem:[#allocation3] sm:$0xff]
      %v529 = vld [vmem:[#allocation3 + $0x8] sm:$0xf]
      %v532 = vcombine.low %v528, %v528
      %v533 = vcombine.low %v529, %v529
      %534 = vrot.lane.b32.xlu0 %v532, 62
      %v535 = vpop.permute.xlu0 %534
      %536 = vrot.lane.b32.xlu0 %v528, 62
      %v537 = vpop.permute.xlu0 %536
      %538 = vrot.lane.b32.xlu0 %v533, 62
      %v539 = vpop.permute.xlu0 %538
      %vm540 = vcmask 506880
      %v541 = vsel %vm540, %v535, %v537
      %v542 = vsel %vm540, %v537, %v539
      %545 = vst [vmem:[#allocation6 + $0x30] sm:$0xf0] %v541
      %546 = vst [vmem:[#allocation6 + $0x38] sm:$0xf0] %v542
      %v547 = vld [vmem:[#allocation3] sm:$0xff]
      %v548 = vld [vmem:[#allocation3 + $0x8] sm:$0xf]
      %v551 = vcombine.high %v547, %v547
      %552 = vrot.lane.b32.xlu0 %v547, 60
      %v553 = vpop.permute.xlu0 %552
      %554 = vrot.lane.b32.xlu0 %v551, 60
      %v555 = vpop.permute.xlu0 %554
      %556 = vrot.lane.b32.xlu0 %v548, 60
      %v557 = vpop.permute.xlu0 %556
      %vm558 = vcmask 490496
      %v559 = vsel %vm558, %v553, %v555
      %v560 = vsel %vm558, %v555, %v557
      %v563 = vsel %vm418, %v559, 0.0
      %v564 = vsel %vm419, %v560, 0.0
      %565 = vst [vmem:[#allocation6 + $0x40] sm:$0xf] %v563
      %566 = vst [vmem:[#allocation6 + $0x48] sm:$0xf] %v564
      %v567 = vld [vmem:[%s1] sm:$0xf]
      %v568 = vld [vmem:[#allocation6] sm:$0xff]
      %v569 = vld [vmem:[#allocation6 + $0x8] sm:$0xff]
      %v570 = vld [vmem:[#allocation6 + $0x10] sm:$0xff]
      %v571 = vld [vmem:[#allocation6 + $0x18] sm:$0xff]
      %v572 = vld [vmem:[#allocation6 + $0x20] sm:$0xff]
      %v573 = vld [vmem:[#allocation6 + $0x28] sm:$0xff]
      %v574 = vld [vmem:[#allocation6 + $0x30] sm:$0xff]
      %v575 = vld [vmem:[#allocation6 + $0x38] sm:$0xff]
      %v576 = vld [vmem:[#allocation6 + $0x40] sm:$0xf]
      %v577 = vld [vmem:[#allocation6 + $0x48] sm:$0xf]
      %vm578 = vcmask 293888
      %v580 = vsel %vm578, %v567, 0
      %vm582 = vcmask 1043456
      %v584 = vsel %vm582, %v576, 0
      %v587 = vsel %vm582, %v577, 0
      %589 = vmatprep.subr.mxu0 %v569
      %590 = vmatpush1.msra.mxu0 %v568
      %591 = vmatprep.subr.mxu0 %v571
      %592 = vmatpush1.msra.mxu0 %v570
      %593 = vmatprep.subr.mxu0 %v573
      %594 = vmatpush1.msra.mxu0 %v572
      %595 = vmatprep.subr.mxu0 %v575
      %596 = vmatpush1.msra.mxu0 %v574
      %597 = vmatprep.subr.mxu0 %v587
      %598 = vmatpush1.msra.mxu0 %v584
      %599 = vmatprep.subr.mxu0 0.0
      %600 = vmatpush1.msra.mxu0 0.0
      %601 = vmatprep.subr.mxu0 0.0
      %602 = vmatpush1.msra.mxu0 0.0
      %603 = vmatprep.subr.mxu0 0.0
      %604 = vmatpush1.msra.mxu0 0.0
      %605 = vmatprep.subr.mxu0 0.0
      %606 = vmatpush1.msra.mxu0 0.0
      %607 = vmatprep.subr.mxu0 0.0
      %608 = vmatpush1.msra.mxu0 0.0
      %609 = vmatprep.subr.mxu0 0.0
      %610 = vmatpush1.msra.mxu0 0.0
      %611 = vmatprep.subr.mxu0 0.0
      %612 = vmatpush1.msra.mxu0 0.0
      %613 = vmatprep.subr.mxu0 0.0
      %614 = vmatpush1.msra.mxu0 0.0
      %615 = vmatprep.subr.mxu0 0.0
      %616 = vmatpush1.msra.mxu0 0.0
      %617 = vmatprep.subr.mxu0 0.0
      %618 = vmatpush1.msra.mxu0 0.0
      %619 = vmatprep.subr.mxu0 0.0
      %620 = vmatpush1.msra.mxu0 0.0
      %621 = vmatprep.subr.mxu0 0.0
      %622 = vmatpush1.msra.mxu0 0.0
      %623 = vmatprep.subr.mxu0 0.0
      %624 = vmatpush1.msra.mxu0 0.0
      %625 = vmatprep.subr.mxu0 0.0
      %626 = vmatpush1.msra.mxu0 0.0
      %627 = vmatprep.subr.mxu0 0.0
      %628 = vmatpush1.msra.mxu0 0.0
      %629 = vmatprep.subr.mxu0 0.0
      %630 = vmatpush1.msra.mxu0 0.0
      %631 = vmatprep.subr.mxu0 0.0
      %632 = vmatpush1.msra.mxu0 0.0
      %633 = vmatprep.subr.mxu0 0.0
      %634 = vmatpush1.msra.mxu0 0.0
      %635 = vmatprep.subr.mxu0 0.0
      %636 = vmatpush1.msra.mxu0 0.0
      %637 = vmatprep.subr.mxu0 0.0
      %638 = vmatpush1.msra.mxu0 0.0
      %639 = vmatprep.subr.mxu0 0.0
      %640 = vmatpush1.msra.mxu0 0.0
      %641 = vmatprep.subr.mxu0 0.0
      %642 = vmatpush1.msra.mxu0 0.0
      %643 = vmatprep.subr.mxu0 0.0
      %644 = vmatpush1.msra.mxu0 0.0
      %645 = vmatprep.subr.mxu0 0.0
      %646 = vmatpush1.msra.mxu0 0.0
      %647 = vmatprep.subr.mxu0 0.0
      %648 = vmatpush1.msra.mxu0 0.0
      %649 = vmatprep.subr.mxu0 0.0
      %650 = vmatpush1.msra.mxu0 0.0
      %651 = vmatprep.subr.mxu0 0.0
      %652 = vmatpush1.msra.mxu0 0.0
      %653 = vmatprep.mubr.f32.mxu0 0.0
      %654 = vmatmul.mubr.f32.gmra.mrb[0].mxu0 %v580
      %v655 = vpop.f32.mrb[0].mxu0
      %v656 = vadd.f32 0.0, %v655
      %v657 = vpop.f32.mrb[0].mxu0
      %v658 = vadd.f32 0.0, %v657
      %659 = vdwg.mxu0
      %v660 = vld [vmem:[%s2] sm:$0xf]
      %662 = vset.pattern.permute.xlu0 0
      %663 = vperm.xlu0 %662, %v660
      %v664 = vpop.permute.xlu0 %663
      %v666 = vmul.f32 %v656, %v664
      %v667 = vmul.f32 %v658, %v664
      %668 = vset.pattern.permute.xlu0 1
      %669 = vperm.xlu0 %668, %v660
      %v670 = vpop.permute.xlu0 %669
      %v672 = vadd.f32 %v666, %v670
      %v673 = vadd.f32 %v667, %v670
      %v674 = vmax.f32 %v672, 0.0
      %v675 = vmax.f32 %v673, 0.0
      %676 = vst [vmem:[#allocation2 + $0x10] sm:$0xf] %v674
      %677 = vst [vmem:[#allocation2 + $0x18] sm:$0xf] %v675
      %vm678 = vcmask 556032
      %679 = vst.msk [vmem:[#allocation4] sm:$0xff] %vm678, 0.0
      %vm680 = vcmask 1048096
      %681 = vst.msk [vmem:[#allocation4 + $0x10] sm:$0xff] %vm680, 0.0
      %vm682 = vcmask 64512
      %683 = vst.msk [vmem:[#allocation4 + $0x18] sm:$0xff] %vm682, 0.0
      %v684 = vld [vmem:[#allocation2 + $0x10] sm:$0xff]
      %v685 = vld [vmem:[#allocation2 + $0x18] sm:$0xff]
      %688 = vrot.lane.b32.xlu0 %v684, 68
      %v689 = vpop.permute.xlu0 %688
      %690 = vrot.lane.b32.xlu0 %v685, 68
      %v691 = vpop.permute.xlu0 %690
      %v692 = vsel %vm678, %v689, %v691
      %696 = vst.msk [vmem:[#allocation4] sm:$0xff] %vm680, %v689
      %697 = vst [vmem:[#allocation4 + $0x8] sm:$0xff] %v692
      %698 = vst.msk [vmem:[#allocation4 + $0x10] sm:$0xff] %vm678, %v691
      %v699 = vld [vmem:[#allocation4] sm:$0xff]
      %v700 = vld [vmem:[#allocation4 + $0x8] sm:$0xff]
      %vm701 = vcmp.ge.s32.totalorder %v385, 4
      %vm702 = vcmp.ge.s32.totalorder %v386, 4
      %v703 = vsel %vm701, %v699, 0.0
      %v704 = vsel %vm702, %v700, 0.0
      %705 = vst [vmem:[#allocation7] sm:$0xff] %v703
      %706 = vst [vmem:[#allocation7 + $0x8] sm:$0xff] %v704
      %v707 = vld [vmem:[#allocation4] sm:$0xff]
      %v708 = vld [vmem:[#allocation4 + $0x8] sm:$0xff]
      %v709 = vld [vmem:[#allocation4 + $0x10] sm:$0xff]
      %713 = vrot.lane.b32.xlu0 %v707, 124
      %v714 = vpop.permute.xlu0 %713
      %715 = vrot.lane.b32.xlu0 %v708, 124
      %v716 = vpop.permute.xlu0 %715
      %717 = vrot.lane.b32.xlu0 %v709, 124
      %v718 = vpop.permute.xlu0 %717
      %v719 = vsel %vm429, %v714, %v716
      %v720 = vsel %vm429, %v716, %v718
      %723 = vst [vmem:[#allocation7 + $0x10] sm:$0xff] %v719
      %724 = vst [vmem:[#allocation7 + $0x18] sm:$0xff] %v720
      %v725 = vld [vmem:[#allocation4] sm:$0xff]
      %v726 = vld [vmem:[#allocation4 + $0x8] sm:$0xff]
      %v727 = vld [vmem:[#allocation4 + $0x10] sm:$0xff]
      %vm728 = vcmp.lt.s32.totalorder %v385, 12
      %vm729 = vcmp.lt.s32.totalorder %v386, 12
      %733 = vrot.lane.b32.xlu0 %v725, 120
      %v734 = vpop.permute.xlu0 %733
      %735 = vrot.lane.b32.xlu0 %v726, 120
      %v736 = vpop.permute.xlu0 %735
      %737 = vrot.lane.b32.xlu0 %v727, 120
      %v738 = vpop.permute.xlu0 %737
      %vm739 = vcmask 982016
      %v740 = vsel %vm739, %v734, %v736
      %v741 = vsel %vm739, %v736, %v738
      %v744 = vsel %vm728, %v740, 0.0
      %v745 = vsel %vm729, %v741, 0.0
      %746 = vst [vmem:[#allocation7 + $0x20] sm:$0xff] %v744
      %747 = vst [vmem:[#allocation7 + $0x28] sm:$0xff] %v745
      %v748 = vld [vmem:[#allocation4] sm:$0xff]
      %v749 = vld [vmem:[#allocation4 + $0x8] sm:$0xff]
      %v750 = vld [vmem:[#allocation4 + $0x10] sm:$0xff]
      %754 = vrot.lane.b32.xlu0 %v748, 64
      %v755 = vpop.permute.xlu0 %754
      %756 = vrot.lane.b32.xlu0 %v749, 64
      %v757 = vpop.permute.xlu0 %756
      %758 = vrot.lane.b32.xlu0 %v750, 64
      %v759 = vpop.permute.xlu0 %758
      %v760 = vsel %vm519, %v755, %v757
      %v761 = vsel %vm519, %v757, %v759
      %v764 = vsel %vm701, %v760, 0.0
      %v765 = vsel %vm702, %v761, 0.0
      %766 = vst [vmem:[#allocation7 + $0x30] sm:$0xff] %v764
      %767 = vst [vmem:[#allocation7 + $0x38] sm:$0xff] %v765
      %v768 = vld [vmem:[#allocation4] sm:$0xff]
      %v769 = vld [vmem:[#allocation4 + $0x8] sm:$0xff]
      %v770 = vld [vmem:[#allocation4 + $0x10] sm:$0xff]
      %774 = vrot.lane.b32.xlu0 %v768, 60
      %v775 = vpop.permute.xlu0 %774
      %776 = vrot.lane.b32.xlu0 %v769, 60
      %v777 = vpop.permute.xlu0 %776
      %778 = vrot.lane.b32.xlu0 %v770, 60
      %v779 = vpop.permute.xlu0 %778
      %v780 = vsel %vm558, %v775, %v777
      %v781 = vsel %vm558, %v777, %v779
      %784 = vst [vmem:[#allocation7 + $0x40] sm:$0xff] %v780
      %785 = vst [vmem:[#allocation7 + $0x48] sm:$0xff] %v781
      %v786 = vld [vmem:[#allocation4] sm:$0xff]
      %v787 = vld [vmem:[#allocation4 + $0x8] sm:$0xff]
      %v788 = vld [vmem:[#allocation4 + $0x10] sm:$0xff]
      %792 = vrot.lane.b32.xlu0 %v786, 56
      %v793 = vpop.permute.xlu0 %792
      %794 = vrot.lane.b32.xlu0 %v787, 56
      %v795 = vpop.permute.xlu0 %794
      %796 = vrot.lane.b32.xlu0 %v788, 56
      %v797 = vpop.permute.xlu0 %796
      %vm798 = vcmask 457728
      %v799 = vsel %vm798, %v793, %v795
      %v800 = vsel %vm798, %v795, %v797
      %v803 = vsel %vm728, %v799, 0.0
      %v804 = vsel %vm729, %v800, 0.0
      %805 = vst [vmem:[#allocation7 + $0x50] sm:$0xff] %v803
      %806 = vst [vmem:[#allocation7 + $0x58] sm:$0xff] %v804
      %v807 = vld [vmem:[#allocation4 + $0x8] sm:$0xff]
      %v808 = vld [vmem:[#allocation4 + $0x10] sm:$0xff]
      %v809 = vsel %vm701, %v807, 0.0
      %v810 = vsel %vm702, %v808, 0.0
      %811 = vst [vmem:[#allocation7 + $0x60] sm:$0xff] %v809
      %812 = vst [vmem:[#allocation7 + $0x68] sm:$0xff] %v810
      %v813 = vld [vmem:[#allocation4 + $0x8] sm:$0xff]
      %v814 = vld [vmem:[#allocation4 + $0x10] sm:$0xff]
      %v815 = vld [vmem:[#allocation4 + $0x18] sm:$0xff]
      %819 = vrot.lane.b32.xlu0 %v813, 124
      %v820 = vpop.permute.xlu0 %819
      %821 = vrot.lane.b32.xlu0 %v814, 124
      %v822 = vpop.permute.xlu0 %821
      %823 = vrot.lane.b32.xlu0 %v815, 124
      %v824 = vpop.permute.xlu0 %823
      %v825 = vsel %vm429, %v820, %v822
      %v826 = vsel %vm429, %v822, %v824
      %829 = vst [vmem:[#allocation7 + $0x70] sm:$0xff] %v825
      %830 = vst [vmem:[#allocation7 + $0x78] sm:$0xff] %v826
      %v831 = vld [vmem:[#allocation4 + $0x8] sm:$0xff]
      %v832 = vld [vmem:[#allocation4 + $0x10] sm:$0xff]
      %v833 = vld [vmem:[#allocation4 + $0x18] sm:$0xff]
      %837 = vrot.lane.b32.xlu0 %v831, 120
      %v838 = vpop.permute.xlu0 %837
      %839 = vrot.lane.b32.xlu0 %v832, 120
      %v840 = vpop.permute.xlu0 %839
      %841 = vrot.lane.b32.xlu0 %v833, 120
      %v842 = vpop.permute.xlu0 %841
      %v843 = vsel %vm739, %v838, %v840
      %v844 = vsel %vm739, %v840, %v842
      %v847 = vsel %vm728, %v843, 0.0
      %v848 = vsel %vm729, %v844, 0.0
      %849 = vst [vmem:[#allocation7 + $0x80] sm:$0xff] %v847
      %850 = vst [vmem:[#allocation7 + $0x88] sm:$0xff] %v848
      %v851 = vld [vmem:[%s3] sm:$0xf]
      %v852 = vld [vmem:[#allocation7] sm:$0xff]
      %v853 = vld [vmem:[#allocation7 + $0x8] sm:$0xff]
      %v854 = vld [vmem:[#allocation7 + $0x10] sm:$0xff]
      %v855 = vld [vmem:[#allocation7 + $0x18] sm:$0xff]
      %v856 = vld [vmem:[#allocation7 + $0x20] sm:$0xff]
      %v857 = vld [vmem:[#allocation7 + $0x28] sm:$0xff]
      %v858 = vld [vmem:[#allocation7 + $0x30] sm:$0xff]
      %v859 = vld [vmem:[#allocation7 + $0x38] sm:$0xff]
      %v860 = vld [vmem:[#allocation7 + $0x40] sm:$0xff]
      %v861 = vld [vmem:[#allocation7 + $0x48] sm:$0xff]
      %v862 = vld [vmem:[#allocation7 + $0x50] sm:$0xff]
      %v863 = vld [vmem:[#allocation7 + $0x58] sm:$0xff]
      %v864 = vld [vmem:[#allocation7 + $0x60] sm:$0xff]
      %v865 = vld [vmem:[#allocation7 + $0x68] sm:$0xff]
      %v866 = vld [vmem:[#allocation7 + $0x70] sm:$0xff]
      %v867 = vld [vmem:[#allocation7 + $0x78] sm:$0xff]
      %v868 = vld [vmem:[#allocation7 + $0x80] sm:$0xff]
      %v869 = vld [vmem:[#allocation7 + $0x88] sm:$0xff]
      %vm870 = vcmask 588800
      %v872 = vsel %vm870, %v851, 0
      %874 = vmatprep.subr.mxu0 %v853
      %875 = vmatpush1.msra.mxu0 %v852
      %876 = vmatprep.subr.mxu0 %v855
      %877 = vmatpush1.msra.mxu0 %v854
      %878 = vmatprep.subr.mxu0 %v857
      %879 = vmatpush1.msra.mxu0 %v856
      %880 = vmatprep.subr.mxu0 %v859
      %881 = vmatpush1.msra.mxu0 %v858
      %882 = vmatprep.subr.mxu0 %v861
      %883 = vmatpush1.msra.mxu0 %v860
      %884 = vmatprep.subr.mxu0 %v863
      %885 = vmatpush1.msra.mxu0 %v862
      %886 = vmatprep.subr.mxu0 %v865
      %887 = vmatpush1.msra.mxu0 %v864
      %888 = vmatprep.subr.mxu0 %v867
      %889 = vmatpush1.msra.mxu0 %v866
      %890 = vmatprep.subr.mxu0 %v869
      %891 = vmatpush1.msra.mxu0 %v868
      %892 = vmatprep.subr.mxu0 0.0
      %893 = vmatpush1.msra.mxu0 0.0
      %894 = vmatprep.subr.mxu0 0.0
      %895 = vmatpush1.msra.mxu0 0.0
      %896 = vmatprep.subr.mxu0 0.0
      %897 = vmatpush1.msra.mxu0 0.0
      %898 = vmatprep.subr.mxu0 0.0
      %899 = vmatpush1.msra.mxu0 0.0
      %900 = vmatprep.subr.mxu0 0.0
      %901 = vmatpush1.msra.mxu0 0.0
      %902 = vmatprep.subr.mxu0 0.0
      %903 = vmatpush1.msra.mxu0 0.0
      %904 = vmatprep.subr.mxu0 0.0
      %905 = vmatpush1.msra.mxu0 0.0
      %906 = vmatprep.subr.mxu0 0.0
      %907 = vmatpush1.msra.mxu0 0.0
      %908 = vmatprep.subr.mxu0 0.0
      %909 = vmatpush1.msra.mxu0 0.0
      %910 = vmatprep.subr.mxu0 0.0
      %911 = vmatpush1.msra.mxu0 0.0
      %912 = vmatprep.subr.mxu0 0.0
      %913 = vmatpush1.msra.mxu0 0.0
      %914 = vmatprep.subr.mxu0 0.0
      %915 = vmatpush1.msra.mxu0 0.0
      %916 = vmatprep.subr.mxu0 0.0
      %917 = vmatpush1.msra.mxu0 0.0
      %918 = vmatprep.subr.mxu0 0.0
      %919 = vmatpush1.msra.mxu0 0.0
      %920 = vmatprep.subr.mxu0 0.0
      %921 = vmatpush1.msra.mxu0 0.0
      %922 = vmatprep.subr.mxu0 0.0
      %923 = vmatpush1.msra.mxu0 0.0
      %924 = vmatprep.subr.mxu0 0.0
      %925 = vmatpush1.msra.mxu0 0.0
      %926 = vmatprep.subr.mxu0 0.0
      %927 = vmatpush1.msra.mxu0 0.0
      %928 = vmatprep.subr.mxu0 0.0
      %929 = vmatpush1.msra.mxu0 0.0
      %930 = vmatprep.subr.mxu0 0.0
      %931 = vmatpush1.msra.mxu0 0.0
      %932 = vmatprep.subr.mxu0 0.0
      %933 = vmatpush1.msra.mxu0 0.0
      %934 = vmatprep.subr.mxu0 0.0
      %935 = vmatpush1.msra.mxu0 0.0
      %936 = vmatprep.subr.mxu0 0.0
      %937 = vmatpush1.msra.mxu0 0.0
      %938 = vmatprep.mubr.f32.mxu0 0.0
      %939 = vmatmul.mubr.f32.gmra.mrb[0].mxu0 %v872
      %v940 = vpop.f32.mrb[0].mxu0
      %v941 = vadd.f32 0.0, %v940
      %v942 = vpop.f32.mrb[0].mxu0
      %v943 = vadd.f32 0.0, %v942
      %944 = vdwg.mxu0
      %v945 = vld [vmem:[%s4] sm:$0xf]
      %947 = vset.pattern.permute.xlu0 0
      %948 = vperm.xlu0 %947, %v945
      %v949 = vpop.permute.xlu0 %948
      %v951 = vmul.f32 %v941, %v949
      %v952 = vmul.f32 %v943, %v949
      %953 = vset.pattern.permute.xlu0 1
      %954 = vperm.xlu0 %953, %v945
      %v955 = vpop.permute.xlu0 %954
      %v957 = vadd.f32 %v951, %v955
      %v958 = vadd.f32 %v952, %v955
      %v959 = vmax.f32 %v957, 0.0
      %v960 = vmax.f32 %v958, 0.0
      %v963 = vrot.slane %v959, 4
      %v964 = vrot.slane %v960, 4
      %967 = vst [vmem:[#allocation2] sm:$0xf0] %v963
      %968 = vst [vmem:[#allocation2 + $0x8] sm:$0xf0] %v964
      %vm969 = vcmask 834560
      %970 = vst.msk [vmem:[#allocation5] sm:$0xff] %vm969, 0.0
      %vm971 = vcmask 830464
      %972 = vst.msk [vmem:[#allocation5 + $0x20] sm:$0xf] %vm971, 0.0
      %vm973 = vcmask 1048368
      %974 = vst.msk [vmem:[#allocation5 + $0x10] sm:$0xff] %vm973, 0.0
      %vm975 = vcmask 621568
      %976 = vst.msk [vmem:[#allocation5 + $0x18] sm:$0xff] %vm975, 0.0
      %vm977 = vcmask 1044272
      %978 = vst.msk [vmem:[#allocation5 + $0x30] sm:$0xf] %vm977, 0.0
      %vm979 = vcmask 617472
      %980 = vst.msk [vmem:[#allocation5 + $0x38] sm:$0xf] %vm979, 0.0
      %v981 = vld [vmem:[#allocation2] sm:$0xf0]
      %v982 = vld [vmem:[#allocation2 + $0x8] sm:$0xf0]
      %v983 = vld [vmem:[#allocation2 + $0x10] sm:$0xff]
      %v984 = vld [vmem:[#allocation2 + $0x18] sm:$0xff]
      %v989 = vrot.slane %v981, 4
      %v990 = vrot.slane %v983, 4
      %v991 = vsel %vm582, %v989, %v990
      %v992 = vrot.slane %v982, 4
      %v993 = vrot.slane %v984, 4
      %v994 = vsel %vm582, %v992, %v993
      %995 = vrot.lane.b32.xlu0 %v991, 102
      %v996 = vpop.permute.xlu0 %995
      %997 = vrot.lane.b32.xlu0 %v994, 102
      %v998 = vpop.permute.xlu0 %997
      %999 = vrot.lane.b32.xlu0 %v990, 102
      %v1000 = vpop.permute.xlu0 %999
      %1001 = vrot.lane.b32.xlu0 %v993, 102
      %v1002 = vpop.permute.xlu0 %1001
      %v1003 = vsel %vm969, %v996, %v998
      %v1004 = vsel %vm969, %v1000, %v1002
      %1011 = vst.msk [vmem:[#allocation5] sm:$0xff] %vm973, %v996
      %1012 = vst [vmem:[#allocation5 + $0x8] sm:$0xff] %v1003
      %1013 = vst.msk [vmem:[#allocation5 + $0x10] sm:$0xff] %vm969, %v998
      %1014 = vst.msk [vmem:[#allocation5 + $0x20] sm:$0xf] %vm977, %v1000
      %1015 = vst [vmem:[#allocation5 + $0x28] sm:$0xf] %v1004
      %1016 = vst.msk [vmem:[#allocation5 + $0x30] sm:$0xf] %vm971, %v1002
      %v1017 = vld [vmem:[#allocation5] sm:$0xff]
      %v1018 = vld [vmem:[#allocation5 + $0x8] sm:$0xff]
      %v1019 = vld [vmem:[#allocation5 + $0x20] sm:$0xf]
      %v1020 = vld [vmem:[#allocation5 + $0x28] sm:$0xf]
      %vm1021 = vcmp.ge.s32.totalorder %v385, 6
      %vm1022 = vcmp.ge.s32.totalorder %v386, 6
      %v1023 = vsel %vm1021, %v1017, 0.0
      %v1024 = vsel %vm1022, %v1018, 0.0
      %v1025 = vsel %vm1021, %v1019, 0.0
      %v1026 = vsel %vm1022, %v1020, 0.0
      %1027 = vst [vmem:[#allocation8] sm:$0xff] %v1023
      %1028 = vst [vmem:[#allocation8 + $0x8] sm:$0xff] %v1024
      %1029 = vst [vmem:[#allocation8 + $0x10] sm:$0xf] %v1025
      %1030 = vst [vmem:[#allocation8 + $0x18] sm:$0xf] %v1026
      %v1031 = vld [vmem:[#allocation5] sm:$0xff]
      %v1032 = vld [vmem:[#allocation5 + $0x8] sm:$0xff]
      %v1033 = vld [vmem:[#allocation5 + $0x10] sm:$0xff]
      %v1034 = vld [vmem:[#allocation5 + $0x20] sm:$0xf]
      %v1035 = vld [vmem:[#allocation5 + $0x28] sm:$0xf]
      %v1036 = vld [vmem:[#allocation5 + $0x30] sm:$0xf]
      %v1043 = vrot.slane %v1031, 4
      %v1044 = vrot.slane %v1032, 4
      %v1045 = vrot.slane %v1033, 4
      %v1046 = vrot.slane %v1034, 4
      %v1047 = vsel %vm582, %v1043, %v1046
      %v1048 = vrot.slane %v1035, 4
      %v1049 = vsel %vm582, %v1044, %v1048
      %v1050 = vrot.slane %v1036, 4
      %v1051 = vsel %vm582, %v1045, %v1050
      %1052 = vrot.lane.b32.xlu0 %v1043, 122
      %v1053 = vpop.permute.xlu0 %1052
      %1054 = vrot.lane.b32.xlu0 %v1044, 122
      %v1055 = vpop.permute.xlu0 %1054
      %1056 = vrot.lane.b32.xlu0 %v1045, 122
      %v1057 = vpop.permute.xlu0 %1056
      %1058 = vrot.lane.b32.xlu0 %v1047, 122
      %v1059 = vpop.permute.xlu0 %1058
      %1060 = vrot.lane.b32.xlu0 %v1049, 122
      %v1061 = vpop.permute.xlu0 %1060
      %1062 = vrot.lane.b32.xlu0 %v1051, 122
      %v1063 = vpop.permute.xlu0 %1062
      %vm1064 = vcmask 998400
      %v1065 = vsel %vm1064, %v1053, %v1055
      %v1066 = vsel %vm1064, %v1055, %v1057
      %v1067 = vsel %vm1064, %v1059, %v1061
      %v1068 = vsel %vm1064, %v1061, %v1063
      %1073 = vst [vmem:[#allocation8 + $0x10] sm:$0xf0] %v1065
      %1074 = vst [vmem:[#allocation8 + $0x18] sm:$0xf0] %v1066
      %1075 = vst [vmem:[#allocation8 + $0x20] sm:$0xff] %v1067
      %1076 = vst [vmem:[#allocation8 + $0x28] sm:$0xff] %v1068
      %v1077 = vld [vmem:[#allocation5] sm:$0xff]
      %v1078 = vld [vmem:[#allocation5 + $0x8] sm:$0xff]
      %v1079 = vld [vmem:[#allocation5 + $0x10] sm:$0xff]
      %v1080 = vld [vmem:[#allocation5 + $0x20] sm:$0xf]
      %v1081 = vld [vmem:[#allocation5 + $0x28] sm:$0xf]
      %v1082 = vld [vmem:[#allocation5 + $0x30] sm:$0xf]
      %vm1083 = vcmp.lt.s32.totalorder %v385, 10
      %vm1084 = vcmp.lt.s32.totalorder %v386, 10
      %1091 = vrot.lane.b32.xlu0 %v1077, 116
      %v1092 = vpop.permute.xlu0 %1091
      %1093 = vrot.lane.b32.xlu0 %v1078, 116
      %v1094 = vpop.permute.xlu0 %1093
      %1095 = vrot.lane.b32.xlu0 %v1079, 116
      %v1096 = vpop.permute.xlu0 %1095
      %1097 = vrot.lane.b32.xlu0 %v1080, 116
      %v1098 = vpop.permute.xlu0 %1097
      %1099 = vrot.lane.b32.xlu0 %v1081, 116
      %v1100 = vpop.permute.xlu0 %1099
      %1101 = vrot.lane.b32.xlu0 %v1082, 116
      %v1102 = vpop.permute.xlu0 %1101
      %vm1103 = vcmask 949248
      %v1104 = vsel %vm1103, %v1092, %v1094
      %v1105 = vsel %vm1103, %v1094, %v1096
      %v1106 = vsel %vm1103, %v1098, %v1100
      %v1107 = vsel %vm1103, %v1100, %v1102
      %v1112 = vsel %vm1083, %v1104, 0.0
      %v1113 = vsel %vm1084, %v1105, 0.0
      %v1114 = vsel %vm1083, %v1106, 0.0
      %v1115 = vsel %vm1084, %v1107, 0.0
      %1116 = vst [vmem:[#allocation8 + $0x30] sm:$0xff] %v1112
      %1117 = vst [vmem:[#allocation8 + $0x38] sm:$0xff] %v1113
      %1118 = vst [vmem:[#allocation8 + $0x40] sm:$0xf] %v1114
      %1119 = vst [vmem:[#allocation8 + $0x48] sm:$0xf] %v1115
      %v1120 = vld [vmem:[#allocation5] sm:$0xff]
      %v1121 = vld [vmem:[#allocation5 + $0x8] sm:$0xff]
      %v1122 = vld [vmem:[#allocation5 + $0x10] sm:$0xff]
      %v1123 = vld [vmem:[#allocation5 + $0x20] sm:$0xf]
      %v1124 = vld [vmem:[#allocation5 + $0x28] sm:$0xf]
      %v1125 = vld [vmem:[#allocation5 + $0x30] sm:$0xf]
      %1132 = vrot.lane.b32.xlu0 %v1120, 32
      %v1133 = vpop.permute.xlu0 %1132
      %1134 = vrot.lane.b32.xlu0 %v1121, 32
      %v1135 = vpop.permute.xlu0 %1134
      %1136 = vrot.lane.b32.xlu0 %v1122, 32
      %v1137 = vpop.permute.xlu0 %1136
      %1138 = vrot.lane.b32.xlu0 %v1123, 32
      %v1139 = vpop.permute.xlu0 %1138
      %1140 = vrot.lane.b32.xlu0 %v1124, 32
      %v1141 = vpop.permute.xlu0 %1140
      %1142 = vrot.lane.b32.xlu0 %v1125, 32
      %v1143 = vpop.permute.xlu0 %1142
      %vm1144 = vcmask 261120
      %v1145 = vsel %vm1144, %v1133, %v1135
      %v1146 = vsel %vm1144, %v1135, %v1137
      %v1147 = vsel %vm1144, %v1139, %v1141
      %v1148 = vsel %vm1144, %v1141, %v1143
      %v1153 = vsel %vm1021, %v1145, 0.0
      %v1154 = vsel %vm1022, %v1146, 0.0
      %v1155 = vsel %vm1021, %v1147, 0.0
      %v1156 = vsel %vm1022, %v1148, 0.0
      %v1161 = vrot.slane %v1153, 4
      %v1162 = vrot.slane %v1154, 4
      %v1163 = vrot.slane %v1155, 4
      %v1164 = vsel %vm582, %v1161, %v1163
      %v1165 = vrot.slane %v1156, 4
      %v1166 = vsel %vm582, %v1162, %v1165
      %1171 = vst [vmem:[#allocation8 + $0x40] sm:$0xf0] %v1161
      %1172 = vst [vmem:[#allocation8 + $0x48] sm:$0xf0] %v1162
      %1173 = vst [vmem:[#allocation8 + $0x50] sm:$0xff] %v1164
      %1174 = vst [vmem:[#allocation8 + $0x58] sm:$0xff] %v1166
      %v1175 = vld [vmem:[#allocation5] sm:$0xff]
      %v1176 = vld [vmem:[#allocation5 + $0x8] sm:$0xff]
      %v1177 = vld [vmem:[#allocation5 + $0x10] sm:$0xff]
      %v1178 = vld [vmem:[#allocation5 + $0x20] sm:$0xf]
      %v1179 = vld [vmem:[#allocation5 + $0x28] sm:$0xf]
      %v1180 = vld [vmem:[#allocation5 + $0x30] sm:$0xf]
      %1187 = vrot.lane.b32.xlu0 %v1175, 26
      %v1188 = vpop.permute.xlu0 %1187
      %1189 = vrot.lane.b32.xlu0 %v1176, 26
      %v1190 = vpop.permute.xlu0 %1189
      %1191 = vrot.lane.b32.xlu0 %v1177, 26
      %v1192 = vpop.permute.xlu0 %1191
      %1193 = vrot.lane.b32.xlu0 %v1178, 26
      %v1194 = vpop.permute.xlu0 %1193
      %1195 = vrot.lane.b32.xlu0 %v1179, 26
      %v1196 = vpop.permute.xlu0 %1195
      %1197 = vrot.lane.b32.xlu0 %v1180, 26
      %v1198 = vpop.permute.xlu0 %1197
      %vm1199 = vcmask 211968
      %v1200 = vsel %vm1199, %v1188, %v1190
      %v1201 = vsel %vm1199, %v1190, %v1192
      %v1202 = vsel %vm1199, %v1194, %v1196
      %v1203 = vsel %vm1199, %v1196, %v1198
      %1208 = vst [vmem:[#allocation8 + $0x60] sm:$0xff] %v1200
      %1209 = vst [vmem:[#allocation8 + $0x68] sm:$0xff] %v1201
      %1210 = vst [vmem:[#allocation8 + $0x70] sm:$0xf] %v1202
      %1211 = vst [vmem:[#allocation8 + $0x78] sm:$0xf] %v1203
      %v1212 = vld [vmem:[#allocation5] sm:$0xff]
      %v1213 = vld [vmem:[#allocation5 + $0x8] sm:$0xff]
      %v1214 = vld [vmem:[#allocation5 + $0x10] sm:$0xff]
      %v1215 = vld [vmem:[#allocation5 + $0x20] sm:$0xf]
      %v1216 = vld [vmem:[#allocation5 + $0x28] sm:$0xf]
      %v1217 = vld [vmem:[#allocation5 + $0x30] sm:$0xf]
      %1224 = vrot.lane.b32.xlu0 %v1212, 20
      %v1225 = vpop.permute.xlu0 %1224
      %1226 = vrot.lane.b32.xlu0 %v1213, 20
      %v1227 = vpop.permute.xlu0 %1226
      %1228 = vrot.lane.b32.xlu0 %v1214, 20
      %v1229 = vpop.permute.xlu0 %1228
      %1230 = vrot.lane.b32.xlu0 %v1215, 20
      %v1231 = vpop.permute.xlu0 %1230
      %1232 = vrot.lane.b32.xlu0 %v1216, 20
      %v1233 = vpop.permute.xlu0 %1232
      %1234 = vrot.lane.b32.xlu0 %v1217, 20
      %v1235 = vpop.permute.xlu0 %1234
      %vm1236 = vcmask 162816
      %v1237 = vsel %vm1236, %v1225, %v1227
      %v1238 = vsel %vm1236, %v1227, %v1229
      %v1239 = vsel %vm1236, %v1231, %v1233
      %v1240 = vsel %vm1236, %v1233, %v1235
      %v1245 = vsel %vm1083, %v1237, 0.0
      %v1246 = vsel %vm1084, %v1238, 0.0
      %v1247 = vsel %vm1083, %v1239, 0.0
      %v1248 = vsel %vm1084, %v1240, 0.0
      %v1253 = vrot.slane %v1245, 4
      %v1254 = vrot.slane %v1246, 4
      %v1255 = vrot.slane %v1247, 4
      %v1256 = vsel %vm582, %v1253, %v1255
      %v1257 = vrot.slane %v1248, 4
      %v1258 = vsel %vm582, %v1254, %v1257
      %1263 = vst [vmem:[#allocation8 + $0x70] sm:$0xf0] %v1253
      %1264 = vst [vmem:[#allocation8 + $0x78] sm:$0xf0] %v1254
      %1265 = vst [vmem:[#allocation8 + $0x80] sm:$0xff] %v1256
      %1266 = vst [vmem:[#allocation8 + $0x88] sm:$0xff] %v1258
      %v1267 = vld [vmem:[#allocation5 + $0x8] sm:$0xff]
      %v1268 = vld [vmem:[#allocation5 + $0x10] sm:$0xff]
      %v1269 = vld [vmem:[#allocation5 + $0x18] sm:$0xff]
      %v1270 = vld [vmem:[#allocation5 + $0x28] sm:$0xf]
      %v1271 = vld [vmem:[#allocation5 + $0x30] sm:$0xf]
      %v1272 = vld [vmem:[#allocation5 + $0x38] sm:$0xf]
      %1279 = vrot.lane.b32.xlu0 %v1267, 64
      %v1280 = vpop.permute.xlu0 %1279
      %1281 = vrot.lane.b32.xlu0 %v1268, 64
      %v1282 = vpop.permute.xlu0 %1281
      %1283 = vrot.lane.b32.xlu0 %v1269, 64
      %v1284 = vpop.permute.xlu0 %1283
      %1285 = vrot.lane.b32.xlu0 %v1270, 64
      %v1286 = vpop.permute.xlu0 %1285
      %1287 = vrot.lane.b32.xlu0 %v1271, 64
      %v1288 = vpop.permute.xlu0 %1287
      %1289 = vrot.lane.b32.xlu0 %v1272, 64
      %v1290 = vpop.permute.xlu0 %1289
      %v1291 = vsel %vm519, %v1280, %v1282
      %v1292 = vsel %vm519, %v1282, %v1284
      %v1293 = vsel %vm519, %v1286, %v1288
      %v1294 = vsel %vm519, %v1288, %v1290
      %v1299 = vsel %vm1021, %v1291, 0.0
      %v1300 = vsel %vm1022, %v1292, 0.0
      %v1301 = vsel %vm1021, %v1293, 0.0
      %v1302 = vsel %vm1022, %v1294, 0.0
      %1303 = vst [vmem:[#allocation8 + $0x90] sm:$0xff] %v1299
      %1304 = vst [vmem:[#allocation8 + $0x98] sm:$0xff] %v1300
      %1305 = vst [vmem:[#allocation8 + $0xa0] sm:$0xf] %v1301
      %1306 = vst [vmem:[#allocation8 + $0xa8] sm:$0xf] %v1302
      %v1307 = vld [vmem:[#allocation5 + $0x8] sm:$0xff]
      %v1308 = vld [vmem:[#allocation5 + $0x10] sm:$0xff]
      %v1309 = vld [vmem:[#allocation5 + $0x18] sm:$0xff]
      %v1310 = vld [vmem:[#allocation5 + $0x28] sm:$0xf]
      %v1311 = vld [vmem:[#allocation5 + $0x30] sm:$0xf]
      %v1312 = vld [vmem:[#allocation5 + $0x38] sm:$0xf]
      %v1319 = vrot.slane %v1307, 4
      %v1320 = vrot.slane %v1308, 4
      %v1321 = vrot.slane %v1309, 4
      %v1322 = vrot.slane %v1310, 4
      %v1323 = vsel %vm582, %v1319, %v1322
      %v1324 = vrot.slane %v1311, 4
      %v1325 = vsel %vm582, %v1320, %v1324
      %v1326 = vrot.slane %v1312, 4
      %v1327 = vsel %vm582, %v1321, %v1326
      %1328 = vrot.lane.b32.xlu0 %v1319, 58
      %v1329 = vpop.permute.xlu0 %1328
      %1330 = vrot.lane.b32.xlu0 %v1320, 58
      %v1331 = vpop.permute.xlu0 %1330
      %1332 = vrot.lane.b32.xlu0 %v1321, 58
      %v1333 = vpop.permute.xlu0 %1332
      %1334 = vrot.lane.b32.xlu0 %v1323, 58
      %v1335 = vpop.permute.xlu0 %1334
      %1336 = vrot.lane.b32.xlu0 %v1325, 58
      %v1337 = vpop.permute.xlu0 %1336
      %1338 = vrot.lane.b32.xlu0 %v1327, 58
      %v1339 = vpop.permute.xlu0 %1338
      %vm1340 = vcmask 474112
      %v1341 = vsel %vm1340, %v1329, %v1331
      %v1342 = vsel %vm1340, %v1331, %v1333
      %v1343 = vsel %vm1340, %v1335, %v1337
      %v1344 = vsel %vm1340, %v1337, %v1339
      %1349 = vst [vmem:[#allocation8 + $0xa0] sm:$0xf0] %v1341
      %1350 = vst [vmem:[#allocation8 + $0xa8] sm:$0xf0] %v1342
      %1351 = vst [vmem:[#allocation8 + $0xb0] sm:$0xff] %v1343
      %1352 = vst [vmem:[#allocation8 + $0xb8] sm:$0xff] %v1344
      %v1353 = vld [vmem:[#allocation5 + $0x8] sm:$0xff]
      %v1354 = vld [vmem:[#allocation5 + $0x10] sm:$0xff]
      %v1355 = vld [vmem:[#allocation5 + $0x18] sm:$0xff]
      %v1356 = vld [vmem:[#allocation5 + $0x28] sm:$0xf]
      %v1357 = vld [vmem:[#allocation5 + $0x30] sm:$0xf]
      %v1358 = vld [vmem:[#allocation5 + $0x38] sm:$0xf]
      %1365 = vrot.lane.b32.xlu0 %v1353, 52
      %v1366 = vpop.permute.xlu0 %1365
      %1367 = vrot.lane.b32.xlu0 %v1354, 52
      %v1368 = vpop.permute.xlu0 %1367
      %1369 = vrot.lane.b32.xlu0 %v1355, 52
      %v1370 = vpop.permute.xlu0 %1369
      %1371 = vrot.lane.b32.xlu0 %v1356, 52
      %v1372 = vpop.permute.xlu0 %1371
      %1373 = vrot.lane.b32.xlu0 %v1357, 52
      %v1374 = vpop.permute.xlu0 %1373
      %1375 = vrot.lane.b32.xlu0 %v1358, 52
      %v1376 = vpop.permute.xlu0 %1375
      %vm1377 = vcmask 424960
      %v1378 = vsel %vm1377, %v1366, %v1368
      %v1379 = vsel %vm1377, %v1368, %v1370
      %v1380 = vsel %vm1377, %v1372, %v1374
      %v1381 = vsel %vm1377, %v1374, %v1376
      %v1386 = vsel %vm1083, %v1378, 0.0
      %v1387 = vsel %vm1084, %v1379, 0.0
      %v1388 = vsel %vm1083, %v1380, 0.0
      %v1389 = vsel %vm1084, %v1381, 0.0
      %1390 = vst [vmem:[#allocation8 + $0xc0] sm:$0xff] %v1386
      %1391 = vst [vmem:[#allocation8 + $0xc8] sm:$0xff] %v1387
      %1392 = vst [vmem:[#allocation8 + $0xd0] sm:$0xf] %v1388
      %1393 = vst [vmem:[#allocation8 + $0xd8] sm:$0xf] %v1389
      %v1394 = vld [vmem:[%s5] sm:$0xf]
      %v1395 = vld [vmem:[#allocation8] sm:$0xff]
      %v1396 = vld [vmem:[#allocation8 + $0x8] sm:$0xff]
      %v1397 = vld [vmem:[#allocation8 + $0x10] sm:$0xff]
      %v1398 = vld [vmem:[#allocation8 + $0x18] sm:$0xff]
      %v1399 = vld [vmem:[#allocation8 + $0x20] sm:$0xff]
      %v1400 = vld [vmem:[#allocation8 + $0x28] sm:$0xff]
      %v1401 = vld [vmem:[#allocation8 + $0x30] sm:$0xff]
      %v1402 = vld [vmem:[#allocation8 + $0x38] sm:$0xff]
      %v1403 = vld [vmem:[#allocation8 + $0x40] sm:$0xff]
      %v1404 = vld [vmem:[#allocation8 + $0x48] sm:$0xff]
      %v1405 = vld [vmem:[#allocation8 + $0x50] sm:$0xff]
      %v1406 = vld [vmem:[#allocation8 + $0x58] sm:$0xff]
      %v1407 = vld [vmem:[#allocation8 + $0x60] sm:$0xff]
      %v1408 = vld [vmem:[#allocation8 + $0x68] sm:$0xff]
      %v1409 = vld [vmem:[#allocation8 + $0x70] sm:$0xff]
      %v1410 = vld [vmem:[#allocation8 + $0x78] sm:$0xff]
      %v1411 = vld [vmem:[#allocation8 + $0x80] sm:$0xff]
      %v1412 = vld [vmem:[#allocation8 + $0x88] sm:$0xff]
      %v1413 = vld [vmem:[#allocation8 + $0x90] sm:$0xff]
      %v1414 = vld [vmem:[#allocation8 + $0x98] sm:$0xff]
      %v1415 = vld [vmem:[#allocation8 + $0xa0] sm:$0xff]
      %v1416 = vld [vmem:[#allocation8 + $0xa8] sm:$0xff]
      %v1417 = vld [vmem:[#allocation8 + $0xb0] sm:$0xff]
      %v1418 = vld [vmem:[#allocation8 + $0xb8] sm:$0xff]
      %v1419 = vld [vmem:[#allocation8 + $0xc0] sm:$0xff]
      %v1420 = vld [vmem:[#allocation8 + $0xc8] sm:$0xff]
      %v1421 = vld [vmem:[#allocation8 + $0xd0] sm:$0xf]
      %v1422 = vld [vmem:[#allocation8 + $0xd8] sm:$0xf]
      %vm1423 = vcmask 883712
      %v1425 = vsel %vm1423, %v1394, 0
      %v1428 = vsel %vm582, %v1421, 0
      %v1431 = vsel %vm582, %v1422, 0
      %1433 = vmatprep.subr.mxu0 %v1396
      %1434 = vmatpush1.msra.mxu0 %v1395
      %1435 = vmatprep.subr.mxu0 %v1398
      %1436 = vmatpush1.msra.mxu0 %v1397
      %1437 = vmatprep.subr.mxu0 %v1400
      %1438 = vmatpush1.msra.mxu0 %v1399
      %1439 = vmatprep.subr.mxu0 %v1402
      %1440 = vmatpush1.msra.mxu0 %v1401
      %1441 = vmatprep.subr.mxu0 %v1404
      %1442 = vmatpush1.msra.mxu0 %v1403
      %1443 = vmatprep.subr.mxu0 %v1406
      %1444 = vmatpush1.msra.mxu0 %v1405
      %1445 = vmatprep.subr.mxu0 %v1408
      %1446 = vmatpush1.msra.mxu0 %v1407
      %1447 = vmatprep.subr.mxu0 %v1410
      %1448 = vmatpush1.msra.mxu0 %v1409
      %1449 = vmatprep.subr.mxu0 %v1412
      %1450 = vmatpush1.msra.mxu0 %v1411
      %1451 = vmatprep.subr.mxu0 %v1414
      %1452 = vmatpush1.msra.mxu0 %v1413
      %1453 = vmatprep.subr.mxu0 %v1416
      %1454 = vmatpush1.msra.mxu0 %v1415
      %1455 = vmatprep.subr.mxu0 %v1418
      %1456 = vmatpush1.msra.mxu0 %v1417
      %1457 = vmatprep.subr.mxu0 %v1420
      %1458 = vmatpush1.msra.mxu0 %v1419
      %1459 = vmatprep.subr.mxu0 %v1431
      %1460 = vmatpush1.msra.mxu0 %v1428
      %1461 = vmatprep.subr.mxu0 0.0
      %1462 = vmatpush1.msra.mxu0 0.0
      %1463 = vmatprep.subr.mxu0 0.0
      %1464 = vmatpush1.msra.mxu0 0.0
      %1465 = vmatprep.subr.mxu0 0.0
      %1466 = vmatpush1.msra.mxu0 0.0
      %1467 = vmatprep.subr.mxu0 0.0
      %1468 = vmatpush1.msra.mxu0 0.0
      %1469 = vmatprep.subr.mxu0 0.0
      %1470 = vmatpush1.msra.mxu0 0.0
      %1471 = vmatprep.subr.mxu0 0.0
      %1472 = vmatpush1.msra.mxu0 0.0
      %1473 = vmatprep.subr.mxu0 0.0
      %1474 = vmatpush1.msra.mxu0 0.0
      %1475 = vmatprep.subr.mxu0 0.0
      %1476 = vmatpush1.msra.mxu0 0.0
      %1477 = vmatprep.subr.mxu0 0.0
      %1478 = vmatpush1.msra.mxu0 0.0
      %1479 = vmatprep.subr.mxu0 0.0
      %1480 = vmatpush1.msra.mxu0 0.0
      %1481 = vmatprep.subr.mxu0 0.0
      %1482 = vmatpush1.msra.mxu0 0.0
      %1483 = vmatprep.subr.mxu0 0.0
      %1484 = vmatpush1.msra.mxu0 0.0
      %1485 = vmatprep.subr.mxu0 0.0
      %1486 = vmatpush1.msra.mxu0 0.0
      %1487 = vmatprep.subr.mxu0 0.0
      %1488 = vmatpush1.msra.mxu0 0.0
      %1489 = vmatprep.subr.mxu0 0.0
      %1490 = vmatpush1.msra.mxu0 0.0
      %1491 = vmatprep.subr.mxu0 0.0
      %1492 = vmatpush1.msra.mxu0 0.0
      %1493 = vmatprep.subr.mxu0 0.0
      %1494 = vmatpush1.msra.mxu0 0.0
      %1495 = vmatprep.subr.mxu0 0.0
      %1496 = vmatpush1.msra.mxu0 0.0
      %1497 = vmatprep.mubr.f32.mxu0 0.0
      %1498 = vmatmul.mubr.f32.gmra.mrb[0].mxu0 %v1425
      %v1499 = vpop.f32.mrb[0].mxu0
      %v1500 = vadd.f32 0.0, %v1499
      %v1501 = vpop.f32.mrb[0].mxu0
      %v1502 = vadd.f32 0.0, %v1501
      %1503 = vdwg.mxu0
      %v1504 = vld [vmem:[%s6] sm:$0xf]
      %1506 = vset.pattern.permute.xlu0 0
      %1507 = vperm.xlu0 %1506, %v1504
      %v1508 = vpop.permute.xlu0 %1507
      %v1510 = vmul.f32 %v1500, %v1508
      %v1511 = vmul.f32 %v1502, %v1508
      %1512 = vset.pattern.permute.xlu0 1
      %1513 = vperm.xlu0 %1512, %v1504
      %v1514 = vpop.permute.xlu0 %1513
      %v1516 = vadd.f32 %v1510, %v1514
      %v1517 = vadd.f32 %v1511, %v1514
      %v1518 = vmax.f32 %v1516, 0.0
      %v1519 = vmax.f32 %v1517, 0.0
      %1520 = vst [vmem:[#allocation2] sm:$0xf] %v1518
      %1521 = vst [vmem:[#allocation2 + $0x8] sm:$0xf] %v1519
      %v1522 = vld [vmem:[%s7] sm:$0xf]
      %v1523 = vld [vmem:[#allocation2] sm:$0xff]
      %v1524 = vld [vmem:[#allocation2 + $0x8] sm:$0xff]
      %v1525 = vld [vmem:[#allocation2 + $0x10] sm:$0xff]
      %v1526 = vld [vmem:[#allocation2 + $0x18] sm:$0xff]
      %vm1527 = vcmask 130048
      %v1529 = vsel %vm1527, %v1522, 0
      %1531 = vmatprep.subr.mxu0 %v1524
      %1532 = vmatpush1.msra.mxu0 %v1523
      %1533 = vmatprep.subr.mxu0 %v1526
      %1534 = vmatpush1.msra.mxu0 %v1525
      %1535 = vmatprep.subr.mxu0 0.0
      %1536 = vmatpush1.msra.mxu0 0.0
      %1537 = vmatprep.subr.mxu0 0.0
      %1538 = vmatpush1.msra.mxu0 0.0
      %1539 = vmatprep.subr.mxu0 0.0
      %1540 = vmatpush1.msra.mxu0 0.0
      %1541 = vmatprep.subr.mxu0 0.0
      %1542 = vmatpush1.msra.mxu0 0.0
      %1543 = vmatprep.subr.mxu0 0.0
      %1544 = vmatpush1.msra.mxu0 0.0
      %1545 = vmatprep.subr.mxu0 0.0
      %1546 = vmatpush1.msra.mxu0 0.0
      %1547 = vmatprep.subr.mxu0 0.0
      %1548 = vmatpush1.msra.mxu0 0.0
      %1549 = vmatprep.subr.mxu0 0.0
      %1550 = vmatpush1.msra.mxu0 0.0
      %1551 = vmatprep.subr.mxu0 0.0
      %1552 = vmatpush1.msra.mxu0 0.0
      %1553 = vmatprep.subr.mxu0 0.0
      %1554 = vmatpush1.msra.mxu0 0.0
      %1555 = vmatprep.subr.mxu0 0.0
      %1556 = vmatpush1.msra.mxu0 0.0
      %1557 = vmatprep.subr.mxu0 0.0
      %1558 = vmatpush1.msra.mxu0 0.0
      %1559 = vmatprep.subr.mxu0 0.0
      %1560 = vmatpush1.msra.mxu0 0.0
      %1561 = vmatprep.subr.mxu0 0.0
      %1562 = vmatpush1.msra.mxu0 0.0
      %1563 = vmatprep.subr.mxu0 0.0
      %1564 = vmatpush1.msra.mxu0 0.0
      %1565 = vmatprep.subr.mxu0 0.0
      %1566 = vmatpush1.msra.mxu0 0.0
      %1567 = vmatprep.subr.mxu0 0.0
      %1568 = vmatpush1.msra.mxu0 0.0
      %1569 = vmatprep.subr.mxu0 0.0
      %1570 = vmatpush1.msra.mxu0 0.0
      %1571 = vmatprep.subr.mxu0 0.0
      %1572 = vmatpush1.msra.mxu0 0.0
      %1573 = vmatprep.subr.mxu0 0.0
      %1574 = vmatpush1.msra.mxu0 0.0
      %1575 = vmatprep.subr.mxu0 0.0
      %1576 = vmatpush1.msra.mxu0 0.0
      %1577 = vmatprep.subr.mxu0 0.0
      %1578 = vmatpush1.msra.mxu0 0.0
      %1579 = vmatprep.subr.mxu0 0.0
      %1580 = vmatpush1.msra.mxu0 0.0
      %1581 = vmatprep.subr.mxu0 0.0
      %1582 = vmatpush1.msra.mxu0 0.0
      %1583 = vmatprep.subr.mxu0 0.0
      %1584 = vmatpush1.msra.mxu0 0.0
      %1585 = vmatprep.subr.mxu0 0.0
      %1586 = vmatpush1.msra.mxu0 0.0
      %1587 = vmatprep.subr.mxu0 0.0
      %1588 = vmatpush1.msra.mxu0 0.0
      %1589 = vmatprep.subr.mxu0 0.0
      %1590 = vmatpush1.msra.mxu0 0.0
      %1591 = vmatprep.subr.mxu0 0.0
      %1592 = vmatpush1.msra.mxu0 0.0
      %1593 = vmatprep.subr.mxu0 0.0
      %1594 = vmatpush1.msra.mxu0 0.0
      %1595 = vmatprep.mubr.f32.mxu0 0.0
      %1596 = vmatmul.mubr.f32.gmra.mrb[0].mxu0 %v1529
      %v1597 = vpop.f32.mrb[0].mxu0
      %v1598 = vadd.f32 0.0, %v1597
      %v1599 = vpop.f32.mrb[0].mxu0
      %v1600 = vadd.f32 0.0, %v1599
      %1601 = vdwg.mxu0
      %v1602 = vld [vmem:[%s8] sm:$0xf]
      %1604 = vset.pattern.permute.xlu0 0
      %1605 = vperm.xlu0 %1604, %v1602
      %v1606 = vpop.permute.xlu0 %1605
      %v1608 = vmul.f32 %v1598, %v1606
      %v1609 = vmul.f32 %v1600, %v1606
      %1610 = vset.pattern.permute.xlu0 1
      %1611 = vperm.xlu0 %1610, %v1602
      %v1612 = vpop.permute.xlu0 %1611
      %v1614 = vadd.f32 %v1608, %v1612
      %v1615 = vadd.f32 %v1609, %v1612
      %v1616 = vmax.f32 %v1614, 0.0
      %v1617 = vmax.f32 %v1615, 0.0
      %v1620 = vcombine.low %v1616, %v1617
      %1622 = vst [vmem:[%s332] sm:$0xff] %v1620
      %p1623 = scmp.lt.s32.totalorder %s20, 1
      %s1624 = scalar_select %p1623, %s20, 1
      %s1625 = smul.addr %s1624, 2
      %s1626 = smul.addr %s1625, 4
      %s1627 = scalar_lea.vmem %s9, %s1626
      // Predicated region
      $region57: #{_lambda_.7} parent=55 // pred_check
        %p1628 = pneg %p232
      $region58: #{_lambda_.7} parent=55 // pred_check_branch
        %1630 = sbr.rel (%p1628) target = $region60
      $region59: #{_lambda_.7} parent=55 // pred_region
        _
      $region60: #{_lambda_.7} parent=55 // pred_fallthru
        _
    $region56: #{_lambda_.7} parent=5 // pred_fallthru
      _
    %p1631 = scmp.le.s32.totalorder 2, %s15
    // Predicated region
    $region61: #{_lambda_.7} parent=5 // pred_check
      %p1632 = pneg %p1631
    $region62: #{_lambda_.7} parent=5 // pred_check_branch
      %1634 = sbr.rel (%p1632) target = $region64
    $region63: #{_lambda_.7} parent=5 // pred_region
      %s1635 = ssub.s32 %s15, 2
      // Predicated region
      $region65: #{_lambda_.7} parent=63 // pred_check
        %p1636 = pneg %p238
      $region66: #{_lambda_.7} parent=63 // pred_check_branch
        %1638 = sbr.rel (%p1636) target = $region68
      $region67: #{_lambda_.7} parent=63 // pred_region
        %p1639 = scmp.lt.s32.totalorder %s21, 1
        %s1640 = scalar_select %p1639, %s21, 1
        %s1641 = smul.addr %s1640, 2
        %s1642 = smul.addr %s1641, 4
        %s1643 = scalar_lea.vmem %s9, %s1642
      $region68: #{_lambda_.7} parent=63 // pred_fallthru
        _
    $region64: #{_lambda_.7} parent=5 // pred_fallthru
      _
  $region6: #{_lambda_.7} parent=0 // loop_footer
    %s19 = sadd.s32 1, %s15
  $region7: #{_lambda_.7} parent=0 // loop_footer_branch
    %14 = sbr.rel target = $region3
  $region8: #{_lambda_.7} parent=0 // loop_exit
    _

// kernel: _lambda_.6
$region0: #{_lambda_.6}
  #allocation0 [shape = 'u32[]', space=smem, size = 0x4, offset = 0x4, fixed_abs, tag = 'smem constant byte address 0x4 - core index']
  #allocation1 [shape = 'u32[144,128]{1,0:T(1,128)}', space=vmem, size = 0x12000, scoped, tag = 'internal scratch']
  #allocation2 [shape = 'f32[16,256]{1,0:T(8,128)}', space=vmem, size = 0x4000, scoped, tag = 'scratch operand']
  #allocation3 [shape = 'f32[4,290]{1,0:T(4,128)}', space=vmem, size = 0x1800, scoped, tag = 'scratch operand']
  #allocation4 [shape = 'f32[8,324]{1,0:T(8,128)}', space=vmem, size = 0x3000, scoped, tag = 'scratch operand']
  #allocation5 [shape = 'f32[12,358]{1,0:T(8,128)}', space=vmem, size = 0x6000, scoped, tag = 'scratch operand']
  #allocation6 [shape = 'f32[36,256]{1,0:T(8,128)}', space=vmem, size = 0xa000, scoped, tag = 'scratch operand']
  #allocation7 [shape = 'f32[72,256]{1,0:T(8,128)}', space=vmem, size = 0x12000, scoped, tag = 'scratch operand']
  #allocation8 [shape = 'f32[108,256]{1,0:T(8,128)}', space=vmem, size = 0x1c000, scoped, tag = 'scratch operand']
  %s0 = inlined_call_operand.vmem [shape: f32[2,4,256], index: 0, kind: input, shape index: {}]
  %s1 = inlined_call_operand.vmem [shape: f32[4,36], index: 1, kind: input, shape index: {}]
  %s2 = inlined_call_operand.vmem [shape: f32[4,2], index: 2, kind: input, shape index: {}]
  %s3 = inlined_call_operand.vmem [shape: f32[4,72], index: 3, kind: input, shape index: {}]
  %s4 = inlined_call_operand.vmem [shape: f32[4,2], index: 4, kind: input, shape index: {}]
  %s5 = inlined_call_operand.vmem [shape: f32[4,108], index: 5, kind: input, shape index: {}]
  %s6 = inlined_call_operand.vmem [shape: f32[4,2], index: 6, kind: input, shape index: {}]
  %s7 = inlined_call_operand.vmem [shape: f32[4,16], index: 7, kind: input, shape index: {}]
  %s8 = inlined_call_operand.vmem [shape: f32[4,2], index: 8, kind: input, shape index: {}]
  %s9 = inlined_call_operand.vmem [shape: f32[2,4,256], index: 9, kind: output, shape index: {}]
  %s10 = sld [smem:[#allocation0]]
  $region69: #{_lambda_.6} parent=0
    _
  %s12 = ssub.s32 1, %s10
  %s13 = scalar_select 0, %s12, %s10
  loop: start=0, step=1, limit=4
  $region2: #{_lambda_.6} parent=0 // loop_pre_header
    _
  $region3: #{_lambda_.6} parent=0 // loop_header
    %s15 = sphi 0, %s19
    %p16 = scmp.ge.s32.totalorder %s15, 4
    %s25 = sphi 0, %s27
    %s28 = sphi 0, %s25
    %s29 = sphi 0, %s28
    %s45 = sphi 0, %s29
    %s49 = sphi 0, %s49
    %s51 = sphi 0, %s49
    %s52 = sphi 0, %s51
    %s66 = sphi 0, %s52
    %s70 = sphi 0, %s70
    %s72 = sphi 0, %s70
    %s73 = sphi 0, %s72
    %s87 = sphi 0, %s73
    %s91 = sphi 0, %s91
    %s93 = sphi 0, %s91
    %s94 = sphi 0, %s93
    %s108 = sphi 0, %s94
    %s112 = sphi 0, %s112
    %s114 = sphi 0, %s112
    %s115 = sphi 0, %s114
    %s129 = sphi 0, %s115
    %s133 = sphi 0, %s133
    %s135 = sphi 0, %s133
    %s136 = sphi 0, %s135
    %s150 = sphi 0, %s136
    %s154 = sphi 0, %s154
    %s156 = sphi 0, %s154
    %s157 = sphi 0, %s156
    %s171 = sphi 0, %s157
    %s175 = sphi 0, %s175
    %s177 = sphi 0, %s175
    %s178 = sphi 0, %s177
    %s192 = sphi 0, %s178
    %s196 = sphi 0, %s196
    %s198 = sphi 0, %s196
    %s199 = sphi 0, %s198
    %s213 = sphi 0, %s199
    %s219 = sphi 0, %s221
    %s222 = sphi 0, %s219
    %s223 = sphi 0, %s222
    %s239 = sphi 0, %s223
  $region4: #{_lambda_.6} parent=0 // loop_header_branch
    %18 = sbr.rel (%p16) target = $region8
  $region5: #{_lambda_.6} parent=0 // loop_body
    %s20 = ssub.s32 %s15, 1
    %s21 = ssub.s32 %s15, 2
    %s22 = sadd.s32 %s15, 1
    %s23 = ssub.s32 %s15, %s22
    %p24 = scmp.eq.s32.totalorder %s23, 0
    %s26 = sadd.s32 %s25, 1
    %s27 = scalar_select %p24, %s25, %s26
    %p30 = pneg %p24
    %p31 = scmp.eq.s32.totalorder %s15, 1
    %p32 = por %p30, %p31
    %p33 = scmp.ne.s32.totalorder %s25, %s28
    %p34 = scmp.eq.s32.totalorder %s15, 0
    %p35 = por %p33, %p34
    %p36 = scmp.ne.s32.totalorder %s25, %s28
    %p37 = scmp.eq.s32.totalorder %s20, 1
    %p38 = por %p36, %p37
    %p39 = scmp.ne.s32.totalorder %s28, %s29
    %p40 = scmp.eq.s32.totalorder %s20, 0
    %p41 = por %p39, %p40
    %p42 = scmp.ne.s32.totalorder %s28, %s29
    %p43 = scmp.eq.s32.totalorder %s21, 1
    %p44 = por %p42, %p43
    %p46 = scmp.ne.s32.totalorder %s29, %s45
    %p47 = scmp.eq.s32.totalorder %s21, 0
    %p48 = por %p46, %p47
    %s50 = sadd.s32 %s49, 1
    %p53 = scmp.eq.s32.totalorder %s15, 1
    %p54 = scmp.ne.s32.totalorder %s49, %s51
    %p55 = scmp.eq.s32.totalorder %s15, 0
    %p56 = por %p54, %p55
    %p57 = scmp.ne.s32.totalorder %s49, %s51
    %p58 = scmp.eq.s32.totalorder %s20, 1
    %p59 = por %p57, %p58
    %p60 = scmp.ne.s32.totalorder %s51, %s52
    %p61 = scmp.eq.s32.totalorder %s20, 0
    %p62 = por %p60, %p61
    %p63 = scmp.ne.s32.totalorder %s51, %s52
    %p64 = scmp.eq.s32.totalorder %s21, 1
    %p65 = por %p63, %p64
    %p67 = scmp.ne.s32.totalorder %s52, %s66
    %p68 = scmp.eq.s32.totalorder %s21, 0
    %p69 = por %p67, %p68
    %s71 = sadd.s32 %s70, 1
    %p74 = scmp.eq.s32.totalorder %s15, 1
    %p75 = scmp.ne.s32.totalorder %s70, %s72
    %p76 = scmp.eq.s32.totalorder %s15, 0
    %p77 = por %p75, %p76
    %p78 = scmp.ne.s32.totalorder %s70, %s72
    %p79 = scmp.eq.s32.totalorder %s20, 1
    %p80 = por %p78, %p79
    %p81 = scmp.ne.s32.totalorder %s72, %s73
    %p82 = scmp.eq.s32.totalorder %s20, 0
    %p83 = por %p81, %p82
    %p84 = scmp.ne.s32.totalorder %s72, %s73
    %p85 = scmp.eq.s32.totalorder %s21, 1
    %p86 = por %p84, %p85
    %p88 = scmp.ne.s32.totalorder %s73, %s87
    %p89 = scmp.eq.s32.totalorder %s21, 0
    %p90 = por %p88, %p89
    %s92 = sadd.s32 %s91, 1
    %p95 = scmp.eq.s32.totalorder %s15, 1
    %p96 = scmp.ne.s32.totalorder %s91, %s93
    %p97 = scmp.eq.s32.totalorder %s15, 0
    %p98 = por %p96, %p97
    %p99 = scmp.ne.s32.totalorder %s91, %s93
    %p100 = scmp.eq.s32.totalorder %s20, 1
    %p101 = por %p99, %p100
    %p102 = scmp.ne.s32.totalorder %s93, %s94
    %p103 = scmp.eq.s32.totalorder %s20, 0
    %p104 = por %p102, %p103
    %p105 = scmp.ne.s32.totalorder %s93, %s94
    %p106 = scmp.eq.s32.totalorder %s21, 1
    %p107 = por %p105, %p106
    %p109 = scmp.ne.s32.totalorder %s94, %s108
    %p110 = scmp.eq.s32.totalorder %s21, 0
    %p111 = por %p109, %p110
    %s113 = sadd.s32 %s112, 1
    %p116 = scmp.eq.s32.totalorder %s15, 1
    %p117 = scmp.ne.s32.totalorder %s112, %s114
    %p118 = scmp.eq.s32.totalorder %s15, 0
    %p119 = por %p117, %p118
    %p120 = scmp.ne.s32.totalorder %s112, %s114
    %p121 = scmp.eq.s32.totalorder %s20, 1
    %p122 = por %p120, %p121
    %p123 = scmp.ne.s32.totalorder %s114, %s115
    %p124 = scmp.eq.s32.totalorder %s20, 0
    %p125 = por %p123, %p124
    %p126 = scmp.ne.s32.totalorder %s114, %s115
    %p127 = scmp.eq.s32.totalorder %s21, 1
    %p128 = por %p126, %p127
    %p130 = scmp.ne.s32.totalorder %s115, %s129
    %p131 = scmp.eq.s32.totalorder %s21, 0
    %p132 = por %p130, %p131
    %s134 = sadd.s32 %s133, 1
    %p137 = scmp.eq.s32.totalorder %s15, 1
    %p138 = scmp.ne.s32.totalorder %s133, %s135
    %p139 = scmp.eq.s32.totalorder %s15, 0
    %p140 = por %p138, %p139
    %p141 = scmp.ne.s32.totalorder %s133, %s135
    %p142 = scmp.eq.s32.totalorder %s20, 1
    %p143 = por %p141, %p142
    %p144 = scmp.ne.s32.totalorder %s135, %s136
    %p145 = scmp.eq.s32.totalorder %s20, 0
    %p146 = por %p144, %p145
    %p147 = scmp.ne.s32.totalorder %s135, %s136
    %p148 = scmp.eq.s32.totalorder %s21, 1
    %p149 = por %p147, %p148
    %p151 = scmp.ne.s32.totalorder %s136, %s150
    %p152 = scmp.eq.s32.totalorder %s21, 0
    %p153 = por %p151, %p152
    %s155 = sadd.s32 %s154, 1
    %p158 = scmp.eq.s32.totalorder %s15, 1
    %p159 = scmp.ne.s32.totalorder %s154, %s156
    %p160 = scmp.eq.s32.totalorder %s15, 0
    %p161 = por %p159, %p160
    %p162 = scmp.ne.s32.totalorder %s154, %s156
    %p163 = scmp.eq.s32.totalorder %s20, 1
    %p164 = por %p162, %p163
    %p165 = scmp.ne.s32.totalorder %s156, %s157
    %p166 = scmp.eq.s32.totalorder %s20, 0
    %p167 = por %p165, %p166
    %p168 = scmp.ne.s32.totalorder %s156, %s157
    %p169 = scmp.eq.s32.totalorder %s21, 1
    %p170 = por %p168, %p169
    %p172 = scmp.ne.s32.totalorder %s157, %s171
    %p173 = scmp.eq.s32.totalorder %s21, 0
    %p174 = por %p172, %p173
    %s176 = sadd.s32 %s175, 1
    %p179 = scmp.eq.s32.totalorder %s15, 1
    %p180 = scmp.ne.s32.totalorder %s175, %s177
    %p181 = scmp.eq.s32.totalorder %s15, 0
    %p182 = por %p180, %p181
    %p183 = scmp.ne.s32.totalorder %s175, %s177
    %p184 = scmp.eq.s32.totalorder %s20, 1
    %p185 = por %p183, %p184
    %p186 = scmp.ne.s32.totalorder %s177, %s178
    %p187 = scmp.eq.s32.totalorder %s20, 0
    %p188 = por %p186, %p187
    %p189 = scmp.ne.s32.totalorder %s177, %s178
    %p190 = scmp.eq.s32.totalorder %s21, 1
    %p191 = por %p189, %p190
    %p193 = scmp.ne.s32.totalorder %s178, %s192
    %p194 = scmp.eq.s32.totalorder %s21, 0
    %p195 = por %p193, %p194
    %s197 = sadd.s32 %s196, 1
    %p200 = scmp.eq.s32.totalorder %s15, 1
    %p201 = scmp.ne.s32.totalorder %s196, %s198
    %p202 = scmp.eq.s32.totalorder %s15, 0
    %p203 = por %p201, %p202
    %p204 = scmp.ne.s32.totalorder %s196, %s198
    %p205 = scmp.eq.s32.totalorder %s20, 1
    %p206 = por %p204, %p205
    %p207 = scmp.ne.s32.totalorder %s198, %s199
    %p208 = scmp.eq.s32.totalorder %s20, 0
    %p209 = por %p207, %p208
    %p210 = scmp.ne.s32.totalorder %s198, %s199
    %p211 = scmp.eq.s32.totalorder %s21, 1
    %p212 = por %p210, %p211
    %p214 = scmp.ne.s32.totalorder %s199, %s213
    %p215 = scmp.eq.s32.totalorder %s21, 0
    %p216 = por %p214, %p215
    %s217 = ssub.s32 %s15, %s22
    %p218 = scmp.eq.s32.totalorder %s217, 0
    %s220 = sadd.s32 %s219, 1
    %s221 = scalar_select %p218, %s219, %s220
    %p224 = pneg %p218
    %p225 = scmp.eq.s32.totalorder %s15, 1
    %p226 = por %p224, %p225
    %p227 = scmp.ne.s32.totalorder %s219, %s222
    %p228 = scmp.eq.s32.totalorder %s15, 0
    %p229 = por %p227, %p228
    %p230 = scmp.ne.s32.totalorder %s219, %s222
    %p231 = scmp.eq.s32.totalorder %s20, 1
    %p232 = por %p230, %p231
    %p233 = scmp.ne.s32.totalorder %s222, %s223
    %p234 = scmp.eq.s32.totalorder %s20, 0
    %p235 = por %p233, %p234
    %p236 = scmp.ne.s32.totalorder %s222, %s223
    %p237 = scmp.eq.s32.totalorder %s21, 1
    %p238 = por %p236, %p237
    %p240 = scmp.ne.s32.totalorder %s223, %s239
    %p241 = scmp.eq.s32.totalorder %s21, 0
    %p242 = por %p240, %p241
    %p243 = scmp.le.s32.totalorder 1, %s15
    %p244 = scmp.lt.s32.totalorder %s15, 3
    %p245 = pnand %p243, %p244
    %p246 = pneg %p245
    // Predicated region
    $region9: #{_lambda_.6} parent=5 // pred_check
      _
    $region10: #{_lambda_.6} parent=5 // pred_check_branch
      %248 = sbr.rel (%p245) target = $region12
    $region11: #{_lambda_.6} parent=5 // pred_region
      %s249 = ssub.s32 %s15, 1
      // Predicated region
      $region13: #{_lambda_.6} parent=11 // pred_check
        %p250 = pneg %p62
      $region14: #{_lambda_.6} parent=11 // pred_check_branch
        %252 = sbr.rel (%p250) target = $region16
      $region15: #{_lambda_.6} parent=11 // pred_region
        _
      $region16: #{_lambda_.6} parent=11 // pred_fallthru
        _
      // Predicated region
      $region17: #{_lambda_.6} parent=11 // pred_check
        %p253 = pneg %p83
      $region18: #{_lambda_.6} parent=11 // pred_check_branch
        %255 = sbr.rel (%p253) target = $region20
      $region19: #{_lambda_.6} parent=11 // pred_region
        _
      $region20: #{_lambda_.6} parent=11 // pred_fallthru
        _
      // Predicated region
      $region21: #{_lambda_.6} parent=11 // pred_check
        %p256 = pneg %p104
      $region22: #{_lambda_.6} parent=11 // pred_check_branch
        %258 = sbr.rel (%p256) target = $region24
      $region23: #{_lambda_.6} parent=11 // pred_region
        _
      $region24: #{_lambda_.6} parent=11 // pred_fallthru
        _
      // Predicated region
      $region25: #{_lambda_.6} parent=11 // pred_check
        %p259 = pneg %p125
      $region26: #{_lambda_.6} parent=11 // pred_check_branch
        %261 = sbr.rel (%p259) target = $region28
      $region27: #{_lambda_.6} parent=11 // pred_region
        _
      $region28: #{_lambda_.6} parent=11 // pred_fallthru
        _
      // Predicated region
      $region29: #{_lambda_.6} parent=11 // pred_check
        %p262 = pneg %p146
      $region30: #{_lambda_.6} parent=11 // pred_check_branch
        %264 = sbr.rel (%p262) target = $region32
      $region31: #{_lambda_.6} parent=11 // pred_region
        _
      $region32: #{_lambda_.6} parent=11 // pred_fallthru
        _
      // Predicated region
      $region33: #{_lambda_.6} parent=11 // pred_check
        %p265 = pneg %p167
      $region34: #{_lambda_.6} parent=11 // pred_check_branch
        %267 = sbr.rel (%p265) target = $region36
      $region35: #{_lambda_.6} parent=11 // pred_region
        _
      $region36: #{_lambda_.6} parent=11 // pred_fallthru
        _
      // Predicated region
      $region37: #{_lambda_.6} parent=11 // pred_check
        %p268 = pneg %p188
      $region38: #{_lambda_.6} parent=11 // pred_check_branch
        %270 = sbr.rel (%p268) target = $region40
      $region39: #{_lambda_.6} parent=11 // pred_region
        _
      $region40: #{_lambda_.6} parent=11 // pred_fallthru
        _
      // Predicated region
      $region41: #{_lambda_.6} parent=11 // pred_check
        %p271 = pneg %p209
      $region42: #{_lambda_.6} parent=11 // pred_check_branch
        %273 = sbr.rel (%p271) target = $region44
      $region43: #{_lambda_.6} parent=11 // pred_region
        _
      $region44: #{_lambda_.6} parent=11 // pred_fallthru
        _
    $region12: #{_lambda_.6} parent=5 // pred_fallthru
      _
    %p274 = scmp.lt.s32.totalorder %s15, 2
    // Predicated region
    $region45: #{_lambda_.6} parent=5 // pred_check
      %p275 = pneg %p274
    $region46: #{_lambda_.6} parent=5 // pred_check_branch
      %277 = sbr.rel (%p275) target = $region48
    $region47: #{_lambda_.6} parent=5 // pred_region
      // Predicated region
      $region49: #{_lambda_.6} parent=47 // pred_check
        %p278 = pneg %p35
      $region50: #{_lambda_.6} parent=47 // pred_check_branch
        %280 = sbr.rel (%p278) target = $region52
      $region51: #{_lambda_.6} parent=47 // pred_region
        %p281 = scmp.lt.s32.totalorder %s15, 1
        %s282 = scalar_select %p281, %s15, 1
        %s283 = smul.addr %s282, 2
        %s284 = smul.addr %s283, 4
        %s285 = scalar_lea.vmem %s0, %s284
      $region52: #{_lambda_.6} parent=47 // pred_fallthru
        _
    $region48: #{_lambda_.6} parent=5 // pred_fallthru
      _
    %p286 = scmp.le.s32.totalorder 1, %s15
    %p287 = scmp.lt.s32.totalorder %s15, 3
    %p288 = pnand %p286, %p287
    %p289 = pneg %p288
    // Predicated region
    $region53: #{_lambda_.6} parent=5 // pred_check
      _
    $region54: #{_lambda_.6} parent=5 // pred_check_branch
      %291 = sbr.rel (%p288) target = $region56
    $region55: #{_lambda_.6} parent=5 // pred_region
      %s292 = ssub.s32 %s15, 1
      %p293 = scmp.lt.s32.totalorder %s20, 1
      %s294 = scalar_select %p293, %s20, 1
      %s295 = smul.addr %s294, 2
      %s296 = smul.addr %s295, 4
      %s297 = scalar_lea.vmem %s0, %s296
      %p298 = pneg %p41
      %p299 = pneg %p38
      %p300 = pneg %p62
      %p301 = pneg %p59
      %p302 = pneg %p83
      %p303 = pneg %p80
      %p304 = pneg %p104
      %p305 = pneg %p101
      %p306 = pneg %p125
      %p307 = pneg %p122
      %p308 = pneg %p146
      %p309 = pneg %p143
      %p310 = pneg %p167
      %p311 = pneg %p164
      %p312 = pneg %p188
      %p313 = pneg %p185
      %p314 = pneg %p209
      %p315 = pneg %p206
      %p316 = pneg %p235
      %p317 = pneg %p232
      %p318 = scmp.lt.s32.totalorder %s20, 1
      %s319 = scalar_select %p318, %s20, 1
      %s320 = smul.addr %s319, 2
      %s321 = smul.addr %s320, 4
      %s322 = scalar_lea.vmem %s9, %s321
      %p323 = scmp.lt.s32.totalorder %s20, 1
      %s324 = scalar_select %p323, %s20, 1
      %s325 = smul.addr %s324, 2
      %s326 = smul.addr %s325, 4
      %s327 = scalar_lea.vmem %s0, %s326
      %p328 = scmp.lt.s32.totalorder %s20, 1
      %s329 = scalar_select %p328, %s20, 1
      %s330 = smul.addr %s329, 2
      %s331 = smul.addr %s330, 4
      %s332 = scalar_lea.vmem %s9, %s331
      %v333 = vld [vmem:[%s327] sm:$0xff]
      %v335 = vcombine.low %v333, %v333
      %337 = vst [vmem:[#allocation2 + $0x10] sm:$0xf0] %v335
      %338 = vst [vmem:[#allocation2 + $0x18] sm:$0xf0] %v333
      %vm339 = vcmask 134144
      %340 = vst.msk [vmem:[#allocation3] sm:$0xf] %vm339, 0.0
      %vm341 = vcmask 273544
      %342 = vst.msk [vmem:[#allocation3 + $0x8] sm:$0xf] %vm341, 0.0
      %v343 = vld [vmem:[#allocation2 + $0x10] sm:$0xf0]
      %v344 = vld [vmem:[#allocation2 + $0x18] sm:$0xf0]
      %v347 = vcombine.high %v343, %v344
      %348 = vrot.lane.b32.xlu0 %v347, 17
      %v349 = vpop.permute.xlu0 %348
      %v350 = vrot.slane %v349, 4
      %vm351 = vcmask 138240
      %v352 = vsel %vm351, %v350, %v349
      %vm355 = vcmask 1043592
      %vm356 = vcmask 1047556
      %vm357 = vmor %vm356, %vm355
      %358 = vst.msk [vmem:[#allocation3] sm:$0xff] %vm357, %v352
      %359 = vst.msk [vmem:[#allocation3 + $0x8] sm:$0xf] %vm339, %v350
      %v360 = vlaneseq
      %v361 = vand.u32 %v360, 127
      %v362 = vadd.s32 %v361, 128
      %vm363 = vcmp.lt.s32.totalorder %v361, 0
      %v364 = vsub.s32 0, %v361
      %v365 = vsel %vm363, %v364, %v361
      %v366 = vshrl.u32 %v365, 4
      %v367 = vand.u32 %v365, 15
      %v368 = vsub.s32 0, %v367
      %v369 = vsel %vm363, %v368, %v367
      %vm370 = vcmp.lt.s32.totalorder %v362, 0
      %v371 = vsub.s32 0, %v362
      %v372 = vsel %vm370, %v371, %v362
      %v373 = vshrl.u32 %v372, 4
      %v374 = vand.u32 %v372, 15
      %v375 = vsub.s32 0, %v374
      %v376 = vsel %vm370, %v375, %v374
      %vm377 = vcmp.ne.s32.totalorder %v369, 0
      %vm378 = vcmp.ne.s32.totalorder %v376, 0
      %vm379 = vcmp.lt.s32.totalorder %v369, 0
      %vm380 = vcmp.lt.s32.totalorder %v376, 0
      %vm381 = vmand %vm379, %vm377
      %vm382 = vmand %vm380, %vm378
      %v383 = vadd.s32 %v369, 16
      %v384 = vadd.s32 %v376, 16
      %v385 = vsel %vm381, %v383, %v369
      %v386 = vsel %vm382, %v384, %v376
      %v387 = vld [vmem:[#allocation3] sm:$0xff]
      %vm388 = vcmp.ge.s32.totalorder %v385, 1
      %vm389 = vcmp.ge.s32.totalorder %v386, 1
      %v391 = vcombine.high %v387, %v387
      %v393 = vsel %vm388, %v387, 0.0
      %v394 = vsel %vm389, %v391, 0.0
      %395 = vst [vmem:[#allocation6] sm:$0xf] %v393
      %396 = vst [vmem:[#allocation6 + $0x8] sm:$0xf] %v394
      %v397 = vld [vmem:[#allocation3] sm:$0xff]
      %v398 = vld [vmem:[#allocation3 + $0x8] sm:$0xf]
      %v401 = vcombine.low %v397, %v397
      %v402 = vcombine.low %v398, %v398
      %403 = vrot.lane.b32.xlu0 %v401, 127
      %v404 = vpop.permute.xlu0 %403
      %405 = vrot.lane.b32.xlu0 %v397, 127
      %v406 = vpop.permute.xlu0 %405
      %407 = vrot.lane.b32.xlu0 %v402, 127
      %v408 = vpop.permute.xlu0 %407
      %vm409 = vcmask 1039360
      %v410 = vsel %vm409, %v404, %v406
      %v411 = vsel %vm409, %v406, %v408
      %414 = vst [vmem:[#allocation6] sm:$0xf0] %v410
      %415 = vst [vmem:[#allocation6 + $0x8] sm:$0xf0] %v411
      %v416 = vld [vmem:[#allocation3] sm:$0xff]
      %v417 = vld [vmem:[#allocation3 + $0x8] sm:$0xf]
      %vm418 = vcmp.lt.s32.totalorder %v385, 15
      %vm419 = vcmp.lt.s32.totalorder %v386, 15
      %v422 = vcombine.high %v416, %v416
      %423 = vrot.lane.b32.xlu0 %v416, 126
      %v424 = vpop.permute.xlu0 %423
      %425 = vrot.lane.b32.xlu0 %v422, 126
      %v426 = vpop.permute.xlu0 %425
      %427 = vrot.lane.b32.xlu0 %v417, 126
      %v428 = vpop.permute.xlu0 %427
      %vm429 = vcmask 1031168
      %v430 = vsel %vm429, %v424, %v426
      %v431 = vsel %vm429, %v426, %v428
      %v434 = vsel %vm418, %v430, 0.0
      %v435 = vsel %vm419, %v431, 0.0
      %436 = vst [vmem:[#allocation6 + $0x10] sm:$0xf] %v434
      %437 = vst [vmem:[#allocation6 + $0x18] sm:$0xf] %v435
      %v438 = vld [vmem:[#allocation3] sm:$0xff]
      %v439 = vld [vmem:[#allocation3 + $0x8] sm:$0xf]
      %v442 = vcombine.high %v438, %v438
      %443 = vrot.lane.b32.xlu0 %v438, 112
      %v444 = vpop.permute.xlu0 %443
      %445 = vrot.lane.b32.xlu0 %v442, 112
      %v446 = vpop.permute.xlu0 %445
      %447 = vrot.lane.b32.xlu0 %v439, 112
      %v448 = vpop.permute.xlu0 %447
      %vm449 = vcmask 916480
      %v450 = vsel %vm449, %v444, %v446
      %v451 = vsel %vm449, %v446, %v448
      %v454 = vsel %vm388, %v450, 0.0
      %v455 = vsel %vm389, %v451, 0.0
      %v458 = vrot.slane %v454, 4
      %v459 = vrot.slane %v455, 4
      %462 = vst [vmem:[#allocation6 + $0x10] sm:$0xf0] %v458
      %463 = vst [vmem:[#allocation6 + $0x18] sm:$0xf0] %v459
      %v464 = vld [vmem:[#allocation3] sm:$0xff]
      %v465 = vld [vmem:[#allocation3 + $0x8] sm:$0xf]
      %v468 = vcombine.high %v464, %v464
      %469 = vrot.lane.b32.xlu0 %v464, 111
      %v470 = vpop.permute.xlu0 %469
      %471 = vrot.lane.b32.xlu0 %v468, 111
      %v472 = vpop.permute.xlu0 %471
      %473 = vrot.lane.b32.xlu0 %v465, 111
      %v474 = vpop.permute.xlu0 %473
      %vm475 = vcmask 908288
      %v476 = vsel %vm475, %v470, %v472
      %v477 = vsel %vm475, %v472, %v474
      %480 = vst [vmem:[#allocation6 + $0x20] sm:$0xf] %v476
      %481 = vst [vmem:[#allocation6 + $0x28] sm:$0xf] %v477
      %v482 = vld [vmem:[#allocation3] sm:$0xff]
      %v483 = vld [vmem:[#allocation3 + $0x8] sm:$0xf]
      %v486 = vcombine.high %v482, %v482
      %487 = vrot.lane.b32.xlu0 %v482, 110
      %v488 = vpop.permute.xlu0 %487
      %489 = vrot.lane.b32.xlu0 %v486, 110
      %v490 = vpop.permute.xlu0 %489
      %491 = vrot.lane.b32.xlu0 %v483, 110
      %v492 = vpop.permute.xlu0 %491
      %vm493 = vcmask 900096
      %v494 = vsel %vm493, %v488, %v490
      %v495 = vsel %vm493, %v490, %v492
      %v498 = vsel %vm418, %v494, 0.0
      %v499 = vsel %vm419, %v495, 0.0
      %v502 = vrot.slane %v498, 4
      %v503 = vrot.slane %v499, 4
      %506 = vst [vmem:[#allocation6 + $0x20] sm:$0xf0] %v502
      %507 = vst [vmem:[#allocation6 + $0x28] sm:$0xf0] %v503
      %v508 = vld [vmem:[#allocation3] sm:$0xff]
      %v509 = vld [vmem:[#allocation3 + $0x8] sm:$0xf]
      %v512 = vcombine.high %v508, %v508
      %513 = vrot.lane.b32.xlu0 %v508, 96
      %v514 = vpop.permute.xlu0 %513
      %515 = vrot.lane.b32.xlu0 %v512, 96
      %v516 = vpop.permute.xlu0 %515
      %517 = vrot.lane.b32.xlu0 %v509, 96
      %v518 = vpop.permute.xlu0 %517
      %vm519 = vcmask 785408
      %v520 = vsel %vm519, %v514, %v516
      %v521 = vsel %vm519, %v516, %v518
      %v524 = vsel %vm388, %v520, 0.0
      %v525 = vsel %vm389, %v521, 0.0
      %526 = vst [vmem:[#allocation6 + $0x30] sm:$0xf] %v524
      %527 = vst [vmem:[#allocation6 + $0x38] sm:$0xf] %v525
      %v528 = vld [vmem:[#allocation3] sm:$0xff]
      %v529 = vld [vmem:[#allocation3 + $0x8] sm:$0xf]
      %v532 = vcombine.low %v528, %v528
      %v533 = vcombine.low %v529, %v529
      %534 = vrot.lane.b32.xlu0 %v532, 95
      %v535 = vpop.permute.xlu0 %534
      %536 = vrot.lane.b32.xlu0 %v528, 95
      %v537 = vpop.permute.xlu0 %536
      %538 = vrot.lane.b32.xlu0 %v533, 95
      %v539 = vpop.permute.xlu0 %538
      %vm540 = vcmask 777216
      %v541 = vsel %vm540, %v535, %v537
      %v542 = vsel %vm540, %v537, %v539
      %545 = vst [vmem:[#allocation6 + $0x30] sm:$0xf0] %v541
      %546 = vst [vmem:[#allocation6 + $0x38] sm:$0xf0] %v542
      %v547 = vld [vmem:[#allocation3] sm:$0xff]
      %v548 = vld [vmem:[#allocation3 + $0x8] sm:$0xf]
      %v551 = vcombine.high %v547, %v547
      %552 = vrot.lane.b32.xlu0 %v547, 94
      %v553 = vpop.permute.xlu0 %552
      %554 = vrot.lane.b32.xlu0 %v551, 94
      %v555 = vpop.permute.xlu0 %554
      %556 = vrot.lane.b32.xlu0 %v548, 94
      %v557 = vpop.permute.xlu0 %556
      %vm558 = vcmask 769024
      %v559 = vsel %vm558, %v553, %v555
      %v560 = vsel %vm558, %v555, %v557
      %v563 = vsel %vm418, %v559, 0.0
      %v564 = vsel %vm419, %v560, 0.0
      %565 = vst [vmem:[#allocation6 + $0x40] sm:$0xf] %v563
      %566 = vst [vmem:[#allocation6 + $0x48] sm:$0xf] %v564
      %v567 = vld [vmem:[%s1] sm:$0xf]
      %v568 = vld [vmem:[#allocation6] sm:$0xff]
      %v569 = vld [vmem:[#allocation6 + $0x8] sm:$0xff]
      %v570 = vld [vmem:[#allocation6 + $0x10] sm:$0xff]
      %v571 = vld [vmem:[#allocation6 + $0x18] sm:$0xff]
      %v572 = vld [vmem:[#allocation6 + $0x20] sm:$0xff]
      %v573 = vld [vmem:[#allocation6 + $0x28] sm:$0xff]
      %v574 = vld [vmem:[#allocation6 + $0x30] sm:$0xff]
      %v575 = vld [vmem:[#allocation6 + $0x38] sm:$0xff]
      %v576 = vld [vmem:[#allocation6 + $0x40] sm:$0xf]
      %v577 = vld [vmem:[#allocation6 + $0x48] sm:$0xf]
      %vm578 = vcmask 293888
      %v580 = vsel %vm578, %v567, 0
      %vm582 = vcmask 1043456
      %v584 = vsel %vm582, %v576, 0
      %v587 = vsel %vm582, %v577, 0
      %589 = vmatprep.subr.mxu0 %v569
      %590 = vmatpush1.msra.mxu0 %v568
      %591 = vmatprep.subr.mxu0 %v571
      %592 = vmatpush1.msra.mxu0 %v570
      %593 = vmatprep.subr.mxu0 %v573
      %594 = vmatpush1.msra.mxu0 %v572
      %595 = vmatprep.subr.mxu0 %v575
      %596 = vmatpush1.msra.mxu0 %v574
      %597 = vmatprep.subr.mxu0 %v587
      %598 = vmatpush1.msra.mxu0 %v584
      %599 = vmatprep.subr.mxu0 0.0
      %600 = vmatpush1.msra.mxu0 0.0
      %601 = vmatprep.subr.mxu0 0.0
      %602 = vmatpush1.msra.mxu0 0.0
      %603 = vmatprep.subr.mxu0 0.0
      %604 = vmatpush1.msra.mxu0 0.0
      %605 = vmatprep.subr.mxu0 0.0
      %606 = vmatpush1.msra.mxu0 0.0
      %607 = vmatprep.subr.mxu0 0.0
      %608 = vmatpush1.msra.mxu0 0.0
      %609 = vmatprep.subr.mxu0 0.0
      %610 = vmatpush1.msra.mxu0 0.0
      %611 = vmatprep.subr.mxu0 0.0
      %612 = vmatpush1.msra.mxu0 0.0
      %613 = vmatprep.subr.mxu0 0.0
      %614 = vmatpush1.msra.mxu0 0.0
      %615 = vmatprep.subr.mxu0 0.0
      %616 = vmatpush1.msra.mxu0 0.0
      %617 = vmatprep.subr.mxu0 0.0
      %618 = vmatpush1.msra.mxu0 0.0
      %619 = vmatprep.subr.mxu0 0.0
      %620 = vmatpush1.msra.mxu0 0.0
      %621 = vmatprep.subr.mxu0 0.0
      %622 = vmatpush1.msra.mxu0 0.0
      %623 = vmatprep.subr.mxu0 0.0
      %624 = vmatpush1.msra.mxu0 0.0
      %625 = vmatprep.subr.mxu0 0.0
      %626 = vmatpush1.msra.mxu0 0.0
      %627 = vmatprep.subr.mxu0 0.0
      %628 = vmatpush1.msra.mxu0 0.0
      %629 = vmatprep.subr.mxu0 0.0
      %630 = vmatpush1.msra.mxu0 0.0
      %631 = vmatprep.subr.mxu0 0.0
      %632 = vmatpush1.msra.mxu0 0.0
      %633 = vmatprep.subr.mxu0 0.0
      %634 = vmatpush1.msra.mxu0 0.0
      %635 = vmatprep.subr.mxu0 0.0
      %636 = vmatpush1.msra.mxu0 0.0
      %637 = vmatprep.subr.mxu0 0.0
      %638 = vmatpush1.msra.mxu0 0.0
      %639 = vmatprep.subr.mxu0 0.0
      %640 = vmatpush1.msra.mxu0 0.0
      %641 = vmatprep.subr.mxu0 0.0
      %642 = vmatpush1.msra.mxu0 0.0
      %643 = vmatprep.subr.mxu0 0.0
      %644 = vmatpush1.msra.mxu0 0.0
      %645 = vmatprep.subr.mxu0 0.0
      %646 = vmatpush1.msra.mxu0 0.0
      %647 = vmatprep.subr.mxu0 0.0
      %648 = vmatpush1.msra.mxu0 0.0
      %649 = vmatprep.subr.mxu0 0.0
      %650 = vmatpush1.msra.mxu0 0.0
      %651 = vmatprep.subr.mxu0 0.0
      %652 = vmatpush1.msra.mxu0 0.0
      %653 = vmatprep.mubr.f32.mxu0 0.0
      %654 = vmatmul.mubr.f32.gmra.mrb[0].mxu0 %v580
      %v655 = vpop.f32.mrb[0].mxu0
      %v656 = vadd.f32 0.0, %v655
      %v657 = vpop.f32.mrb[0].mxu0
      %v658 = vadd.f32 0.0, %v657
      %659 = vdwg.mxu0
      %v660 = vld [vmem:[%s2] sm:$0xf]
      %662 = vset.pattern.permute.xlu0 0
      %663 = vperm.xlu0 %662, %v660
      %v664 = vpop.permute.xlu0 %663
      %v666 = vmul.f32 %v656, %v664
      %v667 = vmul.f32 %v658, %v664
      %668 = vset.pattern.permute.xlu0 1
      %669 = vperm.xlu0 %668, %v660
      %v670 = vpop.permute.xlu0 %669
      %v672 = vadd.f32 %v666, %v670
      %v673 = vadd.f32 %v667, %v670
      %v674 = vmax.f32 %v672, 0.0
      %v675 = vmax.f32 %v673, 0.0
      %676 = vst [vmem:[#allocation2 + $0x10] sm:$0xf] %v674
      %677 = vst [vmem:[#allocation2 + $0x18] sm:$0xf] %v675
      %vm678 = vcmask 277504
      %679 = vst.msk [vmem:[#allocation4] sm:$0xff] %vm678, 0.0
      %vm680 = vcmask 556304
      %681 = vst.msk [vmem:[#allocation4 + $0x10] sm:$0xff] %vm680, 0.0
      %v682 = vld [vmem:[#allocation2 + $0x10] sm:$0xff]
      %v683 = vld [vmem:[#allocation2 + $0x18] sm:$0xff]
      %686 = vrot.lane.b32.xlu0 %v682, 34
      %v687 = vpop.permute.xlu0 %686
      %688 = vrot.lane.b32.xlu0 %v683, 34
      %v689 = vpop.permute.xlu0 %688
      %v690 = vsel %vm678, %v687, %v689
      %vm694 = vcmask 1047824
      %695 = vst.msk [vmem:[#allocation4] sm:$0xff] %vm694, %v687
      %696 = vst [vmem:[#allocation4 + $0x8] sm:$0xff] %v690
      %697 = vst.msk [vmem:[#allocation4 + $0x10] sm:$0xff] %vm678, %v689
      %v698 = vld [vmem:[#allocation4] sm:$0xff]
      %v699 = vld [vmem:[#allocation4 + $0x8] sm:$0xff]
      %vm700 = vcmp.ge.s32.totalorder %v385, 2
      %vm701 = vcmp.ge.s32.totalorder %v386, 2
      %v702 = vsel %vm700, %v698, 0.0
      %v703 = vsel %vm701, %v699, 0.0
      %704 = vst [vmem:[#allocation7] sm:$0xff] %v702
      %705 = vst [vmem:[#allocation7 + $0x8] sm:$0xff] %v703
      %v706 = vld [vmem:[#allocation4] sm:$0xff]
      %v707 = vld [vmem:[#allocation4 + $0x8] sm:$0xff]
      %v708 = vld [vmem:[#allocation4 + $0x10] sm:$0xff]
      %712 = vrot.lane.b32.xlu0 %v706, 126
      %v713 = vpop.permute.xlu0 %712
      %714 = vrot.lane.b32.xlu0 %v707, 126
      %v715 = vpop.permute.xlu0 %714
      %716 = vrot.lane.b32.xlu0 %v708, 126
      %v717 = vpop.permute.xlu0 %716
      %v718 = vsel %vm429, %v713, %v715
      %v719 = vsel %vm429, %v715, %v717
      %722 = vst [vmem:[#allocation7 + $0x10] sm:$0xff] %v718
      %723 = vst [vmem:[#allocation7 + $0x18] sm:$0xff] %v719
      %v724 = vld [vmem:[#allocation4] sm:$0xff]
      %v725 = vld [vmem:[#allocation4 + $0x8] sm:$0xff]
      %v726 = vld [vmem:[#allocation4 + $0x10] sm:$0xff]
      %vm727 = vcmp.lt.s32.totalorder %v385, 14
      %vm728 = vcmp.lt.s32.totalorder %v386, 14
      %732 = vrot.lane.b32.xlu0 %v724, 124
      %v733 = vpop.permute.xlu0 %732
      %734 = vrot.lane.b32.xlu0 %v725, 124
      %v735 = vpop.permute.xlu0 %734
      %736 = vrot.lane.b32.xlu0 %v726, 124
      %v737 = vpop.permute.xlu0 %736
      %vm738 = vcmask 1014784
      %v739 = vsel %vm738, %v733, %v735
      %v740 = vsel %vm738, %v735, %v737
      %v743 = vsel %vm727, %v739, 0.0
      %v744 = vsel %vm728, %v740, 0.0
      %745 = vst [vmem:[#allocation7 + $0x20] sm:$0xff] %v743
      %746 = vst [vmem:[#allocation7 + $0x28] sm:$0xff] %v744
      %v747 = vld [vmem:[#allocation4] sm:$0xff]
      %v748 = vld [vmem:[#allocation4 + $0x8] sm:$0xff]
      %v749 = vld [vmem:[#allocation4 + $0x10] sm:$0xff]
      %753 = vrot.lane.b32.xlu0 %v747, 96
      %v754 = vpop.permute.xlu0 %753
      %755 = vrot.lane.b32.xlu0 %v748, 96
      %v756 = vpop.permute.xlu0 %755
      %757 = vrot.lane.b32.xlu0 %v749, 96
      %v758 = vpop.permute.xlu0 %757
      %v759 = vsel %vm519, %v754, %v756
      %v760 = vsel %vm519, %v756, %v758
      %v763 = vsel %vm700, %v759, 0.0
      %v764 = vsel %vm701, %v760, 0.0
      %765 = vst [vmem:[#allocation7 + $0x30] sm:$0xff] %v763
      %766 = vst [vmem:[#allocation7 + $0x38] sm:$0xff] %v764
      %v767 = vld [vmem:[#allocation4] sm:$0xff]
      %v768 = vld [vmem:[#allocation4 + $0x8] sm:$0xff]
      %v769 = vld [vmem:[#allocation4 + $0x10] sm:$0xff]
      %773 = vrot.lane.b32.xlu0 %v767, 94
      %v774 = vpop.permute.xlu0 %773
      %775 = vrot.lane.b32.xlu0 %v768, 94
      %v776 = vpop.permute.xlu0 %775
      %777 = vrot.lane.b32.xlu0 %v769, 94
      %v778 = vpop.permute.xlu0 %777
      %v779 = vsel %vm558, %v774, %v776
      %v780 = vsel %vm558, %v776, %v778
      %783 = vst [vmem:[#allocation7 + $0x40] sm:$0xff] %v779
      %784 = vst [vmem:[#allocation7 + $0x48] sm:$0xff] %v780
      %v785 = vld [vmem:[#allocation4] sm:$0xff]
      %v786 = vld [vmem:[#allocation4 + $0x8] sm:$0xff]
      %v787 = vld [vmem:[#allocation4 + $0x10] sm:$0xff]
      %791 = vrot.lane.b32.xlu0 %v785, 92
      %v792 = vpop.permute.xlu0 %791
      %793 = vrot.lane.b32.xlu0 %v786, 92
      %v794 = vpop.permute.xlu0 %793
      %795 = vrot.lane.b32.xlu0 %v787, 92
      %v796 = vpop.permute.xlu0 %795
      %vm797 = vcmask 752640
      %v798 = vsel %vm797, %v792, %v794
      %v799 = vsel %vm797, %v794, %v796
      %v802 = vsel %vm727, %v798, 0.0
      %v803 = vsel %vm728, %v799, 0.0
      %804 = vst [vmem:[#allocation7 + $0x50] sm:$0xff] %v802
      %805 = vst [vmem:[#allocation7 + $0x58] sm:$0xff] %v803
      %v806 = vld [vmem:[#allocation4] sm:$0xff]
      %v807 = vld [vmem:[#allocation4 + $0x8] sm:$0xff]
      %v808 = vld [vmem:[#allocation4 + $0x10] sm:$0xff]
      %812 = vrot.lane.b32.xlu0 %v806, 64
      %v813 = vpop.permute.xlu0 %812
      %814 = vrot.lane.b32.xlu0 %v807, 64
      %v815 = vpop.permute.xlu0 %814
      %816 = vrot.lane.b32.xlu0 %v808, 64
      %v817 = vpop.permute.xlu0 %816
      %vm818 = vcmask 523264
      %v819 = vsel %vm818, %v813, %v815
      %v820 = vsel %vm818, %v815, %v817
      %v823 = vsel %vm700, %v819, 0.0
      %v824 = vsel %vm701, %v820, 0.0
      %825 = vst [vmem:[#allocation7 + $0x60] sm:$0xff] %v823
      %826 = vst [vmem:[#allocation7 + $0x68] sm:$0xff] %v824
      %v827 = vld [vmem:[#allocation4] sm:$0xff]
      %v828 = vld [vmem:[#allocation4 + $0x8] sm:$0xff]
      %v829 = vld [vmem:[#allocation4 + $0x10] sm:$0xff]
      %833 = vrot.lane.b32.xlu0 %v827, 62
      %v834 = vpop.permute.xlu0 %833
      %835 = vrot.lane.b32.xlu0 %v828, 62
      %v836 = vpop.permute.xlu0 %835
      %837 = vrot.lane.b32.xlu0 %v829, 62
      %v838 = vpop.permute.xlu0 %837
      %vm839 = vcmask 506880
      %v840 = vsel %vm839, %v834, %v836
      %v841 = vsel %vm839, %v836, %v838
      %844 = vst [vmem:[#allocation7 + $0x70] sm:$0xff] %v840
      %845 = vst [vmem:[#allocation7 + $0x78] sm:$0xff] %v841
      %v846 = vld [vmem:[#allocation4] sm:$0xff]
      %v847 = vld [vmem:[#allocation4 + $0x8] sm:$0xff]
      %v848 = vld [vmem:[#allocation4 + $0x10] sm:$0xff]
      %852 = vrot.lane.b32.xlu0 %v846, 60
      %v853 = vpop.permute.xlu0 %852
      %854 = vrot.lane.b32.xlu0 %v847, 60
      %v855 = vpop.permute.xlu0 %854
      %856 = vrot.lane.b32.xlu0 %v848, 60
      %v857 = vpop.permute.xlu0 %856
      %vm858 = vcmask 490496
      %v859 = vsel %vm858, %v853, %v855
      %v860 = vsel %vm858, %v855, %v857
      %v863 = vsel %vm727, %v859, 0.0
      %v864 = vsel %vm728, %v860, 0.0
      %865 = vst [vmem:[#allocation7 + $0x80] sm:$0xff] %v863
      %866 = vst [vmem:[#allocation7 + $0x88] sm:$0xff] %v864
      %v867 = vld [vmem:[%s3] sm:$0xf]
      %v868 = vld [vmem:[#allocation7] sm:$0xff]
      %v869 = vld [vmem:[#allocation7 + $0x8] sm:$0xff]
      %v870 = vld [vmem:[#allocation7 + $0x10] sm:$0xff]
      %v871 = vld [vmem:[#allocation7 + $0x18] sm:$0xff]
      %v872 = vld [vmem:[#allocation7 + $0x20] sm:$0xff]
      %v873 = vld [vmem:[#allocation7 + $0x28] sm:$0xff]
      %v874 = vld [vmem:[#allocation7 + $0x30] sm:$0xff]
      %v875 = vld [vmem:[#allocation7 + $0x38] sm:$0xff]
      %v876 = vld [vmem:[#allocation7 + $0x40] sm:$0xff]
      %v877 = vld [vmem:[#allocation7 + $0x48] sm:$0xff]
      %v878 = vld [vmem:[#allocation7 + $0x50] sm:$0xff]
      %v879 = vld [vmem:[#allocation7 + $0x58] sm:$0xff]
      %v880 = vld [vmem:[#allocation7 + $0x60] sm:$0xff]
      %v881 = vld [vmem:[#allocation7 + $0x68] sm:$0xff]
      %v882 = vld [vmem:[#allocation7 + $0x70] sm:$0xff]
      %v883 = vld [vmem:[#allocation7 + $0x78] sm:$0xff]
      %v884 = vld [vmem:[#allocation7 + $0x80] sm:$0xff]
      %v885 = vld [vmem:[#allocation7 + $0x88] sm:$0xff]
      %vm886 = vcmask 588800
      %v888 = vsel %vm886, %v867, 0
      %890 = vmatprep.subr.mxu0 %v869
      %891 = vmatpush1.msra.mxu0 %v868
      %892 = vmatprep.subr.mxu0 %v871
      %893 = vmatpush1.msra.mxu0 %v870
      %894 = vmatprep.subr.mxu0 %v873
      %895 = vmatpush1.msra.mxu0 %v872
      %896 = vmatprep.subr.mxu0 %v875
      %897 = vmatpush1.msra.mxu0 %v874
      %898 = vmatprep.subr.mxu0 %v877
      %899 = vmatpush1.msra.mxu0 %v876
      %900 = vmatprep.subr.mxu0 %v879
      %901 = vmatpush1.msra.mxu0 %v878
      %902 = vmatprep.subr.mxu0 %v881
      %903 = vmatpush1.msra.mxu0 %v880
      %904 = vmatprep.subr.mxu0 %v883
      %905 = vmatpush1.msra.mxu0 %v882
      %906 = vmatprep.subr.mxu0 %v885
      %907 = vmatpush1.msra.mxu0 %v884
      %908 = vmatprep.subr.mxu0 0.0
      %909 = vmatpush1.msra.mxu0 0.0
      %910 = vmatprep.subr.mxu0 0.0
      %911 = vmatpush1.msra.mxu0 0.0
      %912 = vmatprep.subr.mxu0 0.0
      %913 = vmatpush1.msra.mxu0 0.0
      %914 = vmatprep.subr.mxu0 0.0
      %915 = vmatpush1.msra.mxu0 0.0
      %916 = vmatprep.subr.mxu0 0.0
      %917 = vmatpush1.msra.mxu0 0.0
      %918 = vmatprep.subr.mxu0 0.0
      %919 = vmatpush1.msra.mxu0 0.0
      %920 = vmatprep.subr.mxu0 0.0
      %921 = vmatpush1.msra.mxu0 0.0
      %922 = vmatprep.subr.mxu0 0.0
      %923 = vmatpush1.msra.mxu0 0.0
      %924 = vmatprep.subr.mxu0 0.0
      %925 = vmatpush1.msra.mxu0 0.0
      %926 = vmatprep.subr.mxu0 0.0
      %927 = vmatpush1.msra.mxu0 0.0
      %928 = vmatprep.subr.mxu0 0.0
      %929 = vmatpush1.msra.mxu0 0.0
      %930 = vmatprep.subr.mxu0 0.0
      %931 = vmatpush1.msra.mxu0 0.0
      %932 = vmatprep.subr.mxu0 0.0
      %933 = vmatpush1.msra.mxu0 0.0
      %934 = vmatprep.subr.mxu0 0.0
      %935 = vmatpush1.msra.mxu0 0.0
      %936 = vmatprep.subr.mxu0 0.0
      %937 = vmatpush1.msra.mxu0 0.0
      %938 = vmatprep.subr.mxu0 0.0
      %939 = vmatpush1.msra.mxu0 0.0
      %940 = vmatprep.subr.mxu0 0.0
      %941 = vmatpush1.msra.mxu0 0.0
      %942 = vmatprep.subr.mxu0 0.0
      %943 = vmatpush1.msra.mxu0 0.0
      %944 = vmatprep.subr.mxu0 0.0
      %945 = vmatpush1.msra.mxu0 0.0
      %946 = vmatprep.subr.mxu0 0.0
      %947 = vmatpush1.msra.mxu0 0.0
      %948 = vmatprep.subr.mxu0 0.0
      %949 = vmatpush1.msra.mxu0 0.0
      %950 = vmatprep.subr.mxu0 0.0
      %951 = vmatpush1.msra.mxu0 0.0
      %952 = vmatprep.subr.mxu0 0.0
      %953 = vmatpush1.msra.mxu0 0.0
      %954 = vmatprep.mubr.f32.mxu0 0.0
      %955 = vmatmul.mubr.f32.gmra.mrb[0].mxu0 %v888
      %v956 = vpop.f32.mrb[0].mxu0
      %v957 = vadd.f32 0.0, %v956
      %v958 = vpop.f32.mrb[0].mxu0
      %v959 = vadd.f32 0.0, %v958
      %960 = vdwg.mxu0
      %v961 = vld [vmem:[%s4] sm:$0xf]
      %963 = vset.pattern.permute.xlu0 0
      %964 = vperm.xlu0 %963, %v961
      %v965 = vpop.permute.xlu0 %964
      %v967 = vmul.f32 %v957, %v965
      %v968 = vmul.f32 %v959, %v965
      %969 = vset.pattern.permute.xlu0 1
      %970 = vperm.xlu0 %969, %v961
      %v971 = vpop.permute.xlu0 %970
      %v973 = vadd.f32 %v967, %v971
      %v974 = vadd.f32 %v968, %v971
      %v975 = vmax.f32 %v973, 0.0
      %v976 = vmax.f32 %v974, 0.0
      %v979 = vrot.slane %v975, 4
      %v980 = vrot.slane %v976, 4
      %983 = vst [vmem:[#allocation2] sm:$0xf0] %v979
      %984 = vst [vmem:[#allocation2 + $0x8] sm:$0xf0] %v980
      %vm985 = vcmask 416768
      %986 = vst.msk [vmem:[#allocation5] sm:$0xff] %vm985, 0.0
      %vm987 = vcmask 412672
      %988 = vst.msk [vmem:[#allocation5 + $0x18] sm:$0xf] %vm987, 0.0
      %vm989 = vcmask 834968
      %990 = vst.msk [vmem:[#allocation5 + $0x10] sm:$0xff] %vm989, 0.0
      %vm991 = vcmask 830872
      %992 = vst.msk [vmem:[#allocation5 + $0x28] sm:$0xf] %vm991, 0.0
      %v993 = vld [vmem:[#allocation2] sm:$0xf0]
      %v994 = vld [vmem:[#allocation2 + $0x8] sm:$0xf0]
      %v995 = vld [vmem:[#allocation2 + $0x10] sm:$0xff]
      %v996 = vld [vmem:[#allocation2 + $0x18] sm:$0xff]
      %v1001 = vrot.slane %v993, 4
      %v1002 = vrot.slane %v995, 4
      %v1003 = vsel %vm582, %v1001, %v1002
      %v1004 = vrot.slane %v994, 4
      %v1005 = vrot.slane %v996, 4
      %v1006 = vsel %vm582, %v1004, %v1005
      %1007 = vrot.lane.b32.xlu0 %v1003, 51
      %v1008 = vpop.permute.xlu0 %1007
      %1009 = vrot.lane.b32.xlu0 %v1006, 51
      %v1010 = vpop.permute.xlu0 %1009
      %1011 = vrot.lane.b32.xlu0 %v1002, 51
      %v1012 = vpop.permute.xlu0 %1011
      %1013 = vrot.lane.b32.xlu0 %v1005, 51
      %v1014 = vpop.permute.xlu0 %1013
      %v1015 = vsel %vm985, %v1008, %v1010
      %v1016 = vsel %vm985, %v1012, %v1014
      %vm1023 = vcmask 1047960
      %1024 = vst.msk [vmem:[#allocation5] sm:$0xff] %vm1023, %v1008
      %1025 = vst [vmem:[#allocation5 + $0x8] sm:$0xff] %v1015
      %1026 = vst.msk [vmem:[#allocation5 + $0x10] sm:$0xff] %vm985, %v1010
      %vm1027 = vcmask 1043864
      %1028 = vst.msk [vmem:[#allocation5 + $0x18] sm:$0xf] %vm1027, %v1012
      %1029 = vst [vmem:[#allocation5 + $0x20] sm:$0xf] %v1016
      %1030 = vst.msk [vmem:[#allocation5 + $0x28] sm:$0xf] %vm987, %v1014
      %v1031 = vld [vmem:[#allocation5] sm:$0xff]
      %v1032 = vld [vmem:[#allocation5 + $0x8] sm:$0xff]
      %v1033 = vld [vmem:[#allocation5 + $0x18] sm:$0xf]
      %v1034 = vld [vmem:[#allocation5 + $0x20] sm:$0xf]
      %vm1035 = vcmp.ge.s32.totalorder %v385, 3
      %vm1036 = vcmp.ge.s32.totalorder %v386, 3
      %v1037 = vsel %vm1035, %v1031, 0.0
      %v1038 = vsel %vm1036, %v1032, 0.0
      %v1039 = vsel %vm1035, %v1033, 0.0
      %v1040 = vsel %vm1036, %v1034, 0.0
      %1041 = vst [vmem:[#allocation8] sm:$0xff] %v1037
      %1042 = vst [vmem:[#allocation8 + $0x8] sm:$0xff] %v1038
      %1043 = vst [vmem:[#allocation8 + $0x10] sm:$0xf] %v1039
      %1044 = vst [vmem:[#allocation8 + $0x18] sm:$0xf] %v1040
      %v1045 = vld [vmem:[#allocation5] sm:$0xff]
      %v1046 = vld [vmem:[#allocation5 + $0x8] sm:$0xff]
      %v1047 = vld [vmem:[#allocation5 + $0x10] sm:$0xff]
      %v1048 = vld [vmem:[#allocation5 + $0x18] sm:$0xf]
      %v1049 = vld [vmem:[#allocation5 + $0x20] sm:$0xf]
      %v1050 = vld [vmem:[#allocation5 + $0x28] sm:$0xf]
      %v1057 = vrot.slane %v1045, 4
      %v1058 = vrot.slane %v1046, 4
      %v1059 = vrot.slane %v1047, 4
      %v1060 = vrot.slane %v1048, 4
      %v1061 = vsel %vm582, %v1057, %v1060
      %v1062 = vrot.slane %v1049, 4
      %v1063 = vsel %vm582, %v1058, %v1062
      %v1064 = vrot.slane %v1050, 4
      %v1065 = vsel %vm582, %v1059, %v1064
      %1066 = vrot.lane.b32.xlu0 %v1057, 125
      %v1067 = vpop.permute.xlu0 %1066
      %1068 = vrot.lane.b32.xlu0 %v1058, 125
      %v1069 = vpop.permute.xlu0 %1068
      %1070 = vrot.lane.b32.xlu0 %v1059, 125
      %v1071 = vpop.permute.xlu0 %1070
      %1072 = vrot.lane.b32.xlu0 %v1061, 125
      %v1073 = vpop.permute.xlu0 %1072
      %1074 = vrot.lane.b32.xlu0 %v1063, 125
      %v1075 = vpop.permute.xlu0 %1074
      %1076 = vrot.lane.b32.xlu0 %v1065, 125
      %v1077 = vpop.permute.xlu0 %1076
      %vm1078 = vcmask 1022976
      %v1079 = vsel %vm1078, %v1067, %v1069
      %v1080 = vsel %vm1078, %v1069, %v1071
      %v1081 = vsel %vm1078, %v1073, %v1075
      %v1082 = vsel %vm1078, %v1075, %v1077
      %1087 = vst [vmem:[#allocation8 + $0x10] sm:$0xf0] %v1079
      %1088 = vst [vmem:[#allocation8 + $0x18] sm:$0xf0] %v1080
      %1089 = vst [vmem:[#allocation8 + $0x20] sm:$0xff] %v1081
      %1090 = vst [vmem:[#allocation8 + $0x28] sm:$0xff] %v1082
      %v1091 = vld [vmem:[#allocation5] sm:$0xff]
      %v1092 = vld [vmem:[#allocation5 + $0x8] sm:$0xff]
      %v1093 = vld [vmem:[#allocation5 + $0x10] sm:$0xff]
      %v1094 = vld [vmem:[#allocation5 + $0x18] sm:$0xf]
      %v1095 = vld [vmem:[#allocation5 + $0x20] sm:$0xf]
      %v1096 = vld [vmem:[#allocation5 + $0x28] sm:$0xf]
      %vm1097 = vcmp.lt.s32.totalorder %v385, 13
      %vm1098 = vcmp.lt.s32.totalorder %v386, 13
      %1105 = vrot.lane.b32.xlu0 %v1091, 122
      %v1106 = vpop.permute.xlu0 %1105
      %1107 = vrot.lane.b32.xlu0 %v1092, 122
      %v1108 = vpop.permute.xlu0 %1107
      %1109 = vrot.lane.b32.xlu0 %v1093, 122
      %v1110 = vpop.permute.xlu0 %1109
      %1111 = vrot.lane.b32.xlu0 %v1094, 122
      %v1112 = vpop.permute.xlu0 %1111
      %1113 = vrot.lane.b32.xlu0 %v1095, 122
      %v1114 = vpop.permute.xlu0 %1113
      %1115 = vrot.lane.b32.xlu0 %v1096, 122
      %v1116 = vpop.permute.xlu0 %1115
      %vm1117 = vcmask 998400
      %v1118 = vsel %vm1117, %v1106, %v1108
      %v1119 = vsel %vm1117, %v1108, %v1110
      %v1120 = vsel %vm1117, %v1112, %v1114
      %v1121 = vsel %vm1117, %v1114, %v1116
      %v1126 = vsel %vm1097, %v1118, 0.0
      %v1127 = vsel %vm1098, %v1119, 0.0
      %v1128 = vsel %vm1097, %v1120, 0.0
      %v1129 = vsel %vm1098, %v1121, 0.0
      %1130 = vst [vmem:[#allocation8 + $0x30] sm:$0xff] %v1126
      %1131 = vst [vmem:[#allocation8 + $0x38] sm:$0xff] %v1127
      %1132 = vst [vmem:[#allocation8 + $0x40] sm:$0xf] %v1128
      %1133 = vst [vmem:[#allocation8 + $0x48] sm:$0xf] %v1129
      %v1134 = vld [vmem:[#allocation5] sm:$0xff]
      %v1135 = vld [vmem:[#allocation5 + $0x8] sm:$0xff]
      %v1136 = vld [vmem:[#allocation5 + $0x10] sm:$0xff]
      %v1137 = vld [vmem:[#allocation5 + $0x18] sm:$0xf]
      %v1138 = vld [vmem:[#allocation5 + $0x20] sm:$0xf]
      %v1139 = vld [vmem:[#allocation5 + $0x28] sm:$0xf]
      %1146 = vrot.lane.b32.xlu0 %v1134, 80
      %v1147 = vpop.permute.xlu0 %1146
      %1148 = vrot.lane.b32.xlu0 %v1135, 80
      %v1149 = vpop.permute.xlu0 %1148
      %1150 = vrot.lane.b32.xlu0 %v1136, 80
      %v1151 = vpop.permute.xlu0 %1150
      %1152 = vrot.lane.b32.xlu0 %v1137, 80
      %v1153 = vpop.permute.xlu0 %1152
      %1154 = vrot.lane.b32.xlu0 %v1138, 80
      %v1155 = vpop.permute.xlu0 %1154
      %1156 = vrot.lane.b32.xlu0 %v1139, 80
      %v1157 = vpop.permute.xlu0 %1156
      %vm1158 = vcmask 654336
      %v1159 = vsel %vm1158, %v1147, %v1149
      %v1160 = vsel %vm1158, %v1149, %v1151
      %v1161 = vsel %vm1158, %v1153, %v1155
      %v1162 = vsel %vm1158, %v1155, %v1157
      %v1167 = vsel %vm1035, %v1159, 0.0
      %v1168 = vsel %vm1036, %v1160, 0.0
      %v1169 = vsel %vm1035, %v1161, 0.0
      %v1170 = vsel %vm1036, %v1162, 0.0
      %v1175 = vrot.slane %v1167, 4
      %v1176 = vrot.slane %v1168, 4
      %v1177 = vrot.slane %v1169, 4
      %v1178 = vsel %vm582, %v1175, %v1177
      %v1179 = vrot.slane %v1170, 4
      %v1180 = vsel %vm582, %v1176, %v1179
      %1185 = vst [vmem:[#allocation8 + $0x40] sm:$0xf0] %v1175
      %1186 = vst [vmem:[#allocation8 + $0x48] sm:$0xf0] %v1176
      %1187 = vst [vmem:[#allocation8 + $0x50] sm:$0xff] %v1178
      %1188 = vst [vmem:[#allocation8 + $0x58] sm:$0xff] %v1180
      %v1189 = vld [vmem:[#allocation5] sm:$0xff]
      %v1190 = vld [vmem:[#allocation5 + $0x8] sm:$0xff]
      %v1191 = vld [vmem:[#allocation5 + $0x10] sm:$0xff]
      %v1192 = vld [vmem:[#allocation5 + $0x18] sm:$0xf]
      %v1193 = vld [vmem:[#allocation5 + $0x20] sm:$0xf]
      %v1194 = vld [vmem:[#allocation5 + $0x28] sm:$0xf]
      %1201 = vrot.lane.b32.xlu0 %v1189, 77
      %v1202 = vpop.permute.xlu0 %1201
      %1203 = vrot.lane.b32.xlu0 %v1190, 77
      %v1204 = vpop.permute.xlu0 %1203
      %1205 = vrot.lane.b32.xlu0 %v1191, 77
      %v1206 = vpop.permute.xlu0 %1205
      %1207 = vrot.lane.b32.xlu0 %v1192, 77
      %v1208 = vpop.permute.xlu0 %1207
      %1209 = vrot.lane.b32.xlu0 %v1193, 77
      %v1210 = vpop.permute.xlu0 %1209
      %1211 = vrot.lane.b32.xlu0 %v1194, 77
      %v1212 = vpop.permute.xlu0 %1211
      %vm1213 = vcmask 629760
      %v1214 = vsel %vm1213, %v1202, %v1204
      %v1215 = vsel %vm1213, %v1204, %v1206
      %v1216 = vsel %vm1213, %v1208, %v1210
      %v1217 = vsel %vm1213, %v1210, %v1212
      %1222 = vst [vmem:[#allocation8 + $0x60] sm:$0xff] %v1214
      %1223 = vst [vmem:[#allocation8 + $0x68] sm:$0xff] %v1215
      %1224 = vst [vmem:[#allocation8 + $0x70] sm:$0xf] %v1216
      %1225 = vst [vmem:[#allocation8 + $0x78] sm:$0xf] %v1217
      %v1226 = vld [vmem:[#allocation5] sm:$0xff]
      %v1227 = vld [vmem:[#allocation5 + $0x8] sm:$0xff]
      %v1228 = vld [vmem:[#allocation5 + $0x10] sm:$0xff]
      %v1229 = vld [vmem:[#allocation5 + $0x18] sm:$0xf]
      %v1230 = vld [vmem:[#allocation5 + $0x20] sm:$0xf]
      %v1231 = vld [vmem:[#allocation5 + $0x28] sm:$0xf]
      %1238 = vrot.lane.b32.xlu0 %v1226, 74
      %v1239 = vpop.permute.xlu0 %1238
      %1240 = vrot.lane.b32.xlu0 %v1227, 74
      %v1241 = vpop.permute.xlu0 %1240
      %1242 = vrot.lane.b32.xlu0 %v1228, 74
      %v1243 = vpop.permute.xlu0 %1242
      %1244 = vrot.lane.b32.xlu0 %v1229, 74
      %v1245 = vpop.permute.xlu0 %1244
      %1246 = vrot.lane.b32.xlu0 %v1230, 74
      %v1247 = vpop.permute.xlu0 %1246
      %1248 = vrot.lane.b32.xlu0 %v1231, 74
      %v1249 = vpop.permute.xlu0 %1248
      %vm1250 = vcmask 605184
      %v1251 = vsel %vm1250, %v1239, %v1241
      %v1252 = vsel %vm1250, %v1241, %v1243
      %v1253 = vsel %vm1250, %v1245, %v1247
      %v1254 = vsel %vm1250, %v1247, %v1249
      %v1259 = vsel %vm1097, %v1251, 0.0
      %v1260 = vsel %vm1098, %v1252, 0.0
      %v1261 = vsel %vm1097, %v1253, 0.0
      %v1262 = vsel %vm1098, %v1254, 0.0
      %v1267 = vrot.slane %v1259, 4
      %v1268 = vrot.slane %v1260, 4
      %v1269 = vrot.slane %v1261, 4
      %v1270 = vsel %vm582, %v1267, %v1269
      %v1271 = vrot.slane %v1262, 4
      %v1272 = vsel %vm582, %v1268, %v1271
      %1277 = vst [vmem:[#allocation8 + $0x70] sm:$0xf0] %v1267
      %1278 = vst [vmem:[#allocation8 + $0x78] sm:$0xf0] %v1268
      %1279 = vst [vmem:[#allocation8 + $0x80] sm:$0xff] %v1270
      %1280 = vst [vmem:[#allocation8 + $0x88] sm:$0xff] %v1272
      %v1281 = vld [vmem:[#allocation5] sm:$0xff]
      %v1282 = vld [vmem:[#allocation5 + $0x8] sm:$0xff]
      %v1283 = vld [vmem:[#allocation5 + $0x10] sm:$0xff]
      %v1284 = vld [vmem:[#allocation5 + $0x18] sm:$0xf]
      %v1285 = vld [vmem:[#allocation5 + $0x20] sm:$0xf]
      %v1286 = vld [vmem:[#allocation5 + $0x28] sm:$0xf]
      %1293 = vrot.lane.b32.xlu0 %v1281, 32
      %v1294 = vpop.permute.xlu0 %1293
      %1295 = vrot.lane.b32.xlu0 %v1282, 32
      %v1296 = vpop.permute.xlu0 %1295
      %1297 = vrot.lane.b32.xlu0 %v1283, 32
      %v1298 = vpop.permute.xlu0 %1297
      %1299 = vrot.lane.b32.xlu0 %v1284, 32
      %v1300 = vpop.permute.xlu0 %1299
      %1301 = vrot.lane.b32.xlu0 %v1285, 32
      %v1302 = vpop.permute.xlu0 %1301
      %1303 = vrot.lane.b32.xlu0 %v1286, 32
      %v1304 = vpop.permute.xlu0 %1303
      %vm1305 = vcmask 261120
      %v1306 = vsel %vm1305, %v1294, %v1296
      %v1307 = vsel %vm1305, %v1296, %v1298
      %v1308 = vsel %vm1305, %v1300, %v1302
      %v1309 = vsel %vm1305, %v1302, %v1304
      %v1314 = vsel %vm1035, %v1306, 0.0
      %v1315 = vsel %vm1036, %v1307, 0.0
      %v1316 = vsel %vm1035, %v1308, 0.0
      %v1317 = vsel %vm1036, %v1309, 0.0
      %1318 = vst [vmem:[#allocation8 + $0x90] sm:$0xff] %v1314
      %1319 = vst [vmem:[#allocation8 + $0x98] sm:$0xff] %v1315
      %1320 = vst [vmem:[#allocation8 + $0xa0] sm:$0xf] %v1316
      %1321 = vst [vmem:[#allocation8 + $0xa8] sm:$0xf] %v1317
      %v1322 = vld [vmem:[#allocation5] sm:$0xff]
      %v1323 = vld [vmem:[#allocation5 + $0x8] sm:$0xff]
      %v1324 = vld [vmem:[#allocation5 + $0x10] sm:$0xff]
      %v1325 = vld [vmem:[#allocation5 + $0x18] sm:$0xf]
      %v1326 = vld [vmem:[#allocation5 + $0x20] sm:$0xf]
      %v1327 = vld [vmem:[#allocation5 + $0x28] sm:$0xf]
      %v1334 = vrot.slane %v1322, 4
      %v1335 = vrot.slane %v1323, 4
      %v1336 = vrot.slane %v1324, 4
      %v1337 = vrot.slane %v1325, 4
      %v1338 = vsel %vm582, %v1334, %v1337
      %v1339 = vrot.slane %v1326, 4
      %v1340 = vsel %vm582, %v1335, %v1339
      %v1341 = vrot.slane %v1327, 4
      %v1342 = vsel %vm582, %v1336, %v1341
      %1343 = vrot.lane.b32.xlu0 %v1334, 29
      %v1344 = vpop.permute.xlu0 %1343
      %1345 = vrot.lane.b32.xlu0 %v1335, 29
      %v1346 = vpop.permute.xlu0 %1345
      %1347 = vrot.lane.b32.xlu0 %v1336, 29
      %v1348 = vpop.permute.xlu0 %1347
      %1349 = vrot.lane.b32.xlu0 %v1338, 29
      %v1350 = vpop.permute.xlu0 %1349
      %1351 = vrot.lane.b32.xlu0 %v1340, 29
      %v1352 = vpop.permute.xlu0 %1351
      %1353 = vrot.lane.b32.xlu0 %v1342, 29
      %v1354 = vpop.permute.xlu0 %1353
      %vm1355 = vcmask 236544
      %v1356 = vsel %vm1355, %v1344, %v1346
      %v1357 = vsel %vm1355, %v1346, %v1348
      %v1358 = vsel %vm1355, %v1350, %v1352
      %v1359 = vsel %vm1355, %v1352, %v1354
      %1364 = vst [vmem:[#allocation8 + $0xa0] sm:$0xf0] %v1356
      %1365 = vst [vmem:[#allocation8 + $0xa8] sm:$0xf0] %v1357
      %1366 = vst [vmem:[#allocation8 + $0xb0] sm:$0xff] %v1358
      %1367 = vst [vmem:[#allocation8 + $0xb8] sm:$0xff] %v1359
      %v1368 = vld [vmem:[#allocation5] sm:$0xff]
      %v1369 = vld [vmem:[#allocation5 + $0x8] sm:$0xff]
      %v1370 = vld [vmem:[#allocation5 + $0x10] sm:$0xff]
      %v1371 = vld [vmem:[#allocation5 + $0x18] sm:$0xf]
      %v1372 = vld [vmem:[#allocation5 + $0x20] sm:$0xf]
      %v1373 = vld [vmem:[#allocation5 + $0x28] sm:$0xf]
      %1380 = vrot.lane.b32.xlu0 %v1368, 26
      %v1381 = vpop.permute.xlu0 %1380
      %1382 = vrot.lane.b32.xlu0 %v1369, 26
      %v1383 = vpop.permute.xlu0 %1382
      %1384 = vrot.lane.b32.xlu0 %v1370, 26
      %v1385 = vpop.permute.xlu0 %1384
      %1386 = vrot.lane.b32.xlu0 %v1371, 26
      %v1387 = vpop.permute.xlu0 %1386
      %1388 = vrot.lane.b32.xlu0 %v1372, 26
      %v1389 = vpop.permute.xlu0 %1388
      %1390 = vrot.lane.b32.xlu0 %v1373, 26
      %v1391 = vpop.permute.xlu0 %1390
      %vm1392 = vcmask 211968
      %v1393 = vsel %vm1392, %v1381, %v1383
      %v1394 = vsel %vm1392, %v1383, %v1385
      %v1395 = vsel %vm1392, %v1387, %v1389
      %v1396 = vsel %vm1392, %v1389, %v1391
      %v1401 = vsel %vm1097, %v1393, 0.0
      %v1402 = vsel %vm1098, %v1394, 0.0
      %v1403 = vsel %vm1097, %v1395, 0.0
      %v1404 = vsel %vm1098, %v1396, 0.0
      %1405 = vst [vmem:[#allocation8 + $0xc0] sm:$0xff] %v1401
      %1406 = vst [vmem:[#allocation8 + $0xc8] sm:$0xff] %v1402
      %1407 = vst [vmem:[#allocation8 + $0xd0] sm:$0xf] %v1403
      %1408 = vst [vmem:[#allocation8 + $0xd8] sm:$0xf] %v1404
      %v1409 = vld [vmem:[%s5] sm:$0xf]
      %v1410 = vld [vmem:[#allocation8] sm:$0xff]
      %v1411 = vld [vmem:[#allocation8 + $0x8] sm:$0xff]
      %v1412 = vld [vmem:[#allocation8 + $0x10] sm:$0xff]
      %v1413 = vld [vmem:[#allocation8 + $0x18] sm:$0xff]
      %v1414 = vld [vmem:[#allocation8 + $0x20] sm:$0xff]
      %v1415 = vld [vmem:[#allocation8 + $0x28] sm:$0xff]
      %v1416 = vld [vmem:[#allocation8 + $0x30] sm:$0xff]
      %v1417 = vld [vmem:[#allocation8 + $0x38] sm:$0xff]
      %v1418 = vld [vmem:[#allocation8 + $0x40] sm:$0xff]
      %v1419 = vld [vmem:[#allocation8 + $0x48] sm:$0xff]
      %v1420 = vld [vmem:[#allocation8 + $0x50] sm:$0xff]
      %v1421 = vld [vmem:[#allocation8 + $0x58] sm:$0xff]
      %v1422 = vld [vmem:[#allocation8 + $0x60] sm:$0xff]
      %v1423 = vld [vmem:[#allocation8 + $0x68] sm:$0xff]
      %v1424 = vld [vmem:[#allocation8 + $0x70] sm:$0xff]
      %v1425 = vld [vmem:[#allocation8 + $0x78] sm:$0xff]
      %v1426 = vld [vmem:[#allocation8 + $0x80] sm:$0xff]
      %v1427 = vld [vmem:[#allocation8 + $0x88] sm:$0xff]
      %v1428 = vld [vmem:[#allocation8 + $0x90] sm:$0xff]
      %v1429 = vld [vmem:[#allocation8 + $0x98] sm:$0xff]
      %v1430 = vld [vmem:[#allocation8 + $0xa0] sm:$0xff]
      %v1431 = vld [vmem:[#allocation8 + $0xa8] sm:$0xff]
      %v1432 = vld [vmem:[#allocation8 + $0xb0] sm:$0xff]
      %v1433 = vld [vmem:[#allocation8 + $0xb8] sm:$0xff]
      %v1434 = vld [vmem:[#allocation8 + $0xc0] sm:$0xff]
      %v1435 = vld [vmem:[#allocation8 + $0xc8] sm:$0xff]
      %v1436 = vld [vmem:[#allocation8 + $0xd0] sm:$0xf]
      %v1437 = vld [vmem:[#allocation8 + $0xd8] sm:$0xf]
      %vm1438 = vcmask 883712
      %v1440 = vsel %vm1438, %v1409, 0
      %v1443 = vsel %vm582, %v1436, 0
      %v1446 = vsel %vm582, %v1437, 0
      %1448 = vmatprep.subr.mxu0 %v1411
      %1449 = vmatpush1.msra.mxu0 %v1410
      %1450 = vmatprep.subr.mxu0 %v1413
      %1451 = vmatpush1.msra.mxu0 %v1412
      %1452 = vmatprep.subr.mxu0 %v1415
      %1453 = vmatpush1.msra.mxu0 %v1414
      %1454 = vmatprep.subr.mxu0 %v1417
      %1455 = vmatpush1.msra.mxu0 %v1416
      %1456 = vmatprep.subr.mxu0 %v1419
      %1457 = vmatpush1.msra.mxu0 %v1418
      %1458 = vmatprep.subr.mxu0 %v1421
      %1459 = vmatpush1.msra.mxu0 %v1420
      %1460 = vmatprep.subr.mxu0 %v1423
      %1461 = vmatpush1.msra.mxu0 %v1422
      %1462 = vmatprep.subr.mxu0 %v1425
      %1463 = vmatpush1.msra.mxu0 %v1424
      %1464 = vmatprep.subr.mxu0 %v1427
      %1465 = vmatpush1.msra.mxu0 %v1426
      %1466 = vmatprep.subr.mxu0 %v1429
      %1467 = vmatpush1.msra.mxu0 %v1428
      %1468 = vmatprep.subr.mxu0 %v1431
      %1469 = vmatpush1.msra.mxu0 %v1430
      %1470 = vmatprep.subr.mxu0 %v1433
      %1471 = vmatpush1.msra.mxu0 %v1432
      %1472 = vmatprep.subr.mxu0 %v1435
      %1473 = vmatpush1.msra.mxu0 %v1434
      %1474 = vmatprep.subr.mxu0 %v1446
      %1475 = vmatpush1.msra.mxu0 %v1443
      %1476 = vmatprep.subr.mxu0 0.0
      %1477 = vmatpush1.msra.mxu0 0.0
      %1478 = vmatprep.subr.mxu0 0.0
      %1479 = vmatpush1.msra.mxu0 0.0
      %1480 = vmatprep.subr.mxu0 0.0
      %1481 = vmatpush1.msra.mxu0 0.0
      %1482 = vmatprep.subr.mxu0 0.0
      %1483 = vmatpush1.msra.mxu0 0.0
      %1484 = vmatprep.subr.mxu0 0.0
      %1485 = vmatpush1.msra.mxu0 0.0
      %1486 = vmatprep.subr.mxu0 0.0
      %1487 = vmatpush1.msra.mxu0 0.0
      %1488 = vmatprep.subr.mxu0 0.0
      %1489 = vmatpush1.msra.mxu0 0.0
      %1490 = vmatprep.subr.mxu0 0.0
      %1491 = vmatpush1.msra.mxu0 0.0
      %1492 = vmatprep.subr.mxu0 0.0
      %1493 = vmatpush1.msra.mxu0 0.0
      %1494 = vmatprep.subr.mxu0 0.0
      %1495 = vmatpush1.msra.mxu0 0.0
      %1496 = vmatprep.subr.mxu0 0.0
      %1497 = vmatpush1.msra.mxu0 0.0
      %1498 = vmatprep.subr.mxu0 0.0
      %1499 = vmatpush1.msra.mxu0 0.0
      %1500 = vmatprep.subr.mxu0 0.0
      %1501 = vmatpush1.msra.mxu0 0.0
      %1502 = vmatprep.subr.mxu0 0.0
      %1503 = vmatpush1.msra.mxu0 0.0
      %1504 = vmatprep.subr.mxu0 0.0
      %1505 = vmatpush1.msra.mxu0 0.0
      %1506 = vmatprep.subr.mxu0 0.0
      %1507 = vmatpush1.msra.mxu0 0.0
      %1508 = vmatprep.subr.mxu0 0.0
      %1509 = vmatpush1.msra.mxu0 0.0
      %1510 = vmatprep.subr.mxu0 0.0
      %1511 = vmatpush1.msra.mxu0 0.0
      %1512 = vmatprep.mubr.f32.mxu0 0.0
      %1513 = vmatmul.mubr.f32.gmra.mrb[0].mxu0 %v1440
      %v1514 = vpop.f32.mrb[0].mxu0
      %v1515 = vadd.f32 0.0, %v1514
      %v1516 = vpop.f32.mrb[0].mxu0
      %v1517 = vadd.f32 0.0, %v1516
      %1518 = vdwg.mxu0
      %v1519 = vld [vmem:[%s6] sm:$0xf]
      %1521 = vset.pattern.permute.xlu0 0
      %1522 = vperm.xlu0 %1521, %v1519
      %v1523 = vpop.permute.xlu0 %1522
      %v1525 = vmul.f32 %v1515, %v1523
      %v1526 = vmul.f32 %v1517, %v1523
      %1527 = vset.pattern.permute.xlu0 1
      %1528 = vperm.xlu0 %1527, %v1519
      %v1529 = vpop.permute.xlu0 %1528
      %v1531 = vadd.f32 %v1525, %v1529
      %v1532 = vadd.f32 %v1526, %v1529
      %v1533 = vmax.f32 %v1531, 0.0
      %v1534 = vmax.f32 %v1532, 0.0
      %1535 = vst [vmem:[#allocation2] sm:$0xf] %v1533
      %1536 = vst [vmem:[#allocation2 + $0x8] sm:$0xf] %v1534
      %v1537 = vld [vmem:[%s7] sm:$0xf]
      %v1538 = vld [vmem:[#allocation2] sm:$0xff]
      %v1539 = vld [vmem:[#allocation2 + $0x8] sm:$0xff]
      %v1540 = vld [vmem:[#allocation2 + $0x10] sm:$0xff]
      %v1541 = vld [vmem:[#allocation2 + $0x18] sm:$0xff]
      %vm1542 = vcmask 130048
      %v1544 = vsel %vm1542, %v1537, 0
      %1546 = vmatprep.subr.mxu0 %v1539
      %1547 = vmatpush1.msra.mxu0 %v1538
      %1548 = vmatprep.subr.mxu0 %v1541
      %1549 = vmatpush1.msra.mxu0 %v1540
      %1550 = vmatprep.subr.mxu0 0.0
      %1551 = vmatpush1.msra.mxu0 0.0
      %1552 = vmatprep.subr.mxu0 0.0
      %1553 = vmatpush1.msra.mxu0 0.0
      %1554 = vmatprep.subr.mxu0 0.0
      %1555 = vmatpush1.msra.mxu0 0.0
      %1556 = vmatprep.subr.mxu0 0.0
      %1557 = vmatpush1.msra.mxu0 0.0
      %1558 = vmatprep.subr.mxu0 0.0
      %1559 = vmatpush1.msra.mxu0 0.0
      %1560 = vmatprep.subr.mxu0 0.0
      %1561 = vmatpush1.msra.mxu0 0.0
      %1562 = vmatprep.subr.mxu0 0.0
      %1563 = vmatpush1.msra.mxu0 0.0
      %1564 = vmatprep.subr.mxu0 0.0
      %1565 = vmatpush1.msra.mxu0 0.0
      %1566 = vmatprep.subr.mxu0 0.0
      %1567 = vmatpush1.msra.mxu0 0.0
      %1568 = vmatprep.subr.mxu0 0.0
      %1569 = vmatpush1.msra.mxu0 0.0
      %1570 = vmatprep.subr.mxu0 0.0
      %1571 = vmatpush1.msra.mxu0 0.0
      %1572 = vmatprep.subr.mxu0 0.0
      %1573 = vmatpush1.msra.mxu0 0.0
      %1574 = vmatprep.subr.mxu0 0.0
      %1575 = vmatpush1.msra.mxu0 0.0
      %1576 = vmatprep.subr.mxu0 0.0
      %1577 = vmatpush1.msra.mxu0 0.0
      %1578 = vmatprep.subr.mxu0 0.0
      %1579 = vmatpush1.msra.mxu0 0.0
      %1580 = vmatprep.subr.mxu0 0.0
      %1581 = vmatpush1.msra.mxu0 0.0
      %1582 = vmatprep.subr.mxu0 0.0
      %1583 = vmatpush1.msra.mxu0 0.0
      %1584 = vmatprep.subr.mxu0 0.0
      %1585 = vmatpush1.msra.mxu0 0.0
      %1586 = vmatprep.subr.mxu0 0.0
      %1587 = vmatpush1.msra.mxu0 0.0
      %1588 = vmatprep.subr.mxu0 0.0
      %1589 = vmatpush1.msra.mxu0 0.0
      %1590 = vmatprep.subr.mxu0 0.0
      %1591 = vmatpush1.msra.mxu0 0.0
      %1592 = vmatprep.subr.mxu0 0.0
      %1593 = vmatpush1.msra.mxu0 0.0
      %1594 = vmatprep.subr.mxu0 0.0
      %1595 = vmatpush1.msra.mxu0 0.0
      %1596 = vmatprep.subr.mxu0 0.0
      %1597 = vmatpush1.msra.mxu0 0.0
      %1598 = vmatprep.subr.mxu0 0.0
      %1599 = vmatpush1.msra.mxu0 0.0
      %1600 = vmatprep.subr.mxu0 0.0
      %1601 = vmatpush1.msra.mxu0 0.0
      %1602 = vmatprep.subr.mxu0 0.0
      %1603 = vmatpush1.msra.mxu0 0.0
      %1604 = vmatprep.subr.mxu0 0.0
      %1605 = vmatpush1.msra.mxu0 0.0
      %1606 = vmatprep.subr.mxu0 0.0
      %1607 = vmatpush1.msra.mxu0 0.0
      %1608 = vmatprep.subr.mxu0 0.0
      %1609 = vmatpush1.msra.mxu0 0.0
      %1610 = vmatprep.mubr.f32.mxu0 0.0
      %1611 = vmatmul.mubr.f32.gmra.mrb[0].mxu0 %v1544
      %v1612 = vpop.f32.mrb[0].mxu0
      %v1613 = vadd.f32 0.0, %v1612
      %v1614 = vpop.f32.mrb[0].mxu0
      %v1615 = vadd.f32 0.0, %v1614
      %1616 = vdwg.mxu0
      %v1617 = vld [vmem:[%s8] sm:$0xf]
      %1619 = vset.pattern.permute.xlu0 0
      %1620 = vperm.xlu0 %1619, %v1617
      %v1621 = vpop.permute.xlu0 %1620
      %v1623 = vmul.f32 %v1613, %v1621
      %v1624 = vmul.f32 %v1615, %v1621
      %1625 = vset.pattern.permute.xlu0 1
      %1626 = vperm.xlu0 %1625, %v1617
      %v1627 = vpop.permute.xlu0 %1626
      %v1629 = vadd.f32 %v1623, %v1627
      %v1630 = vadd.f32 %v1624, %v1627
      %v1631 = vmax.f32 %v1629, 0.0
      %v1632 = vmax.f32 %v1630, 0.0
      %v1635 = vcombine.low %v1631, %v1632
      %1637 = vst [vmem:[%s332] sm:$0xff] %v1635
      %p1638 = scmp.lt.s32.totalorder %s20, 1
      %s1639 = scalar_select %p1638, %s20, 1
      %s1640 = smul.addr %s1639, 2
      %s1641 = smul.addr %s1640, 4
      %s1642 = scalar_lea.vmem %s9, %s1641
      // Predicated region
      $region57: #{_lambda_.6} parent=55 // pred_check
        %p1643 = pneg %p232
      $region58: #{_lambda_.6} parent=55 // pred_check_branch
        %1645 = sbr.rel (%p1643) target = $region60
      $region59: #{_lambda_.6} parent=55 // pred_region
        _
      $region60: #{_lambda_.6} parent=55 // pred_fallthru
        _
    $region56: #{_lambda_.6} parent=5 // pred_fallthru
      _
    %p1646 = scmp.le.s32.totalorder 2, %s15
    // Predicated region
    $region61: #{_lambda_.6} parent=5 // pred_check
      %p1647 = pneg %p1646
    $region62: #{_lambda_.6} parent=5 // pred_check_branch
      %1649 = sbr.rel (%p1647) target = $region64
    $region63: #{_lambda_.6} parent=5 // pred_region
      %s1650 = ssub.s32 %s15, 2
      // Predicated region
      $region65: #{_lambda_.6} parent=63 // pred_check
        %p1651 = pneg %p238
      $region66: #{_lambda_.6} parent=63 // pred_check_branch
        %1653 = sbr.rel (%p1651) target = $region68
      $region67: #{_lambda_.6} parent=63 // pred_region
        %p1654 = scmp.lt.s32.totalorder %s21, 1
        %s1655 = scalar_select %p1654, %s21, 1
        %s1656 = smul.addr %s1655, 2
        %s1657 = smul.addr %s1656, 4
        %s1658 = scalar_lea.vmem %s9, %s1657
      $region68: #{_lambda_.6} parent=63 // pred_fallthru
        _
    $region64: #{_lambda_.6} parent=5 // pred_fallthru
      _
  $region6: #{_lambda_.6} parent=0 // loop_footer
    %s19 = sadd.s32 1, %s15
  $region7: #{_lambda_.6} parent=0 // loop_footer_branch
    %14 = sbr.rel target = $region3
  $region8: #{_lambda_.6} parent=0 // loop_exit
    _

</llo_original>
